<compile_context>
chip_gen: v7x
topology: tpu7x:2x2x1
jax: 0.10.0
libtpu: 0.0.40
codegen_flags: <defaults>
</compile_context>

<pallas_src>
import functools

import jax
import jax.numpy as jnp
import numpy as np
from jax import lax
from jax.experimental import pallas as pl
from jax.experimental.pallas import tpu as pltpu

LANE = 128
SUBLANE = 8
UNROLL = 8            # manual unroll width for long time blocks
FULL_UNROLL_MAX = 32  # fully unroll the time loop up to this many steps


def _round_up(x, m):
    return (x + m - 1) // m * m


def _cdiv(a, b):
    return -(-a // b)


def _vmem_capacity_bytes():
    try:
        return int(pltpu.get_tpu_info().vmem_capacity_bytes)
    except Exception:
        return 64 << 20  # conservative (v7x-sized) fallback


# ----------------------------------------------------------------------------
# Fused kernel: every LSTM layer + final Linear over one block of t_blk steps.
#   x_ref     : (rows, Dp)        bf16   rows = t_blk * Bp, time-major flat [t*Bp + b]
#   w0ihT_ref : (Dp, 4Hp)         bf16   layer-0 input weights
#   wihT_ref  : (L-1, Hp, 4Hp)    bf16   input weights of layers 1..L-1 (only if L > 1)
#   whhT_ref  : (L, Hp, 4Hp)      bf16
#   b_ref     : (L, 1, 4Hp)       f32    b_ih + b_hh, gate-padded
#   wfcT_ref  : (Hp, Ep)          bf16
#   bfc_ref   : (1, Ep)           f32
#   out_ref   : (rows, Ep)        f32    lane-dense fused-FC output
# ----------------------------------------------------------------------------
def _fused_lstm_kernel(x_ref, w0ihT_ref, *rest, num_layers, t_blk):
    if num_layers > 1:
        (wihT_ref, whhT_ref, b_ref, wfcT_ref, bfc_ref,
         out_ref, h_sc, c_sc, xwb_sc, act_sc) = rest
    else:
        (whhT_ref, b_ref, wfcT_ref, bfc_ref,
         out_ref, h_sc, c_sc, xwb_sc, act_sc) = rest
        wihT_ref = None

    _, Bp, Hp = h_sc.shape

    # Reset the carried recurrent state at the first time block.
    @pl.when(pl.program_id(0) == 0)
    def _():
        h_sc[...] = jnp.zeros_like(h_sc)
        c_sc[...] = jnp.zeros_like(c_sc)

    for l in range(num_layers):
        # x-path for the whole block: one large MXU matmul, bias folded in once.
        src = x_ref[...] if l == 0 else act_sc[...]
        wihT = w0ihT_ref[...] if l == 0 else wihT_ref[l - 1]
        xwb_sc[...] = (
            jnp.dot(src, wihT, preferred_element_type=jnp.float32) + b_ref[l]
        ).astype(xwb_sc.dtype)

        def step(s):
            row = s * Bp
            if not isinstance(row, int):
                row = pl.multiple_of(row, SUBLANE)  # Bp is a multiple of 8
            # Only this small recurrent matmul is on the serial critical path.
            gates = xwb_sc[pl.ds(row, Bp), :].astype(jnp.float32) + jnp.dot(
                h_sc[l], whhT_ref[l], preferred_element_type=jnp.float32)
            # PyTorch gate order: i, f, g, o. Hp is a multiple of 128 -> whole vregs.
            i_g = jax.nn.sigmoid(gates[:, 0 * Hp:1 * Hp])
            f_g = jax.nn.sigmoid(gates[:, 1 * Hp:2 * Hp])
            g_g = jnp.tanh(gates[:, 2 * Hp:3 * Hp])
            o_g = jax.nn.sigmoid(gates[:, 3 * Hp:4 * Hp])
            c_new = f_g * c_sc[l] + i_g * g_g
            h_new = o_g * jnp.tanh(c_new)
            c_sc[l] = c_new
            h_bf = h_new.astype(act_sc.dtype)
            h_sc[l] = h_bf
            act_sc[pl.ds(row, Bp), :] = h_bf    # next layer's / fused FC's input

        if t_blk <= FULL_UNROLL_MAX:
            for s in range(t_blk):
                step(s)
        else:
            n_main = t_blk // UNROLL

            def body(j, carry):
                for u in range(UNROLL):
                    step(j * UNROLL + u)
                return carry

            lax.fori_loop(0, n_main, body, 0)
            for s in range(n_main * UNROLL, t_blk):
                step(s)

    # Fused final Linear on the last layer's block activations (lane-dense output).
    y = jnp.dot(act_sc[...], wfcT_ref[...],
                preferred_element_type=jnp.float32) + bfc_ref[...]
    out_ref[...] = y.astype(out_ref.dtype)


# ----------------------------------------------------------------------------
# pallas_call wrapper
# ----------------------------------------------------------------------------
def _fused_forward(x2d, w0ihT, wihT, whhT, b, wfcT, bfc, *,
                   Bp, t_blk, num_layers, vmem_limit):
    rows_total, Dp = x2d.shape
    L, Hp, Hp4 = whhT.shape
    Ep = wfcT.shape[1]
    rows = t_blk * Bp
    nt = rows_total // rows

    in_specs = [
        pl.BlockSpec((rows, Dp), lambda t: (t, 0)),
        pl.BlockSpec((Dp, Hp4), lambda t: (0, 0)),
    ]
    args = [x2d, w0ihT]
    if num_layers > 1:
        in_specs.append(pl.BlockSpec((L - 1, Hp, Hp4), lambda t: (0, 0, 0)))
        args.append(wihT)
    in_specs += [
        pl.BlockSpec((L, Hp, Hp4), lambda t: (0, 0, 0)),
        pl.BlockSpec((L, 1, Hp4), lambda t: (0, 0, 0)),
        pl.BlockSpec((Hp, Ep), lambda t: (0, 0)),
        pl.BlockSpec((1, Ep), lambda t: (0, 0)),
    ]
    args += [whhT, b, wfcT, bfc]

    return pl.pallas_call(
        functools.partial(_fused_lstm_kernel, num_layers=num_layers, t_blk=t_blk),
        out_shape=jax.ShapeDtypeStruct((rows_total, Ep), jnp.float32),
        grid_spec=pltpu.PrefetchScalarGridSpec(
            num_scalar_prefetch=0,
            grid=(nt,),
            in_specs=in_specs,
            out_specs=pl.BlockSpec((rows, Ep), lambda t: (t, 0)),
            scratch_shapes=[
                pltpu.VMEM((L, Bp, Hp), jnp.bfloat16),   # carried h per layer
                pltpu.VMEM((L, Bp, Hp), jnp.float32),    # carried c per layer
                pltpu.VMEM((rows, Hp4), jnp.bfloat16),   # x @ W_ih^T + b for the block
                pltpu.VMEM((rows, Hp), jnp.bfloat16),    # layer-output slab for the block
            ],
        ),
        compiler_params=pltpu.CompilerParams(
            dimension_semantics=("arbitrary",),          # time recurrence is sequential
            vmem_limit_bytes=vmem_limit,
        ),
    )(*args)


# ----------------------------------------------------------------------------
# Weight preparation: gate-pad hidden dim to Hp (multiple of 128), fuse biases,
# transpose for (x @ W^T) layout, cast matmul operands to bf16. Padded hidden
# units get zero weights/bias -> they stay exactly 0 forever.
# ----------------------------------------------------------------------------
def _prep_lstm_weights(layers, E, H, Hp, Dp):
    def gate_pad(w):  # (4H, ...) -> (4Hp, ...), padding each gate block separately
        w4 = w.reshape((4, H) + w.shape[1:])
        pad = [(0, 0), (0, Hp - H)] + [(0, 0)] * (w.ndim - 1)
        return jnp.pad(w4, pad).reshape((4 * Hp,) + w.shape[1:])

    w0 = jnp.pad(gate_pad(layers[0]["w_ih"]), ((0, 0), (0, Dp - E)))   # (4Hp, Dp)
    w0ihT = jnp.transpose(w0).astype(jnp.bfloat16)                     # (Dp, 4Hp)

    wih_rest, whh_all, b_all = [], [], []
    for li, layer in enumerate(layers):
        whh = jnp.pad(gate_pad(layer["w_hh"]), ((0, 0), (0, Hp - H)))  # (4Hp, Hp)
        whh_all.append(jnp.transpose(whh))                             # (Hp, 4Hp)
        b_all.append(gate_pad(layer["b_ih"] + layer["b_hh"]).reshape(1, 4 * Hp))
        if li > 0:
            wih = jnp.pad(gate_pad(layer["w_ih"]), ((0, 0), (0, Hp - H)))
            wih_rest.append(jnp.transpose(wih))                        # (Hp, 4Hp)

    whhT = jnp.stack(whh_all).astype(jnp.bfloat16)                     # (L, Hp, 4Hp)
    b = jnp.stack(b_all).astype(jnp.float32)                           # (L, 1, 4Hp)
    wihT = jnp.stack(wih_rest).astype(jnp.bfloat16) if wih_rest else None
    return w0ihT, wihT, whhT, b


def _choose_time_block(T, Bp, Dp, Hp, Ep, budget_bytes):
    # VMEM bytes that scale with one time step of a block:
    per_t = Bp * (
        2 * 2 * Dp        # x block, bf16, double-buffered by the pipeline
        + 2 * 4 * Hp      # x-path scratch, bf16
        + 2 * Hp          # activation slab, bf16
        + 2 * 4 * Ep)     # output block, f32, double-buffered
    max_t = max(1, budget_bytes // per_t)
    max_t = min(max_t, T, 2048)
    n_blocks = _cdiv(T, max_t)
    t_blk = _cdiv(T, n_blocks)        # near-divisor of T -> padding < n_blocks steps
    return t_blk, n_blocks


@jax.jit
def lstm_preference_model(x, params):
    """Forward pass of LSTMPreferenceModel. x: (B, T, E) batch_first -> (B, T, E)."""
    B, T, E = x.shape
    layers = params["lstm"]
    L = len(layers)
    H = layers[0]["w_hh"].shape[1]
    Hp = _round_up(H, LANE)
    Dp = _round_up(E, LANE)           # padded layer-0 input width
    Ep = _round_up(E, LANE)           # padded (lane-dense) FC output width
    Bp = _round_up(B, SUBLANE)        # padded batch -> 8-aligned per-step slices

    # VMEM-aware time blocking: weights + state are resident, the rest scales with t_blk.
    vmem_cap = _vmem_capacity_bytes()
    w_bytes = 2 * (2 * (Dp * 4 * Hp + max(L - 1, 0) * Hp * 4 * Hp
                        + L * Hp * 4 * Hp + Hp * Ep)
                   + 4 * (L * 4 * Hp + Ep))        # double-buffered weights + biases
    state_bytes = L * Bp * Hp * (2 + 4)
    budget = max(min(vmem_cap // 2, 64 << 20) - w_bytes - state_bytes, 1 << 12)
    t_blk, n_blocks = _choose_time_block(T, Bp, Dp, Hp, Ep, budget)
    T_pad = t_blk * n_blocks
    vmem_limit = int(min(vmem_cap * 3 // 4, 100 << 20))

    w0ihT, wihT, whhT, b = _prep_lstm_weights(layers, E, H, Hp, Dp)
    wfcT = jnp.transpose(
        jnp.pad(params["fc_w"], ((0, Ep - E), (0, Hp - H)))).astype(jnp.bfloat16)
    bfc = jnp.pad(params["fc_b"], (0, Ep - E)).reshape(1, Ep).astype(jnp.float32)

    # Time-major, batch/feature zero-padded, flattened to (T_pad*Bp, Dp). The LSTM is
    # causal and padded rows/columns are sliced off below, so padding is harmless.
    x_tm = jnp.transpose(x, (1, 0, 2))
    x_tm = jnp.pad(x_tm, ((0, T_pad - T), (0, Bp - B), (0, Dp - E)))
    x2d = x_tm.reshape(T_pad * Bp, Dp).astype(jnp.bfloat16)

    out2d = _fused_forward(x2d, w0ihT, wihT, whhT, b, wfcT, bfc,
                           Bp=Bp, t_blk=t_blk, num_layers=L, vmem_limit=vmem_limit)
    out = out2d.reshape(T_pad, Bp, Ep)[:T, :B, :E]
    return jnp.transpose(out, (1, 0, 2))        # back to (B, T, E)


# ----------------------------------------------------------------------------
# Deterministic parameter init (PyTorch-style uniform(-1/sqrt(H), 1/sqrt(H)))
# ----------------------------------------------------------------------------
def init_params(key, embedding_dim, hidden_dim, num_layers):
    bound = 1.0 / np.sqrt(hidden_dim)
    layers = []
    for l in range(num_layers):
        d_in = embedding_dim if l == 0 else hidden_dim
        key, k1, k2, k3, k4 = jax.random.split(key, 5)
        layers.append({
            "w_ih": jax.random.uniform(k1, (4 * hidden_dim, d_in), jnp.float32, -bound, bound),
            "w_hh": jax.random.uniform(k2, (4 * hidden_dim, hidden_dim), jnp.float32, -bound, bound),
            "b_ih": jax.random.uniform(k3, (4 * hidden_dim,), jnp.float32, -bound, bound),
            "b_hh": jax.random.uniform(k4, (4 * hidden_dim,), jnp.float32, -bound, bound),
        })
    key, k1, k2 = jax.random.split(key, 3)
    fb = 1.0 / np.sqrt(hidden_dim)
    return {
        "lstm": layers,
        "fc_w": jax.random.uniform(k1, (embedding_dim, hidden_dim), jnp.float32, -fb, fb),
        "fc_b": jax.random.uniform(k2, (embedding_dim,), jnp.float32, -fb, fb),
    }


# ----------------------------------------------------------------------------
# Pure-JAX f32 reference (matches torch.nn.LSTM semantics) for correctness check
# ----------------------------------------------------------------------------
def reference_forward(x, params):
    B, T, E = x.shape
    h_seq = jnp.transpose(x, (1, 0, 2)).astype(jnp.float32)  # (T, B, E)
    for layer in params["lstm"]:
        H = layer["w_hh"].shape[1]
        wihT = layer["w_ih"].T
        whhT = layer["w_hh"].T
        b = layer["b_ih"] + layer["b_hh"]

        def step(carry, x_t):
            h, c = carry
            gates = x_t @ wihT + h @ whhT + b
            i_g = jax.nn.sigmoid(gates[:, 0 * H:1 * H])
            f_g = jax.nn.sigmoid(gates[:, 1 * H:2 * H])
            g_g = jnp.tanh(gates[:, 2 * H:3 * H])
            o_g = jax.nn.sigmoid(gates[:, 3 * H:4 * H])
            c = f_g * c + i_g * g_g
            h = o_g * jnp.tanh(c)
            return (h, c), h

        init = (jnp.zeros((B, H), jnp.float32), jnp.zeros((B, H), jnp.float32))
        _, h_seq = lax.scan(step, init, h_seq)
    out = h_seq @ params["fc_w"].T + params["fc_b"]  # (T, B, E)
    return jnp.transpose(out, (1, 0, 2))


if __name__ == "__main__":
    B, T = 2, 8
    embedding_dim, hidden_dim, num_layers = 16, 32, 2

    key = jax.random.PRNGKey(0)
    key, pkey, xkey = jax.random.split(key, 3)
    params = init_params(pkey, embedding_dim, hidden_dim, num_layers)
    x = jax.random.normal(xkey, (B, T, embedding_dim), jnp.float32)

    out = jax.block_until_ready(lstm_preference_model(x, params))
    ref = jax.block_until_ready(reference_forward(x, params))

    # bf16 MXU operands / bf16 activation scratch (f32 accumulation & gate math)
    # -> loosened tolerance.
    np.testing.assert_allclose(np.asarray(out), np.asarray(ref), rtol=5e-2, atol=5e-2)
    assert out.shape == (B, T, embedding_dim)

    print("KERNEL_OK")
</pallas_src>

<mosaic_0001>
module attributes {stable_mosaic.version = 11 : i64} {
  func.func @_fused_lstm_kernel(%arg0: i32, %arg1: memref<64x128xbf16, #tpu.memory_space<vmem>>, %arg2: memref<128x512xbf16, #tpu.memory_space<vmem>>, %arg3: memref<1x128x512xbf16, #tpu.memory_space<vmem>>, %arg4: memref<2x128x512xbf16, #tpu.memory_space<vmem>>, %arg5: memref<2x1x512xf32, #tpu.memory_space<vmem>>, %arg6: memref<128x128xbf16, #tpu.memory_space<vmem>>, %arg7: memref<1x128xf32, #tpu.memory_space<vmem>>, %arg8: memref<64x128xf32, #tpu.memory_space<vmem>>, %arg9: memref<2x8x128xbf16, #tpu.memory_space<vmem>>, %arg10: memref<2x8x128xf32, #tpu.memory_space<vmem>>, %arg11: memref<64x512xbf16, #tpu.memory_space<vmem>>, %arg12: memref<64x128xbf16, #tpu.memory_space<vmem>>) attributes {dimension_semantics = [#tpu.dimension_semantics<arbitrary>], iteration_bounds = array<i64: 1>, scalar_prefetch = 0 : i64, scratch_operands = 4 : i64, tpu.core_type = #tpu.core_type<tc>, window_params = [{transform_indices = @transform_0, window_bounds = array<i64: 64, 128>}, {pipeline_mode = #tpu.pipeline_mode<synchronous>, transform_indices = @transform_1, window_bounds = array<i64: 128, 512>}, {pipeline_mode = #tpu.pipeline_mode<synchronous>, transform_indices = @transform_2, window_bounds = array<i64: 1, 128, 512>}, {pipeline_mode = #tpu.pipeline_mode<synchronous>, transform_indices = @transform_3, window_bounds = array<i64: 2, 128, 512>}, {pipeline_mode = #tpu.pipeline_mode<synchronous>, transform_indices = @transform_4, window_bounds = array<i64: 2, 1, 512>}, {pipeline_mode = #tpu.pipeline_mode<synchronous>, transform_indices = @transform_5, window_bounds = array<i64: 128, 128>}, {pipeline_mode = #tpu.pipeline_mode<synchronous>, transform_indices = @transform_6, window_bounds = array<i64: 1, 128>}, {transform_indices = @transform_7, window_bounds = array<i64: 64, 128>}]} {
    %c0_i32 = arith.constant 0 : i32
    %0 = arith.cmpi eq, %arg0, %c0_i32 : i32
    %1 = arith.extui %0 : i1 to i32
    %c0_i32_0 = arith.constant 0 : i32
    %2 = arith.cmpi ne, %1, %c0_i32_0 : i32
    scf.if %2 {
      %cst_389 = arith.constant 0.000000e+00 : bf16
      %717 = vector.broadcast %cst_389 : bf16 to vector<2x8x128xbf16>
      %c0_390 = arith.constant 0 : index
      %c0_391 = arith.constant 0 : index
      %c0_392 = arith.constant 0 : index
      %718 = vector.load %arg9[%c0_390, %c0_391, %c0_392] : memref<2x8x128xbf16, #tpu.memory_space<vmem>>, vector<2x8x128xbf16>
      tpu.vector_store %arg9[%c0_390, %c0_391, %c0_392], %717 {strides = array<i32>} : memref<2x8x128xbf16, #tpu.memory_space<vmem>>, vector<2x8x128xbf16>,
      %cst_393 = arith.constant 0.000000e+00 : f32
      %719 = vector.broadcast %cst_393 : f32 to vector<2x8x128xf32>
      %c0_394 = arith.constant 0 : index
      %c0_395 = arith.constant 0 : index
      %c0_396 = arith.constant 0 : index
      %720 = vector.load %arg10[%c0_394, %c0_395, %c0_396] : memref<2x8x128xf32, #tpu.memory_space<vmem>>, vector<2x8x128xf32>
      tpu.vector_store %arg10[%c0_394, %c0_395, %c0_396], %719 {strides = array<i32>} : memref<2x8x128xf32, #tpu.memory_space<vmem>>, vector<2x8x128xf32>,
    } else {
    }
    %c0 = arith.constant 0 : index
    %c0_1 = arith.constant 0 : index
    %3 = vector.load %arg1[%c0, %c0_1] : memref<64x128xbf16, #tpu.memory_space<vmem>>, vector<64x128xbf16>
    %c0_2 = arith.constant 0 : index
    %c0_3 = arith.constant 0 : index
    %4 = vector.load %arg2[%c0_2, %c0_3] : memref<128x512xbf16, #tpu.memory_space<vmem>>, vector<128x512xbf16>
    %cst = arith.constant dense<0.000000e+00> : vector<64x512xf32>
    %5 = tpu.matmul %3, %4, %cst {dimension_numbers = #tpu.dot_dimension_numbers<[1], [0], [0], [1], [0, 0, 1, 1], [], []>} : vector<64x128xbf16>, vector<128x512xbf16>, vector<64x512xf32> -> vector<64x512xf32>
    %c0_4 = arith.constant 0 : index
    %c0_5 = arith.constant 0 : index
    %c0_6 = arith.constant 0 : index
    %6 = vector.load %arg5[%c0_4, %c0_5, %c0_6] : memref<2x1x512xf32, #tpu.memory_space<vmem>>, vector<1x1x512xf32>
    %7 = vector.shape_cast %6 : vector<1x1x512xf32> to vector<1x512xf32>
    %8 = vector.broadcast %7 : vector<1x512xf32> to vector<64x512xf32>
    %9 = arith.addf %5, %8 : vector<64x512xf32>
    %10 = arith.truncf %9 : vector<64x512xf32> to vector<64x512xbf16>
    %c0_7 = arith.constant 0 : index
    %c0_8 = arith.constant 0 : index
    %11 = vector.load %arg11[%c0_7, %c0_8] : memref<64x512xbf16, #tpu.memory_space<vmem>>, vector<64x512xbf16>
    tpu.vector_store %arg11[%c0_7, %c0_8], %10 {strides = array<i32>} : memref<64x512xbf16, #tpu.memory_space<vmem>>, vector<64x512xbf16>,
    %c0_9 = arith.constant 0 : index
    %c0_10 = arith.constant 0 : index
    %12 = vector.load %arg11[%c0_9, %c0_10] : memref<64x512xbf16, #tpu.memory_space<vmem>>, vector<8x512xbf16>
    %13 = arith.extf %12 : vector<8x512xbf16> to vector<8x512xf32>
    %c0_11 = arith.constant 0 : index
    %c0_12 = arith.constant 0 : index
    %c0_13 = arith.constant 0 : index
    %14 = vector.load %arg9[%c0_11, %c0_12, %c0_13] : memref<2x8x128xbf16, #tpu.memory_space<vmem>>, vector<1x8x128xbf16>
    %15 = vector.shape_cast %14 : vector<1x8x128xbf16> to vector<8x128xbf16>
    %c0_14 = arith.constant 0 : index
    %c0_15 = arith.constant 0 : index
    %c0_16 = arith.constant 0 : index
    %16 = vector.load %arg4[%c0_14, %c0_15, %c0_16] : memref<2x128x512xbf16, #tpu.memory_space<vmem>>, vector<1x128x512xbf16>
    %17 = vector.shape_cast %16 : vector<1x128x512xbf16> to vector<128x512xbf16>
    %cst_17 = arith.constant dense<0.000000e+00> : vector<8x512xf32>
    %18 = tpu.matmul %15, %17, %cst_17 {dimension_numbers = #tpu.dot_dimension_numbers<[1], [0], [0], [1], [0, 0, 1, 1], [], []>} : vector<8x128xbf16>, vector<128x512xbf16>, vector<8x512xf32> -> vector<8x512xf32>
    %19 = arith.addf %13, %18 : vector<8x512xf32>
    %20 = vector.extract_strided_slice %19 {offsets = [0, 0], sizes = [8, 128], strides = [1, 1]} : vector<8x512xf32> to vector<8x128xf32>
    %21 = arith.negf %20 : vector<8x128xf32>
    %22 = math.exp %21 : vector<8x128xf32>
    %cst_18 = arith.constant 1.000000e+00 : f32
    %23 = vector.broadcast %cst_18 : f32 to vector<8x128xf32>
    %24 = arith.addf %23, %22 : vector<8x128xf32>
    %25 = arith.divf %23, %24 : vector<8x128xf32>
    %26 = vector.extract_strided_slice %19 {offsets = [0, 128], sizes = [8, 128], strides = [1, 1]} : vector<8x512xf32> to vector<8x128xf32>
    %27 = arith.negf %26 : vector<8x128xf32>
    %28 = math.exp %27 : vector<8x128xf32>
    %cst_19 = arith.constant 1.000000e+00 : f32
    %29 = vector.broadcast %cst_19 : f32 to vector<8x128xf32>
    %30 = arith.addf %29, %28 : vector<8x128xf32>
    %31 = arith.divf %29, %30 : vector<8x128xf32>
    %32 = vector.extract_strided_slice %19 {offsets = [0, 256], sizes = [8, 128], strides = [1, 1]} : vector<8x512xf32> to vector<8x128xf32>
    %33 = math.tanh %32 : vector<8x128xf32>
    %34 = vector.extract_strided_slice %19 {offsets = [0, 384], sizes = [8, 128], strides = [1, 1]} : vector<8x512xf32> to vector<8x128xf32>
    %35 = arith.negf %34 : vector<8x128xf32>
    %36 = math.exp %35 : vector<8x128xf32>
    %cst_20 = arith.constant 1.000000e+00 : f32
    %37 = vector.broadcast %cst_20 : f32 to vector<8x128xf32>
    %38 = arith.addf %37, %36 : vector<8x128xf32>
    %39 = arith.divf %37, %38 : vector<8x128xf32>
    %c0_21 = arith.constant 0 : index
    %c0_22 = arith.constant 0 : index
    %c0_23 = arith.constant 0 : index
    %40 = vector.load %arg10[%c0_21, %c0_22, %c0_23] : memref<2x8x128xf32, #tpu.memory_space<vmem>>, vector<1x8x128xf32>
    %41 = vector.shape_cast %40 : vector<1x8x128xf32> to vector<8x128xf32>
    %42 = arith.mulf %31, %41 : vector<8x128xf32>
    %43 = arith.mulf %25, %33 : vector<8x128xf32>
    %44 = arith.addf %42, %43 : vector<8x128xf32>
    %45 = math.tanh %44 : vector<8x128xf32>
    %46 = arith.mulf %39, %45 : vector<8x128xf32>
    %c0_24 = arith.constant 0 : index
    %c0_25 = arith.constant 0 : index
    %c0_26 = arith.constant 0 : index
    %47 = vector.load %arg10[%c0_24, %c0_25, %c0_26] : memref<2x8x128xf32, #tpu.memory_space<vmem>>, vector<1x8x128xf32>
    %48 = vector.shape_cast %47 : vector<1x8x128xf32> to vector<8x128xf32>
    %49 = vector.shape_cast %44 : vector<8x128xf32> to vector<1x8x128xf32>
    tpu.vector_store %arg10[%c0_24, %c0_25, %c0_26], %49 {strides = array<i32>} : memref<2x8x128xf32, #tpu.memory_space<vmem>>, vector<1x8x128xf32>,
    %50 = arith.truncf %46 : vector<8x128xf32> to vector<8x128xbf16>
    %c0_27 = arith.constant 0 : index
    %c0_28 = arith.constant 0 : index
    %c0_29 = arith.constant 0 : index
    %51 = vector.load %arg9[%c0_27, %c0_28, %c0_29] : memref<2x8x128xbf16, #tpu.memory_space<vmem>>, vector<1x8x128xbf16>
    %52 = vector.shape_cast %51 : vector<1x8x128xbf16> to vector<8x128xbf16>
    %53 = vector.shape_cast %50 : vector<8x128xbf16> to vector<1x8x128xbf16>
    tpu.vector_store %arg9[%c0_27, %c0_28, %c0_29], %53 {strides = array<i32>} : memref<2x8x128xbf16, #tpu.memory_space<vmem>>, vector<1x8x128xbf16>,
    %c0_30 = arith.constant 0 : index
    %c0_31 = arith.constant 0 : index
    %54 = vector.load %arg12[%c0_30, %c0_31] : memref<64x128xbf16, #tpu.memory_space<vmem>>, vector<8x128xbf16>
    tpu.vector_store %arg12[%c0_30, %c0_31], %50 {strides = array<i32>} : memref<64x128xbf16, #tpu.memory_space<vmem>>, vector<8x128xbf16>,
    %c8 = arith.constant 8 : index
    %c0_32 = arith.constant 0 : index
    %55 = vector.load %arg11[%c8, %c0_32] : memref<64x512xbf16, #tpu.memory_space<vmem>>, vector<8x512xbf16>
    %56 = arith.extf %55 : vector<8x512xbf16> to vector<8x512xf32>
    %c0_33 = arith.constant 0 : index
    %c0_34 = arith.constant 0 : index
    %c0_35 = arith.constant 0 : index
    %57 = vector.load %arg9[%c0_33, %c0_34, %c0_35] : memref<2x8x128xbf16, #tpu.memory_space<vmem>>, vector<1x8x128xbf16>
    %58 = vector.shape_cast %57 : vector<1x8x128xbf16> to vector<8x128xbf16>
    %c0_36 = arith.constant 0 : index
    %c0_37 = arith.constant 0 : index
    %c0_38 = arith.constant 0 : index
    %59 = vector.load %arg4[%c0_36, %c0_37, %c0_38] : memref<2x128x512xbf16, #tpu.memory_space<vmem>>, vector<1x128x512xbf16>
    %60 = vector.shape_cast %59 : vector<1x128x512xbf16> to vector<128x512xbf16>
    %cst_39 = arith.constant dense<0.000000e+00> : vector<8x512xf32>
    %61 = tpu.matmul %58, %60, %cst_39 {dimension_numbers = #tpu.dot_dimension_numbers<[1], [0], [0], [1], [0, 0, 1, 1], [], []>} : vector<8x128xbf16>, vector<128x512xbf16>, vector<8x512xf32> -> vector<8x512xf32>
    %62 = arith.addf %56, %61 : vector<8x512xf32>
    %63 = vector.extract_strided_slice %62 {offsets = [0, 0], sizes = [8, 128], strides = [1, 1]} : vector<8x512xf32> to vector<8x128xf32>
    %64 = arith.negf %63 : vector<8x128xf32>
    %65 = math.exp %64 : vector<8x128xf32>
    %cst_40 = arith.constant 1.000000e+00 : f32
    %66 = vector.broadcast %cst_40 : f32 to vector<8x128xf32>
    %67 = arith.addf %66, %65 : vector<8x128xf32>
    %68 = arith.divf %66, %67 : vector<8x128xf32>
    %69 = vector.extract_strided_slice %62 {offsets = [0, 128], sizes = [8, 128], strides = [1, 1]} : vector<8x512xf32> to vector<8x128xf32>
    %70 = arith.negf %69 : vector<8x128xf32>
    %71 = math.exp %70 : vector<8x128xf32>
    %cst_41 = arith.constant 1.000000e+00 : f32
    %72 = vector.broadcast %cst_41 : f32 to vector<8x128xf32>
    %73 = arith.addf %72, %71 : vector<8x128xf32>
    %74 = arith.divf %72, %73 : vector<8x128xf32>
    %75 = vector.extract_strided_slice %62 {offsets = [0, 256], sizes = [8, 128], strides = [1, 1]} : vector<8x512xf32> to vector<8x128xf32>
    %76 = math.tanh %75 : vector<8x128xf32>
    %77 = vector.extract_strided_slice %62 {offsets = [0, 384], sizes = [8, 128], strides = [1, 1]} : vector<8x512xf32> to vector<8x128xf32>
    %78 = arith.negf %77 : vector<8x128xf32>
    %79 = math.exp %78 : vector<8x128xf32>
    %cst_42 = arith.constant 1.000000e+00 : f32
    %80 = vector.broadcast %cst_42 : f32 to vector<8x128xf32>
    %81 = arith.addf %80, %79 : vector<8x128xf32>
    %82 = arith.divf %80, %81 : vector<8x128xf32>
    %c0_43 = arith.constant 0 : index
    %c0_44 = arith.constant 0 : index
    %c0_45 = arith.constant 0 : index
    %83 = vector.load %arg10[%c0_43, %c0_44, %c0_45] : memref<2x8x128xf32, #tpu.memory_space<vmem>>, vector<1x8x128xf32>
    %84 = vector.shape_cast %83 : vector<1x8x128xf32> to vector<8x128xf32>
    %85 = arith.mulf %74, %84 : vector<8x128xf32>
    %86 = arith.mulf %68, %76 : vector<8x128xf32>
    %87 = arith.addf %85, %86 : vector<8x128xf32>
    %88 = math.tanh %87 : vector<8x128xf32>
    %89 = arith.mulf %82, %88 : vector<8x128xf32>
    %c0_46 = arith.constant 0 : index
    %c0_47 = arith.constant 0 : index
    %c0_48 = arith.constant 0 : index
    %90 = vector.load %arg10[%c0_46, %c0_47, %c0_48] : memref<2x8x128xf32, #tpu.memory_space<vmem>>, vector<1x8x128xf32>
    %91 = vector.shape_cast %90 : vector<1x8x128xf32> to vector<8x128xf32>
    %92 = vector.shape_cast %87 : vector<8x128xf32> to vector<1x8x128xf32>
    tpu.vector_store %arg10[%c0_46, %c0_47, %c0_48], %92 {strides = array<i32>} : memref<2x8x128xf32, #tpu.memory_space<vmem>>, vector<1x8x128xf32>,
    %93 = arith.truncf %89 : vector<8x128xf32> to vector<8x128xbf16>
    %c0_49 = arith.constant 0 : index
    %c0_50 = arith.constant 0 : index
    %c0_51 = arith.constant 0 : index
    %94 = vector.load %arg9[%c0_49, %c0_50, %c0_51] : memref<2x8x128xbf16, #tpu.memory_space<vmem>>, vector<1x8x128xbf16>
    %95 = vector.shape_cast %94 : vector<1x8x128xbf16> to vector<8x128xbf16>
    %96 = vector.shape_cast %93 : vector<8x128xbf16> to vector<1x8x128xbf16>
    tpu.vector_store %arg9[%c0_49, %c0_50, %c0_51], %96 {strides = array<i32>} : memref<2x8x128xbf16, #tpu.memory_space<vmem>>, vector<1x8x128xbf16>,
    %c8_52 = arith.constant 8 : index
    %c0_53 = arith.constant 0 : index
    %97 = vector.load %arg12[%c8_52, %c0_53] : memref<64x128xbf16, #tpu.memory_space<vmem>>, vector<8x128xbf16>
    tpu.vector_store %arg12[%c8_52, %c0_53], %93 {strides = array<i32>} : memref<64x128xbf16, #tpu.memory_space<vmem>>, vector<8x128xbf16>,
    %c16 = arith.constant 16 : index
    %c0_54 = arith.constant 0 : index
    %98 = vector.load %arg11[%c16, %c0_54] : memref<64x512xbf16, #tpu.memory_space<vmem>>, vector<8x512xbf16>
    %99 = arith.extf %98 : vector<8x512xbf16> to vector<8x512xf32>
    %c0_55 = arith.constant 0 : index
    %c0_56 = arith.constant 0 : index
    %c0_57 = arith.constant 0 : index
    %100 = vector.load %arg9[%c0_55, %c0_56, %c0_57] : memref<2x8x128xbf16, #tpu.memory_space<vmem>>, vector<1x8x128xbf16>
    %101 = vector.shape_cast %100 : vector<1x8x128xbf16> to vector<8x128xbf16>
    %c0_58 = arith.constant 0 : index
    %c0_59 = arith.constant 0 : index
    %c0_60 = arith.constant 0 : index
    %102 = vector.load %arg4[%c0_58, %c0_59, %c0_60] : memref<2x128x512xbf16, #tpu.memory_space<vmem>>, vector<1x128x512xbf16>
    %103 = vector.shape_cast %102 : vector<1x128x512xbf16> to vector<128x512xbf16>
    %cst_61 = arith.constant dense<0.000000e+00> : vector<8x512xf32>
    %104 = tpu.matmul %101, %103, %cst_61 {dimension_numbers = #tpu.dot_dimension_numbers<[1], [0], [0], [1], [0, 0, 1, 1], [], []>} : vector<8x128xbf16>, vector<128x512xbf16>, vector<8x512xf32> -> vector<8x512xf32>
    %105 = arith.addf %99, %104 : vector<8x512xf32>
    %106 = vector.extract_strided_slice %105 {offsets = [0, 0], sizes = [8, 128], strides = [1, 1]} : vector<8x512xf32> to vector<8x128xf32>
    %107 = arith.negf %106 : vector<8x128xf32>
    %108 = math.exp %107 : vector<8x128xf32>
    %cst_62 = arith.constant 1.000000e+00 : f32
    %109 = vector.broadcast %cst_62 : f32 to vector<8x128xf32>
    %110 = arith.addf %109, %108 : vector<8x128xf32>
    %111 = arith.divf %109, %110 : vector<8x128xf32>
    %112 = vector.extract_strided_slice %105 {offsets = [0, 128], sizes = [8, 128], strides = [1, 1]} : vector<8x512xf32> to vector<8x128xf32>
    %113 = arith.negf %112 : vector<8x128xf32>
    %114 = math.exp %113 : vector<8x128xf32>
    %cst_63 = arith.constant 1.000000e+00 : f32
    %115 = vector.broadcast %cst_63 : f32 to vector<8x128xf32>
    %116 = arith.addf %115, %114 : vector<8x128xf32>
    %117 = arith.divf %115, %116 : vector<8x128xf32>
    %118 = vector.extract_strided_slice %105 {offsets = [0, 256], sizes = [8, 128], strides = [1, 1]} : vector<8x512xf32> to vector<8x128xf32>
    %119 = math.tanh %118 : vector<8x128xf32>
    %120 = vector.extract_strided_slice %105 {offsets = [0, 384], sizes = [8, 128], strides = [1, 1]} : vector<8x512xf32> to vector<8x128xf32>
    %121 = arith.negf %120 : vector<8x128xf32>
    %122 = math.exp %121 : vector<8x128xf32>
    %cst_64 = arith.constant 1.000000e+00 : f32
    %123 = vector.broadcast %cst_64 : f32 to vector<8x128xf32>
    %124 = arith.addf %123, %122 : vector<8x128xf32>
    %125 = arith.divf %123, %124 : vector<8x128xf32>
    %c0_65 = arith.constant 0 : index
    %c0_66 = arith.constant 0 : index
    %c0_67 = arith.constant 0 : index
    %126 = vector.load %arg10[%c0_65, %c0_66, %c0_67] : memref<2x8x128xf32, #tpu.memory_space<vmem>>, vector<1x8x128xf32>
    %127 = vector.shape_cast %126 : vector<1x8x128xf32> to vector<8x128xf32>
    %128 = arith.mulf %117, %127 : vector<8x128xf32>
    %129 = arith.mulf %111, %119 : vector<8x128xf32>
    %130 = arith.addf %128, %129 : vector<8x128xf32>
    %131 = math.tanh %130 : vector<8x128xf32>
    %132 = arith.mulf %125, %131 : vector<8x128xf32>
    %c0_68 = arith.constant 0 : index
    %c0_69 = arith.constant 0 : index
    %c0_70 = arith.constant 0 : index
    %133 = vector.load %arg10[%c0_68, %c0_69, %c0_70] : memref<2x8x128xf32, #tpu.memory_space<vmem>>, vector<1x8x128xf32>
    %134 = vector.shape_cast %133 : vector<1x8x128xf32> to vector<8x128xf32>
    %135 = vector.shape_cast %130 : vector<8x128xf32> to vector<1x8x128xf32>
    tpu.vector_store %arg10[%c0_68, %c0_69, %c0_70], %135 {strides = array<i32>} : memref<2x8x128xf32, #tpu.memory_space<vmem>>, vector<1x8x128xf32>,
    %136 = arith.truncf %132 : vector<8x128xf32> to vector<8x128xbf16>
    %c0_71 = arith.constant 0 : index
    %c0_72 = arith.constant 0 : index
    %c0_73 = arith.constant 0 : index
    %137 = vector.load %arg9[%c0_71, %c0_72, %c0_73] : memref<2x8x128xbf16, #tpu.memory_space<vmem>>, vector<1x8x128xbf16>
    %138 = vector.shape_cast %137 : vector<1x8x128xbf16> to vector<8x128xbf16>
    %139 = vector.shape_cast %136 : vector<8x128xbf16> to vector<1x8x128xbf16>
    tpu.vector_store %arg9[%c0_71, %c0_72, %c0_73], %139 {strides = array<i32>} : memref<2x8x128xbf16, #tpu.memory_space<vmem>>, vector<1x8x128xbf16>,
    %c16_74 = arith.constant 16 : index
    %c0_75 = arith.constant 0 : index
    %140 = vector.load %arg12[%c16_74, %c0_75] : memref<64x128xbf16, #tpu.memory_space<vmem>>, vector<8x128xbf16>
    tpu.vector_store %arg12[%c16_74, %c0_75], %136 {strides = array<i32>} : memref<64x128xbf16, #tpu.memory_space<vmem>>, vector<8x128xbf16>,
    %c24 = arith.constant 24 : index
    %c0_76 = arith.constant 0 : index
    %141 = vector.load %arg11[%c24, %c0_76] : memref<64x512xbf16, #tpu.memory_space<vmem>>, vector<8x512xbf16>
    %142 = arith.extf %141 : vector<8x512xbf16> to vector<8x512xf32>
    %c0_77 = arith.constant 0 : index
    %c0_78 = arith.constant 0 : index
    %c0_79 = arith.constant 0 : index
    %143 = vector.load %arg9[%c0_77, %c0_78, %c0_79] : memref<2x8x128xbf16, #tpu.memory_space<vmem>>, vector<1x8x128xbf16>
    %144 = vector.shape_cast %143 : vector<1x8x128xbf16> to vector<8x128xbf16>
    %c0_80 = arith.constant 0 : index
    %c0_81 = arith.constant 0 : index
    %c0_82 = arith.constant 0 : index
    %145 = vector.load %arg4[%c0_80, %c0_81, %c0_82] : memref<2x128x512xbf16, #tpu.memory_space<vmem>>, vector<1x128x512xbf16>
    %146 = vector.shape_cast %145 : vector<1x128x512xbf16> to vector<128x512xbf16>
    %cst_83 = arith.constant dense<0.000000e+00> : vector<8x512xf32>
    %147 = tpu.matmul %144, %146, %cst_83 {dimension_numbers = #tpu.dot_dimension_numbers<[1], [0], [0], [1], [0, 0, 1, 1], [], []>} : vector<8x128xbf16>, vector<128x512xbf16>, vector<8x512xf32> -> vector<8x512xf32>
    %148 = arith.addf %142, %147 : vector<8x512xf32>
    %149 = vector.extract_strided_slice %148 {offsets = [0, 0], sizes = [8, 128], strides = [1, 1]} : vector<8x512xf32> to vector<8x128xf32>
    %150 = arith.negf %149 : vector<8x128xf32>
    %151 = math.exp %150 : vector<8x128xf32>
    %cst_84 = arith.constant 1.000000e+00 : f32
    %152 = vector.broadcast %cst_84 : f32 to vector<8x128xf32>
    %153 = arith.addf %152, %151 : vector<8x128xf32>
    %154 = arith.divf %152, %153 : vector<8x128xf32>
    %155 = vector.extract_strided_slice %148 {offsets = [0, 128], sizes = [8, 128], strides = [1, 1]} : vector<8x512xf32> to vector<8x128xf32>
    %156 = arith.negf %155 : vector<8x128xf32>
    %157 = math.exp %156 : vector<8x128xf32>
    %cst_85 = arith.constant 1.000000e+00 : f32
    %158 = vector.broadcast %cst_85 : f32 to vector<8x128xf32>
    %159 = arith.addf %158, %157 : vector<8x128xf32>
    %160 = arith.divf %158, %159 : vector<8x128xf32>
    %161 = vector.extract_strided_slice %148 {offsets = [0, 256], sizes = [8, 128], strides = [1, 1]} : vector<8x512xf32> to vector<8x128xf32>
    %162 = math.tanh %161 : vector<8x128xf32>
    %163 = vector.extract_strided_slice %148 {offsets = [0, 384], sizes = [8, 128], strides = [1, 1]} : vector<8x512xf32> to vector<8x128xf32>
    %164 = arith.negf %163 : vector<8x128xf32>
    %165 = math.exp %164 : vector<8x128xf32>
    %cst_86 = arith.constant 1.000000e+00 : f32
    %166 = vector.broadcast %cst_86 : f32 to vector<8x128xf32>
    %167 = arith.addf %166, %165 : vector<8x128xf32>
    %168 = arith.divf %166, %167 : vector<8x128xf32>
    %c0_87 = arith.constant 0 : index
    %c0_88 = arith.constant 0 : index
    %c0_89 = arith.constant 0 : index
    %169 = vector.load %arg10[%c0_87, %c0_88, %c0_89] : memref<2x8x128xf32, #tpu.memory_space<vmem>>, vector<1x8x128xf32>
    %170 = vector.shape_cast %169 : vector<1x8x128xf32> to vector<8x128xf32>
    %171 = arith.mulf %160, %170 : vector<8x128xf32>
    %172 = arith.mulf %154, %162 : vector<8x128xf32>
    %173 = arith.addf %171, %172 : vector<8x128xf32>
    %174 = math.tanh %173 : vector<8x128xf32>
    %175 = arith.mulf %168, %174 : vector<8x128xf32>
    %c0_90 = arith.constant 0 : index
    %c0_91 = arith.constant 0 : index
    %c0_92 = arith.constant 0 : index
    %176 = vector.load %arg10[%c0_90, %c0_91, %c0_92] : memref<2x8x128xf32, #tpu.memory_space<vmem>>, vector<1x8x128xf32>
    %177 = vector.shape_cast %176 : vector<1x8x128xf32> to vector<8x128xf32>
    %178 = vector.shape_cast %173 : vector<8x128xf32> to vector<1x8x128xf32>
    tpu.vector_store %arg10[%c0_90, %c0_91, %c0_92], %178 {strides = array<i32>} : memref<2x8x128xf32, #tpu.memory_space<vmem>>, vector<1x8x128xf32>,
    %179 = arith.truncf %175 : vector<8x128xf32> to vector<8x128xbf16>
    %c0_93 = arith.constant 0 : index
    %c0_94 = arith.constant 0 : index
    %c0_95 = arith.constant 0 : index
    %180 = vector.load %arg9[%c0_93, %c0_94, %c0_95] : memref<2x8x128xbf16, #tpu.memory_space<vmem>>, vector<1x8x128xbf16>
    %181 = vector.shape_cast %180 : vector<1x8x128xbf16> to vector<8x128xbf16>
    %182 = vector.shape_cast %179 : vector<8x128xbf16> to vector<1x8x128xbf16>
    tpu.vector_store %arg9[%c0_93, %c0_94, %c0_95], %182 {strides = array<i32>} : memref<2x8x128xbf16, #tpu.memory_space<vmem>>, vector<1x8x128xbf16>,
    %c24_96 = arith.constant 24 : index
    %c0_97 = arith.constant 0 : index
    %183 = vector.load %arg12[%c24_96, %c0_97] : memref<64x128xbf16, #tpu.memory_space<vmem>>, vector<8x128xbf16>
    tpu.vector_store %arg12[%c24_96, %c0_97], %179 {strides = array<i32>} : memref<64x128xbf16, #tpu.memory_space<vmem>>, vector<8x128xbf16>,
    %c32 = arith.constant 32 : index
    %c0_98 = arith.constant 0 : index
    %184 = vector.load %arg11[%c32, %c0_98] : memref<64x512xbf16, #tpu.memory_space<vmem>>, vector<8x512xbf16>
    %185 = arith.extf %184 : vector<8x512xbf16> to vector<8x512xf32>
    %c0_99 = arith.constant 0 : index
    %c0_100 = arith.constant 0 : index
    %c0_101 = arith.constant 0 : index
    %186 = vector.load %arg9[%c0_99, %c0_100, %c0_101] : memref<2x8x128xbf16, #tpu.memory_space<vmem>>, vector<1x8x128xbf16>
    %187 = vector.shape_cast %186 : vector<1x8x128xbf16> to vector<8x128xbf16>
    %c0_102 = arith.constant 0 : index
    %c0_103 = arith.constant 0 : index
    %c0_104 = arith.constant 0 : index
    %188 = vector.load %arg4[%c0_102, %c0_103, %c0_104] : memref<2x128x512xbf16, #tpu.memory_space<vmem>>, vector<1x128x512xbf16>
    %189 = vector.shape_cast %188 : vector<1x128x512xbf16> to vector<128x512xbf16>
    %cst_105 = arith.constant dense<0.000000e+00> : vector<8x512xf32>
    %190 = tpu.matmul %187, %189, %cst_105 {dimension_numbers = #tpu.dot_dimension_numbers<[1], [0], [0], [1], [0, 0, 1, 1], [], []>} : vector<8x128xbf16>, vector<128x512xbf16>, vector<8x512xf32> -> vector<8x512xf32>
    %191 = arith.addf %185, %190 : vector<8x512xf32>
    %192 = vector.extract_strided_slice %191 {offsets = [0, 0], sizes = [8, 128], strides = [1, 1]} : vector<8x512xf32> to vector<8x128xf32>
    %193 = arith.negf %192 : vector<8x128xf32>
    %194 = math.exp %193 : vector<8x128xf32>
    %cst_106 = arith.constant 1.000000e+00 : f32
    %195 = vector.broadcast %cst_106 : f32 to vector<8x128xf32>
    %196 = arith.addf %195, %194 : vector<8x128xf32>
    %197 = arith.divf %195, %196 : vector<8x128xf32>
    %198 = vector.extract_strided_slice %191 {offsets = [0, 128], sizes = [8, 128], strides = [1, 1]} : vector<8x512xf32> to vector<8x128xf32>
    %199 = arith.negf %198 : vector<8x128xf32>
    %200 = math.exp %199 : vector<8x128xf32>
    %cst_107 = arith.constant 1.000000e+00 : f32
    %201 = vector.broadcast %cst_107 : f32 to vector<8x128xf32>
    %202 = arith.addf %201, %200 : vector<8x128xf32>
    %203 = arith.divf %201, %202 : vector<8x128xf32>
    %204 = vector.extract_strided_slice %191 {offsets = [0, 256], sizes = [8, 128], strides = [1, 1]} : vector<8x512xf32> to vector<8x128xf32>
    %205 = math.tanh %204 : vector<8x128xf32>
    %206 = vector.extract_strided_slice %191 {offsets = [0, 384], sizes = [8, 128], strides = [1, 1]} : vector<8x512xf32> to vector<8x128xf32>
    %207 = arith.negf %206 : vector<8x128xf32>
    %208 = math.exp %207 : vector<8x128xf32>
    %cst_108 = arith.constant 1.000000e+00 : f32
    %209 = vector.broadcast %cst_108 : f32 to vector<8x128xf32>
    %210 = arith.addf %209, %208 : vector<8x128xf32>
    %211 = arith.divf %209, %210 : vector<8x128xf32>
    %c0_109 = arith.constant 0 : index
    %c0_110 = arith.constant 0 : index
    %c0_111 = arith.constant 0 : index
    %212 = vector.load %arg10[%c0_109, %c0_110, %c0_111] : memref<2x8x128xf32, #tpu.memory_space<vmem>>, vector<1x8x128xf32>
    %213 = vector.shape_cast %212 : vector<1x8x128xf32> to vector<8x128xf32>
    %214 = arith.mulf %203, %213 : vector<8x128xf32>
    %215 = arith.mulf %197, %205 : vector<8x128xf32>
    %216 = arith.addf %214, %215 : vector<8x128xf32>
    %217 = math.tanh %216 : vector<8x128xf32>
    %218 = arith.mulf %211, %217 : vector<8x128xf32>
    %c0_112 = arith.constant 0 : index
    %c0_113 = arith.constant 0 : index
    %c0_114 = arith.constant 0 : index
    %219 = vector.load %arg10[%c0_112, %c0_113, %c0_114] : memref<2x8x128xf32, #tpu.memory_space<vmem>>, vector<1x8x128xf32>
    %220 = vector.shape_cast %219 : vector<1x8x128xf32> to vector<8x128xf32>
    %221 = vector.shape_cast %216 : vector<8x128xf32> to vector<1x8x128xf32>
    tpu.vector_store %arg10[%c0_112, %c0_113, %c0_114], %221 {strides = array<i32>} : memref<2x8x128xf32, #tpu.memory_space<vmem>>, vector<1x8x128xf32>,
    %222 = arith.truncf %218 : vector<8x128xf32> to vector<8x128xbf16>
    %c0_115 = arith.constant 0 : index
    %c0_116 = arith.constant 0 : index
    %c0_117 = arith.constant 0 : index
    %223 = vector.load %arg9[%c0_115, %c0_116, %c0_117] : memref<2x8x128xbf16, #tpu.memory_space<vmem>>, vector<1x8x128xbf16>
    %224 = vector.shape_cast %223 : vector<1x8x128xbf16> to vector<8x128xbf16>
    %225 = vector.shape_cast %222 : vector<8x128xbf16> to vector<1x8x128xbf16>
    tpu.vector_store %arg9[%c0_115, %c0_116, %c0_117], %225 {strides = array<i32>} : memref<2x8x128xbf16, #tpu.memory_space<vmem>>, vector<1x8x128xbf16>,
    %c32_118 = arith.constant 32 : index
    %c0_119 = arith.constant 0 : index
    %226 = vector.load %arg12[%c32_118, %c0_119] : memref<64x128xbf16, #tpu.memory_space<vmem>>, vector<8x128xbf16>
    tpu.vector_store %arg12[%c32_118, %c0_119], %222 {strides = array<i32>} : memref<64x128xbf16, #tpu.memory_space<vmem>>, vector<8x128xbf16>,
    %c40 = arith.constant 40 : index
    %c0_120 = arith.constant 0 : index
    %227 = vector.load %arg11[%c40, %c0_120] : memref<64x512xbf16, #tpu.memory_space<vmem>>, vector<8x512xbf16>
    %228 = arith.extf %227 : vector<8x512xbf16> to vector<8x512xf32>
    %c0_121 = arith.constant 0 : index
    %c0_122 = arith.constant 0 : index
    %c0_123 = arith.constant 0 : index
    %229 = vector.load %arg9[%c0_121, %c0_122, %c0_123] : memref<2x8x128xbf16, #tpu.memory_space<vmem>>, vector<1x8x128xbf16>
    %230 = vector.shape_cast %229 : vector<1x8x128xbf16> to vector<8x128xbf16>
    %c0_124 = arith.constant 0 : index
    %c0_125 = arith.constant 0 : index
    %c0_126 = arith.constant 0 : index
    %231 = vector.load %arg4[%c0_124, %c0_125, %c0_126] : memref<2x128x512xbf16, #tpu.memory_space<vmem>>, vector<1x128x512xbf16>
    %232 = vector.shape_cast %231 : vector<1x128x512xbf16> to vector<128x512xbf16>
    %cst_127 = arith.constant dense<0.000000e+00> : vector<8x512xf32>
    %233 = tpu.matmul %230, %232, %cst_127 {dimension_numbers = #tpu.dot_dimension_numbers<[1], [0], [0], [1], [0, 0, 1, 1], [], []>} : vector<8x128xbf16>, vector<128x512xbf16>, vector<8x512xf32> -> vector<8x512xf32>
    %234 = arith.addf %228, %233 : vector<8x512xf32>
    %235 = vector.extract_strided_slice %234 {offsets = [0, 0], sizes = [8, 128], strides = [1, 1]} : vector<8x512xf32> to vector<8x128xf32>
    %236 = arith.negf %235 : vector<8x128xf32>
    %237 = math.exp %236 : vector<8x128xf32>
    %cst_128 = arith.constant 1.000000e+00 : f32
    %238 = vector.broadcast %cst_128 : f32 to vector<8x128xf32>
    %239 = arith.addf %238, %237 : vector<8x128xf32>
    %240 = arith.divf %238, %239 : vector<8x128xf32>
    %241 = vector.extract_strided_slice %234 {offsets = [0, 128], sizes = [8, 128], strides = [1, 1]} : vector<8x512xf32> to vector<8x128xf32>
    %242 = arith.negf %241 : vector<8x128xf32>
    %243 = math.exp %242 : vector<8x128xf32>
    %cst_129 = arith.constant 1.000000e+00 : f32
    %244 = vector.broadcast %cst_129 : f32 to vector<8x128xf32>
    %245 = arith.addf %244, %243 : vector<8x128xf32>
    %246 = arith.divf %244, %245 : vector<8x128xf32>
    %247 = vector.extract_strided_slice %234 {offsets = [0, 256], sizes = [8, 128], strides = [1, 1]} : vector<8x512xf32> to vector<8x128xf32>
    %248 = math.tanh %247 : vector<8x128xf32>
    %249 = vector.extract_strided_slice %234 {offsets = [0, 384], sizes = [8, 128], strides = [1, 1]} : vector<8x512xf32> to vector<8x128xf32>
    %250 = arith.negf %249 : vector<8x128xf32>
    %251 = math.exp %250 : vector<8x128xf32>
    %cst_130 = arith.constant 1.000000e+00 : f32
    %252 = vector.broadcast %cst_130 : f32 to vector<8x128xf32>
    %253 = arith.addf %252, %251 : vector<8x128xf32>
    %254 = arith.divf %252, %253 : vector<8x128xf32>
    %c0_131 = arith.constant 0 : index
    %c0_132 = arith.constant 0 : index
    %c0_133 = arith.constant 0 : index
    %255 = vector.load %arg10[%c0_131, %c0_132, %c0_133] : memref<2x8x128xf32, #tpu.memory_space<vmem>>, vector<1x8x128xf32>
    %256 = vector.shape_cast %255 : vector<1x8x128xf32> to vector<8x128xf32>
    %257 = arith.mulf %246, %256 : vector<8x128xf32>
    %258 = arith.mulf %240, %248 : vector<8x128xf32>
    %259 = arith.addf %257, %258 : vector<8x128xf32>
    %260 = math.tanh %259 : vector<8x128xf32>
    %261 = arith.mulf %254, %260 : vector<8x128xf32>
    %c0_134 = arith.constant 0 : index
    %c0_135 = arith.constant 0 : index
    %c0_136 = arith.constant 0 : index
    %262 = vector.load %arg10[%c0_134, %c0_135, %c0_136] : memref<2x8x128xf32, #tpu.memory_space<vmem>>, vector<1x8x128xf32>
    %263 = vector.shape_cast %262 : vector<1x8x128xf32> to vector<8x128xf32>
    %264 = vector.shape_cast %259 : vector<8x128xf32> to vector<1x8x128xf32>
    tpu.vector_store %arg10[%c0_134, %c0_135, %c0_136], %264 {strides = array<i32>} : memref<2x8x128xf32, #tpu.memory_space<vmem>>, vector<1x8x128xf32>,
    %265 = arith.truncf %261 : vector<8x128xf32> to vector<8x128xbf16>
    %c0_137 = arith.constant 0 : index
    %c0_138 = arith.constant 0 : index
    %c0_139 = arith.constant 0 : index
    %266 = vector.load %arg9[%c0_137, %c0_138, %c0_139] : memref<2x8x128xbf16, #tpu.memory_space<vmem>>, vector<1x8x128xbf16>
    %267 = vector.shape_cast %266 : vector<1x8x128xbf16> to vector<8x128xbf16>
    %268 = vector.shape_cast %265 : vector<8x128xbf16> to vector<1x8x128xbf16>
    tpu.vector_store %arg9[%c0_137, %c0_138, %c0_139], %268 {strides = array<i32>} : memref<2x8x128xbf16, #tpu.memory_space<vmem>>, vector<1x8x128xbf16>,
    %c40_140 = arith.constant 40 : index
    %c0_141 = arith.constant 0 : index
    %269 = vector.load %arg12[%c40_140, %c0_141] : memref<64x128xbf16, #tpu.memory_space<vmem>>, vector<8x128xbf16>
    tpu.vector_store %arg12[%c40_140, %c0_141], %265 {strides = array<i32>} : memref<64x128xbf16, #tpu.memory_space<vmem>>, vector<8x128xbf16>,
    %c48 = arith.constant 48 : index
    %c0_142 = arith.constant 0 : index
    %270 = vector.load %arg11[%c48, %c0_142] : memref<64x512xbf16, #tpu.memory_space<vmem>>, vector<8x512xbf16>
    %271 = arith.extf %270 : vector<8x512xbf16> to vector<8x512xf32>
    %c0_143 = arith.constant 0 : index
    %c0_144 = arith.constant 0 : index
    %c0_145 = arith.constant 0 : index
    %272 = vector.load %arg9[%c0_143, %c0_144, %c0_145] : memref<2x8x128xbf16, #tpu.memory_space<vmem>>, vector<1x8x128xbf16>
    %273 = vector.shape_cast %272 : vector<1x8x128xbf16> to vector<8x128xbf16>
    %c0_146 = arith.constant 0 : index
    %c0_147 = arith.constant 0 : index
    %c0_148 = arith.constant 0 : index
    %274 = vector.load %arg4[%c0_146, %c0_147, %c0_148] : memref<2x128x512xbf16, #tpu.memory_space<vmem>>, vector<1x128x512xbf16>
    %275 = vector.shape_cast %274 : vector<1x128x512xbf16> to vector<128x512xbf16>
    %cst_149 = arith.constant dense<0.000000e+00> : vector<8x512xf32>
    %276 = tpu.matmul %273, %275, %cst_149 {dimension_numbers = #tpu.dot_dimension_numbers<[1], [0], [0], [1], [0, 0, 1, 1], [], []>} : vector<8x128xbf16>, vector<128x512xbf16>, vector<8x512xf32> -> vector<8x512xf32>
    %277 = arith.addf %271, %276 : vector<8x512xf32>
    %278 = vector.extract_strided_slice %277 {offsets = [0, 0], sizes = [8, 128], strides = [1, 1]} : vector<8x512xf32> to vector<8x128xf32>
    %279 = arith.negf %278 : vector<8x128xf32>
    %280 = math.exp %279 : vector<8x128xf32>
    %cst_150 = arith.constant 1.000000e+00 : f32
    %281 = vector.broadcast %cst_150 : f32 to vector<8x128xf32>
    %282 = arith.addf %281, %280 : vector<8x128xf32>
    %283 = arith.divf %281, %282 : vector<8x128xf32>
    %284 = vector.extract_strided_slice %277 {offsets = [0, 128], sizes = [8, 128], strides = [1, 1]} : vector<8x512xf32> to vector<8x128xf32>
    %285 = arith.negf %284 : vector<8x128xf32>
    %286 = math.exp %285 : vector<8x128xf32>
    %cst_151 = arith.constant 1.000000e+00 : f32
    %287 = vector.broadcast %cst_151 : f32 to vector<8x128xf32>
    %288 = arith.addf %287, %286 : vector<8x128xf32>
    %289 = arith.divf %287, %288 : vector<8x128xf32>
    %290 = vector.extract_strided_slice %277 {offsets = [0, 256], sizes = [8, 128], strides = [1, 1]} : vector<8x512xf32> to vector<8x128xf32>
    %291 = math.tanh %290 : vector<8x128xf32>
    %292 = vector.extract_strided_slice %277 {offsets = [0, 384], sizes = [8, 128], strides = [1, 1]} : vector<8x512xf32> to vector<8x128xf32>
    %293 = arith.negf %292 : vector<8x128xf32>
    %294 = math.exp %293 : vector<8x128xf32>
    %cst_152 = arith.constant 1.000000e+00 : f32
    %295 = vector.broadcast %cst_152 : f32 to vector<8x128xf32>
    %296 = arith.addf %295, %294 : vector<8x128xf32>
    %297 = arith.divf %295, %296 : vector<8x128xf32>
    %c0_153 = arith.constant 0 : index
    %c0_154 = arith.constant 0 : index
    %c0_155 = arith.constant 0 : index
    %298 = vector.load %arg10[%c0_153, %c0_154, %c0_155] : memref<2x8x128xf32, #tpu.memory_space<vmem>>, vector<1x8x128xf32>
    %299 = vector.shape_cast %298 : vector<1x8x128xf32> to vector<8x128xf32>
    %300 = arith.mulf %289, %299 : vector<8x128xf32>
    %301 = arith.mulf %283, %291 : vector<8x128xf32>
    %302 = arith.addf %300, %301 : vector<8x128xf32>
    %303 = math.tanh %302 : vector<8x128xf32>
    %304 = arith.mulf %297, %303 : vector<8x128xf32>
    %c0_156 = arith.constant 0 : index
    %c0_157 = arith.constant 0 : index
    %c0_158 = arith.constant 0 : index
    %305 = vector.load %arg10[%c0_156, %c0_157, %c0_158] : memref<2x8x128xf32, #tpu.memory_space<vmem>>, vector<1x8x128xf32>
    %306 = vector.shape_cast %305 : vector<1x8x128xf32> to vector<8x128xf32>
    %307 = vector.shape_cast %302 : vector<8x128xf32> to vector<1x8x128xf32>
    tpu.vector_store %arg10[%c0_156, %c0_157, %c0_158], %307 {strides = array<i32>} : memref<2x8x128xf32, #tpu.memory_space<vmem>>, vector<1x8x128xf32>,
    %308 = arith.truncf %304 : vector<8x128xf32> to vector<8x128xbf16>
    %c0_159 = arith.constant 0 : index
    %c0_160 = arith.constant 0 : index
    %c0_161 = arith.constant 0 : index
    %309 = vector.load %arg9[%c0_159, %c0_160, %c0_161] : memref<2x8x128xbf16, #tpu.memory_space<vmem>>, vector<1x8x128xbf16>
    %310 = vector.shape_cast %309 : vector<1x8x128xbf16> to vector<8x128xbf16>
    %311 = vector.shape_cast %308 : vector<8x128xbf16> to vector<1x8x128xbf16>
    tpu.vector_store %arg9[%c0_159, %c0_160, %c0_161], %311 {strides = array<i32>} : memref<2x8x128xbf16, #tpu.memory_space<vmem>>, vector<1x8x128xbf16>,
    %c48_162 = arith.constant 48 : index
    %c0_163 = arith.constant 0 : index
    %312 = vector.load %arg12[%c48_162, %c0_163] : memref<64x128xbf16, #tpu.memory_space<vmem>>, vector<8x128xbf16>
    tpu.vector_store %arg12[%c48_162, %c0_163], %308 {strides = array<i32>} : memref<64x128xbf16, #tpu.memory_space<vmem>>, vector<8x128xbf16>,
    %c56 = arith.constant 56 : index
    %c0_164 = arith.constant 0 : index
    %313 = vector.load %arg11[%c56, %c0_164] : memref<64x512xbf16, #tpu.memory_space<vmem>>, vector<8x512xbf16>
    %314 = arith.extf %313 : vector<8x512xbf16> to vector<8x512xf32>
    %c0_165 = arith.constant 0 : index
    %c0_166 = arith.constant 0 : index
    %c0_167 = arith.constant 0 : index
    %315 = vector.load %arg9[%c0_165, %c0_166, %c0_167] : memref<2x8x128xbf16, #tpu.memory_space<vmem>>, vector<1x8x128xbf16>
    %316 = vector.shape_cast %315 : vector<1x8x128xbf16> to vector<8x128xbf16>
    %c0_168 = arith.constant 0 : index
    %c0_169 = arith.constant 0 : index
    %c0_170 = arith.constant 0 : index
    %317 = vector.load %arg4[%c0_168, %c0_169, %c0_170] : memref<2x128x512xbf16, #tpu.memory_space<vmem>>, vector<1x128x512xbf16>
    %318 = vector.shape_cast %317 : vector<1x128x512xbf16> to vector<128x512xbf16>
    %cst_171 = arith.constant dense<0.000000e+00> : vector<8x512xf32>
    %319 = tpu.matmul %316, %318, %cst_171 {dimension_numbers = #tpu.dot_dimension_numbers<[1], [0], [0], [1], [0, 0, 1, 1], [], []>} : vector<8x128xbf16>, vector<128x512xbf16>, vector<8x512xf32> -> vector<8x512xf32>
    %320 = arith.addf %314, %319 : vector<8x512xf32>
    %321 = vector.extract_strided_slice %320 {offsets = [0, 0], sizes = [8, 128], strides = [1, 1]} : vector<8x512xf32> to vector<8x128xf32>
    %322 = arith.negf %321 : vector<8x128xf32>
    %323 = math.exp %322 : vector<8x128xf32>
    %cst_172 = arith.constant 1.000000e+00 : f32
    %324 = vector.broadcast %cst_172 : f32 to vector<8x128xf32>
    %325 = arith.addf %324, %323 : vector<8x128xf32>
    %326 = arith.divf %324, %325 : vector<8x128xf32>
    %327 = vector.extract_strided_slice %320 {offsets = [0, 128], sizes = [8, 128], strides = [1, 1]} : vector<8x512xf32> to vector<8x128xf32>
    %328 = arith.negf %327 : vector<8x128xf32>
    %329 = math.exp %328 : vector<8x128xf32>
    %cst_173 = arith.constant 1.000000e+00 : f32
    %330 = vector.broadcast %cst_173 : f32 to vector<8x128xf32>
    %331 = arith.addf %330, %329 : vector<8x128xf32>
    %332 = arith.divf %330, %331 : vector<8x128xf32>
    %333 = vector.extract_strided_slice %320 {offsets = [0, 256], sizes = [8, 128], strides = [1, 1]} : vector<8x512xf32> to vector<8x128xf32>
    %334 = math.tanh %333 : vector<8x128xf32>
    %335 = vector.extract_strided_slice %320 {offsets = [0, 384], sizes = [8, 128], strides = [1, 1]} : vector<8x512xf32> to vector<8x128xf32>
    %336 = arith.negf %335 : vector<8x128xf32>
    %337 = math.exp %336 : vector<8x128xf32>
    %cst_174 = arith.constant 1.000000e+00 : f32
    %338 = vector.broadcast %cst_174 : f32 to vector<8x128xf32>
    %339 = arith.addf %338, %337 : vector<8x128xf32>
    %340 = arith.divf %338, %339 : vector<8x128xf32>
    %c0_175 = arith.constant 0 : index
    %c0_176 = arith.constant 0 : index
    %c0_177 = arith.constant 0 : index
    %341 = vector.load %arg10[%c0_175, %c0_176, %c0_177] : memref<2x8x128xf32, #tpu.memory_space<vmem>>, vector<1x8x128xf32>
    %342 = vector.shape_cast %341 : vector<1x8x128xf32> to vector<8x128xf32>
    %343 = arith.mulf %332, %342 : vector<8x128xf32>
    %344 = arith.mulf %326, %334 : vector<8x128xf32>
    %345 = arith.addf %343, %344 : vector<8x128xf32>
    %346 = math.tanh %345 : vector<8x128xf32>
    %347 = arith.mulf %340, %346 : vector<8x128xf32>
    %c0_178 = arith.constant 0 : index
    %c0_179 = arith.constant 0 : index
    %c0_180 = arith.constant 0 : index
    %348 = vector.load %arg10[%c0_178, %c0_179, %c0_180] : memref<2x8x128xf32, #tpu.memory_space<vmem>>, vector<1x8x128xf32>
    %349 = vector.shape_cast %348 : vector<1x8x128xf32> to vector<8x128xf32>
    %350 = vector.shape_cast %345 : vector<8x128xf32> to vector<1x8x128xf32>
    tpu.vector_store %arg10[%c0_178, %c0_179, %c0_180], %350 {strides = array<i32>} : memref<2x8x128xf32, #tpu.memory_space<vmem>>, vector<1x8x128xf32>,
    %351 = arith.truncf %347 : vector<8x128xf32> to vector<8x128xbf16>
    %c0_181 = arith.constant 0 : index
    %c0_182 = arith.constant 0 : index
    %c0_183 = arith.constant 0 : index
    %352 = vector.load %arg9[%c0_181, %c0_182, %c0_183] : memref<2x8x128xbf16, #tpu.memory_space<vmem>>, vector<1x8x128xbf16>
    %353 = vector.shape_cast %352 : vector<1x8x128xbf16> to vector<8x128xbf16>
    %354 = vector.shape_cast %351 : vector<8x128xbf16> to vector<1x8x128xbf16>
    tpu.vector_store %arg9[%c0_181, %c0_182, %c0_183], %354 {strides = array<i32>} : memref<2x8x128xbf16, #tpu.memory_space<vmem>>, vector<1x8x128xbf16>,
    %c56_184 = arith.constant 56 : index
    %c0_185 = arith.constant 0 : index
    %355 = vector.load %arg12[%c56_184, %c0_185] : memref<64x128xbf16, #tpu.memory_space<vmem>>, vector<8x128xbf16>
    tpu.vector_store %arg12[%c56_184, %c0_185], %351 {strides = array<i32>} : memref<64x128xbf16, #tpu.memory_space<vmem>>, vector<8x128xbf16>,
    %c0_186 = arith.constant 0 : index
    %c0_187 = arith.constant 0 : index
    %356 = vector.load %arg12[%c0_186, %c0_187] : memref<64x128xbf16, #tpu.memory_space<vmem>>, vector<64x128xbf16>
    %c0_188 = arith.constant 0 : index
    %c0_189 = arith.constant 0 : index
    %c0_190 = arith.constant 0 : index
    %357 = vector.load %arg3[%c0_188, %c0_189, %c0_190] : memref<1x128x512xbf16, #tpu.memory_space<vmem>>, vector<1x128x512xbf16>
    %358 = vector.shape_cast %357 : vector<1x128x512xbf16> to vector<128x512xbf16>
    %cst_191 = arith.constant dense<0.000000e+00> : vector<64x512xf32>
    %359 = tpu.matmul %356, %358, %cst_191 {dimension_numbers = #tpu.dot_dimension_numbers<[1], [0], [0], [1], [0, 0, 1, 1], [], []>} : vector<64x128xbf16>, vector<128x512xbf16>, vector<64x512xf32> -> vector<64x512xf32>
    %c1 = arith.constant 1 : index
    %c0_192 = arith.constant 0 : index
    %c0_193 = arith.constant 0 : index
    %360 = vector.load %arg5[%c1, %c0_192, %c0_193] : memref<2x1x512xf32, #tpu.memory_space<vmem>>, vector<1x1x512xf32>
    %361 = vector.shape_cast %360 : vector<1x1x512xf32> to vector<1x512xf32>
    %362 = vector.broadcast %361 : vector<1x512xf32> to vector<64x512xf32>
    %363 = arith.addf %359, %362 : vector<64x512xf32>
    %364 = arith.truncf %363 : vector<64x512xf32> to vector<64x512xbf16>
    %c0_194 = arith.constant 0 : index
    %c0_195 = arith.constant 0 : index
    %365 = vector.load %arg11[%c0_194, %c0_195] : memref<64x512xbf16, #tpu.memory_space<vmem>>, vector<64x512xbf16>
    tpu.vector_store %arg11[%c0_194, %c0_195], %364 {strides = array<i32>} : memref<64x512xbf16, #tpu.memory_space<vmem>>, vector<64x512xbf16>,
    %c0_196 = arith.constant 0 : index
    %c0_197 = arith.constant 0 : index
    %366 = vector.load %arg11[%c0_196, %c0_197] : memref<64x512xbf16, #tpu.memory_space<vmem>>, vector<8x512xbf16>
    %367 = arith.extf %366 : vector<8x512xbf16> to vector<8x512xf32>
    %c1_198 = arith.constant 1 : index
    %c0_199 = arith.constant 0 : index
    %c0_200 = arith.constant 0 : index
    %368 = vector.load %arg9[%c1_198, %c0_199, %c0_200] : memref<2x8x128xbf16, #tpu.memory_space<vmem>>, vector<1x8x128xbf16>
    %369 = vector.shape_cast %368 : vector<1x8x128xbf16> to vector<8x128xbf16>
    %c1_201 = arith.constant 1 : index
    %c0_202 = arith.constant 0 : index
    %c0_203 = arith.constant 0 : index
    %370 = vector.load %arg4[%c1_201, %c0_202, %c0_203] : memref<2x128x512xbf16, #tpu.memory_space<vmem>>, vector<1x128x512xbf16>
    %371 = vector.shape_cast %370 : vector<1x128x512xbf16> to vector<128x512xbf16>
    %cst_204 = arith.constant dense<0.000000e+00> : vector<8x512xf32>
    %372 = tpu.matmul %369, %371, %cst_204 {dimension_numbers = #tpu.dot_dimension_numbers<[1], [0], [0], [1], [0, 0, 1, 1], [], []>} : vector<8x128xbf16>, vector<128x512xbf16>, vector<8x512xf32> -> vector<8x512xf32>
    %373 = arith.addf %367, %372 : vector<8x512xf32>
    %374 = vector.extract_strided_slice %373 {offsets = [0, 0], sizes = [8, 128], strides = [1, 1]} : vector<8x512xf32> to vector<8x128xf32>
    %375 = arith.negf %374 : vector<8x128xf32>
    %376 = math.exp %375 : vector<8x128xf32>
    %cst_205 = arith.constant 1.000000e+00 : f32
    %377 = vector.broadcast %cst_205 : f32 to vector<8x128xf32>
    %378 = arith.addf %377, %376 : vector<8x128xf32>
    %379 = arith.divf %377, %378 : vector<8x128xf32>
    %380 = vector.extract_strided_slice %373 {offsets = [0, 128], sizes = [8, 128], strides = [1, 1]} : vector<8x512xf32> to vector<8x128xf32>
    %381 = arith.negf %380 : vector<8x128xf32>
    %382 = math.exp %381 : vector<8x128xf32>
    %cst_206 = arith.constant 1.000000e+00 : f32
    %383 = vector.broadcast %cst_206 : f32 to vector<8x128xf32>
    %384 = arith.addf %383, %382 : vector<8x128xf32>
    %385 = arith.divf %383, %384 : vector<8x128xf32>
    %386 = vector.extract_strided_slice %373 {offsets = [0, 256], sizes = [8, 128], strides = [1, 1]} : vector<8x512xf32> to vector<8x128xf32>
    %387 = math.tanh %386 : vector<8x128xf32>
    %388 = vector.extract_strided_slice %373 {offsets = [0, 384], sizes = [8, 128], strides = [1, 1]} : vector<8x512xf32> to vector<8x128xf32>
    %389 = arith.negf %388 : vector<8x128xf32>
    %390 = math.exp %389 : vector<8x128xf32>
    %cst_207 = arith.constant 1.000000e+00 : f32
    %391 = vector.broadcast %cst_207 : f32 to vector<8x128xf32>
    %392 = arith.addf %391, %390 : vector<8x128xf32>
    %393 = arith.divf %391, %392 : vector<8x128xf32>
    %c1_208 = arith.constant 1 : index
    %c0_209 = arith.constant 0 : index
    %c0_210 = arith.constant 0 : index
    %394 = vector.load %arg10[%c1_208, %c0_209, %c0_210] : memref<2x8x128xf32, #tpu.memory_space<vmem>>, vector<1x8x128xf32>
    %395 = vector.shape_cast %394 : vector<1x8x128xf32> to vector<8x128xf32>
    %396 = arith.mulf %385, %395 : vector<8x128xf32>
    %397 = arith.mulf %379, %387 : vector<8x128xf32>
    %398 = arith.addf %396, %397 : vector<8x128xf32>
    %399 = math.tanh %398 : vector<8x128xf32>
    %400 = arith.mulf %393, %399 : vector<8x128xf32>
    %c1_211 = arith.constant 1 : index
    %c0_212 = arith.constant 0 : index
    %c0_213 = arith.constant 0 : index
    %401 = vector.load %arg10[%c1_211, %c0_212, %c0_213] : memref<2x8x128xf32, #tpu.memory_space<vmem>>, vector<1x8x128xf32>
    %402 = vector.shape_cast %401 : vector<1x8x128xf32> to vector<8x128xf32>
    %403 = vector.shape_cast %398 : vector<8x128xf32> to vector<1x8x128xf32>
    tpu.vector_store %arg10[%c1_211, %c0_212, %c0_213], %403 {strides = array<i32>} : memref<2x8x128xf32, #tpu.memory_space<vmem>>, vector<1x8x128xf32>,
    %404 = arith.truncf %400 : vector<8x128xf32> to vector<8x128xbf16>
    %c1_214 = arith.constant 1 : index
    %c0_215 = arith.constant 0 : index
    %c0_216 = arith.constant 0 : index
    %405 = vector.load %arg9[%c1_214, %c0_215, %c0_216] : memref<2x8x128xbf16, #tpu.memory_space<vmem>>, vector<1x8x128xbf16>
    %406 = vector.shape_cast %405 : vector<1x8x128xbf16> to vector<8x128xbf16>
    %407 = vector.shape_cast %404 : vector<8x128xbf16> to vector<1x8x128xbf16>
    tpu.vector_store %arg9[%c1_214, %c0_215, %c0_216], %407 {strides = array<i32>} : memref<2x8x128xbf16, #tpu.memory_space<vmem>>, vector<1x8x128xbf16>,
    %c0_217 = arith.constant 0 : index
    %c0_218 = arith.constant 0 : index
    %408 = vector.load %arg12[%c0_217, %c0_218] : memref<64x128xbf16, #tpu.memory_space<vmem>>, vector<8x128xbf16>
    tpu.vector_store %arg12[%c0_217, %c0_218], %404 {strides = array<i32>} : memref<64x128xbf16, #tpu.memory_space<vmem>>, vector<8x128xbf16>,
    %c8_219 = arith.constant 8 : index
    %c0_220 = arith.constant 0 : index
    %409 = vector.load %arg11[%c8_219, %c0_220] : memref<64x512xbf16, #tpu.memory_space<vmem>>, vector<8x512xbf16>
    %410 = arith.extf %409 : vector<8x512xbf16> to vector<8x512xf32>
    %c1_221 = arith.constant 1 : index
    %c0_222 = arith.constant 0 : index
    %c0_223 = arith.constant 0 : index
    %411 = vector.load %arg9[%c1_221, %c0_222, %c0_223] : memref<2x8x128xbf16, #tpu.memory_space<vmem>>, vector<1x8x128xbf16>
    %412 = vector.shape_cast %411 : vector<1x8x128xbf16> to vector<8x128xbf16>
    %c1_224 = arith.constant 1 : index
    %c0_225 = arith.constant 0 : index
    %c0_226 = arith.constant 0 : index
    %413 = vector.load %arg4[%c1_224, %c0_225, %c0_226] : memref<2x128x512xbf16, #tpu.memory_space<vmem>>, vector<1x128x512xbf16>
    %414 = vector.shape_cast %413 : vector<1x128x512xbf16> to vector<128x512xbf16>
    %cst_227 = arith.constant dense<0.000000e+00> : vector<8x512xf32>
    %415 = tpu.matmul %412, %414, %cst_227 {dimension_numbers = #tpu.dot_dimension_numbers<[1], [0], [0], [1], [0, 0, 1, 1], [], []>} : vector<8x128xbf16>, vector<128x512xbf16>, vector<8x512xf32> -> vector<8x512xf32>
    %416 = arith.addf %410, %415 : vector<8x512xf32>
    %417 = vector.extract_strided_slice %416 {offsets = [0, 0], sizes = [8, 128], strides = [1, 1]} : vector<8x512xf32> to vector<8x128xf32>
    %418 = arith.negf %417 : vector<8x128xf32>
    %419 = math.exp %418 : vector<8x128xf32>
    %cst_228 = arith.constant 1.000000e+00 : f32
    %420 = vector.broadcast %cst_228 : f32 to vector<8x128xf32>
    %421 = arith.addf %420, %419 : vector<8x128xf32>
    %422 = arith.divf %420, %421 : vector<8x128xf32>
    %423 = vector.extract_strided_slice %416 {offsets = [0, 128], sizes = [8, 128], strides = [1, 1]} : vector<8x512xf32> to vector<8x128xf32>
    %424 = arith.negf %423 : vector<8x128xf32>
    %425 = math.exp %424 : vector<8x128xf32>
    %cst_229 = arith.constant 1.000000e+00 : f32
    %426 = vector.broadcast %cst_229 : f32 to vector<8x128xf32>
    %427 = arith.addf %426, %425 : vector<8x128xf32>
    %428 = arith.divf %426, %427 : vector<8x128xf32>
    %429 = vector.extract_strided_slice %416 {offsets = [0, 256], sizes = [8, 128], strides = [1, 1]} : vector<8x512xf32> to vector<8x128xf32>
    %430 = math.tanh %429 : vector<8x128xf32>
    %431 = vector.extract_strided_slice %416 {offsets = [0, 384], sizes = [8, 128], strides = [1, 1]} : vector<8x512xf32> to vector<8x128xf32>
    %432 = arith.negf %431 : vector<8x128xf32>
    %433 = math.exp %432 : vector<8x128xf32>
    %cst_230 = arith.constant 1.000000e+00 : f32
    %434 = vector.broadcast %cst_230 : f32 to vector<8x128xf32>
    %435 = arith.addf %434, %433 : vector<8x128xf32>
    %436 = arith.divf %434, %435 : vector<8x128xf32>
    %c1_231 = arith.constant 1 : index
    %c0_232 = arith.constant 0 : index
    %c0_233 = arith.constant 0 : index
    %437 = vector.load %arg10[%c1_231, %c0_232, %c0_233] : memref<2x8x128xf32, #tpu.memory_space<vmem>>, vector<1x8x128xf32>
    %438 = vector.shape_cast %437 : vector<1x8x128xf32> to vector<8x128xf32>
    %439 = arith.mulf %428, %438 : vector<8x128xf32>
    %440 = arith.mulf %422, %430 : vector<8x128xf32>
    %441 = arith.addf %439, %440 : vector<8x128xf32>
    %442 = math.tanh %441 : vector<8x128xf32>
    %443 = arith.mulf %436, %442 : vector<8x128xf32>
    %c1_234 = arith.constant 1 : index
    %c0_235 = arith.constant 0 : index
    %c0_236 = arith.constant 0 : index
    %444 = vector.load %arg10[%c1_234, %c0_235, %c0_236] : memref<2x8x128xf32, #tpu.memory_space<vmem>>, vector<1x8x128xf32>
    %445 = vector.shape_cast %444 : vector<1x8x128xf32> to vector<8x128xf32>
    %446 = vector.shape_cast %441 : vector<8x128xf32> to vector<1x8x128xf32>
    tpu.vector_store %arg10[%c1_234, %c0_235, %c0_236], %446 {strides = array<i32>} : memref<2x8x128xf32, #tpu.memory_space<vmem>>, vector<1x8x128xf32>,
    %447 = arith.truncf %443 : vector<8x128xf32> to vector<8x128xbf16>
    %c1_237 = arith.constant 1 : index
    %c0_238 = arith.constant 0 : index
    %c0_239 = arith.constant 0 : index
    %448 = vector.load %arg9[%c1_237, %c0_238, %c0_239] : memref<2x8x128xbf16, #tpu.memory_space<vmem>>, vector<1x8x128xbf16>
    %449 = vector.shape_cast %448 : vector<1x8x128xbf16> to vector<8x128xbf16>
    %450 = vector.shape_cast %447 : vector<8x128xbf16> to vector<1x8x128xbf16>
    tpu.vector_store %arg9[%c1_237, %c0_238, %c0_239], %450 {strides = array<i32>} : memref<2x8x128xbf16, #tpu.memory_space<vmem>>, vector<1x8x128xbf16>,
    %c8_240 = arith.constant 8 : index
    %c0_241 = arith.constant 0 : index
    %451 = vector.load %arg12[%c8_240, %c0_241] : memref<64x128xbf16, #tpu.memory_space<vmem>>, vector<8x128xbf16>
    tpu.vector_store %arg12[%c8_240, %c0_241], %447 {strides = array<i32>} : memref<64x128xbf16, #tpu.memory_space<vmem>>, vector<8x128xbf16>,
    %c16_242 = arith.constant 16 : index
    %c0_243 = arith.constant 0 : index
    %452 = vector.load %arg11[%c16_242, %c0_243] : memref<64x512xbf16, #tpu.memory_space<vmem>>, vector<8x512xbf16>
    %453 = arith.extf %452 : vector<8x512xbf16> to vector<8x512xf32>
    %c1_244 = arith.constant 1 : index
    %c0_245 = arith.constant 0 : index
    %c0_246 = arith.constant 0 : index
    %454 = vector.load %arg9[%c1_244, %c0_245, %c0_246] : memref<2x8x128xbf16, #tpu.memory_space<vmem>>, vector<1x8x128xbf16>
    %455 = vector.shape_cast %454 : vector<1x8x128xbf16> to vector<8x128xbf16>
    %c1_247 = arith.constant 1 : index
    %c0_248 = arith.constant 0 : index
    %c0_249 = arith.constant 0 : index
    %456 = vector.load %arg4[%c1_247, %c0_248, %c0_249] : memref<2x128x512xbf16, #tpu.memory_space<vmem>>, vector<1x128x512xbf16>
    %457 = vector.shape_cast %456 : vector<1x128x512xbf16> to vector<128x512xbf16>
    %cst_250 = arith.constant dense<0.000000e+00> : vector<8x512xf32>
    %458 = tpu.matmul %455, %457, %cst_250 {dimension_numbers = #tpu.dot_dimension_numbers<[1], [0], [0], [1], [0, 0, 1, 1], [], []>} : vector<8x128xbf16>, vector<128x512xbf16>, vector<8x512xf32> -> vector<8x512xf32>
    %459 = arith.addf %453, %458 : vector<8x512xf32>
    %460 = vector.extract_strided_slice %459 {offsets = [0, 0], sizes = [8, 128], strides = [1, 1]} : vector<8x512xf32> to vector<8x128xf32>
    %461 = arith.negf %460 : vector<8x128xf32>
    %462 = math.exp %461 : vector<8x128xf32>
    %cst_251 = arith.constant 1.000000e+00 : f32
    %463 = vector.broadcast %cst_251 : f32 to vector<8x128xf32>
    %464 = arith.addf %463, %462 : vector<8x128xf32>
    %465 = arith.divf %463, %464 : vector<8x128xf32>
    %466 = vector.extract_strided_slice %459 {offsets = [0, 128], sizes = [8, 128], strides = [1, 1]} : vector<8x512xf32> to vector<8x128xf32>
    %467 = arith.negf %466 : vector<8x128xf32>
    %468 = math.exp %467 : vector<8x128xf32>
    %cst_252 = arith.constant 1.000000e+00 : f32
    %469 = vector.broadcast %cst_252 : f32 to vector<8x128xf32>
    %470 = arith.addf %469, %468 : vector<8x128xf32>
    %471 = arith.divf %469, %470 : vector<8x128xf32>
    %472 = vector.extract_strided_slice %459 {offsets = [0, 256], sizes = [8, 128], strides = [1, 1]} : vector<8x512xf32> to vector<8x128xf32>
    %473 = math.tanh %472 : vector<8x128xf32>
    %474 = vector.extract_strided_slice %459 {offsets = [0, 384], sizes = [8, 128], strides = [1, 1]} : vector<8x512xf32> to vector<8x128xf32>
    %475 = arith.negf %474 : vector<8x128xf32>
    %476 = math.exp %475 : vector<8x128xf32>
    %cst_253 = arith.constant 1.000000e+00 : f32
    %477 = vector.broadcast %cst_253 : f32 to vector<8x128xf32>
    %478 = arith.addf %477, %476 : vector<8x128xf32>
    %479 = arith.divf %477, %478 : vector<8x128xf32>
    %c1_254 = arith.constant 1 : index
    %c0_255 = arith.constant 0 : index
    %c0_256 = arith.constant 0 : index
    %480 = vector.load %arg10[%c1_254, %c0_255, %c0_256] : memref<2x8x128xf32, #tpu.memory_space<vmem>>, vector<1x8x128xf32>
    %481 = vector.shape_cast %480 : vector<1x8x128xf32> to vector<8x128xf32>
    %482 = arith.mulf %471, %481 : vector<8x128xf32>
    %483 = arith.mulf %465, %473 : vector<8x128xf32>
    %484 = arith.addf %482, %483 : vector<8x128xf32>
    %485 = math.tanh %484 : vector<8x128xf32>
    %486 = arith.mulf %479, %485 : vector<8x128xf32>
    %c1_257 = arith.constant 1 : index
    %c0_258 = arith.constant 0 : index
    %c0_259 = arith.constant 0 : index
    %487 = vector.load %arg10[%c1_257, %c0_258, %c0_259] : memref<2x8x128xf32, #tpu.memory_space<vmem>>, vector<1x8x128xf32>
    %488 = vector.shape_cast %487 : vector<1x8x128xf32> to vector<8x128xf32>
    %489 = vector.shape_cast %484 : vector<8x128xf32> to vector<1x8x128xf32>
    tpu.vector_store %arg10[%c1_257, %c0_258, %c0_259], %489 {strides = array<i32>} : memref<2x8x128xf32, #tpu.memory_space<vmem>>, vector<1x8x128xf32>,
    %490 = arith.truncf %486 : vector<8x128xf32> to vector<8x128xbf16>
    %c1_260 = arith.constant 1 : index
    %c0_261 = arith.constant 0 : index
    %c0_262 = arith.constant 0 : index
    %491 = vector.load %arg9[%c1_260, %c0_261, %c0_262] : memref<2x8x128xbf16, #tpu.memory_space<vmem>>, vector<1x8x128xbf16>
    %492 = vector.shape_cast %491 : vector<1x8x128xbf16> to vector<8x128xbf16>
    %493 = vector.shape_cast %490 : vector<8x128xbf16> to vector<1x8x128xbf16>
    tpu.vector_store %arg9[%c1_260, %c0_261, %c0_262], %493 {strides = array<i32>} : memref<2x8x128xbf16, #tpu.memory_space<vmem>>, vector<1x8x128xbf16>,
    %c16_263 = arith.constant 16 : index
    %c0_264 = arith.constant 0 : index
    %494 = vector.load %arg12[%c16_263, %c0_264] : memref<64x128xbf16, #tpu.memory_space<vmem>>, vector<8x128xbf16>
    tpu.vector_store %arg12[%c16_263, %c0_264], %490 {strides = array<i32>} : memref<64x128xbf16, #tpu.memory_space<vmem>>, vector<8x128xbf16>,
    %c24_265 = arith.constant 24 : index
    %c0_266 = arith.constant 0 : index
    %495 = vector.load %arg11[%c24_265, %c0_266] : memref<64x512xbf16, #tpu.memory_space<vmem>>, vector<8x512xbf16>
    %496 = arith.extf %495 : vector<8x512xbf16> to vector<8x512xf32>
    %c1_267 = arith.constant 1 : index
    %c0_268 = arith.constant 0 : index
    %c0_269 = arith.constant 0 : index
    %497 = vector.load %arg9[%c1_267, %c0_268, %c0_269] : memref<2x8x128xbf16, #tpu.memory_space<vmem>>, vector<1x8x128xbf16>
    %498 = vector.shape_cast %497 : vector<1x8x128xbf16> to vector<8x128xbf16>
    %c1_270 = arith.constant 1 : index
    %c0_271 = arith.constant 0 : index
    %c0_272 = arith.constant 0 : index
    %499 = vector.load %arg4[%c1_270, %c0_271, %c0_272] : memref<2x128x512xbf16, #tpu.memory_space<vmem>>, vector<1x128x512xbf16>
    %500 = vector.shape_cast %499 : vector<1x128x512xbf16> to vector<128x512xbf16>
    %cst_273 = arith.constant dense<0.000000e+00> : vector<8x512xf32>
    %501 = tpu.matmul %498, %500, %cst_273 {dimension_numbers = #tpu.dot_dimension_numbers<[1], [0], [0], [1], [0, 0, 1, 1], [], []>} : vector<8x128xbf16>, vector<128x512xbf16>, vector<8x512xf32> -> vector<8x512xf32>
    %502 = arith.addf %496, %501 : vector<8x512xf32>
    %503 = vector.extract_strided_slice %502 {offsets = [0, 0], sizes = [8, 128], strides = [1, 1]} : vector<8x512xf32> to vector<8x128xf32>
    %504 = arith.negf %503 : vector<8x128xf32>
    %505 = math.exp %504 : vector<8x128xf32>
    %cst_274 = arith.constant 1.000000e+00 : f32
    %506 = vector.broadcast %cst_274 : f32 to vector<8x128xf32>
    %507 = arith.addf %506, %505 : vector<8x128xf32>
    %508 = arith.divf %506, %507 : vector<8x128xf32>
    %509 = vector.extract_strided_slice %502 {offsets = [0, 128], sizes = [8, 128], strides = [1, 1]} : vector<8x512xf32> to vector<8x128xf32>
    %510 = arith.negf %509 : vector<8x128xf32>
    %511 = math.exp %510 : vector<8x128xf32>
    %cst_275 = arith.constant 1.000000e+00 : f32
    %512 = vector.broadcast %cst_275 : f32 to vector<8x128xf32>
    %513 = arith.addf %512, %511 : vector<8x128xf32>
    %514 = arith.divf %512, %513 : vector<8x128xf32>
    %515 = vector.extract_strided_slice %502 {offsets = [0, 256], sizes = [8, 128], strides = [1, 1]} : vector<8x512xf32> to vector<8x128xf32>
    %516 = math.tanh %515 : vector<8x128xf32>
    %517 = vector.extract_strided_slice %502 {offsets = [0, 384], sizes = [8, 128], strides = [1, 1]} : vector<8x512xf32> to vector<8x128xf32>
    %518 = arith.negf %517 : vector<8x128xf32>
    %519 = math.exp %518 : vector<8x128xf32>
    %cst_276 = arith.constant 1.000000e+00 : f32
    %520 = vector.broadcast %cst_276 : f32 to vector<8x128xf32>
    %521 = arith.addf %520, %519 : vector<8x128xf32>
    %522 = arith.divf %520, %521 : vector<8x128xf32>
    %c1_277 = arith.constant 1 : index
    %c0_278 = arith.constant 0 : index
    %c0_279 = arith.constant 0 : index
    %523 = vector.load %arg10[%c1_277, %c0_278, %c0_279] : memref<2x8x128xf32, #tpu.memory_space<vmem>>, vector<1x8x128xf32>
    %524 = vector.shape_cast %523 : vector<1x8x128xf32> to vector<8x128xf32>
    %525 = arith.mulf %514, %524 : vector<8x128xf32>
    %526 = arith.mulf %508, %516 : vector<8x128xf32>
    %527 = arith.addf %525, %526 : vector<8x128xf32>
    %528 = math.tanh %527 : vector<8x128xf32>
    %529 = arith.mulf %522, %528 : vector<8x128xf32>
    %c1_280 = arith.constant 1 : index
    %c0_281 = arith.constant 0 : index
    %c0_282 = arith.constant 0 : index
    %530 = vector.load %arg10[%c1_280, %c0_281, %c0_282] : memref<2x8x128xf32, #tpu.memory_space<vmem>>, vector<1x8x128xf32>
    %531 = vector.shape_cast %530 : vector<1x8x128xf32> to vector<8x128xf32>
    %532 = vector.shape_cast %527 : vector<8x128xf32> to vector<1x8x128xf32>
    tpu.vector_store %arg10[%c1_280, %c0_281, %c0_282], %532 {strides = array<i32>} : memref<2x8x128xf32, #tpu.memory_space<vmem>>, vector<1x8x128xf32>,
    %533 = arith.truncf %529 : vector<8x128xf32> to vector<8x128xbf16>
    %c1_283 = arith.constant 1 : index
    %c0_284 = arith.constant 0 : index
    %c0_285 = arith.constant 0 : index
    %534 = vector.load %arg9[%c1_283, %c0_284, %c0_285] : memref<2x8x128xbf16, #tpu.memory_space<vmem>>, vector<1x8x128xbf16>
    %535 = vector.shape_cast %534 : vector<1x8x128xbf16> to vector<8x128xbf16>
    %536 = vector.shape_cast %533 : vector<8x128xbf16> to vector<1x8x128xbf16>
    tpu.vector_store %arg9[%c1_283, %c0_284, %c0_285], %536 {strides = array<i32>} : memref<2x8x128xbf16, #tpu.memory_space<vmem>>, vector<1x8x128xbf16>,
    %c24_286 = arith.constant 24 : index
    %c0_287 = arith.constant 0 : index
    %537 = vector.load %arg12[%c24_286, %c0_287] : memref<64x128xbf16, #tpu.memory_space<vmem>>, vector<8x128xbf16>
    tpu.vector_store %arg12[%c24_286, %c0_287], %533 {strides = array<i32>} : memref<64x128xbf16, #tpu.memory_space<vmem>>, vector<8x128xbf16>,
    %c32_288 = arith.constant 32 : index
    %c0_289 = arith.constant 0 : index
    %538 = vector.load %arg11[%c32_288, %c0_289] : memref<64x512xbf16, #tpu.memory_space<vmem>>, vector<8x512xbf16>
    %539 = arith.extf %538 : vector<8x512xbf16> to vector<8x512xf32>
    %c1_290 = arith.constant 1 : index
    %c0_291 = arith.constant 0 : index
    %c0_292 = arith.constant 0 : index
    %540 = vector.load %arg9[%c1_290, %c0_291, %c0_292] : memref<2x8x128xbf16, #tpu.memory_space<vmem>>, vector<1x8x128xbf16>
    %541 = vector.shape_cast %540 : vector<1x8x128xbf16> to vector<8x128xbf16>
    %c1_293 = arith.constant 1 : index
    %c0_294 = arith.constant 0 : index
    %c0_295 = arith.constant 0 : index
    %542 = vector.load %arg4[%c1_293, %c0_294, %c0_295] : memref<2x128x512xbf16, #tpu.memory_space<vmem>>, vector<1x128x512xbf16>
    %543 = vector.shape_cast %542 : vector<1x128x512xbf16> to vector<128x512xbf16>
    %cst_296 = arith.constant dense<0.000000e+00> : vector<8x512xf32>
    %544 = tpu.matmul %541, %543, %cst_296 {dimension_numbers = #tpu.dot_dimension_numbers<[1], [0], [0], [1], [0, 0, 1, 1], [], []>} : vector<8x128xbf16>, vector<128x512xbf16>, vector<8x512xf32> -> vector<8x512xf32>
    %545 = arith.addf %539, %544 : vector<8x512xf32>
    %546 = vector.extract_strided_slice %545 {offsets = [0, 0], sizes = [8, 128], strides = [1, 1]} : vector<8x512xf32> to vector<8x128xf32>
    %547 = arith.negf %546 : vector<8x128xf32>
    %548 = math.exp %547 : vector<8x128xf32>
    %cst_297 = arith.constant 1.000000e+00 : f32
    %549 = vector.broadcast %cst_297 : f32 to vector<8x128xf32>
    %550 = arith.addf %549, %548 : vector<8x128xf32>
    %551 = arith.divf %549, %550 : vector<8x128xf32>
    %552 = vector.extract_strided_slice %545 {offsets = [0, 128], sizes = [8, 128], strides = [1, 1]} : vector<8x512xf32> to vector<8x128xf32>
    %553 = arith.negf %552 : vector<8x128xf32>
    %554 = math.exp %553 : vector<8x128xf32>
    %cst_298 = arith.constant 1.000000e+00 : f32
    %555 = vector.broadcast %cst_298 : f32 to vector<8x128xf32>
    %556 = arith.addf %555, %554 : vector<8x128xf32>
    %557 = arith.divf %555, %556 : vector<8x128xf32>
    %558 = vector.extract_strided_slice %545 {offsets = [0, 256], sizes = [8, 128], strides = [1, 1]} : vector<8x512xf32> to vector<8x128xf32>
    %559 = math.tanh %558 : vector<8x128xf32>
    %560 = vector.extract_strided_slice %545 {offsets = [0, 384], sizes = [8, 128], strides = [1, 1]} : vector<8x512xf32> to vector<8x128xf32>
    %561 = arith.negf %560 : vector<8x128xf32>
    %562 = math.exp %561 : vector<8x128xf32>
    %cst_299 = arith.constant 1.000000e+00 : f32
    %563 = vector.broadcast %cst_299 : f32 to vector<8x128xf32>
    %564 = arith.addf %563, %562 : vector<8x128xf32>
    %565 = arith.divf %563, %564 : vector<8x128xf32>
    %c1_300 = arith.constant 1 : index
    %c0_301 = arith.constant 0 : index
    %c0_302 = arith.constant 0 : index
    %566 = vector.load %arg10[%c1_300, %c0_301, %c0_302] : memref<2x8x128xf32, #tpu.memory_space<vmem>>, vector<1x8x128xf32>
    %567 = vector.shape_cast %566 : vector<1x8x128xf32> to vector<8x128xf32>
    %568 = arith.mulf %557, %567 : vector<8x128xf32>
    %569 = arith.mulf %551, %559 : vector<8x128xf32>
    %570 = arith.addf %568, %569 : vector<8x128xf32>
    %571 = math.tanh %570 : vector<8x128xf32>
    %572 = arith.mulf %565, %571 : vector<8x128xf32>
    %c1_303 = arith.constant 1 : index
    %c0_304 = arith.constant 0 : index
    %c0_305 = arith.constant 0 : index
    %573 = vector.load %arg10[%c1_303, %c0_304, %c0_305] : memref<2x8x128xf32, #tpu.memory_space<vmem>>, vector<1x8x128xf32>
    %574 = vector.shape_cast %573 : vector<1x8x128xf32> to vector<8x128xf32>
    %575 = vector.shape_cast %570 : vector<8x128xf32> to vector<1x8x128xf32>
    tpu.vector_store %arg10[%c1_303, %c0_304, %c0_305], %575 {strides = array<i32>} : memref<2x8x128xf32, #tpu.memory_space<vmem>>, vector<1x8x128xf32>,
    %576 = arith.truncf %572 : vector<8x128xf32> to vector<8x128xbf16>
    %c1_306 = arith.constant 1 : index
    %c0_307 = arith.constant 0 : index
    %c0_308 = arith.constant 0 : index
    %577 = vector.load %arg9[%c1_306, %c0_307, %c0_308] : memref<2x8x128xbf16, #tpu.memory_space<vmem>>, vector<1x8x128xbf16>
    %578 = vector.shape_cast %577 : vector<1x8x128xbf16> to vector<8x128xbf16>
    %579 = vector.shape_cast %576 : vector<8x128xbf16> to vector<1x8x128xbf16>
    tpu.vector_store %arg9[%c1_306, %c0_307, %c0_308], %579 {strides = array<i32>} : memref<2x8x128xbf16, #tpu.memory_space<vmem>>, vector<1x8x128xbf16>,
    %c32_309 = arith.constant 32 : index
    %c0_310 = arith.constant 0 : index
    %580 = vector.load %arg12[%c32_309, %c0_310] : memref<64x128xbf16, #tpu.memory_space<vmem>>, vector<8x128xbf16>
    tpu.vector_store %arg12[%c32_309, %c0_310], %576 {strides = array<i32>} : memref<64x128xbf16, #tpu.memory_space<vmem>>, vector<8x128xbf16>,
    %c40_311 = arith.constant 40 : index
    %c0_312 = arith.constant 0 : index
    %581 = vector.load %arg11[%c40_311, %c0_312] : memref<64x512xbf16, #tpu.memory_space<vmem>>, vector<8x512xbf16>
    %582 = arith.extf %581 : vector<8x512xbf16> to vector<8x512xf32>
    %c1_313 = arith.constant 1 : index
    %c0_314 = arith.constant 0 : index
    %c0_315 = arith.constant 0 : index
    %583 = vector.load %arg9[%c1_313, %c0_314, %c0_315] : memref<2x8x128xbf16, #tpu.memory_space<vmem>>, vector<1x8x128xbf16>
    %584 = vector.shape_cast %583 : vector<1x8x128xbf16> to vector<8x128xbf16>
    %c1_316 = arith.constant 1 : index
    %c0_317 = arith.constant 0 : index
    %c0_318 = arith.constant 0 : index
    %585 = vector.load %arg4[%c1_316, %c0_317, %c0_318] : memref<2x128x512xbf16, #tpu.memory_space<vmem>>, vector<1x128x512xbf16>
    %586 = vector.shape_cast %585 : vector<1x128x512xbf16> to vector<128x512xbf16>
    %cst_319 = arith.constant dense<0.000000e+00> : vector<8x512xf32>
    %587 = tpu.matmul %584, %586, %cst_319 {dimension_numbers = #tpu.dot_dimension_numbers<[1], [0], [0], [1], [0, 0, 1, 1], [], []>} : vector<8x128xbf16>, vector<128x512xbf16>, vector<8x512xf32> -> vector<8x512xf32>
    %588 = arith.addf %582, %587 : vector<8x512xf32>
    %589 = vector.extract_strided_slice %588 {offsets = [0, 0], sizes = [8, 128], strides = [1, 1]} : vector<8x512xf32> to vector<8x128xf32>
    %590 = arith.negf %589 : vector<8x128xf32>
    %591 = math.exp %590 : vector<8x128xf32>
    %cst_320 = arith.constant 1.000000e+00 : f32
    %592 = vector.broadcast %cst_320 : f32 to vector<8x128xf32>
    %593 = arith.addf %592, %591 : vector<8x128xf32>
    %594 = arith.divf %592, %593 : vector<8x128xf32>
    %595 = vector.extract_strided_slice %588 {offsets = [0, 128], sizes = [8, 128], strides = [1, 1]} : vector<8x512xf32> to vector<8x128xf32>
    %596 = arith.negf %595 : vector<8x128xf32>
    %597 = math.exp %596 : vector<8x128xf32>
    %cst_321 = arith.constant 1.000000e+00 : f32
    %598 = vector.broadcast %cst_321 : f32 to vector<8x128xf32>
    %599 = arith.addf %598, %597 : vector<8x128xf32>
    %600 = arith.divf %598, %599 : vector<8x128xf32>
    %601 = vector.extract_strided_slice %588 {offsets = [0, 256], sizes = [8, 128], strides = [1, 1]} : vector<8x512xf32> to vector<8x128xf32>
    %602 = math.tanh %601 : vector<8x128xf32>
    %603 = vector.extract_strided_slice %588 {offsets = [0, 384], sizes = [8, 128], strides = [1, 1]} : vector<8x512xf32> to vector<8x128xf32>
    %604 = arith.negf %603 : vector<8x128xf32>
    %605 = math.exp %604 : vector<8x128xf32>
    %cst_322 = arith.constant 1.000000e+00 : f32
    %606 = vector.broadcast %cst_322 : f32 to vector<8x128xf32>
    %607 = arith.addf %606, %605 : vector<8x128xf32>
    %608 = arith.divf %606, %607 : vector<8x128xf32>
    %c1_323 = arith.constant 1 : index
    %c0_324 = arith.constant 0 : index
    %c0_325 = arith.constant 0 : index
    %609 = vector.load %arg10[%c1_323, %c0_324, %c0_325] : memref<2x8x128xf32, #tpu.memory_space<vmem>>, vector<1x8x128xf32>
    %610 = vector.shape_cast %609 : vector<1x8x128xf32> to vector<8x128xf32>
    %611 = arith.mulf %600, %610 : vector<8x128xf32>
    %612 = arith.mulf %594, %602 : vector<8x128xf32>
    %613 = arith.addf %611, %612 : vector<8x128xf32>
    %614 = math.tanh %613 : vector<8x128xf32>
    %615 = arith.mulf %608, %614 : vector<8x128xf32>
    %c1_326 = arith.constant 1 : index
    %c0_327 = arith.constant 0 : index
    %c0_328 = arith.constant 0 : index
    %616 = vector.load %arg10[%c1_326, %c0_327, %c0_328] : memref<2x8x128xf32, #tpu.memory_space<vmem>>, vector<1x8x128xf32>
    %617 = vector.shape_cast %616 : vector<1x8x128xf32> to vector<8x128xf32>
    %618 = vector.shape_cast %613 : vector<8x128xf32> to vector<1x8x128xf32>
    tpu.vector_store %arg10[%c1_326, %c0_327, %c0_328], %618 {strides = array<i32>} : memref<2x8x128xf32, #tpu.memory_space<vmem>>, vector<1x8x128xf32>,
    %619 = arith.truncf %615 : vector<8x128xf32> to vector<8x128xbf16>
    %c1_329 = arith.constant 1 : index
    %c0_330 = arith.constant 0 : index
    %c0_331 = arith.constant 0 : index
    %620 = vector.load %arg9[%c1_329, %c0_330, %c0_331] : memref<2x8x128xbf16, #tpu.memory_space<vmem>>, vector<1x8x128xbf16>
    %621 = vector.shape_cast %620 : vector<1x8x128xbf16> to vector<8x128xbf16>
    %622 = vector.shape_cast %619 : vector<8x128xbf16> to vector<1x8x128xbf16>
    tpu.vector_store %arg9[%c1_329, %c0_330, %c0_331], %622 {strides = array<i32>} : memref<2x8x128xbf16, #tpu.memory_space<vmem>>, vector<1x8x128xbf16>,
    %c40_332 = arith.constant 40 : index
    %c0_333 = arith.constant 0 : index
    %623 = vector.load %arg12[%c40_332, %c0_333] : memref<64x128xbf16, #tpu.memory_space<vmem>>, vector<8x128xbf16>
    tpu.vector_store %arg12[%c40_332, %c0_333], %619 {strides = array<i32>} : memref<64x128xbf16, #tpu.memory_space<vmem>>, vector<8x128xbf16>,
    %c48_334 = arith.constant 48 : index
    %c0_335 = arith.constant 0 : index
    %624 = vector.load %arg11[%c48_334, %c0_335] : memref<64x512xbf16, #tpu.memory_space<vmem>>, vector<8x512xbf16>
    %625 = arith.extf %624 : vector<8x512xbf16> to vector<8x512xf32>
    %c1_336 = arith.constant 1 : index
    %c0_337 = arith.constant 0 : index
    %c0_338 = arith.constant 0 : index
    %626 = vector.load %arg9[%c1_336, %c0_337, %c0_338] : memref<2x8x128xbf16, #tpu.memory_space<vmem>>, vector<1x8x128xbf16>
    %627 = vector.shape_cast %626 : vector<1x8x128xbf16> to vector<8x128xbf16>
    %c1_339 = arith.constant 1 : index
    %c0_340 = arith.constant 0 : index
    %c0_341 = arith.constant 0 : index
    %628 = vector.load %arg4[%c1_339, %c0_340, %c0_341] : memref<2x128x512xbf16, #tpu.memory_space<vmem>>, vector<1x128x512xbf16>
    %629 = vector.shape_cast %628 : vector<1x128x512xbf16> to vector<128x512xbf16>
    %cst_342 = arith.constant dense<0.000000e+00> : vector<8x512xf32>
    %630 = tpu.matmul %627, %629, %cst_342 {dimension_numbers = #tpu.dot_dimension_numbers<[1], [0], [0], [1], [0, 0, 1, 1], [], []>} : vector<8x128xbf16>, vector<128x512xbf16>, vector<8x512xf32> -> vector<8x512xf32>
    %631 = arith.addf %625, %630 : vector<8x512xf32>
    %632 = vector.extract_strided_slice %631 {offsets = [0, 0], sizes = [8, 128], strides = [1, 1]} : vector<8x512xf32> to vector<8x128xf32>
    %633 = arith.negf %632 : vector<8x128xf32>
    %634 = math.exp %633 : vector<8x128xf32>
    %cst_343 = arith.constant 1.000000e+00 : f32
    %635 = vector.broadcast %cst_343 : f32 to vector<8x128xf32>
    %636 = arith.addf %635, %634 : vector<8x128xf32>
    %637 = arith.divf %635, %636 : vector<8x128xf32>
    %638 = vector.extract_strided_slice %631 {offsets = [0, 128], sizes = [8, 128], strides = [1, 1]} : vector<8x512xf32> to vector<8x128xf32>
    %639 = arith.negf %638 : vector<8x128xf32>
    %640 = math.exp %639 : vector<8x128xf32>
    %cst_344 = arith.constant 1.000000e+00 : f32
    %641 = vector.broadcast %cst_344 : f32 to vector<8x128xf32>
    %642 = arith.addf %641, %640 : vector<8x128xf32>
    %643 = arith.divf %641, %642 : vector<8x128xf32>
    %644 = vector.extract_strided_slice %631 {offsets = [0, 256], sizes = [8, 128], strides = [1, 1]} : vector<8x512xf32> to vector<8x128xf32>
    %645 = math.tanh %644 : vector<8x128xf32>
    %646 = vector.extract_strided_slice %631 {offsets = [0, 384], sizes = [8, 128], strides = [1, 1]} : vector<8x512xf32> to vector<8x128xf32>
    %647 = arith.negf %646 : vector<8x128xf32>
    %648 = math.exp %647 : vector<8x128xf32>
    %cst_345 = arith.constant 1.000000e+00 : f32
    %649 = vector.broadcast %cst_345 : f32 to vector<8x128xf32>
    %650 = arith.addf %649, %648 : vector<8x128xf32>
    %651 = arith.divf %649, %650 : vector<8x128xf32>
    %c1_346 = arith.constant 1 : index
    %c0_347 = arith.constant 0 : index
    %c0_348 = arith.constant 0 : index
    %652 = vector.load %arg10[%c1_346, %c0_347, %c0_348] : memref<2x8x128xf32, #tpu.memory_space<vmem>>, vector<1x8x128xf32>
    %653 = vector.shape_cast %652 : vector<1x8x128xf32> to vector<8x128xf32>
    %654 = arith.mulf %643, %653 : vector<8x128xf32>
    %655 = arith.mulf %637, %645 : vector<8x128xf32>
    %656 = arith.addf %654, %655 : vector<8x128xf32>
    %657 = math.tanh %656 : vector<8x128xf32>
    %658 = arith.mulf %651, %657 : vector<8x128xf32>
    %c1_349 = arith.constant 1 : index
    %c0_350 = arith.constant 0 : index
    %c0_351 = arith.constant 0 : index
    %659 = vector.load %arg10[%c1_349, %c0_350, %c0_351] : memref<2x8x128xf32, #tpu.memory_space<vmem>>, vector<1x8x128xf32>
    %660 = vector.shape_cast %659 : vector<1x8x128xf32> to vector<8x128xf32>
    %661 = vector.shape_cast %656 : vector<8x128xf32> to vector<1x8x128xf32>
    tpu.vector_store %arg10[%c1_349, %c0_350, %c0_351], %661 {strides = array<i32>} : memref<2x8x128xf32, #tpu.memory_space<vmem>>, vector<1x8x128xf32>,
    %662 = arith.truncf %658 : vector<8x128xf32> to vector<8x128xbf16>
    %c1_352 = arith.constant 1 : index
    %c0_353 = arith.constant 0 : index
    %c0_354 = arith.constant 0 : index
    %663 = vector.load %arg9[%c1_352, %c0_353, %c0_354] : memref<2x8x128xbf16, #tpu.memory_space<vmem>>, vector<1x8x128xbf16>
    %664 = vector.shape_cast %663 : vector<1x8x128xbf16> to vector<8x128xbf16>
    %665 = vector.shape_cast %662 : vector<8x128xbf16> to vector<1x8x128xbf16>
    tpu.vector_store %arg9[%c1_352, %c0_353, %c0_354], %665 {strides = array<i32>} : memref<2x8x128xbf16, #tpu.memory_space<vmem>>, vector<1x8x128xbf16>,
    %c48_355 = arith.constant 48 : index
    %c0_356 = arith.constant 0 : index
    %666 = vector.load %arg12[%c48_355, %c0_356] : memref<64x128xbf16, #tpu.memory_space<vmem>>, vector<8x128xbf16>
    tpu.vector_store %arg12[%c48_355, %c0_356], %662 {strides = array<i32>} : memref<64x128xbf16, #tpu.memory_space<vmem>>, vector<8x128xbf16>,
    %c56_357 = arith.constant 56 : index
    %c0_358 = arith.constant 0 : index
    %667 = vector.load %arg11[%c56_357, %c0_358] : memref<64x512xbf16, #tpu.memory_space<vmem>>, vector<8x512xbf16>
    %668 = arith.extf %667 : vector<8x512xbf16> to vector<8x512xf32>
    %c1_359 = arith.constant 1 : index
    %c0_360 = arith.constant 0 : index
    %c0_361 = arith.constant 0 : index
    %669 = vector.load %arg9[%c1_359, %c0_360, %c0_361] : memref<2x8x128xbf16, #tpu.memory_space<vmem>>, vector<1x8x128xbf16>
    %670 = vector.shape_cast %669 : vector<1x8x128xbf16> to vector<8x128xbf16>
    %c1_362 = arith.constant 1 : index
    %c0_363 = arith.constant 0 : index
    %c0_364 = arith.constant 0 : index
    %671 = vector.load %arg4[%c1_362, %c0_363, %c0_364] : memref<2x128x512xbf16, #tpu.memory_space<vmem>>, vector<1x128x512xbf16>
    %672 = vector.shape_cast %671 : vector<1x128x512xbf16> to vector<128x512xbf16>
    %cst_365 = arith.constant dense<0.000000e+00> : vector<8x512xf32>
    %673 = tpu.matmul %670, %672, %cst_365 {dimension_numbers = #tpu.dot_dimension_numbers<[1], [0], [0], [1], [0, 0, 1, 1], [], []>} : vector<8x128xbf16>, vector<128x512xbf16>, vector<8x512xf32> -> vector<8x512xf32>
    %674 = arith.addf %668, %673 : vector<8x512xf32>
    %675 = vector.extract_strided_slice %674 {offsets = [0, 0], sizes = [8, 128], strides = [1, 1]} : vector<8x512xf32> to vector<8x128xf32>
    %676 = arith.negf %675 : vector<8x128xf32>
    %677 = math.exp %676 : vector<8x128xf32>
    %cst_366 = arith.constant 1.000000e+00 : f32
    %678 = vector.broadcast %cst_366 : f32 to vector<8x128xf32>
    %679 = arith.addf %678, %677 : vector<8x128xf32>
    %680 = arith.divf %678, %679 : vector<8x128xf32>
    %681 = vector.extract_strided_slice %674 {offsets = [0, 128], sizes = [8, 128], strides = [1, 1]} : vector<8x512xf32> to vector<8x128xf32>
    %682 = arith.negf %681 : vector<8x128xf32>
    %683 = math.exp %682 : vector<8x128xf32>
    %cst_367 = arith.constant 1.000000e+00 : f32
    %684 = vector.broadcast %cst_367 : f32 to vector<8x128xf32>
    %685 = arith.addf %684, %683 : vector<8x128xf32>
    %686 = arith.divf %684, %685 : vector<8x128xf32>
    %687 = vector.extract_strided_slice %674 {offsets = [0, 256], sizes = [8, 128], strides = [1, 1]} : vector<8x512xf32> to vector<8x128xf32>
    %688 = math.tanh %687 : vector<8x128xf32>
    %689 = vector.extract_strided_slice %674 {offsets = [0, 384], sizes = [8, 128], strides = [1, 1]} : vector<8x512xf32> to vector<8x128xf32>
    %690 = arith.negf %689 : vector<8x128xf32>
    %691 = math.exp %690 : vector<8x128xf32>
    %cst_368 = arith.constant 1.000000e+00 : f32
    %692 = vector.broadcast %cst_368 : f32 to vector<8x128xf32>
    %693 = arith.addf %692, %691 : vector<8x128xf32>
    %694 = arith.divf %692, %693 : vector<8x128xf32>
    %c1_369 = arith.constant 1 : index
    %c0_370 = arith.constant 0 : index
    %c0_371 = arith.constant 0 : index
    %695 = vector.load %arg10[%c1_369, %c0_370, %c0_371] : memref<2x8x128xf32, #tpu.memory_space<vmem>>, vector<1x8x128xf32>
    %696 = vector.shape_cast %695 : vector<1x8x128xf32> to vector<8x128xf32>
    %697 = arith.mulf %686, %696 : vector<8x128xf32>
    %698 = arith.mulf %680, %688 : vector<8x128xf32>
    %699 = arith.addf %697, %698 : vector<8x128xf32>
    %700 = math.tanh %699 : vector<8x128xf32>
    %701 = arith.mulf %694, %700 : vector<8x128xf32>
    %c1_372 = arith.constant 1 : index
    %c0_373 = arith.constant 0 : index
    %c0_374 = arith.constant 0 : index
    %702 = vector.load %arg10[%c1_372, %c0_373, %c0_374] : memref<2x8x128xf32, #tpu.memory_space<vmem>>, vector<1x8x128xf32>
    %703 = vector.shape_cast %702 : vector<1x8x128xf32> to vector<8x128xf32>
    %704 = vector.shape_cast %699 : vector<8x128xf32> to vector<1x8x128xf32>
    tpu.vector_store %arg10[%c1_372, %c0_373, %c0_374], %704 {strides = array<i32>} : memref<2x8x128xf32, #tpu.memory_space<vmem>>, vector<1x8x128xf32>,
    %705 = arith.truncf %701 : vector<8x128xf32> to vector<8x128xbf16>
    %c1_375 = arith.constant 1 : index
    %c0_376 = arith.constant 0 : index
    %c0_377 = arith.constant 0 : index
    %706 = vector.load %arg9[%c1_375, %c0_376, %c0_377] : memref<2x8x128xbf16, #tpu.memory_space<vmem>>, vector<1x8x128xbf16>
    %707 = vector.shape_cast %706 : vector<1x8x128xbf16> to vector<8x128xbf16>
    %708 = vector.shape_cast %705 : vector<8x128xbf16> to vector<1x8x128xbf16>
    tpu.vector_store %arg9[%c1_375, %c0_376, %c0_377], %708 {strides = array<i32>} : memref<2x8x128xbf16, #tpu.memory_space<vmem>>, vector<1x8x128xbf16>,
    %c56_378 = arith.constant 56 : index
    %c0_379 = arith.constant 0 : index
    %709 = vector.load %arg12[%c56_378, %c0_379] : memref<64x128xbf16, #tpu.memory_space<vmem>>, vector<8x128xbf16>
    tpu.vector_store %arg12[%c56_378, %c0_379], %705 {strides = array<i32>} : memref<64x128xbf16, #tpu.memory_space<vmem>>, vector<8x128xbf16>,
    %c0_380 = arith.constant 0 : index
    %c0_381 = arith.constant 0 : index
    %710 = vector.load %arg12[%c0_380, %c0_381] : memref<64x128xbf16, #tpu.memory_space<vmem>>, vector<64x128xbf16>
    %c0_382 = arith.constant 0 : index
    %c0_383 = arith.constant 0 : index
    %711 = vector.load %arg6[%c0_382, %c0_383] : memref<128x128xbf16, #tpu.memory_space<vmem>>, vector<128x128xbf16>
    %cst_384 = arith.constant dense<0.000000e+00> : vector<64x128xf32>
    %712 = tpu.matmul %710, %711, %cst_384 {dimension_numbers = #tpu.dot_dimension_numbers<[1], [0], [0], [1], [0, 0, 1, 1], [], []>} : vector<64x128xbf16>, vector<128x128xbf16>, vector<64x128xf32> -> vector<64x128xf32>
    %c0_385 = arith.constant 0 : index
    %c0_386 = arith.constant 0 : index
    %713 = vector.load %arg7[%c0_385, %c0_386] : memref<1x128xf32, #tpu.memory_space<vmem>>, vector<1x128xf32>
    %714 = vector.broadcast %713 : vector<1x128xf32> to vector<64x128xf32>
    %715 = arith.addf %712, %714 : vector<64x128xf32>
    %c0_387 = arith.constant 0 : index
    %c0_388 = arith.constant 0 : index
    %716 = vector.load %arg8[%c0_387, %c0_388] : memref<64x128xf32, #tpu.memory_space<vmem>>, vector<64x128xf32>
    tpu.vector_store %arg8[%c0_387, %c0_388], %715 {strides = array<i32>} : memref<64x128xf32, #tpu.memory_space<vmem>>, vector<64x128xf32>,
    return
  }
  func.func @transform_0(%arg0: i32) -> (i32, i32) {
    %c0_i32 = arith.constant 0 : i32
    %c0_i32_0 = arith.constant 0 : i32
    return %arg0, %c0_i32 : i32, i32
  }
  func.func @transform_1(%arg0: i32) -> (i32, i32) {
    %c0_i32 = arith.constant 0 : i32
    %c0_i32_0 = arith.constant 0 : i32
    %c0_i32_1 = arith.constant 0 : i32
    return %c0_i32, %c0_i32_0 : i32, i32
  }
  func.func @transform_2(%arg0: i32) -> (i32, i32, i32) {
    %c0_i32 = arith.constant 0 : i32
    %c0_i32_0 = arith.constant 0 : i32
    %c0_i32_1 = arith.constant 0 : i32
    %c0_i32_2 = arith.constant 0 : i32
    return %c0_i32, %c0_i32_0, %c0_i32_1 : i32, i32, i32
  }
  func.func @transform_3(%arg0: i32) -> (i32, i32, i32) {
    %c0_i32 = arith.constant 0 : i32
    %c0_i32_0 = arith.constant 0 : i32
    %c0_i32_1 = arith.constant 0 : i32
    %c0_i32_2 = arith.constant 0 : i32
    return %c0_i32, %c0_i32_0, %c0_i32_1 : i32, i32, i32
  }
  func.func @transform_4(%arg0: i32) -> (i32, i32, i32) {
    %c0_i32 = arith.constant 0 : i32
    %c0_i32_0 = arith.constant 0 : i32
    %c0_i32_1 = arith.constant 0 : i32
    %c0_i32_2 = arith.constant 0 : i32
    return %c0_i32, %c0_i32_0, %c0_i32_1 : i32, i32, i32
  }
  func.func @transform_5(%arg0: i32) -> (i32, i32) {
    %c0_i32 = arith.constant 0 : i32
    %c0_i32_0 = arith.constant 0 : i32
    %c0_i32_1 = arith.constant 0 : i32
    return %c0_i32, %c0_i32_0 : i32, i32
  }
  func.func @transform_6(%arg0: i32) -> (i32, i32) {
    %c0_i32 = arith.constant 0 : i32
    %c0_i32_0 = arith.constant 0 : i32
    %c0_i32_1 = arith.constant 0 : i32
    return %c0_i32, %c0_i32_0 : i32, i32
  }
  func.func @transform_7(%arg0: i32) -> (i32, i32) {
    %c0_i32 = arith.constant 0 : i32
    %c0_i32_0 = arith.constant 0 : i32
    return %arg0, %c0_i32 : i32, i32
  }
}

</mosaic_0001>

<llo_original>
// kernel: lstm_preference_model.1
$region0: #{lstm_preference_model.1}
  #allocation0 [shape = 'u32[]', space=smem, size = 0x4, offset = 0x4, fixed_abs, tag = 'smem constant byte address 0x4 - core index']
  #allocation1 [shape = 'u32[144,128]{1,0:T(1,128)}', space=vmem, size = 0x12000, scoped, tag = 'internal scratch']
  #allocation2 [shape = 'bf16[2,8,128]{2,1,0:T(8,128)(2,1)}', space=vmem, size = 0x1000, scoped, tag = 'scratch operand']
  #allocation3 [shape = 'f32[2,8,128]{2,1,0:T(8,128)}', space=vmem, size = 0x2000, scoped, tag = 'scratch operand']
  #allocation4 [shape = 'bf16[64,512]{1,0:T(16,128)(2,1)}', space=vmem, size = 0x10000, scoped, tag = 'scratch operand']
  #allocation5 [shape = 'bf16[64,128]{1,0:T(16,128)(2,1)}', space=vmem, size = 0x4000, scoped, tag = 'scratch operand']
  %s0 = inlined_call_operand.vmem [shape: bf16[64,128], index: 0, kind: input, shape index: {}]
  %s1 = inlined_call_operand.vmem [shape: bf16[128,512], index: 1, kind: input, shape index: {}]
  %s2 = inlined_call_operand.vmem [shape: bf16[1,128,512], index: 2, kind: input, shape index: {}]
  %s3 = inlined_call_operand.vmem [shape: bf16[2,128,512], index: 3, kind: input, shape index: {}]
  %s4 = inlined_call_operand.vmem [shape: f32[2,1,512], index: 4, kind: input, shape index: {}]
  %s5 = inlined_call_operand.vmem [shape: bf16[128,128], index: 5, kind: input, shape index: {}]
  %s6 = inlined_call_operand.vmem [shape: f32[1,128], index: 6, kind: input, shape index: {}]
  %s7 = inlined_call_operand.vmem [shape: f32[64,128], index: 7, kind: output, shape index: {}]
  %s8 = sld [smem:[#allocation0]]
  $region42: #{lstm_preference_model.1} parent=0
    _
  %s10 = ssub.s32 1, %s8
  %s11 = scalar_select 0, %s10, %s8
  // Predicated region
  $region2: #{lstm_preference_model.1} parent=0 // pred_check
    _
  $region3: #{lstm_preference_model.1} parent=0 // pred_check_branch
    %13 = sbr.rel (0) target = $region5
  $region4: #{lstm_preference_model.1} parent=0 // pred_region
    _
  $region5: #{lstm_preference_model.1} parent=0 // pred_fallthru
    _
  // Predicated region
  $region6: #{lstm_preference_model.1} parent=0 // pred_check
    _
  $region7: #{lstm_preference_model.1} parent=0 // pred_check_branch
    %15 = sbr.rel (0) target = $region9
  $region8: #{lstm_preference_model.1} parent=0 // pred_region
    _
  $region9: #{lstm_preference_model.1} parent=0 // pred_fallthru
    _
  // Predicated region
  $region10: #{lstm_preference_model.1} parent=0 // pred_check
    _
  $region11: #{lstm_preference_model.1} parent=0 // pred_check_branch
    %17 = sbr.rel (0) target = $region13
  $region12: #{lstm_preference_model.1} parent=0 // pred_region
    _
  $region13: #{lstm_preference_model.1} parent=0 // pred_fallthru
    _
  // Predicated region
  $region14: #{lstm_preference_model.1} parent=0 // pred_check
    _
  $region15: #{lstm_preference_model.1} parent=0 // pred_check_branch
    %19 = sbr.rel (0) target = $region17
  $region16: #{lstm_preference_model.1} parent=0 // pred_region
    _
  $region17: #{lstm_preference_model.1} parent=0 // pred_fallthru
    _
  // Predicated region
  $region18: #{lstm_preference_model.1} parent=0 // pred_check
    _
  $region19: #{lstm_preference_model.1} parent=0 // pred_check_branch
    %21 = sbr.rel (0) target = $region21
  $region20: #{lstm_preference_model.1} parent=0 // pred_region
    _
  $region21: #{lstm_preference_model.1} parent=0 // pred_fallthru
    _
  // Predicated region
  $region22: #{lstm_preference_model.1} parent=0 // pred_check
    _
  $region23: #{lstm_preference_model.1} parent=0 // pred_check_branch
    %23 = sbr.rel (0) target = $region25
  $region24: #{lstm_preference_model.1} parent=0 // pred_region
    _
  $region25: #{lstm_preference_model.1} parent=0 // pred_fallthru
    _
  // Predicated region
  $region26: #{lstm_preference_model.1} parent=0 // pred_check
    _
  $region27: #{lstm_preference_model.1} parent=0 // pred_check_branch
    %25 = sbr.rel (0) target = $region29
  $region28: #{lstm_preference_model.1} parent=0 // pred_region
    _
  $region29: #{lstm_preference_model.1} parent=0 // pred_fallthru
    _
  %p27 = scmp.eq.s32.totalorder 0, 0
  // Predicated region
  $region30: #{lstm_preference_model.1} parent=0 // pred_check
    %p28 = pneg %p27
  $region31: #{lstm_preference_model.1} parent=0 // pred_check_branch
    %30 = sbr.rel (%p28) target = $region33
  $region32: #{lstm_preference_model.1} parent=0 // pred_region
    %31 = vst [vmem:[#allocation2] sm:$0xf] 0
    %32 = vst [vmem:[#allocation2 + $0x4] sm:$0xf] 0
    %33 = vst [vmem:[#allocation3] sm:$0xff] 0.0
    %34 = vst [vmem:[#allocation3 + $0x8] sm:$0xff] 0.0
  $region33: #{lstm_preference_model.1} parent=0 // pred_fallthru
    _
  %v35 = vld [vmem:[%s0] sm:$0xf]
  %v36 = vld [vmem:[%s0 + $0x4] sm:$0xf]
  %v37 = vld [vmem:[%s0 + $0x8] sm:$0xf]
  %v38 = vld [vmem:[%s0 + $0xc] sm:$0xf]
  %v39 = vld [vmem:[%s0 + $0x10] sm:$0xf]
  %v40 = vld [vmem:[%s0 + $0x14] sm:$0xf]
  %v41 = vld [vmem:[%s0 + $0x18] sm:$0xf]
  %v42 = vld [vmem:[%s0 + $0x1c] sm:$0xf]
  %v43 = vld [vmem:[%s1] sm:$0xff]
  %v44 = vld [vmem:[%s1 + $0x8] sm:$0xff]
  %v45 = vld [vmem:[%s1 + $0x10] sm:$0xff]
  %v46 = vld [vmem:[%s1 + $0x18] sm:$0xff]
  %v47 = vld [vmem:[%s1 + $0x20] sm:$0xff]
  %v48 = vld [vmem:[%s1 + $0x28] sm:$0xff]
  %v49 = vld [vmem:[%s1 + $0x30] sm:$0xff]
  %v50 = vld [vmem:[%s1 + $0x38] sm:$0xff]
  %v51 = vld [vmem:[%s1 + $0x40] sm:$0xff]
  %v52 = vld [vmem:[%s1 + $0x48] sm:$0xff]
  %v53 = vld [vmem:[%s1 + $0x50] sm:$0xff]
  %v54 = vld [vmem:[%s1 + $0x58] sm:$0xff]
  %v55 = vld [vmem:[%s1 + $0x60] sm:$0xff]
  %v56 = vld [vmem:[%s1 + $0x68] sm:$0xff]
  %v57 = vld [vmem:[%s1 + $0x70] sm:$0xff]
  %v58 = vld [vmem:[%s1 + $0x78] sm:$0xff]
  %v59 = vld [vmem:[%s1 + $0x80] sm:$0xff]
  %v60 = vld [vmem:[%s1 + $0x88] sm:$0xff]
  %v61 = vld [vmem:[%s1 + $0x90] sm:$0xff]
  %v62 = vld [vmem:[%s1 + $0x98] sm:$0xff]
  %v63 = vld [vmem:[%s1 + $0xa0] sm:$0xff]
  %v64 = vld [vmem:[%s1 + $0xa8] sm:$0xff]
  %v65 = vld [vmem:[%s1 + $0xb0] sm:$0xff]
  %v66 = vld [vmem:[%s1 + $0xb8] sm:$0xff]
  %v67 = vld [vmem:[%s1 + $0xc0] sm:$0xff]
  %v68 = vld [vmem:[%s1 + $0xc8] sm:$0xff]
  %v69 = vld [vmem:[%s1 + $0xd0] sm:$0xff]
  %v70 = vld [vmem:[%s1 + $0xd8] sm:$0xff]
  %v71 = vld [vmem:[%s1 + $0xe0] sm:$0xff]
  %v72 = vld [vmem:[%s1 + $0xe8] sm:$0xff]
  %v73 = vld [vmem:[%s1 + $0xf0] sm:$0xff]
  %v74 = vld [vmem:[%s1 + $0xf8] sm:$0xff]
  %v75 = vld [vmem:[%s4] sm:$0xf]
  %v77 = vlaneseq
  %v78 = vshrl.u32 %v77, 7
  %v79 = vsub.s32 0, %v78
  %v80 = vrot.slane %v75, %v79
  %v81 = vlaneseq
  %v82 = vshrl.u32 %v81, 7
  %v83 = vsub.s32 1, %v82
  %v84 = vrot.slane %v75, %v83
  %v85 = vlaneseq
  %v86 = vshrl.u32 %v85, 7
  %v87 = vsub.s32 2, %v86
  %v88 = vrot.slane %v75, %v87
  %v89 = vlaneseq
  %v90 = vshrl.u32 %v89, 7
  %v91 = vsub.s32 3, %v90
  %v92 = vrot.slane %v75, %v91
  %v105 = vunpack.c.l.b16 %v35
  %v106 = vunpack.c.l.b16 %v36
  %v107 = vunpack.c.l.b16 %v37
  %v108 = vunpack.c.l.b16 %v38
  %v109 = vunpack.c.l.b16 %v39
  %v110 = vunpack.c.l.b16 %v40
  %v111 = vunpack.c.l.b16 %v41
  %v112 = vunpack.c.l.b16 %v42
  %v113 = vpack.c.b16 %v106, %v105
  %v114 = vpack.c.b16 %v108, %v107
  %v115 = vpack.c.b16 %v110, %v109
  %v116 = vpack.c.b16 %v112, %v111
  %v153 = vunpack.c.l.b16 %v43
  %v154 = vunpack.c.h.b16 %v43
  %v155 = vunpack.c.l.b16 %v44
  %v156 = vunpack.c.h.b16 %v44
  %v157 = vunpack.c.l.b16 %v45
  %v158 = vunpack.c.h.b16 %v45
  %v159 = vunpack.c.l.b16 %v46
  %v160 = vunpack.c.h.b16 %v46
  %v161 = vunpack.c.l.b16 %v47
  %v162 = vunpack.c.h.b16 %v47
  %v163 = vunpack.c.l.b16 %v48
  %v164 = vunpack.c.h.b16 %v48
  %v165 = vunpack.c.l.b16 %v49
  %v166 = vunpack.c.h.b16 %v49
  %v167 = vunpack.c.l.b16 %v50
  %v168 = vunpack.c.h.b16 %v50
  %v169 = vunpack.c.l.b16 %v51
  %v170 = vunpack.c.h.b16 %v51
  %v171 = vunpack.c.l.b16 %v52
  %v172 = vunpack.c.h.b16 %v52
  %v173 = vunpack.c.l.b16 %v53
  %v174 = vunpack.c.h.b16 %v53
  %v175 = vunpack.c.l.b16 %v54
  %v176 = vunpack.c.h.b16 %v54
  %v177 = vunpack.c.l.b16 %v55
  %v178 = vunpack.c.h.b16 %v55
  %v179 = vunpack.c.l.b16 %v56
  %v180 = vunpack.c.h.b16 %v56
  %v181 = vunpack.c.l.b16 %v57
  %v182 = vunpack.c.h.b16 %v57
  %v183 = vunpack.c.l.b16 %v58
  %v184 = vunpack.c.h.b16 %v58
  %v185 = vunpack.c.l.b16 %v59
  %v186 = vunpack.c.h.b16 %v59
  %v187 = vunpack.c.l.b16 %v60
  %v188 = vunpack.c.h.b16 %v60
  %v189 = vunpack.c.l.b16 %v61
  %v190 = vunpack.c.h.b16 %v61
  %v191 = vunpack.c.l.b16 %v62
  %v192 = vunpack.c.h.b16 %v62
  %v193 = vunpack.c.l.b16 %v63
  %v194 = vunpack.c.h.b16 %v63
  %v195 = vunpack.c.l.b16 %v64
  %v196 = vunpack.c.h.b16 %v64
  %v197 = vunpack.c.l.b16 %v65
  %v198 = vunpack.c.h.b16 %v65
  %v199 = vunpack.c.l.b16 %v66
  %v200 = vunpack.c.h.b16 %v66
  %v201 = vunpack.c.l.b16 %v67
  %v202 = vunpack.c.h.b16 %v67
  %v203 = vunpack.c.l.b16 %v68
  %v204 = vunpack.c.h.b16 %v68
  %v205 = vunpack.c.l.b16 %v69
  %v206 = vunpack.c.h.b16 %v69
  %v207 = vunpack.c.l.b16 %v70
  %v208 = vunpack.c.h.b16 %v70
  %v209 = vunpack.c.l.b16 %v71
  %v210 = vunpack.c.h.b16 %v71
  %v211 = vunpack.c.l.b16 %v72
  %v212 = vunpack.c.h.b16 %v72
  %v213 = vunpack.c.l.b16 %v73
  %v214 = vunpack.c.h.b16 %v73
  %v215 = vunpack.c.l.b16 %v74
  %v216 = vunpack.c.h.b16 %v74
  %v217 = vpack.c.b16 %v157, %v153
  %v218 = vpack.c.b16 %v158, %v154
  %v219 = vpack.c.b16 %v159, %v155
  %v220 = vpack.c.b16 %v160, %v156
  %v221 = vpack.c.b16 %v165, %v161
  %v222 = vpack.c.b16 %v166, %v162
  %v223 = vpack.c.b16 %v167, %v163
  %v224 = vpack.c.b16 %v168, %v164
  %v225 = vpack.c.b16 %v173, %v169
  %v226 = vpack.c.b16 %v174, %v170
  %v227 = vpack.c.b16 %v175, %v171
  %v228 = vpack.c.b16 %v176, %v172
  %v229 = vpack.c.b16 %v181, %v177
  %v230 = vpack.c.b16 %v182, %v178
  %v231 = vpack.c.b16 %v183, %v179
  %v232 = vpack.c.b16 %v184, %v180
  %v233 = vpack.c.b16 %v189, %v185
  %v234 = vpack.c.b16 %v190, %v186
  %v235 = vpack.c.b16 %v191, %v187
  %v236 = vpack.c.b16 %v192, %v188
  %v237 = vpack.c.b16 %v197, %v193
  %v238 = vpack.c.b16 %v198, %v194
  %v239 = vpack.c.b16 %v199, %v195
  %v240 = vpack.c.b16 %v200, %v196
  %v241 = vpack.c.b16 %v205, %v201
  %v242 = vpack.c.b16 %v206, %v202
  %v243 = vpack.c.b16 %v207, %v203
  %v244 = vpack.c.b16 %v208, %v204
  %v245 = vpack.c.b16 %v213, %v209
  %v246 = vpack.c.b16 %v214, %v210
  %v247 = vpack.c.b16 %v215, %v211
  %v248 = vpack.c.b16 %v216, %v212
  %281 = vmatprep.subr.bf16.mxu0 %v218
  %282 = vmatpush1.bf16.msra.mxu0 %v217
  %283 = vmatprep.subr.bf16.mxu0 %v222
  %284 = vmatpush1.bf16.msra.mxu0 %v221
  %285 = vmatprep.subr.bf16.mxu0 %v226
  %286 = vmatpush1.bf16.msra.mxu0 %v225
  %287 = vmatprep.subr.bf16.mxu0 %v230
  %288 = vmatpush1.bf16.msra.mxu0 %v229
  %289 = vmatprep.subr.bf16.mxu0 %v234
  %290 = vmatpush1.bf16.msra.mxu0 %v233
  %291 = vmatprep.subr.bf16.mxu0 %v238
  %292 = vmatpush1.bf16.msra.mxu0 %v237
  %293 = vmatprep.subr.bf16.mxu0 %v242
  %294 = vmatpush1.bf16.msra.mxu0 %v241
  %295 = vmatprep.subr.bf16.mxu0 %v246
  %296 = vmatpush1.bf16.msra.mxu0 %v245
  %297 = vmatprep.subr.bf16.mxu0 0
  %298 = vmatpush1.bf16.msra.mxu0 0
  %299 = vmatprep.subr.bf16.mxu0 0
  %300 = vmatpush1.bf16.msra.mxu0 0
  %301 = vmatprep.subr.bf16.mxu0 0
  %302 = vmatpush1.bf16.msra.mxu0 0
  %303 = vmatprep.subr.bf16.mxu0 0
  %304 = vmatpush1.bf16.msra.mxu0 0
  %305 = vmatprep.subr.bf16.mxu0 0
  %306 = vmatpush1.bf16.msra.mxu0 0
  %307 = vmatprep.subr.bf16.mxu0 0
  %308 = vmatpush1.bf16.msra.mxu0 0
  %309 = vmatprep.subr.bf16.mxu0 0
  %310 = vmatpush1.bf16.msra.mxu0 0
  %311 = vmatprep.subr.bf16.mxu0 0
  %312 = vmatpush1.bf16.msra.mxu0 0
  %313 = vmatprep.mubr.bf16.mxu0 0
  %314 = vmatmul.mubr.bf16.gmra.mrb[0].mxu0 %v113
  %v315 = vpop.f32.mrb[0].mxu0
  %v316 = vadd.f32 %v80, %v315
  %v317 = vpop.f32.mrb[0].mxu0
  %v318 = vadd.f32 %v84, %v317
  %v319 = vpop.f32.mrb[0].mxu0
  %v320 = vadd.f32 %v80, %v319
  %v321 = vpop.f32.mrb[0].mxu0
  %v322 = vadd.f32 %v84, %v321
  %323 = vmatprep.mubr.bf16.mxu0 0
  %324 = vmatmul.mubr.bf16.gmra.mrb[0].mxu0 %v114
  %v325 = vpop.f32.mrb[0].mxu0
  %v326 = vadd.f32 %v80, %v325
  %v327 = vpop.f32.mrb[0].mxu0
  %v328 = vadd.f32 %v84, %v327
  %v329 = vpop.f32.mrb[0].mxu0
  %v330 = vadd.f32 %v80, %v329
  %v331 = vpop.f32.mrb[0].mxu0
  %v332 = vadd.f32 %v84, %v331
  %333 = vmatprep.mubr.bf16.mxu0 0
  %334 = vmatmul.mubr.bf16.gmra.mrb[0].mxu0 %v115
  %v335 = vpop.f32.mrb[0].mxu0
  %v336 = vadd.f32 %v80, %v335
  %v337 = vpop.f32.mrb[0].mxu0
  %v338 = vadd.f32 %v84, %v337
  %v339 = vpop.f32.mrb[0].mxu0
  %v340 = vadd.f32 %v80, %v339
  %v341 = vpop.f32.mrb[0].mxu0
  %v342 = vadd.f32 %v84, %v341
  %343 = vmatprep.mubr.bf16.mxu0 0
  %344 = vmatmul.mubr.bf16.gmra.mrb[0].mxu0 %v116
  %v345 = vpop.f32.mrb[0].mxu0
  %v346 = vadd.f32 %v80, %v345
  %v347 = vpop.f32.mrb[0].mxu0
  %v348 = vadd.f32 %v84, %v347
  %v349 = vpop.f32.mrb[0].mxu0
  %v350 = vadd.f32 %v80, %v349
  %v351 = vpop.f32.mrb[0].mxu0
  %v352 = vadd.f32 %v84, %v351
  %353 = vdwg.mxu0
  %354 = vmatprep.subr.bf16.mxu0 %v220
  %355 = vmatpush1.bf16.msra.mxu0 %v219
  %356 = vmatprep.subr.bf16.mxu0 %v224
  %357 = vmatpush1.bf16.msra.mxu0 %v223
  %358 = vmatprep.subr.bf16.mxu0 %v228
  %359 = vmatpush1.bf16.msra.mxu0 %v227
  %360 = vmatprep.subr.bf16.mxu0 %v232
  %361 = vmatpush1.bf16.msra.mxu0 %v231
  %362 = vmatprep.subr.bf16.mxu0 %v236
  %363 = vmatpush1.bf16.msra.mxu0 %v235
  %364 = vmatprep.subr.bf16.mxu0 %v240
  %365 = vmatpush1.bf16.msra.mxu0 %v239
  %366 = vmatprep.subr.bf16.mxu0 %v244
  %367 = vmatpush1.bf16.msra.mxu0 %v243
  %368 = vmatprep.subr.bf16.mxu0 %v248
  %369 = vmatpush1.bf16.msra.mxu0 %v247
  %370 = vmatprep.subr.bf16.mxu0 0
  %371 = vmatpush1.bf16.msra.mxu0 0
  %372 = vmatprep.subr.bf16.mxu0 0
  %373 = vmatpush1.bf16.msra.mxu0 0
  %374 = vmatprep.subr.bf16.mxu0 0
  %375 = vmatpush1.bf16.msra.mxu0 0
  %376 = vmatprep.subr.bf16.mxu0 0
  %377 = vmatpush1.bf16.msra.mxu0 0
  %378 = vmatprep.subr.bf16.mxu0 0
  %379 = vmatpush1.bf16.msra.mxu0 0
  %380 = vmatprep.subr.bf16.mxu0 0
  %381 = vmatpush1.bf16.msra.mxu0 0
  %382 = vmatprep.subr.bf16.mxu0 0
  %383 = vmatpush1.bf16.msra.mxu0 0
  %384 = vmatprep.subr.bf16.mxu0 0
  %385 = vmatpush1.bf16.msra.mxu0 0
  %386 = vmatprep.mubr.bf16.mxu0 0
  %387 = vmatmul.mubr.bf16.gmra.mrb[0].mxu0 %v113
  %v388 = vpop.f32.mrb[0].mxu0
  %v389 = vadd.f32 %v88, %v388
  %v390 = vpop.f32.mrb[0].mxu0
  %v391 = vadd.f32 %v92, %v390
  %v392 = vpop.f32.mrb[0].mxu0
  %v393 = vadd.f32 %v88, %v392
  %v394 = vpop.f32.mrb[0].mxu0
  %v395 = vadd.f32 %v92, %v394
  %396 = vmatprep.mubr.bf16.mxu0 0
  %397 = vmatmul.mubr.bf16.gmra.mrb[0].mxu0 %v114
  %v398 = vpop.f32.mrb[0].mxu0
  %v399 = vadd.f32 %v88, %v398
  %v400 = vpop.f32.mrb[0].mxu0
  %v401 = vadd.f32 %v92, %v400
  %v402 = vpop.f32.mrb[0].mxu0
  %v403 = vadd.f32 %v88, %v402
  %v404 = vpop.f32.mrb[0].mxu0
  %v405 = vadd.f32 %v92, %v404
  %406 = vmatprep.mubr.bf16.mxu0 0
  %407 = vmatmul.mubr.bf16.gmra.mrb[0].mxu0 %v115
  %v408 = vpop.f32.mrb[0].mxu0
  %v409 = vadd.f32 %v88, %v408
  %v410 = vpop.f32.mrb[0].mxu0
  %v411 = vadd.f32 %v92, %v410
  %v412 = vpop.f32.mrb[0].mxu0
  %v413 = vadd.f32 %v88, %v412
  %v414 = vpop.f32.mrb[0].mxu0
  %v415 = vadd.f32 %v92, %v414
  %416 = vmatprep.mubr.bf16.mxu0 0
  %417 = vmatmul.mubr.bf16.gmra.mrb[0].mxu0 %v116
  %v418 = vpop.f32.mrb[0].mxu0
  %v419 = vadd.f32 %v88, %v418
  %v420 = vpop.f32.mrb[0].mxu0
  %v421 = vadd.f32 %v92, %v420
  %v422 = vpop.f32.mrb[0].mxu0
  %v423 = vadd.f32 %v88, %v422
  %v424 = vpop.f32.mrb[0].mxu0
  %v425 = vadd.f32 %v92, %v424
  %426 = vdwg.mxu0
  %v427 = vpack.c.bf16 %v320, %v316
  %v428 = vpack.c.bf16 %v322, %v318
  %v429 = vpack.c.bf16 %v393, %v389
  %v430 = vpack.c.bf16 %v395, %v391
  %v431 = vpack.c.bf16 %v330, %v326
  %v432 = vpack.c.bf16 %v332, %v328
  %v433 = vpack.c.bf16 %v403, %v399
  %v434 = vpack.c.bf16 %v405, %v401
  %v435 = vpack.c.bf16 %v340, %v336
  %v436 = vpack.c.bf16 %v342, %v338
  %v437 = vpack.c.bf16 %v413, %v409
  %v438 = vpack.c.bf16 %v415, %v411
  %v439 = vpack.c.bf16 %v350, %v346
  %v440 = vpack.c.bf16 %v352, %v348
  %v441 = vpack.c.bf16 %v423, %v419
  %v442 = vpack.c.bf16 %v425, %v421
  %443 = vst [vmem:[#allocation4] sm:$0xff] %v427
  %444 = vst [vmem:[#allocation4 + $0x8] sm:$0xff] %v428
  %445 = vst [vmem:[#allocation4 + $0x10] sm:$0xff] %v429
  %446 = vst [vmem:[#allocation4 + $0x18] sm:$0xff] %v430
  %447 = vst [vmem:[#allocation4 + $0x20] sm:$0xff] %v431
  %448 = vst [vmem:[#allocation4 + $0x28] sm:$0xff] %v432
  %449 = vst [vmem:[#allocation4 + $0x30] sm:$0xff] %v433
  %450 = vst [vmem:[#allocation4 + $0x38] sm:$0xff] %v434
  %451 = vst [vmem:[#allocation4 + $0x40] sm:$0xff] %v435
  %452 = vst [vmem:[#allocation4 + $0x48] sm:$0xff] %v436
  %453 = vst [vmem:[#allocation4 + $0x50] sm:$0xff] %v437
  %454 = vst [vmem:[#allocation4 + $0x58] sm:$0xff] %v438
  %455 = vst [vmem:[#allocation4 + $0x60] sm:$0xff] %v439
  %456 = vst [vmem:[#allocation4 + $0x68] sm:$0xff] %v440
  %457 = vst [vmem:[#allocation4 + $0x70] sm:$0xff] %v441
  %458 = vst [vmem:[#allocation4 + $0x78] sm:$0xff] %v442
  %v459 = vld [vmem:[#allocation4] sm:$0xf]
  %v460 = vld [vmem:[#allocation4 + $0x8] sm:$0xf]
  %v461 = vld [vmem:[#allocation4 + $0x10] sm:$0xf]
  %v462 = vld [vmem:[#allocation4 + $0x18] sm:$0xf]
  %v463 = vunpack.c.l.bf16 %v459
  %v464 = vunpack.c.l.bf16 %v460
  %v465 = vunpack.c.l.bf16 %v461
  %v466 = vunpack.c.l.bf16 %v462
  %v467 = vld [vmem:[#allocation2] sm:$0xf]
  %v468 = vld [vmem:[%s3] sm:$0xff]
  %v469 = vld [vmem:[%s3 + $0x8] sm:$0xff]
  %v470 = vld [vmem:[%s3 + $0x10] sm:$0xff]
  %v471 = vld [vmem:[%s3 + $0x18] sm:$0xff]
  %v472 = vld [vmem:[%s3 + $0x20] sm:$0xff]
  %v473 = vld [vmem:[%s3 + $0x28] sm:$0xff]
  %v474 = vld [vmem:[%s3 + $0x30] sm:$0xff]
  %v475 = vld [vmem:[%s3 + $0x38] sm:$0xff]
  %v476 = vld [vmem:[%s3 + $0x40] sm:$0xff]
  %v477 = vld [vmem:[%s3 + $0x48] sm:$0xff]
  %v478 = vld [vmem:[%s3 + $0x50] sm:$0xff]
  %v479 = vld [vmem:[%s3 + $0x58] sm:$0xff]
  %v480 = vld [vmem:[%s3 + $0x60] sm:$0xff]
  %v481 = vld [vmem:[%s3 + $0x68] sm:$0xff]
  %v482 = vld [vmem:[%s3 + $0x70] sm:$0xff]
  %v483 = vld [vmem:[%s3 + $0x78] sm:$0xff]
  %v484 = vld [vmem:[%s3 + $0x80] sm:$0xff]
  %v485 = vld [vmem:[%s3 + $0x88] sm:$0xff]
  %v486 = vld [vmem:[%s3 + $0x90] sm:$0xff]
  %v487 = vld [vmem:[%s3 + $0x98] sm:$0xff]
  %v488 = vld [vmem:[%s3 + $0xa0] sm:$0xff]
  %v489 = vld [vmem:[%s3 + $0xa8] sm:$0xff]
  %v490 = vld [vmem:[%s3 + $0xb0] sm:$0xff]
  %v491 = vld [vmem:[%s3 + $0xb8] sm:$0xff]
  %v492 = vld [vmem:[%s3 + $0xc0] sm:$0xff]
  %v493 = vld [vmem:[%s3 + $0xc8] sm:$0xff]
  %v494 = vld [vmem:[%s3 + $0xd0] sm:$0xff]
  %v495 = vld [vmem:[%s3 + $0xd8] sm:$0xff]
  %v496 = vld [vmem:[%s3 + $0xe0] sm:$0xff]
  %v497 = vld [vmem:[%s3 + $0xe8] sm:$0xff]
  %v498 = vld [vmem:[%s3 + $0xf0] sm:$0xff]
  %v499 = vld [vmem:[%s3 + $0xf8] sm:$0xff]
  %v532 = vunpack.c.l.b16 %v468
  %v533 = vunpack.c.h.b16 %v468
  %v534 = vunpack.c.l.b16 %v469
  %v535 = vunpack.c.h.b16 %v469
  %v536 = vunpack.c.l.b16 %v470
  %v537 = vunpack.c.h.b16 %v470
  %v538 = vunpack.c.l.b16 %v471
  %v539 = vunpack.c.h.b16 %v471
  %v540 = vunpack.c.l.b16 %v472
  %v541 = vunpack.c.h.b16 %v472
  %v542 = vunpack.c.l.b16 %v473
  %v543 = vunpack.c.h.b16 %v473
  %v544 = vunpack.c.l.b16 %v474
  %v545 = vunpack.c.h.b16 %v474
  %v546 = vunpack.c.l.b16 %v475
  %v547 = vunpack.c.h.b16 %v475
  %v548 = vunpack.c.l.b16 %v476
  %v549 = vunpack.c.h.b16 %v476
  %v550 = vunpack.c.l.b16 %v477
  %v551 = vunpack.c.h.b16 %v477
  %v552 = vunpack.c.l.b16 %v478
  %v553 = vunpack.c.h.b16 %v478
  %v554 = vunpack.c.l.b16 %v479
  %v555 = vunpack.c.h.b16 %v479
  %v556 = vunpack.c.l.b16 %v480
  %v557 = vunpack.c.h.b16 %v480
  %v558 = vunpack.c.l.b16 %v481
  %v559 = vunpack.c.h.b16 %v481
  %v560 = vunpack.c.l.b16 %v482
  %v561 = vunpack.c.h.b16 %v482
  %v562 = vunpack.c.l.b16 %v483
  %v563 = vunpack.c.h.b16 %v483
  %v564 = vunpack.c.l.b16 %v484
  %v565 = vunpack.c.h.b16 %v484
  %v566 = vunpack.c.l.b16 %v485
  %v567 = vunpack.c.h.b16 %v485
  %v568 = vunpack.c.l.b16 %v486
  %v569 = vunpack.c.h.b16 %v486
  %v570 = vunpack.c.l.b16 %v487
  %v571 = vunpack.c.h.b16 %v487
  %v572 = vunpack.c.l.b16 %v488
  %v573 = vunpack.c.h.b16 %v488
  %v574 = vunpack.c.l.b16 %v489
  %v575 = vunpack.c.h.b16 %v489
  %v576 = vunpack.c.l.b16 %v490
  %v577 = vunpack.c.h.b16 %v490
  %v578 = vunpack.c.l.b16 %v491
  %v579 = vunpack.c.h.b16 %v491
  %v580 = vunpack.c.l.b16 %v492
  %v581 = vunpack.c.h.b16 %v492
  %v582 = vunpack.c.l.b16 %v493
  %v583 = vunpack.c.h.b16 %v493
  %v584 = vunpack.c.l.b16 %v494
  %v585 = vunpack.c.h.b16 %v494
  %v586 = vunpack.c.l.b16 %v495
  %v587 = vunpack.c.h.b16 %v495
  %v588 = vunpack.c.l.b16 %v496
  %v589 = vunpack.c.h.b16 %v496
  %v590 = vunpack.c.l.b16 %v497
  %v591 = vunpack.c.h.b16 %v497
  %v592 = vunpack.c.l.b16 %v498
  %v593 = vunpack.c.h.b16 %v498
  %v594 = vunpack.c.l.b16 %v499
  %v595 = vunpack.c.h.b16 %v499
  %v596 = vpack.c.b16 %v536, %v532
  %v597 = vpack.c.b16 %v537, %v533
  %v598 = vpack.c.b16 %v538, %v534
  %v599 = vpack.c.b16 %v539, %v535
  %v600 = vpack.c.b16 %v544, %v540
  %v601 = vpack.c.b16 %v545, %v541
  %v602 = vpack.c.b16 %v546, %v542
  %v603 = vpack.c.b16 %v547, %v543
  %v604 = vpack.c.b16 %v552, %v548
  %v605 = vpack.c.b16 %v553, %v549
  %v606 = vpack.c.b16 %v554, %v550
  %v607 = vpack.c.b16 %v555, %v551
  %v608 = vpack.c.b16 %v560, %v556
  %v609 = vpack.c.b16 %v561, %v557
  %v610 = vpack.c.b16 %v562, %v558
  %v611 = vpack.c.b16 %v563, %v559
  %v612 = vpack.c.b16 %v568, %v564
  %v613 = vpack.c.b16 %v569, %v565
  %v614 = vpack.c.b16 %v570, %v566
  %v615 = vpack.c.b16 %v571, %v567
  %v616 = vpack.c.b16 %v576, %v572
  %v617 = vpack.c.b16 %v577, %v573
  %v618 = vpack.c.b16 %v578, %v574
  %v619 = vpack.c.b16 %v579, %v575
  %v620 = vpack.c.b16 %v584, %v580
  %v621 = vpack.c.b16 %v585, %v581
  %v622 = vpack.c.b16 %v586, %v582
  %v623 = vpack.c.b16 %v587, %v583
  %v624 = vpack.c.b16 %v592, %v588
  %v625 = vpack.c.b16 %v593, %v589
  %v626 = vpack.c.b16 %v594, %v590
  %v627 = vpack.c.b16 %v595, %v591
  %660 = vmatprep.subr.bf16.mxu0 %v597
  %661 = vmatpush1.bf16.msra.mxu0 %v596
  %662 = vmatprep.subr.bf16.mxu0 %v601
  %663 = vmatpush1.bf16.msra.mxu0 %v600
  %664 = vmatprep.subr.bf16.mxu0 %v605
  %665 = vmatpush1.bf16.msra.mxu0 %v604
  %666 = vmatprep.subr.bf16.mxu0 %v609
  %667 = vmatpush1.bf16.msra.mxu0 %v608
  %668 = vmatprep.subr.bf16.mxu0 %v613
  %669 = vmatpush1.bf16.msra.mxu0 %v612
  %670 = vmatprep.subr.bf16.mxu0 %v617
  %671 = vmatpush1.bf16.msra.mxu0 %v616
  %672 = vmatprep.subr.bf16.mxu0 %v621
  %673 = vmatpush1.bf16.msra.mxu0 %v620
  %674 = vmatprep.subr.bf16.mxu0 %v625
  %675 = vmatpush1.bf16.msra.mxu0 %v624
  %676 = vmatprep.subr.bf16.mxu0 0
  %677 = vmatpush1.bf16.msra.mxu0 0
  %678 = vmatprep.subr.bf16.mxu0 0
  %679 = vmatpush1.bf16.msra.mxu0 0
  %680 = vmatprep.subr.bf16.mxu0 0
  %681 = vmatpush1.bf16.msra.mxu0 0
  %682 = vmatprep.subr.bf16.mxu0 0
  %683 = vmatpush1.bf16.msra.mxu0 0
  %684 = vmatprep.subr.bf16.mxu0 0
  %685 = vmatpush1.bf16.msra.mxu0 0
  %686 = vmatprep.subr.bf16.mxu0 0
  %687 = vmatpush1.bf16.msra.mxu0 0
  %688 = vmatprep.subr.bf16.mxu0 0
  %689 = vmatpush1.bf16.msra.mxu0 0
  %690 = vmatprep.subr.bf16.mxu0 0
  %691 = vmatpush1.bf16.msra.mxu0 0
  %692 = vmatprep.mubr.bf16.mxu0 0
  %693 = vmatmul.mubr.bf16.gmra.mrb[0].mxu0 %v467
  %v694 = vpop.f32.mrb[0].mxu0
  %v695 = vadd.f32 0.0, %v694
  %v696 = vpop.f32.mrb[0].mxu0
  %v697 = vadd.f32 0.0, %v696
  %v698 = vpop.f32.mrb[0].mxu0
  %v699 = vpop.f32.mrb[0].mxu0
  %700 = vdwg.mxu0
  %701 = vmatprep.subr.bf16.mxu0 %v599
  %702 = vmatpush1.bf16.msra.mxu0 %v598
  %703 = vmatprep.subr.bf16.mxu0 %v603
  %704 = vmatpush1.bf16.msra.mxu0 %v602
  %705 = vmatprep.subr.bf16.mxu0 %v607
  %706 = vmatpush1.bf16.msra.mxu0 %v606
  %707 = vmatprep.subr.bf16.mxu0 %v611
  %708 = vmatpush1.bf16.msra.mxu0 %v610
  %709 = vmatprep.subr.bf16.mxu0 %v615
  %710 = vmatpush1.bf16.msra.mxu0 %v614
  %711 = vmatprep.subr.bf16.mxu0 %v619
  %712 = vmatpush1.bf16.msra.mxu0 %v618
  %713 = vmatprep.subr.bf16.mxu0 %v623
  %714 = vmatpush1.bf16.msra.mxu0 %v622
  %715 = vmatprep.subr.bf16.mxu0 %v627
  %716 = vmatpush1.bf16.msra.mxu0 %v626
  %717 = vmatprep.subr.bf16.mxu0 0
  %718 = vmatpush1.bf16.msra.mxu0 0
  %719 = vmatprep.subr.bf16.mxu0 0
  %720 = vmatpush1.bf16.msra.mxu0 0
  %721 = vmatprep.subr.bf16.mxu0 0
  %722 = vmatpush1.bf16.msra.mxu0 0
  %723 = vmatprep.subr.bf16.mxu0 0
  %724 = vmatpush1.bf16.msra.mxu0 0
  %725 = vmatprep.subr.bf16.mxu0 0
  %726 = vmatpush1.bf16.msra.mxu0 0
  %727 = vmatprep.subr.bf16.mxu0 0
  %728 = vmatpush1.bf16.msra.mxu0 0
  %729 = vmatprep.subr.bf16.mxu0 0
  %730 = vmatpush1.bf16.msra.mxu0 0
  %731 = vmatprep.subr.bf16.mxu0 0
  %732 = vmatpush1.bf16.msra.mxu0 0
  %733 = vmatprep.mubr.bf16.mxu0 0
  %734 = vmatmul.mubr.bf16.gmra.mrb[0].mxu0 %v467
  %v735 = vpop.f32.mrb[0].mxu0
  %v736 = vadd.f32 0.0, %v735
  %v737 = vpop.f32.mrb[0].mxu0
  %v738 = vadd.f32 0.0, %v737
  %v739 = vpop.f32.mrb[0].mxu0
  %v740 = vpop.f32.mrb[0].mxu0
  %741 = vdwg.mxu0
  %v742 = vadd.f32 %v463, %v695
  %v743 = vadd.f32 %v464, %v697
  %v744 = vadd.f32 %v465, %v736
  %v745 = vadd.f32 %v466, %v738
  %v746 = vxor.u32 %v742, 2147483648
  %v747 = vmul.f32 %v746, 1.442695
  %v748 = vpow.pop %v747
  %v749 = vadd.f32 %v748, 1.0
  %v750 = vrcp.pop %v749
  %v751 = vmul.f32 1.0, %v750
  %v752 = vxor.u32 %v743, 2147483648
  %v753 = vmul.f32 %v752, 1.442695
  %v754 = vpow.pop %v753
  %v755 = vadd.f32 %v754, 1.0
  %v756 = vrcp.pop %v755
  %v757 = vmul.f32 1.0, %v756
  %v758 = vtanh.pop %v744
  %v759 = vxor.u32 %v745, 2147483648
  %v760 = vmul.f32 %v759, 1.442695
  %v761 = vpow.pop %v760
  %v762 = vadd.f32 %v761, 1.0
  %v763 = vrcp.pop %v762
  %v764 = vmul.f32 1.0, %v763
  %v765 = vld [vmem:[#allocation3] sm:$0xff]
  %v766 = vmul.f32 %v757, %v765
  %v767 = vmul.f32 %v751, %v758
  %v768 = vadd.f32 %v766, %v767
  %v769 = vtanh.pop %v768
  %v770 = vmul.f32 %v764, %v769
  %771 = vst [vmem:[#allocation3] sm:$0xff] %v768
  %v772 = vpack.c.bf16 %v770, %v770
  %773 = vst [vmem:[#allocation2] sm:$0xf] %v772
  %774 = vst [vmem:[#allocation5] sm:$0xf] %v772
  %v775 = vld [vmem:[#allocation4] sm:$0xf0]
  %v776 = vld [vmem:[#allocation4 + $0x8] sm:$0xf0]
  %v777 = vld [vmem:[#allocation4 + $0x10] sm:$0xf0]
  %v778 = vld [vmem:[#allocation4 + $0x18] sm:$0xf0]
  %v783 = vrot.slane %v775, 4
  %v784 = vrot.slane %v776, 4
  %v785 = vrot.slane %v777, 4
  %v786 = vrot.slane %v778, 4
  %v791 = vunpack.c.l.bf16 %v783
  %v792 = vunpack.c.l.bf16 %v784
  %v793 = vunpack.c.l.bf16 %v785
  %v794 = vunpack.c.l.bf16 %v786
  %v795 = vld [vmem:[#allocation2] sm:$0xf]
  %v796 = vld [vmem:[%s3] sm:$0xff]
  %v797 = vld [vmem:[%s3 + $0x8] sm:$0xff]
  %v798 = vld [vmem:[%s3 + $0x10] sm:$0xff]
  %v799 = vld [vmem:[%s3 + $0x18] sm:$0xff]
  %v800 = vld [vmem:[%s3 + $0x20] sm:$0xff]
  %v801 = vld [vmem:[%s3 + $0x28] sm:$0xff]
  %v802 = vld [vmem:[%s3 + $0x30] sm:$0xff]
  %v803 = vld [vmem:[%s3 + $0x38] sm:$0xff]
  %v804 = vld [vmem:[%s3 + $0x40] sm:$0xff]
  %v805 = vld [vmem:[%s3 + $0x48] sm:$0xff]
  %v806 = vld [vmem:[%s3 + $0x50] sm:$0xff]
  %v807 = vld [vmem:[%s3 + $0x58] sm:$0xff]
  %v808 = vld [vmem:[%s3 + $0x60] sm:$0xff]
  %v809 = vld [vmem:[%s3 + $0x68] sm:$0xff]
  %v810 = vld [vmem:[%s3 + $0x70] sm:$0xff]
  %v811 = vld [vmem:[%s3 + $0x78] sm:$0xff]
  %v812 = vld [vmem:[%s3 + $0x80] sm:$0xff]
  %v813 = vld [vmem:[%s3 + $0x88] sm:$0xff]
  %v814 = vld [vmem:[%s3 + $0x90] sm:$0xff]
  %v815 = vld [vmem:[%s3 + $0x98] sm:$0xff]
  %v816 = vld [vmem:[%s3 + $0xa0] sm:$0xff]
  %v817 = vld [vmem:[%s3 + $0xa8] sm:$0xff]
  %v818 = vld [vmem:[%s3 + $0xb0] sm:$0xff]
  %v819 = vld [vmem:[%s3 + $0xb8] sm:$0xff]
  %v820 = vld [vmem:[%s3 + $0xc0] sm:$0xff]
  %v821 = vld [vmem:[%s3 + $0xc8] sm:$0xff]
  %v822 = vld [vmem:[%s3 + $0xd0] sm:$0xff]
  %v823 = vld [vmem:[%s3 + $0xd8] sm:$0xff]
  %v824 = vld [vmem:[%s3 + $0xe0] sm:$0xff]
  %v825 = vld [vmem:[%s3 + $0xe8] sm:$0xff]
  %v826 = vld [vmem:[%s3 + $0xf0] sm:$0xff]
  %v827 = vld [vmem:[%s3 + $0xf8] sm:$0xff]
  %v860 = vunpack.c.l.b16 %v796
  %v861 = vunpack.c.h.b16 %v796
  %v862 = vunpack.c.l.b16 %v797
  %v863 = vunpack.c.h.b16 %v797
  %v864 = vunpack.c.l.b16 %v798
  %v865 = vunpack.c.h.b16 %v798
  %v866 = vunpack.c.l.b16 %v799
  %v867 = vunpack.c.h.b16 %v799
  %v868 = vunpack.c.l.b16 %v800
  %v869 = vunpack.c.h.b16 %v800
  %v870 = vunpack.c.l.b16 %v801
  %v871 = vunpack.c.h.b16 %v801
  %v872 = vunpack.c.l.b16 %v802
  %v873 = vunpack.c.h.b16 %v802
  %v874 = vunpack.c.l.b16 %v803
  %v875 = vunpack.c.h.b16 %v803
  %v876 = vunpack.c.l.b16 %v804
  %v877 = vunpack.c.h.b16 %v804
  %v878 = vunpack.c.l.b16 %v805
  %v879 = vunpack.c.h.b16 %v805
  %v880 = vunpack.c.l.b16 %v806
  %v881 = vunpack.c.h.b16 %v806
  %v882 = vunpack.c.l.b16 %v807
  %v883 = vunpack.c.h.b16 %v807
  %v884 = vunpack.c.l.b16 %v808
  %v885 = vunpack.c.h.b16 %v808
  %v886 = vunpack.c.l.b16 %v809
  %v887 = vunpack.c.h.b16 %v809
  %v888 = vunpack.c.l.b16 %v810
  %v889 = vunpack.c.h.b16 %v810
  %v890 = vunpack.c.l.b16 %v811
  %v891 = vunpack.c.h.b16 %v811
  %v892 = vunpack.c.l.b16 %v812
  %v893 = vunpack.c.h.b16 %v812
  %v894 = vunpack.c.l.b16 %v813
  %v895 = vunpack.c.h.b16 %v813
  %v896 = vunpack.c.l.b16 %v814
  %v897 = vunpack.c.h.b16 %v814
  %v898 = vunpack.c.l.b16 %v815
  %v899 = vunpack.c.h.b16 %v815
  %v900 = vunpack.c.l.b16 %v816
  %v901 = vunpack.c.h.b16 %v816
  %v902 = vunpack.c.l.b16 %v817
  %v903 = vunpack.c.h.b16 %v817
  %v904 = vunpack.c.l.b16 %v818
  %v905 = vunpack.c.h.b16 %v818
  %v906 = vunpack.c.l.b16 %v819
  %v907 = vunpack.c.h.b16 %v819
  %v908 = vunpack.c.l.b16 %v820
  %v909 = vunpack.c.h.b16 %v820
  %v910 = vunpack.c.l.b16 %v821
  %v911 = vunpack.c.h.b16 %v821
  %v912 = vunpack.c.l.b16 %v822
  %v913 = vunpack.c.h.b16 %v822
  %v914 = vunpack.c.l.b16 %v823
  %v915 = vunpack.c.h.b16 %v823
  %v916 = vunpack.c.l.b16 %v824
  %v917 = vunpack.c.h.b16 %v824
  %v918 = vunpack.c.l.b16 %v825
  %v919 = vunpack.c.h.b16 %v825
  %v920 = vunpack.c.l.b16 %v826
  %v921 = vunpack.c.h.b16 %v826
  %v922 = vunpack.c.l.b16 %v827
  %v923 = vunpack.c.h.b16 %v827
  %v924 = vpack.c.b16 %v864, %v860
  %v925 = vpack.c.b16 %v865, %v861
  %v926 = vpack.c.b16 %v866, %v862
  %v927 = vpack.c.b16 %v867, %v863
  %v928 = vpack.c.b16 %v872, %v868
  %v929 = vpack.c.b16 %v873, %v869
  %v930 = vpack.c.b16 %v874, %v870
  %v931 = vpack.c.b16 %v875, %v871
  %v932 = vpack.c.b16 %v880, %v876
  %v933 = vpack.c.b16 %v881, %v877
  %v934 = vpack.c.b16 %v882, %v878
  %v935 = vpack.c.b16 %v883, %v879
  %v936 = vpack.c.b16 %v888, %v884
  %v937 = vpack.c.b16 %v889, %v885
  %v938 = vpack.c.b16 %v890, %v886
  %v939 = vpack.c.b16 %v891, %v887
  %v940 = vpack.c.b16 %v896, %v892
  %v941 = vpack.c.b16 %v897, %v893
  %v942 = vpack.c.b16 %v898, %v894
  %v943 = vpack.c.b16 %v899, %v895
  %v944 = vpack.c.b16 %v904, %v900
  %v945 = vpack.c.b16 %v905, %v901
  %v946 = vpack.c.b16 %v906, %v902
  %v947 = vpack.c.b16 %v907, %v903
  %v948 = vpack.c.b16 %v912, %v908
  %v949 = vpack.c.b16 %v913, %v909
  %v950 = vpack.c.b16 %v914, %v910
  %v951 = vpack.c.b16 %v915, %v911
  %v952 = vpack.c.b16 %v920, %v916
  %v953 = vpack.c.b16 %v921, %v917
  %v954 = vpack.c.b16 %v922, %v918
  %v955 = vpack.c.b16 %v923, %v919
  %988 = vmatprep.subr.bf16.mxu0 %v925
  %989 = vmatpush1.bf16.msra.mxu0 %v924
  %990 = vmatprep.subr.bf16.mxu0 %v929
  %991 = vmatpush1.bf16.msra.mxu0 %v928
  %992 = vmatprep.subr.bf16.mxu0 %v933
  %993 = vmatpush1.bf16.msra.mxu0 %v932
  %994 = vmatprep.subr.bf16.mxu0 %v937
  %995 = vmatpush1.bf16.msra.mxu0 %v936
  %996 = vmatprep.subr.bf16.mxu0 %v941
  %997 = vmatpush1.bf16.msra.mxu0 %v940
  %998 = vmatprep.subr.bf16.mxu0 %v945
  %999 = vmatpush1.bf16.msra.mxu0 %v944
  %1000 = vmatprep.subr.bf16.mxu0 %v949
  %1001 = vmatpush1.bf16.msra.mxu0 %v948
  %1002 = vmatprep.subr.bf16.mxu0 %v953
  %1003 = vmatpush1.bf16.msra.mxu0 %v952
  %1004 = vmatprep.subr.bf16.mxu0 0
  %1005 = vmatpush1.bf16.msra.mxu0 0
  %1006 = vmatprep.subr.bf16.mxu0 0
  %1007 = vmatpush1.bf16.msra.mxu0 0
  %1008 = vmatprep.subr.bf16.mxu0 0
  %1009 = vmatpush1.bf16.msra.mxu0 0
  %1010 = vmatprep.subr.bf16.mxu0 0
  %1011 = vmatpush1.bf16.msra.mxu0 0
  %1012 = vmatprep.subr.bf16.mxu0 0
  %1013 = vmatpush1.bf16.msra.mxu0 0
  %1014 = vmatprep.subr.bf16.mxu0 0
  %1015 = vmatpush1.bf16.msra.mxu0 0
  %1016 = vmatprep.subr.bf16.mxu0 0
  %1017 = vmatpush1.bf16.msra.mxu0 0
  %1018 = vmatprep.subr.bf16.mxu0 0
  %1019 = vmatpush1.bf16.msra.mxu0 0
  %1020 = vmatprep.mubr.bf16.mxu0 0
  %1021 = vmatmul.mubr.bf16.gmra.mrb[0].mxu0 %v795
  %v1022 = vpop.f32.mrb[0].mxu0
  %v1023 = vadd.f32 0.0, %v1022
  %v1024 = vpop.f32.mrb[0].mxu0
  %v1025 = vadd.f32 0.0, %v1024
  %v1026 = vpop.f32.mrb[0].mxu0
  %v1027 = vpop.f32.mrb[0].mxu0
  %1028 = vdwg.mxu0
  %1029 = vmatprep.subr.bf16.mxu0 %v927
  %1030 = vmatpush1.bf16.msra.mxu0 %v926
  %1031 = vmatprep.subr.bf16.mxu0 %v931
  %1032 = vmatpush1.bf16.msra.mxu0 %v930
  %1033 = vmatprep.subr.bf16.mxu0 %v935
  %1034 = vmatpush1.bf16.msra.mxu0 %v934
  %1035 = vmatprep.subr.bf16.mxu0 %v939
  %1036 = vmatpush1.bf16.msra.mxu0 %v938
  %1037 = vmatprep.subr.bf16.mxu0 %v943
  %1038 = vmatpush1.bf16.msra.mxu0 %v942
  %1039 = vmatprep.subr.bf16.mxu0 %v947
  %1040 = vmatpush1.bf16.msra.mxu0 %v946
  %1041 = vmatprep.subr.bf16.mxu0 %v951
  %1042 = vmatpush1.bf16.msra.mxu0 %v950
  %1043 = vmatprep.subr.bf16.mxu0 %v955
  %1044 = vmatpush1.bf16.msra.mxu0 %v954
  %1045 = vmatprep.subr.bf16.mxu0 0
  %1046 = vmatpush1.bf16.msra.mxu0 0
  %1047 = vmatprep.subr.bf16.mxu0 0
  %1048 = vmatpush1.bf16.msra.mxu0 0
  %1049 = vmatprep.subr.bf16.mxu0 0
  %1050 = vmatpush1.bf16.msra.mxu0 0
  %1051 = vmatprep.subr.bf16.mxu0 0
  %1052 = vmatpush1.bf16.msra.mxu0 0
  %1053 = vmatprep.subr.bf16.mxu0 0
  %1054 = vmatpush1.bf16.msra.mxu0 0
  %1055 = vmatprep.subr.bf16.mxu0 0
  %1056 = vmatpush1.bf16.msra.mxu0 0
  %1057 = vmatprep.subr.bf16.mxu0 0
  %1058 = vmatpush1.bf16.msra.mxu0 0
  %1059 = vmatprep.subr.bf16.mxu0 0
  %1060 = vmatpush1.bf16.msra.mxu0 0
  %1061 = vmatprep.mubr.bf16.mxu0 0
  %1062 = vmatmul.mubr.bf16.gmra.mrb[0].mxu0 %v795
  %v1063 = vpop.f32.mrb[0].mxu0
  %v1064 = vadd.f32 0.0, %v1063
  %v1065 = vpop.f32.mrb[0].mxu0
  %v1066 = vadd.f32 0.0, %v1065
  %v1067 = vpop.f32.mrb[0].mxu0
  %v1068 = vpop.f32.mrb[0].mxu0
  %1069 = vdwg.mxu0
  %v1070 = vadd.f32 %v791, %v1023
  %v1071 = vadd.f32 %v792, %v1025
  %v1072 = vadd.f32 %v793, %v1064
  %v1073 = vadd.f32 %v794, %v1066
  %v1074 = vxor.u32 %v1070, 2147483648
  %v1075 = vmul.f32 %v1074, 1.442695
  %v1076 = vpow.pop %v1075
  %v1077 = vadd.f32 %v1076, 1.0
  %v1078 = vrcp.pop %v1077
  %v1079 = vmul.f32 1.0, %v1078
  %v1080 = vxor.u32 %v1071, 2147483648
  %v1081 = vmul.f32 %v1080, 1.442695
  %v1082 = vpow.pop %v1081
  %v1083 = vadd.f32 %v1082, 1.0
  %v1084 = vrcp.pop %v1083
  %v1085 = vmul.f32 1.0, %v1084
  %v1086 = vtanh.pop %v1072
  %v1087 = vxor.u32 %v1073, 2147483648
  %v1088 = vmul.f32 %v1087, 1.442695
  %v1089 = vpow.pop %v1088
  %v1090 = vadd.f32 %v1089, 1.0
  %v1091 = vrcp.pop %v1090
  %v1092 = vmul.f32 1.0, %v1091
  %v1093 = vld [vmem:[#allocation3] sm:$0xff]
  %v1094 = vmul.f32 %v1085, %v1093
  %v1095 = vmul.f32 %v1079, %v1086
  %v1096 = vadd.f32 %v1094, %v1095
  %v1097 = vtanh.pop %v1096
  %v1098 = vmul.f32 %v1092, %v1097
  %1099 = vst [vmem:[#allocation3] sm:$0xff] %v1096
  %v1100 = vpack.c.bf16 %v1098, %v1098
  %1101 = vst [vmem:[#allocation2] sm:$0xf] %v1100
  %v1103 = vrot.slane %v1100, 4
  %1105 = vst [vmem:[#allocation5] sm:$0xf0] %v1103
  %v1106 = vld [vmem:[#allocation4 + $0x20] sm:$0xf]
  %v1107 = vld [vmem:[#allocation4 + $0x28] sm:$0xf]
  %v1108 = vld [vmem:[#allocation4 + $0x30] sm:$0xf]
  %v1109 = vld [vmem:[#allocation4 + $0x38] sm:$0xf]
  %v1110 = vunpack.c.l.bf16 %v1106
  %v1111 = vunpack.c.l.bf16 %v1107
  %v1112 = vunpack.c.l.bf16 %v1108
  %v1113 = vunpack.c.l.bf16 %v1109
  %v1114 = vld [vmem:[#allocation2] sm:$0xf]
  %v1115 = vld [vmem:[%s3] sm:$0xff]
  %v1116 = vld [vmem:[%s3 + $0x8] sm:$0xff]
  %v1117 = vld [vmem:[%s3 + $0x10] sm:$0xff]
  %v1118 = vld [vmem:[%s3 + $0x18] sm:$0xff]
  %v1119 = vld [vmem:[%s3 + $0x20] sm:$0xff]
  %v1120 = vld [vmem:[%s3 + $0x28] sm:$0xff]
  %v1121 = vld [vmem:[%s3 + $0x30] sm:$0xff]
  %v1122 = vld [vmem:[%s3 + $0x38] sm:$0xff]
  %v1123 = vld [vmem:[%s3 + $0x40] sm:$0xff]
  %v1124 = vld [vmem:[%s3 + $0x48] sm:$0xff]
  %v1125 = vld [vmem:[%s3 + $0x50] sm:$0xff]
  %v1126 = vld [vmem:[%s3 + $0x58] sm:$0xff]
  %v1127 = vld [vmem:[%s3 + $0x60] sm:$0xff]
  %v1128 = vld [vmem:[%s3 + $0x68] sm:$0xff]
  %v1129 = vld [vmem:[%s3 + $0x70] sm:$0xff]
  %v1130 = vld [vmem:[%s3 + $0x78] sm:$0xff]
  %v1131 = vld [vmem:[%s3 + $0x80] sm:$0xff]
  %v1132 = vld [vmem:[%s3 + $0x88] sm:$0xff]
  %v1133 = vld [vmem:[%s3 + $0x90] sm:$0xff]
  %v1134 = vld [vmem:[%s3 + $0x98] sm:$0xff]
  %v1135 = vld [vmem:[%s3 + $0xa0] sm:$0xff]
  %v1136 = vld [vmem:[%s3 + $0xa8] sm:$0xff]
  %v1137 = vld [vmem:[%s3 + $0xb0] sm:$0xff]
  %v1138 = vld [vmem:[%s3 + $0xb8] sm:$0xff]
  %v1139 = vld [vmem:[%s3 + $0xc0] sm:$0xff]
  %v1140 = vld [vmem:[%s3 + $0xc8] sm:$0xff]
  %v1141 = vld [vmem:[%s3 + $0xd0] sm:$0xff]
  %v1142 = vld [vmem:[%s3 + $0xd8] sm:$0xff]
  %v1143 = vld [vmem:[%s3 + $0xe0] sm:$0xff]
  %v1144 = vld [vmem:[%s3 + $0xe8] sm:$0xff]
  %v1145 = vld [vmem:[%s3 + $0xf0] sm:$0xff]
  %v1146 = vld [vmem:[%s3 + $0xf8] sm:$0xff]
  %v1179 = vunpack.c.l.b16 %v1115
  %v1180 = vunpack.c.h.b16 %v1115
  %v1181 = vunpack.c.l.b16 %v1116
  %v1182 = vunpack.c.h.b16 %v1116
  %v1183 = vunpack.c.l.b16 %v1117
  %v1184 = vunpack.c.h.b16 %v1117
  %v1185 = vunpack.c.l.b16 %v1118
  %v1186 = vunpack.c.h.b16 %v1118
  %v1187 = vunpack.c.l.b16 %v1119
  %v1188 = vunpack.c.h.b16 %v1119
  %v1189 = vunpack.c.l.b16 %v1120
  %v1190 = vunpack.c.h.b16 %v1120
  %v1191 = vunpack.c.l.b16 %v1121
  %v1192 = vunpack.c.h.b16 %v1121
  %v1193 = vunpack.c.l.b16 %v1122
  %v1194 = vunpack.c.h.b16 %v1122
  %v1195 = vunpack.c.l.b16 %v1123
  %v1196 = vunpack.c.h.b16 %v1123
  %v1197 = vunpack.c.l.b16 %v1124
  %v1198 = vunpack.c.h.b16 %v1124
  %v1199 = vunpack.c.l.b16 %v1125
  %v1200 = vunpack.c.h.b16 %v1125
  %v1201 = vunpack.c.l.b16 %v1126
  %v1202 = vunpack.c.h.b16 %v1126
  %v1203 = vunpack.c.l.b16 %v1127
  %v1204 = vunpack.c.h.b16 %v1127
  %v1205 = vunpack.c.l.b16 %v1128
  %v1206 = vunpack.c.h.b16 %v1128
  %v1207 = vunpack.c.l.b16 %v1129
  %v1208 = vunpack.c.h.b16 %v1129
  %v1209 = vunpack.c.l.b16 %v1130
  %v1210 = vunpack.c.h.b16 %v1130
  %v1211 = vunpack.c.l.b16 %v1131
  %v1212 = vunpack.c.h.b16 %v1131
  %v1213 = vunpack.c.l.b16 %v1132
  %v1214 = vunpack.c.h.b16 %v1132
  %v1215 = vunpack.c.l.b16 %v1133
  %v1216 = vunpack.c.h.b16 %v1133
  %v1217 = vunpack.c.l.b16 %v1134
  %v1218 = vunpack.c.h.b16 %v1134
  %v1219 = vunpack.c.l.b16 %v1135
  %v1220 = vunpack.c.h.b16 %v1135
  %v1221 = vunpack.c.l.b16 %v1136
  %v1222 = vunpack.c.h.b16 %v1136
  %v1223 = vunpack.c.l.b16 %v1137
  %v1224 = vunpack.c.h.b16 %v1137
  %v1225 = vunpack.c.l.b16 %v1138
  %v1226 = vunpack.c.h.b16 %v1138
  %v1227 = vunpack.c.l.b16 %v1139
  %v1228 = vunpack.c.h.b16 %v1139
  %v1229 = vunpack.c.l.b16 %v1140
  %v1230 = vunpack.c.h.b16 %v1140
  %v1231 = vunpack.c.l.b16 %v1141
  %v1232 = vunpack.c.h.b16 %v1141
  %v1233 = vunpack.c.l.b16 %v1142
  %v1234 = vunpack.c.h.b16 %v1142
  %v1235 = vunpack.c.l.b16 %v1143
  %v1236 = vunpack.c.h.b16 %v1143
  %v1237 = vunpack.c.l.b16 %v1144
  %v1238 = vunpack.c.h.b16 %v1144
  %v1239 = vunpack.c.l.b16 %v1145
  %v1240 = vunpack.c.h.b16 %v1145
  %v1241 = vunpack.c.l.b16 %v1146
  %v1242 = vunpack.c.h.b16 %v1146
  %v1243 = vpack.c.b16 %v1183, %v1179
  %v1244 = vpack.c.b16 %v1184, %v1180
  %v1245 = vpack.c.b16 %v1185, %v1181
  %v1246 = vpack.c.b16 %v1186, %v1182
  %v1247 = vpack.c.b16 %v1191, %v1187
  %v1248 = vpack.c.b16 %v1192, %v1188
  %v1249 = vpack.c.b16 %v1193, %v1189
  %v1250 = vpack.c.b16 %v1194, %v1190
  %v1251 = vpack.c.b16 %v1199, %v1195
  %v1252 = vpack.c.b16 %v1200, %v1196
  %v1253 = vpack.c.b16 %v1201, %v1197
  %v1254 = vpack.c.b16 %v1202, %v1198
  %v1255 = vpack.c.b16 %v1207, %v1203
  %v1256 = vpack.c.b16 %v1208, %v1204
  %v1257 = vpack.c.b16 %v1209, %v1205
  %v1258 = vpack.c.b16 %v1210, %v1206
  %v1259 = vpack.c.b16 %v1215, %v1211
  %v1260 = vpack.c.b16 %v1216, %v1212
  %v1261 = vpack.c.b16 %v1217, %v1213
  %v1262 = vpack.c.b16 %v1218, %v1214
  %v1263 = vpack.c.b16 %v1223, %v1219
  %v1264 = vpack.c.b16 %v1224, %v1220
  %v1265 = vpack.c.b16 %v1225, %v1221
  %v1266 = vpack.c.b16 %v1226, %v1222
  %v1267 = vpack.c.b16 %v1231, %v1227
  %v1268 = vpack.c.b16 %v1232, %v1228
  %v1269 = vpack.c.b16 %v1233, %v1229
  %v1270 = vpack.c.b16 %v1234, %v1230
  %v1271 = vpack.c.b16 %v1239, %v1235
  %v1272 = vpack.c.b16 %v1240, %v1236
  %v1273 = vpack.c.b16 %v1241, %v1237
  %v1274 = vpack.c.b16 %v1242, %v1238
  %1307 = vmatprep.subr.bf16.mxu0 %v1244
  %1308 = vmatpush1.bf16.msra.mxu0 %v1243
  %1309 = vmatprep.subr.bf16.mxu0 %v1248
  %1310 = vmatpush1.bf16.msra.mxu0 %v1247
  %1311 = vmatprep.subr.bf16.mxu0 %v1252
  %1312 = vmatpush1.bf16.msra.mxu0 %v1251
  %1313 = vmatprep.subr.bf16.mxu0 %v1256
  %1314 = vmatpush1.bf16.msra.mxu0 %v1255
  %1315 = vmatprep.subr.bf16.mxu0 %v1260
  %1316 = vmatpush1.bf16.msra.mxu0 %v1259
  %1317 = vmatprep.subr.bf16.mxu0 %v1264
  %1318 = vmatpush1.bf16.msra.mxu0 %v1263
  %1319 = vmatprep.subr.bf16.mxu0 %v1268
  %1320 = vmatpush1.bf16.msra.mxu0 %v1267
  %1321 = vmatprep.subr.bf16.mxu0 %v1272
  %1322 = vmatpush1.bf16.msra.mxu0 %v1271
  %1323 = vmatprep.subr.bf16.mxu0 0
  %1324 = vmatpush1.bf16.msra.mxu0 0
  %1325 = vmatprep.subr.bf16.mxu0 0
  %1326 = vmatpush1.bf16.msra.mxu0 0
  %1327 = vmatprep.subr.bf16.mxu0 0
  %1328 = vmatpush1.bf16.msra.mxu0 0
  %1329 = vmatprep.subr.bf16.mxu0 0
  %1330 = vmatpush1.bf16.msra.mxu0 0
  %1331 = vmatprep.subr.bf16.mxu0 0
  %1332 = vmatpush1.bf16.msra.mxu0 0
  %1333 = vmatprep.subr.bf16.mxu0 0
  %1334 = vmatpush1.bf16.msra.mxu0 0
  %1335 = vmatprep.subr.bf16.mxu0 0
  %1336 = vmatpush1.bf16.msra.mxu0 0
  %1337 = vmatprep.subr.bf16.mxu0 0
  %1338 = vmatpush1.bf16.msra.mxu0 0
  %1339 = vmatprep.mubr.bf16.mxu0 0
  %1340 = vmatmul.mubr.bf16.gmra.mrb[0].mxu0 %v1114
  %v1341 = vpop.f32.mrb[0].mxu0
  %v1342 = vadd.f32 0.0, %v1341
  %v1343 = vpop.f32.mrb[0].mxu0
  %v1344 = vadd.f32 0.0, %v1343
  %v1345 = vpop.f32.mrb[0].mxu0
  %v1346 = vpop.f32.mrb[0].mxu0
  %1347 = vdwg.mxu0
  %1348 = vmatprep.subr.bf16.mxu0 %v1246
  %1349 = vmatpush1.bf16.msra.mxu0 %v1245
  %1350 = vmatprep.subr.bf16.mxu0 %v1250
  %1351 = vmatpush1.bf16.msra.mxu0 %v1249
  %1352 = vmatprep.subr.bf16.mxu0 %v1254
  %1353 = vmatpush1.bf16.msra.mxu0 %v1253
  %1354 = vmatprep.subr.bf16.mxu0 %v1258
  %1355 = vmatpush1.bf16.msra.mxu0 %v1257
  %1356 = vmatprep.subr.bf16.mxu0 %v1262
  %1357 = vmatpush1.bf16.msra.mxu0 %v1261
  %1358 = vmatprep.subr.bf16.mxu0 %v1266
  %1359 = vmatpush1.bf16.msra.mxu0 %v1265
  %1360 = vmatprep.subr.bf16.mxu0 %v1270
  %1361 = vmatpush1.bf16.msra.mxu0 %v1269
  %1362 = vmatprep.subr.bf16.mxu0 %v1274
  %1363 = vmatpush1.bf16.msra.mxu0 %v1273
  %1364 = vmatprep.subr.bf16.mxu0 0
  %1365 = vmatpush1.bf16.msra.mxu0 0
  %1366 = vmatprep.subr.bf16.mxu0 0
  %1367 = vmatpush1.bf16.msra.mxu0 0
  %1368 = vmatprep.subr.bf16.mxu0 0
  %1369 = vmatpush1.bf16.msra.mxu0 0
  %1370 = vmatprep.subr.bf16.mxu0 0
  %1371 = vmatpush1.bf16.msra.mxu0 0
  %1372 = vmatprep.subr.bf16.mxu0 0
  %1373 = vmatpush1.bf16.msra.mxu0 0
  %1374 = vmatprep.subr.bf16.mxu0 0
  %1375 = vmatpush1.bf16.msra.mxu0 0
  %1376 = vmatprep.subr.bf16.mxu0 0
  %1377 = vmatpush1.bf16.msra.mxu0 0
  %1378 = vmatprep.subr.bf16.mxu0 0
  %1379 = vmatpush1.bf16.msra.mxu0 0
  %1380 = vmatprep.mubr.bf16.mxu0 0
  %1381 = vmatmul.mubr.bf16.gmra.mrb[0].mxu0 %v1114
  %v1382 = vpop.f32.mrb[0].mxu0
  %v1383 = vadd.f32 0.0, %v1382
  %v1384 = vpop.f32.mrb[0].mxu0
  %v1385 = vadd.f32 0.0, %v1384
  %v1386 = vpop.f32.mrb[0].mxu0
  %v1387 = vpop.f32.mrb[0].mxu0
  %1388 = vdwg.mxu0
  %v1389 = vadd.f32 %v1110, %v1342
  %v1390 = vadd.f32 %v1111, %v1344
  %v1391 = vadd.f32 %v1112, %v1383
  %v1392 = vadd.f32 %v1113, %v1385
  %v1393 = vxor.u32 %v1389, 2147483648
  %v1394 = vmul.f32 %v1393, 1.442695
  %v1395 = vpow.pop %v1394
  %v1396 = vadd.f32 %v1395, 1.0
  %v1397 = vrcp.pop %v1396
  %v1398 = vmul.f32 1.0, %v1397
  %v1399 = vxor.u32 %v1390, 2147483648
  %v1400 = vmul.f32 %v1399, 1.442695
  %v1401 = vpow.pop %v1400
  %v1402 = vadd.f32 %v1401, 1.0
  %v1403 = vrcp.pop %v1402
  %v1404 = vmul.f32 1.0, %v1403
  %v1405 = vtanh.pop %v1391
  %v1406 = vxor.u32 %v1392, 2147483648
  %v1407 = vmul.f32 %v1406, 1.442695
  %v1408 = vpow.pop %v1407
  %v1409 = vadd.f32 %v1408, 1.0
  %v1410 = vrcp.pop %v1409
  %v1411 = vmul.f32 1.0, %v1410
  %v1412 = vld [vmem:[#allocation3] sm:$0xff]
  %v1413 = vmul.f32 %v1404, %v1412
  %v1414 = vmul.f32 %v1398, %v1405
  %v1415 = vadd.f32 %v1413, %v1414
  %v1416 = vtanh.pop %v1415
  %v1417 = vmul.f32 %v1411, %v1416
  %1418 = vst [vmem:[#allocation3] sm:$0xff] %v1415
  %v1419 = vpack.c.bf16 %v1417, %v1417
  %1420 = vst [vmem:[#allocation2] sm:$0xf] %v1419
  %1421 = vst [vmem:[#allocation5 + $0x8] sm:$0xf] %v1419
  %v1422 = vld [vmem:[#allocation4 + $0x20] sm:$0xf0]
  %v1423 = vld [vmem:[#allocation4 + $0x28] sm:$0xf0]
  %v1424 = vld [vmem:[#allocation4 + $0x30] sm:$0xf0]
  %v1425 = vld [vmem:[#allocation4 + $0x38] sm:$0xf0]
  %v1430 = vrot.slane %v1422, 4
  %v1431 = vrot.slane %v1423, 4
  %v1432 = vrot.slane %v1424, 4
  %v1433 = vrot.slane %v1425, 4
  %v1438 = vunpack.c.l.bf16 %v1430
  %v1439 = vunpack.c.l.bf16 %v1431
  %v1440 = vunpack.c.l.bf16 %v1432
  %v1441 = vunpack.c.l.bf16 %v1433
  %v1442 = vld [vmem:[#allocation2] sm:$0xf]
  %v1443 = vld [vmem:[%s3] sm:$0xff]
  %v1444 = vld [vmem:[%s3 + $0x8] sm:$0xff]
  %v1445 = vld [vmem:[%s3 + $0x10] sm:$0xff]
  %v1446 = vld [vmem:[%s3 + $0x18] sm:$0xff]
  %v1447 = vld [vmem:[%s3 + $0x20] sm:$0xff]
  %v1448 = vld [vmem:[%s3 + $0x28] sm:$0xff]
  %v1449 = vld [vmem:[%s3 + $0x30] sm:$0xff]
  %v1450 = vld [vmem:[%s3 + $0x38] sm:$0xff]
  %v1451 = vld [vmem:[%s3 + $0x40] sm:$0xff]
  %v1452 = vld [vmem:[%s3 + $0x48] sm:$0xff]
  %v1453 = vld [vmem:[%s3 + $0x50] sm:$0xff]
  %v1454 = vld [vmem:[%s3 + $0x58] sm:$0xff]
  %v1455 = vld [vmem:[%s3 + $0x60] sm:$0xff]
  %v1456 = vld [vmem:[%s3 + $0x68] sm:$0xff]
  %v1457 = vld [vmem:[%s3 + $0x70] sm:$0xff]
  %v1458 = vld [vmem:[%s3 + $0x78] sm:$0xff]
  %v1459 = vld [vmem:[%s3 + $0x80] sm:$0xff]
  %v1460 = vld [vmem:[%s3 + $0x88] sm:$0xff]
  %v1461 = vld [vmem:[%s3 + $0x90] sm:$0xff]
  %v1462 = vld [vmem:[%s3 + $0x98] sm:$0xff]
  %v1463 = vld [vmem:[%s3 + $0xa0] sm:$0xff]
  %v1464 = vld [vmem:[%s3 + $0xa8] sm:$0xff]
  %v1465 = vld [vmem:[%s3 + $0xb0] sm:$0xff]
  %v1466 = vld [vmem:[%s3 + $0xb8] sm:$0xff]
  %v1467 = vld [vmem:[%s3 + $0xc0] sm:$0xff]
  %v1468 = vld [vmem:[%s3 + $0xc8] sm:$0xff]
  %v1469 = vld [vmem:[%s3 + $0xd0] sm:$0xff]
  %v1470 = vld [vmem:[%s3 + $0xd8] sm:$0xff]
  %v1471 = vld [vmem:[%s3 + $0xe0] sm:$0xff]
  %v1472 = vld [vmem:[%s3 + $0xe8] sm:$0xff]
  %v1473 = vld [vmem:[%s3 + $0xf0] sm:$0xff]
  %v1474 = vld [vmem:[%s3 + $0xf8] sm:$0xff]
  %v1507 = vunpack.c.l.b16 %v1443
  %v1508 = vunpack.c.h.b16 %v1443
  %v1509 = vunpack.c.l.b16 %v1444
  %v1510 = vunpack.c.h.b16 %v1444
  %v1511 = vunpack.c.l.b16 %v1445
  %v1512 = vunpack.c.h.b16 %v1445
  %v1513 = vunpack.c.l.b16 %v1446
  %v1514 = vunpack.c.h.b16 %v1446
  %v1515 = vunpack.c.l.b16 %v1447
  %v1516 = vunpack.c.h.b16 %v1447
  %v1517 = vunpack.c.l.b16 %v1448
  %v1518 = vunpack.c.h.b16 %v1448
  %v1519 = vunpack.c.l.b16 %v1449
  %v1520 = vunpack.c.h.b16 %v1449
  %v1521 = vunpack.c.l.b16 %v1450
  %v1522 = vunpack.c.h.b16 %v1450
  %v1523 = vunpack.c.l.b16 %v1451
  %v1524 = vunpack.c.h.b16 %v1451
  %v1525 = vunpack.c.l.b16 %v1452
  %v1526 = vunpack.c.h.b16 %v1452
  %v1527 = vunpack.c.l.b16 %v1453
  %v1528 = vunpack.c.h.b16 %v1453
  %v1529 = vunpack.c.l.b16 %v1454
  %v1530 = vunpack.c.h.b16 %v1454
  %v1531 = vunpack.c.l.b16 %v1455
  %v1532 = vunpack.c.h.b16 %v1455
  %v1533 = vunpack.c.l.b16 %v1456
  %v1534 = vunpack.c.h.b16 %v1456
  %v1535 = vunpack.c.l.b16 %v1457
  %v1536 = vunpack.c.h.b16 %v1457
  %v1537 = vunpack.c.l.b16 %v1458
  %v1538 = vunpack.c.h.b16 %v1458
  %v1539 = vunpack.c.l.b16 %v1459
  %v1540 = vunpack.c.h.b16 %v1459
  %v1541 = vunpack.c.l.b16 %v1460
  %v1542 = vunpack.c.h.b16 %v1460
  %v1543 = vunpack.c.l.b16 %v1461
  %v1544 = vunpack.c.h.b16 %v1461
  %v1545 = vunpack.c.l.b16 %v1462
  %v1546 = vunpack.c.h.b16 %v1462
  %v1547 = vunpack.c.l.b16 %v1463
  %v1548 = vunpack.c.h.b16 %v1463
  %v1549 = vunpack.c.l.b16 %v1464
  %v1550 = vunpack.c.h.b16 %v1464
  %v1551 = vunpack.c.l.b16 %v1465
  %v1552 = vunpack.c.h.b16 %v1465
  %v1553 = vunpack.c.l.b16 %v1466
  %v1554 = vunpack.c.h.b16 %v1466
  %v1555 = vunpack.c.l.b16 %v1467
  %v1556 = vunpack.c.h.b16 %v1467
  %v1557 = vunpack.c.l.b16 %v1468
  %v1558 = vunpack.c.h.b16 %v1468
  %v1559 = vunpack.c.l.b16 %v1469
  %v1560 = vunpack.c.h.b16 %v1469
  %v1561 = vunpack.c.l.b16 %v1470
  %v1562 = vunpack.c.h.b16 %v1470
  %v1563 = vunpack.c.l.b16 %v1471
  %v1564 = vunpack.c.h.b16 %v1471
  %v1565 = vunpack.c.l.b16 %v1472
  %v1566 = vunpack.c.h.b16 %v1472
  %v1567 = vunpack.c.l.b16 %v1473
  %v1568 = vunpack.c.h.b16 %v1473
  %v1569 = vunpack.c.l.b16 %v1474
  %v1570 = vunpack.c.h.b16 %v1474
  %v1571 = vpack.c.b16 %v1511, %v1507
  %v1572 = vpack.c.b16 %v1512, %v1508
  %v1573 = vpack.c.b16 %v1513, %v1509
  %v1574 = vpack.c.b16 %v1514, %v1510
  %v1575 = vpack.c.b16 %v1519, %v1515
  %v1576 = vpack.c.b16 %v1520, %v1516
  %v1577 = vpack.c.b16 %v1521, %v1517
  %v1578 = vpack.c.b16 %v1522, %v1518
  %v1579 = vpack.c.b16 %v1527, %v1523
  %v1580 = vpack.c.b16 %v1528, %v1524
  %v1581 = vpack.c.b16 %v1529, %v1525
  %v1582 = vpack.c.b16 %v1530, %v1526
  %v1583 = vpack.c.b16 %v1535, %v1531
  %v1584 = vpack.c.b16 %v1536, %v1532
  %v1585 = vpack.c.b16 %v1537, %v1533
  %v1586 = vpack.c.b16 %v1538, %v1534
  %v1587 = vpack.c.b16 %v1543, %v1539
  %v1588 = vpack.c.b16 %v1544, %v1540
  %v1589 = vpack.c.b16 %v1545, %v1541
  %v1590 = vpack.c.b16 %v1546, %v1542
  %v1591 = vpack.c.b16 %v1551, %v1547
  %v1592 = vpack.c.b16 %v1552, %v1548
  %v1593 = vpack.c.b16 %v1553, %v1549
  %v1594 = vpack.c.b16 %v1554, %v1550
  %v1595 = vpack.c.b16 %v1559, %v1555
  %v1596 = vpack.c.b16 %v1560, %v1556
  %v1597 = vpack.c.b16 %v1561, %v1557
  %v1598 = vpack.c.b16 %v1562, %v1558
  %v1599 = vpack.c.b16 %v1567, %v1563
  %v1600 = vpack.c.b16 %v1568, %v1564
  %v1601 = vpack.c.b16 %v1569, %v1565
  %v1602 = vpack.c.b16 %v1570, %v1566
  %1635 = vmatprep.subr.bf16.mxu0 %v1572
  %1636 = vmatpush1.bf16.msra.mxu0 %v1571
  %1637 = vmatprep.subr.bf16.mxu0 %v1576
  %1638 = vmatpush1.bf16.msra.mxu0 %v1575
  %1639 = vmatprep.subr.bf16.mxu0 %v1580
  %1640 = vmatpush1.bf16.msra.mxu0 %v1579
  %1641 = vmatprep.subr.bf16.mxu0 %v1584
  %1642 = vmatpush1.bf16.msra.mxu0 %v1583
  %1643 = vmatprep.subr.bf16.mxu0 %v1588
  %1644 = vmatpush1.bf16.msra.mxu0 %v1587
  %1645 = vmatprep.subr.bf16.mxu0 %v1592
  %1646 = vmatpush1.bf16.msra.mxu0 %v1591
  %1647 = vmatprep.subr.bf16.mxu0 %v1596
  %1648 = vmatpush1.bf16.msra.mxu0 %v1595
  %1649 = vmatprep.subr.bf16.mxu0 %v1600
  %1650 = vmatpush1.bf16.msra.mxu0 %v1599
  %1651 = vmatprep.subr.bf16.mxu0 0
  %1652 = vmatpush1.bf16.msra.mxu0 0
  %1653 = vmatprep.subr.bf16.mxu0 0
  %1654 = vmatpush1.bf16.msra.mxu0 0
  %1655 = vmatprep.subr.bf16.mxu0 0
  %1656 = vmatpush1.bf16.msra.mxu0 0
  %1657 = vmatprep.subr.bf16.mxu0 0
  %1658 = vmatpush1.bf16.msra.mxu0 0
  %1659 = vmatprep.subr.bf16.mxu0 0
  %1660 = vmatpush1.bf16.msra.mxu0 0
  %1661 = vmatprep.subr.bf16.mxu0 0
  %1662 = vmatpush1.bf16.msra.mxu0 0
  %1663 = vmatprep.subr.bf16.mxu0 0
  %1664 = vmatpush1.bf16.msra.mxu0 0
  %1665 = vmatprep.subr.bf16.mxu0 0
  %1666 = vmatpush1.bf16.msra.mxu0 0
  %1667 = vmatprep.mubr.bf16.mxu0 0
  %1668 = vmatmul.mubr.bf16.gmra.mrb[0].mxu0 %v1442
  %v1669 = vpop.f32.mrb[0].mxu0
  %v1670 = vadd.f32 0.0, %v1669
  %v1671 = vpop.f32.mrb[0].mxu0
  %v1672 = vadd.f32 0.0, %v1671
  %v1673 = vpop.f32.mrb[0].mxu0
  %v1674 = vpop.f32.mrb[0].mxu0
  %1675 = vdwg.mxu0
  %1676 = vmatprep.subr.bf16.mxu0 %v1574
  %1677 = vmatpush1.bf16.msra.mxu0 %v1573
  %1678 = vmatprep.subr.bf16.mxu0 %v1578
  %1679 = vmatpush1.bf16.msra.mxu0 %v1577
  %1680 = vmatprep.subr.bf16.mxu0 %v1582
  %1681 = vmatpush1.bf16.msra.mxu0 %v1581
  %1682 = vmatprep.subr.bf16.mxu0 %v1586
  %1683 = vmatpush1.bf16.msra.mxu0 %v1585
  %1684 = vmatprep.subr.bf16.mxu0 %v1590
  %1685 = vmatpush1.bf16.msra.mxu0 %v1589
  %1686 = vmatprep.subr.bf16.mxu0 %v1594
  %1687 = vmatpush1.bf16.msra.mxu0 %v1593
  %1688 = vmatprep.subr.bf16.mxu0 %v1598
  %1689 = vmatpush1.bf16.msra.mxu0 %v1597
  %1690 = vmatprep.subr.bf16.mxu0 %v1602
  %1691 = vmatpush1.bf16.msra.mxu0 %v1601
  %1692 = vmatprep.subr.bf16.mxu0 0
  %1693 = vmatpush1.bf16.msra.mxu0 0
  %1694 = vmatprep.subr.bf16.mxu0 0
  %1695 = vmatpush1.bf16.msra.mxu0 0
  %1696 = vmatprep.subr.bf16.mxu0 0
  %1697 = vmatpush1.bf16.msra.mxu0 0
  %1698 = vmatprep.subr.bf16.mxu0 0
  %1699 = vmatpush1.bf16.msra.mxu0 0
  %1700 = vmatprep.subr.bf16.mxu0 0
  %1701 = vmatpush1.bf16.msra.mxu0 0
  %1702 = vmatprep.subr.bf16.mxu0 0
  %1703 = vmatpush1.bf16.msra.mxu0 0
  %1704 = vmatprep.subr.bf16.mxu0 0
  %1705 = vmatpush1.bf16.msra.mxu0 0
  %1706 = vmatprep.subr.bf16.mxu0 0
  %1707 = vmatpush1.bf16.msra.mxu0 0
  %1708 = vmatprep.mubr.bf16.mxu0 0
  %1709 = vmatmul.mubr.bf16.gmra.mrb[0].mxu0 %v1442
  %v1710 = vpop.f32.mrb[0].mxu0
  %v1711 = vadd.f32 0.0, %v1710
  %v1712 = vpop.f32.mrb[0].mxu0
  %v1713 = vadd.f32 0.0, %v1712
  %v1714 = vpop.f32.mrb[0].mxu0
  %v1715 = vpop.f32.mrb[0].mxu0
  %1716 = vdwg.mxu0
  %v1717 = vadd.f32 %v1438, %v1670
  %v1718 = vadd.f32 %v1439, %v1672
  %v1719 = vadd.f32 %v1440, %v1711
  %v1720 = vadd.f32 %v1441, %v1713
  %v1721 = vxor.u32 %v1717, 2147483648
  %v1722 = vmul.f32 %v1721, 1.442695
  %v1723 = vpow.pop %v1722
  %v1724 = vadd.f32 %v1723, 1.0
  %v1725 = vrcp.pop %v1724
  %v1726 = vmul.f32 1.0, %v1725
  %v1727 = vxor.u32 %v1718, 2147483648
  %v1728 = vmul.f32 %v1727, 1.442695
  %v1729 = vpow.pop %v1728
  %v1730 = vadd.f32 %v1729, 1.0
  %v1731 = vrcp.pop %v1730
  %v1732 = vmul.f32 1.0, %v1731
  %v1733 = vtanh.pop %v1719
  %v1734 = vxor.u32 %v1720, 2147483648
  %v1735 = vmul.f32 %v1734, 1.442695
  %v1736 = vpow.pop %v1735
  %v1737 = vadd.f32 %v1736, 1.0
  %v1738 = vrcp.pop %v1737
  %v1739 = vmul.f32 1.0, %v1738
  %v1740 = vld [vmem:[#allocation3] sm:$0xff]
  %v1741 = vmul.f32 %v1732, %v1740
  %v1742 = vmul.f32 %v1726, %v1733
  %v1743 = vadd.f32 %v1741, %v1742
  %v1744 = vtanh.pop %v1743
  %v1745 = vmul.f32 %v1739, %v1744
  %1746 = vst [vmem:[#allocation3] sm:$0xff] %v1743
  %v1747 = vpack.c.bf16 %v1745, %v1745
  %1748 = vst [vmem:[#allocation2] sm:$0xf] %v1747
  %v1750 = vrot.slane %v1747, 4
  %1752 = vst [vmem:[#allocation5 + $0x8] sm:$0xf0] %v1750
  %v1753 = vld [vmem:[#allocation4 + $0x40] sm:$0xf]
  %v1754 = vld [vmem:[#allocation4 + $0x48] sm:$0xf]
  %v1755 = vld [vmem:[#allocation4 + $0x50] sm:$0xf]
  %v1756 = vld [vmem:[#allocation4 + $0x58] sm:$0xf]
  %v1757 = vunpack.c.l.bf16 %v1753
  %v1758 = vunpack.c.l.bf16 %v1754
  %v1759 = vunpack.c.l.bf16 %v1755
  %v1760 = vunpack.c.l.bf16 %v1756
  %v1761 = vld [vmem:[#allocation2] sm:$0xf]
  %v1762 = vld [vmem:[%s3] sm:$0xff]
  %v1763 = vld [vmem:[%s3 + $0x8] sm:$0xff]
  %v1764 = vld [vmem:[%s3 + $0x10] sm:$0xff]
  %v1765 = vld [vmem:[%s3 + $0x18] sm:$0xff]
  %v1766 = vld [vmem:[%s3 + $0x20] sm:$0xff]
  %v1767 = vld [vmem:[%s3 + $0x28] sm:$0xff]
  %v1768 = vld [vmem:[%s3 + $0x30] sm:$0xff]
  %v1769 = vld [vmem:[%s3 + $0x38] sm:$0xff]
  %v1770 = vld [vmem:[%s3 + $0x40] sm:$0xff]
  %v1771 = vld [vmem:[%s3 + $0x48] sm:$0xff]
  %v1772 = vld [vmem:[%s3 + $0x50] sm:$0xff]
  %v1773 = vld [vmem:[%s3 + $0x58] sm:$0xff]
  %v1774 = vld [vmem:[%s3 + $0x60] sm:$0xff]
  %v1775 = vld [vmem:[%s3 + $0x68] sm:$0xff]
  %v1776 = vld [vmem:[%s3 + $0x70] sm:$0xff]
  %v1777 = vld [vmem:[%s3 + $0x78] sm:$0xff]
  %v1778 = vld [vmem:[%s3 + $0x80] sm:$0xff]
  %v1779 = vld [vmem:[%s3 + $0x88] sm:$0xff]
  %v1780 = vld [vmem:[%s3 + $0x90] sm:$0xff]
  %v1781 = vld [vmem:[%s3 + $0x98] sm:$0xff]
  %v1782 = vld [vmem:[%s3 + $0xa0] sm:$0xff]
  %v1783 = vld [vmem:[%s3 + $0xa8] sm:$0xff]
  %v1784 = vld [vmem:[%s3 + $0xb0] sm:$0xff]
  %v1785 = vld [vmem:[%s3 + $0xb8] sm:$0xff]
  %v1786 = vld [vmem:[%s3 + $0xc0] sm:$0xff]
  %v1787 = vld [vmem:[%s3 + $0xc8] sm:$0xff]
  %v1788 = vld [vmem:[%s3 + $0xd0] sm:$0xff]
  %v1789 = vld [vmem:[%s3 + $0xd8] sm:$0xff]
  %v1790 = vld [vmem:[%s3 + $0xe0] sm:$0xff]
  %v1791 = vld [vmem:[%s3 + $0xe8] sm:$0xff]
  %v1792 = vld [vmem:[%s3 + $0xf0] sm:$0xff]
  %v1793 = vld [vmem:[%s3 + $0xf8] sm:$0xff]
  %v1826 = vunpack.c.l.b16 %v1762
  %v1827 = vunpack.c.h.b16 %v1762
  %v1828 = vunpack.c.l.b16 %v1763
  %v1829 = vunpack.c.h.b16 %v1763
  %v1830 = vunpack.c.l.b16 %v1764
  %v1831 = vunpack.c.h.b16 %v1764
  %v1832 = vunpack.c.l.b16 %v1765
  %v1833 = vunpack.c.h.b16 %v1765
  %v1834 = vunpack.c.l.b16 %v1766
  %v1835 = vunpack.c.h.b16 %v1766
  %v1836 = vunpack.c.l.b16 %v1767
  %v1837 = vunpack.c.h.b16 %v1767
  %v1838 = vunpack.c.l.b16 %v1768
  %v1839 = vunpack.c.h.b16 %v1768
  %v1840 = vunpack.c.l.b16 %v1769
  %v1841 = vunpack.c.h.b16 %v1769
  %v1842 = vunpack.c.l.b16 %v1770
  %v1843 = vunpack.c.h.b16 %v1770
  %v1844 = vunpack.c.l.b16 %v1771
  %v1845 = vunpack.c.h.b16 %v1771
  %v1846 = vunpack.c.l.b16 %v1772
  %v1847 = vunpack.c.h.b16 %v1772
  %v1848 = vunpack.c.l.b16 %v1773
  %v1849 = vunpack.c.h.b16 %v1773
  %v1850 = vunpack.c.l.b16 %v1774
  %v1851 = vunpack.c.h.b16 %v1774
  %v1852 = vunpack.c.l.b16 %v1775
  %v1853 = vunpack.c.h.b16 %v1775
  %v1854 = vunpack.c.l.b16 %v1776
  %v1855 = vunpack.c.h.b16 %v1776
  %v1856 = vunpack.c.l.b16 %v1777
  %v1857 = vunpack.c.h.b16 %v1777
  %v1858 = vunpack.c.l.b16 %v1778
  %v1859 = vunpack.c.h.b16 %v1778
  %v1860 = vunpack.c.l.b16 %v1779
  %v1861 = vunpack.c.h.b16 %v1779
  %v1862 = vunpack.c.l.b16 %v1780
  %v1863 = vunpack.c.h.b16 %v1780
  %v1864 = vunpack.c.l.b16 %v1781
  %v1865 = vunpack.c.h.b16 %v1781
  %v1866 = vunpack.c.l.b16 %v1782
  %v1867 = vunpack.c.h.b16 %v1782
  %v1868 = vunpack.c.l.b16 %v1783
  %v1869 = vunpack.c.h.b16 %v1783
  %v1870 = vunpack.c.l.b16 %v1784
  %v1871 = vunpack.c.h.b16 %v1784
  %v1872 = vunpack.c.l.b16 %v1785
  %v1873 = vunpack.c.h.b16 %v1785
  %v1874 = vunpack.c.l.b16 %v1786
  %v1875 = vunpack.c.h.b16 %v1786
  %v1876 = vunpack.c.l.b16 %v1787
  %v1877 = vunpack.c.h.b16 %v1787
  %v1878 = vunpack.c.l.b16 %v1788
  %v1879 = vunpack.c.h.b16 %v1788
  %v1880 = vunpack.c.l.b16 %v1789
  %v1881 = vunpack.c.h.b16 %v1789
  %v1882 = vunpack.c.l.b16 %v1790
  %v1883 = vunpack.c.h.b16 %v1790
  %v1884 = vunpack.c.l.b16 %v1791
  %v1885 = vunpack.c.h.b16 %v1791
  %v1886 = vunpack.c.l.b16 %v1792
  %v1887 = vunpack.c.h.b16 %v1792
  %v1888 = vunpack.c.l.b16 %v1793
  %v1889 = vunpack.c.h.b16 %v1793
  %v1890 = vpack.c.b16 %v1830, %v1826
  %v1891 = vpack.c.b16 %v1831, %v1827
  %v1892 = vpack.c.b16 %v1832, %v1828
  %v1893 = vpack.c.b16 %v1833, %v1829
  %v1894 = vpack.c.b16 %v1838, %v1834
  %v1895 = vpack.c.b16 %v1839, %v1835
  %v1896 = vpack.c.b16 %v1840, %v1836
  %v1897 = vpack.c.b16 %v1841, %v1837
  %v1898 = vpack.c.b16 %v1846, %v1842
  %v1899 = vpack.c.b16 %v1847, %v1843
  %v1900 = vpack.c.b16 %v1848, %v1844
  %v1901 = vpack.c.b16 %v1849, %v1845
  %v1902 = vpack.c.b16 %v1854, %v1850
  %v1903 = vpack.c.b16 %v1855, %v1851
  %v1904 = vpack.c.b16 %v1856, %v1852
  %v1905 = vpack.c.b16 %v1857, %v1853
  %v1906 = vpack.c.b16 %v1862, %v1858
  %v1907 = vpack.c.b16 %v1863, %v1859
  %v1908 = vpack.c.b16 %v1864, %v1860
  %v1909 = vpack.c.b16 %v1865, %v1861
  %v1910 = vpack.c.b16 %v1870, %v1866
  %v1911 = vpack.c.b16 %v1871, %v1867
  %v1912 = vpack.c.b16 %v1872, %v1868
  %v1913 = vpack.c.b16 %v1873, %v1869
  %v1914 = vpack.c.b16 %v1878, %v1874
  %v1915 = vpack.c.b16 %v1879, %v1875
  %v1916 = vpack.c.b16 %v1880, %v1876
  %v1917 = vpack.c.b16 %v1881, %v1877
  %v1918 = vpack.c.b16 %v1886, %v1882
  %v1919 = vpack.c.b16 %v1887, %v1883
  %v1920 = vpack.c.b16 %v1888, %v1884
  %v1921 = vpack.c.b16 %v1889, %v1885
  %1954 = vmatprep.subr.bf16.mxu0 %v1891
  %1955 = vmatpush1.bf16.msra.mxu0 %v1890
  %1956 = vmatprep.subr.bf16.mxu0 %v1895
  %1957 = vmatpush1.bf16.msra.mxu0 %v1894
  %1958 = vmatprep.subr.bf16.mxu0 %v1899
  %1959 = vmatpush1.bf16.msra.mxu0 %v1898
  %1960 = vmatprep.subr.bf16.mxu0 %v1903
  %1961 = vmatpush1.bf16.msra.mxu0 %v1902
  %1962 = vmatprep.subr.bf16.mxu0 %v1907
  %1963 = vmatpush1.bf16.msra.mxu0 %v1906
  %1964 = vmatprep.subr.bf16.mxu0 %v1911
  %1965 = vmatpush1.bf16.msra.mxu0 %v1910
  %1966 = vmatprep.subr.bf16.mxu0 %v1915
  %1967 = vmatpush1.bf16.msra.mxu0 %v1914
  %1968 = vmatprep.subr.bf16.mxu0 %v1919
  %1969 = vmatpush1.bf16.msra.mxu0 %v1918
  %1970 = vmatprep.subr.bf16.mxu0 0
  %1971 = vmatpush1.bf16.msra.mxu0 0
  %1972 = vmatprep.subr.bf16.mxu0 0
  %1973 = vmatpush1.bf16.msra.mxu0 0
  %1974 = vmatprep.subr.bf16.mxu0 0
  %1975 = vmatpush1.bf16.msra.mxu0 0
  %1976 = vmatprep.subr.bf16.mxu0 0
  %1977 = vmatpush1.bf16.msra.mxu0 0
  %1978 = vmatprep.subr.bf16.mxu0 0
  %1979 = vmatpush1.bf16.msra.mxu0 0
  %1980 = vmatprep.subr.bf16.mxu0 0
  %1981 = vmatpush1.bf16.msra.mxu0 0
  %1982 = vmatprep.subr.bf16.mxu0 0
  %1983 = vmatpush1.bf16.msra.mxu0 0
  %1984 = vmatprep.subr.bf16.mxu0 0
  %1985 = vmatpush1.bf16.msra.mxu0 0
  %1986 = vmatprep.mubr.bf16.mxu0 0
  %1987 = vmatmul.mubr.bf16.gmra.mrb[0].mxu0 %v1761
  %v1988 = vpop.f32.mrb[0].mxu0
  %v1989 = vadd.f32 0.0, %v1988
  %v1990 = vpop.f32.mrb[0].mxu0
  %v1991 = vadd.f32 0.0, %v1990
  %v1992 = vpop.f32.mrb[0].mxu0
  %v1993 = vpop.f32.mrb[0].mxu0
  %1994 = vdwg.mxu0
  %1995 = vmatprep.subr.bf16.mxu0 %v1893
  %1996 = vmatpush1.bf16.msra.mxu0 %v1892
  %1997 = vmatprep.subr.bf16.mxu0 %v1897
  %1998 = vmatpush1.bf16.msra.mxu0 %v1896
  %1999 = vmatprep.subr.bf16.mxu0 %v1901
  %2000 = vmatpush1.bf16.msra.mxu0 %v1900
  %2001 = vmatprep.subr.bf16.mxu0 %v1905
  %2002 = vmatpush1.bf16.msra.mxu0 %v1904
  %2003 = vmatprep.subr.bf16.mxu0 %v1909
  %2004 = vmatpush1.bf16.msra.mxu0 %v1908
  %2005 = vmatprep.subr.bf16.mxu0 %v1913
  %2006 = vmatpush1.bf16.msra.mxu0 %v1912
  %2007 = vmatprep.subr.bf16.mxu0 %v1917
  %2008 = vmatpush1.bf16.msra.mxu0 %v1916
  %2009 = vmatprep.subr.bf16.mxu0 %v1921
  %2010 = vmatpush1.bf16.msra.mxu0 %v1920
  %2011 = vmatprep.subr.bf16.mxu0 0
  %2012 = vmatpush1.bf16.msra.mxu0 0
  %2013 = vmatprep.subr.bf16.mxu0 0
  %2014 = vmatpush1.bf16.msra.mxu0 0
  %2015 = vmatprep.subr.bf16.mxu0 0
  %2016 = vmatpush1.bf16.msra.mxu0 0
  %2017 = vmatprep.subr.bf16.mxu0 0
  %2018 = vmatpush1.bf16.msra.mxu0 0
  %2019 = vmatprep.subr.bf16.mxu0 0
  %2020 = vmatpush1.bf16.msra.mxu0 0
  %2021 = vmatprep.subr.bf16.mxu0 0
  %2022 = vmatpush1.bf16.msra.mxu0 0
  %2023 = vmatprep.subr.bf16.mxu0 0
  %2024 = vmatpush1.bf16.msra.mxu0 0
  %2025 = vmatprep.subr.bf16.mxu0 0
  %2026 = vmatpush1.bf16.msra.mxu0 0
  %2027 = vmatprep.mubr.bf16.mxu0 0
  %2028 = vmatmul.mubr.bf16.gmra.mrb[0].mxu0 %v1761
  %v2029 = vpop.f32.mrb[0].mxu0
  %v2030 = vadd.f32 0.0, %v2029
  %v2031 = vpop.f32.mrb[0].mxu0
  %v2032 = vadd.f32 0.0, %v2031
  %v2033 = vpop.f32.mrb[0].mxu0
  %v2034 = vpop.f32.mrb[0].mxu0
  %2035 = vdwg.mxu0
  %v2036 = vadd.f32 %v1757, %v1989
  %v2037 = vadd.f32 %v1758, %v1991
  %v2038 = vadd.f32 %v1759, %v2030
  %v2039 = vadd.f32 %v1760, %v2032
  %v2040 = vxor.u32 %v2036, 2147483648
  %v2041 = vmul.f32 %v2040, 1.442695
  %v2042 = vpow.pop %v2041
  %v2043 = vadd.f32 %v2042, 1.0
  %v2044 = vrcp.pop %v2043
  %v2045 = vmul.f32 1.0, %v2044
  %v2046 = vxor.u32 %v2037, 2147483648
  %v2047 = vmul.f32 %v2046, 1.442695
  %v2048 = vpow.pop %v2047
  %v2049 = vadd.f32 %v2048, 1.0
  %v2050 = vrcp.pop %v2049
  %v2051 = vmul.f32 1.0, %v2050
  %v2052 = vtanh.pop %v2038
  %v2053 = vxor.u32 %v2039, 2147483648
  %v2054 = vmul.f32 %v2053, 1.442695
  %v2055 = vpow.pop %v2054
  %v2056 = vadd.f32 %v2055, 1.0
  %v2057 = vrcp.pop %v2056
  %v2058 = vmul.f32 1.0, %v2057
  %v2059 = vld [vmem:[#allocation3] sm:$0xff]
  %v2060 = vmul.f32 %v2051, %v2059
  %v2061 = vmul.f32 %v2045, %v2052
  %v2062 = vadd.f32 %v2060, %v2061
  %v2063 = vtanh.pop %v2062
  %v2064 = vmul.f32 %v2058, %v2063
  %2065 = vst [vmem:[#allocation3] sm:$0xff] %v2062
  %v2066 = vpack.c.bf16 %v2064, %v2064
  %2067 = vst [vmem:[#allocation2] sm:$0xf] %v2066
  %2068 = vst [vmem:[#allocation5 + $0x10] sm:$0xf] %v2066
  %v2069 = vld [vmem:[#allocation4 + $0x40] sm:$0xf0]
  %v2070 = vld [vmem:[#allocation4 + $0x48] sm:$0xf0]
  %v2071 = vld [vmem:[#allocation4 + $0x50] sm:$0xf0]
  %v2072 = vld [vmem:[#allocation4 + $0x58] sm:$0xf0]
  %v2077 = vrot.slane %v2069, 4
  %v2078 = vrot.slane %v2070, 4
  %v2079 = vrot.slane %v2071, 4
  %v2080 = vrot.slane %v2072, 4
  %v2085 = vunpack.c.l.bf16 %v2077
  %v2086 = vunpack.c.l.bf16 %v2078
  %v2087 = vunpack.c.l.bf16 %v2079
  %v2088 = vunpack.c.l.bf16 %v2080
  %v2089 = vld [vmem:[#allocation2] sm:$0xf]
  %v2090 = vld [vmem:[%s3] sm:$0xff]
  %v2091 = vld [vmem:[%s3 + $0x8] sm:$0xff]
  %v2092 = vld [vmem:[%s3 + $0x10] sm:$0xff]
  %v2093 = vld [vmem:[%s3 + $0x18] sm:$0xff]
  %v2094 = vld [vmem:[%s3 + $0x20] sm:$0xff]
  %v2095 = vld [vmem:[%s3 + $0x28] sm:$0xff]
  %v2096 = vld [vmem:[%s3 + $0x30] sm:$0xff]
  %v2097 = vld [vmem:[%s3 + $0x38] sm:$0xff]
  %v2098 = vld [vmem:[%s3 + $0x40] sm:$0xff]
  %v2099 = vld [vmem:[%s3 + $0x48] sm:$0xff]
  %v2100 = vld [vmem:[%s3 + $0x50] sm:$0xff]
  %v2101 = vld [vmem:[%s3 + $0x58] sm:$0xff]
  %v2102 = vld [vmem:[%s3 + $0x60] sm:$0xff]
  %v2103 = vld [vmem:[%s3 + $0x68] sm:$0xff]
  %v2104 = vld [vmem:[%s3 + $0x70] sm:$0xff]
  %v2105 = vld [vmem:[%s3 + $0x78] sm:$0xff]
  %v2106 = vld [vmem:[%s3 + $0x80] sm:$0xff]
  %v2107 = vld [vmem:[%s3 + $0x88] sm:$0xff]
  %v2108 = vld [vmem:[%s3 + $0x90] sm:$0xff]
  %v2109 = vld [vmem:[%s3 + $0x98] sm:$0xff]
  %v2110 = vld [vmem:[%s3 + $0xa0] sm:$0xff]
  %v2111 = vld [vmem:[%s3 + $0xa8] sm:$0xff]
  %v2112 = vld [vmem:[%s3 + $0xb0] sm:$0xff]
  %v2113 = vld [vmem:[%s3 + $0xb8] sm:$0xff]
  %v2114 = vld [vmem:[%s3 + $0xc0] sm:$0xff]
  %v2115 = vld [vmem:[%s3 + $0xc8] sm:$0xff]
  %v2116 = vld [vmem:[%s3 + $0xd0] sm:$0xff]
  %v2117 = vld [vmem:[%s3 + $0xd8] sm:$0xff]
  %v2118 = vld [vmem:[%s3 + $0xe0] sm:$0xff]
  %v2119 = vld [vmem:[%s3 + $0xe8] sm:$0xff]
  %v2120 = vld [vmem:[%s3 + $0xf0] sm:$0xff]
  %v2121 = vld [vmem:[%s3 + $0xf8] sm:$0xff]
  %v2154 = vunpack.c.l.b16 %v2090
  %v2155 = vunpack.c.h.b16 %v2090
  %v2156 = vunpack.c.l.b16 %v2091
  %v2157 = vunpack.c.h.b16 %v2091
  %v2158 = vunpack.c.l.b16 %v2092
  %v2159 = vunpack.c.h.b16 %v2092
  %v2160 = vunpack.c.l.b16 %v2093
  %v2161 = vunpack.c.h.b16 %v2093
  %v2162 = vunpack.c.l.b16 %v2094
  %v2163 = vunpack.c.h.b16 %v2094
  %v2164 = vunpack.c.l.b16 %v2095
  %v2165 = vunpack.c.h.b16 %v2095
  %v2166 = vunpack.c.l.b16 %v2096
  %v2167 = vunpack.c.h.b16 %v2096
  %v2168 = vunpack.c.l.b16 %v2097
  %v2169 = vunpack.c.h.b16 %v2097
  %v2170 = vunpack.c.l.b16 %v2098
  %v2171 = vunpack.c.h.b16 %v2098
  %v2172 = vunpack.c.l.b16 %v2099
  %v2173 = vunpack.c.h.b16 %v2099
  %v2174 = vunpack.c.l.b16 %v2100
  %v2175 = vunpack.c.h.b16 %v2100
  %v2176 = vunpack.c.l.b16 %v2101
  %v2177 = vunpack.c.h.b16 %v2101
  %v2178 = vunpack.c.l.b16 %v2102
  %v2179 = vunpack.c.h.b16 %v2102
  %v2180 = vunpack.c.l.b16 %v2103
  %v2181 = vunpack.c.h.b16 %v2103
  %v2182 = vunpack.c.l.b16 %v2104
  %v2183 = vunpack.c.h.b16 %v2104
  %v2184 = vunpack.c.l.b16 %v2105
  %v2185 = vunpack.c.h.b16 %v2105
  %v2186 = vunpack.c.l.b16 %v2106
  %v2187 = vunpack.c.h.b16 %v2106
  %v2188 = vunpack.c.l.b16 %v2107
  %v2189 = vunpack.c.h.b16 %v2107
  %v2190 = vunpack.c.l.b16 %v2108
  %v2191 = vunpack.c.h.b16 %v2108
  %v2192 = vunpack.c.l.b16 %v2109
  %v2193 = vunpack.c.h.b16 %v2109
  %v2194 = vunpack.c.l.b16 %v2110
  %v2195 = vunpack.c.h.b16 %v2110
  %v2196 = vunpack.c.l.b16 %v2111
  %v2197 = vunpack.c.h.b16 %v2111
  %v2198 = vunpack.c.l.b16 %v2112
  %v2199 = vunpack.c.h.b16 %v2112
  %v2200 = vunpack.c.l.b16 %v2113
  %v2201 = vunpack.c.h.b16 %v2113
  %v2202 = vunpack.c.l.b16 %v2114
  %v2203 = vunpack.c.h.b16 %v2114
  %v2204 = vunpack.c.l.b16 %v2115
  %v2205 = vunpack.c.h.b16 %v2115
  %v2206 = vunpack.c.l.b16 %v2116
  %v2207 = vunpack.c.h.b16 %v2116
  %v2208 = vunpack.c.l.b16 %v2117
  %v2209 = vunpack.c.h.b16 %v2117
  %v2210 = vunpack.c.l.b16 %v2118
  %v2211 = vunpack.c.h.b16 %v2118
  %v2212 = vunpack.c.l.b16 %v2119
  %v2213 = vunpack.c.h.b16 %v2119
  %v2214 = vunpack.c.l.b16 %v2120
  %v2215 = vunpack.c.h.b16 %v2120
  %v2216 = vunpack.c.l.b16 %v2121
  %v2217 = vunpack.c.h.b16 %v2121
  %v2218 = vpack.c.b16 %v2158, %v2154
  %v2219 = vpack.c.b16 %v2159, %v2155
  %v2220 = vpack.c.b16 %v2160, %v2156
  %v2221 = vpack.c.b16 %v2161, %v2157
  %v2222 = vpack.c.b16 %v2166, %v2162
  %v2223 = vpack.c.b16 %v2167, %v2163
  %v2224 = vpack.c.b16 %v2168, %v2164
  %v2225 = vpack.c.b16 %v2169, %v2165
  %v2226 = vpack.c.b16 %v2174, %v2170
  %v2227 = vpack.c.b16 %v2175, %v2171
  %v2228 = vpack.c.b16 %v2176, %v2172
  %v2229 = vpack.c.b16 %v2177, %v2173
  %v2230 = vpack.c.b16 %v2182, %v2178
  %v2231 = vpack.c.b16 %v2183, %v2179
  %v2232 = vpack.c.b16 %v2184, %v2180
  %v2233 = vpack.c.b16 %v2185, %v2181
  %v2234 = vpack.c.b16 %v2190, %v2186
  %v2235 = vpack.c.b16 %v2191, %v2187
  %v2236 = vpack.c.b16 %v2192, %v2188
  %v2237 = vpack.c.b16 %v2193, %v2189
  %v2238 = vpack.c.b16 %v2198, %v2194
  %v2239 = vpack.c.b16 %v2199, %v2195
  %v2240 = vpack.c.b16 %v2200, %v2196
  %v2241 = vpack.c.b16 %v2201, %v2197
  %v2242 = vpack.c.b16 %v2206, %v2202
  %v2243 = vpack.c.b16 %v2207, %v2203
  %v2244 = vpack.c.b16 %v2208, %v2204
  %v2245 = vpack.c.b16 %v2209, %v2205
  %v2246 = vpack.c.b16 %v2214, %v2210
  %v2247 = vpack.c.b16 %v2215, %v2211
  %v2248 = vpack.c.b16 %v2216, %v2212
  %v2249 = vpack.c.b16 %v2217, %v2213
  %2282 = vmatprep.subr.bf16.mxu0 %v2219
  %2283 = vmatpush1.bf16.msra.mxu0 %v2218
  %2284 = vmatprep.subr.bf16.mxu0 %v2223
  %2285 = vmatpush1.bf16.msra.mxu0 %v2222
  %2286 = vmatprep.subr.bf16.mxu0 %v2227
  %2287 = vmatpush1.bf16.msra.mxu0 %v2226
  %2288 = vmatprep.subr.bf16.mxu0 %v2231
  %2289 = vmatpush1.bf16.msra.mxu0 %v2230
  %2290 = vmatprep.subr.bf16.mxu0 %v2235
  %2291 = vmatpush1.bf16.msra.mxu0 %v2234
  %2292 = vmatprep.subr.bf16.mxu0 %v2239
  %2293 = vmatpush1.bf16.msra.mxu0 %v2238
  %2294 = vmatprep.subr.bf16.mxu0 %v2243
  %2295 = vmatpush1.bf16.msra.mxu0 %v2242
  %2296 = vmatprep.subr.bf16.mxu0 %v2247
  %2297 = vmatpush1.bf16.msra.mxu0 %v2246
  %2298 = vmatprep.subr.bf16.mxu0 0
  %2299 = vmatpush1.bf16.msra.mxu0 0
  %2300 = vmatprep.subr.bf16.mxu0 0
  %2301 = vmatpush1.bf16.msra.mxu0 0
  %2302 = vmatprep.subr.bf16.mxu0 0
  %2303 = vmatpush1.bf16.msra.mxu0 0
  %2304 = vmatprep.subr.bf16.mxu0 0
  %2305 = vmatpush1.bf16.msra.mxu0 0
  %2306 = vmatprep.subr.bf16.mxu0 0
  %2307 = vmatpush1.bf16.msra.mxu0 0
  %2308 = vmatprep.subr.bf16.mxu0 0
  %2309 = vmatpush1.bf16.msra.mxu0 0
  %2310 = vmatprep.subr.bf16.mxu0 0
  %2311 = vmatpush1.bf16.msra.mxu0 0
  %2312 = vmatprep.subr.bf16.mxu0 0
  %2313 = vmatpush1.bf16.msra.mxu0 0
  %2314 = vmatprep.mubr.bf16.mxu0 0
  %2315 = vmatmul.mubr.bf16.gmra.mrb[0].mxu0 %v2089
  %v2316 = vpop.f32.mrb[0].mxu0
  %v2317 = vadd.f32 0.0, %v2316
  %v2318 = vpop.f32.mrb[0].mxu0
  %v2319 = vadd.f32 0.0, %v2318
  %v2320 = vpop.f32.mrb[0].mxu0
  %v2321 = vpop.f32.mrb[0].mxu0
  %2322 = vdwg.mxu0
  %2323 = vmatprep.subr.bf16.mxu0 %v2221
  %2324 = vmatpush1.bf16.msra.mxu0 %v2220
  %2325 = vmatprep.subr.bf16.mxu0 %v2225
  %2326 = vmatpush1.bf16.msra.mxu0 %v2224
  %2327 = vmatprep.subr.bf16.mxu0 %v2229
  %2328 = vmatpush1.bf16.msra.mxu0 %v2228
  %2329 = vmatprep.subr.bf16.mxu0 %v2233
  %2330 = vmatpush1.bf16.msra.mxu0 %v2232
  %2331 = vmatprep.subr.bf16.mxu0 %v2237
  %2332 = vmatpush1.bf16.msra.mxu0 %v2236
  %2333 = vmatprep.subr.bf16.mxu0 %v2241
  %2334 = vmatpush1.bf16.msra.mxu0 %v2240
  %2335 = vmatprep.subr.bf16.mxu0 %v2245
  %2336 = vmatpush1.bf16.msra.mxu0 %v2244
  %2337 = vmatprep.subr.bf16.mxu0 %v2249
  %2338 = vmatpush1.bf16.msra.mxu0 %v2248
  %2339 = vmatprep.subr.bf16.mxu0 0
  %2340 = vmatpush1.bf16.msra.mxu0 0
  %2341 = vmatprep.subr.bf16.mxu0 0
  %2342 = vmatpush1.bf16.msra.mxu0 0
  %2343 = vmatprep.subr.bf16.mxu0 0
  %2344 = vmatpush1.bf16.msra.mxu0 0
  %2345 = vmatprep.subr.bf16.mxu0 0
  %2346 = vmatpush1.bf16.msra.mxu0 0
  %2347 = vmatprep.subr.bf16.mxu0 0
  %2348 = vmatpush1.bf16.msra.mxu0 0
  %2349 = vmatprep.subr.bf16.mxu0 0
  %2350 = vmatpush1.bf16.msra.mxu0 0
  %2351 = vmatprep.subr.bf16.mxu0 0
  %2352 = vmatpush1.bf16.msra.mxu0 0
  %2353 = vmatprep.subr.bf16.mxu0 0
  %2354 = vmatpush1.bf16.msra.mxu0 0
  %2355 = vmatprep.mubr.bf16.mxu0 0
  %2356 = vmatmul.mubr.bf16.gmra.mrb[0].mxu0 %v2089
  %v2357 = vpop.f32.mrb[0].mxu0
  %v2358 = vadd.f32 0.0, %v2357
  %v2359 = vpop.f32.mrb[0].mxu0
  %v2360 = vadd.f32 0.0, %v2359
  %v2361 = vpop.f32.mrb[0].mxu0
  %v2362 = vpop.f32.mrb[0].mxu0
  %2363 = vdwg.mxu0
  %v2364 = vadd.f32 %v2085, %v2317
  %v2365 = vadd.f32 %v2086, %v2319
  %v2366 = vadd.f32 %v2087, %v2358
  %v2367 = vadd.f32 %v2088, %v2360
  %v2368 = vxor.u32 %v2364, 2147483648
  %v2369 = vmul.f32 %v2368, 1.442695
  %v2370 = vpow.pop %v2369
  %v2371 = vadd.f32 %v2370, 1.0
  %v2372 = vrcp.pop %v2371
  %v2373 = vmul.f32 1.0, %v2372
  %v2374 = vxor.u32 %v2365, 2147483648
  %v2375 = vmul.f32 %v2374, 1.442695
  %v2376 = vpow.pop %v2375
  %v2377 = vadd.f32 %v2376, 1.0
  %v2378 = vrcp.pop %v2377
  %v2379 = vmul.f32 1.0, %v2378
  %v2380 = vtanh.pop %v2366
  %v2381 = vxor.u32 %v2367, 2147483648
  %v2382 = vmul.f32 %v2381, 1.442695
  %v2383 = vpow.pop %v2382
  %v2384 = vadd.f32 %v2383, 1.0
  %v2385 = vrcp.pop %v2384
  %v2386 = vmul.f32 1.0, %v2385
  %v2387 = vld [vmem:[#allocation3] sm:$0xff]
  %v2388 = vmul.f32 %v2379, %v2387
  %v2389 = vmul.f32 %v2373, %v2380
  %v2390 = vadd.f32 %v2388, %v2389
  %v2391 = vtanh.pop %v2390
  %v2392 = vmul.f32 %v2386, %v2391
  %2393 = vst [vmem:[#allocation3] sm:$0xff] %v2390
  %v2394 = vpack.c.bf16 %v2392, %v2392
  %2395 = vst [vmem:[#allocation2] sm:$0xf] %v2394
  %v2397 = vrot.slane %v2394, 4
  %2399 = vst [vmem:[#allocation5 + $0x10] sm:$0xf0] %v2397
  %v2400 = vld [vmem:[#allocation4 + $0x60] sm:$0xf]
  %v2401 = vld [vmem:[#allocation4 + $0x68] sm:$0xf]
  %v2402 = vld [vmem:[#allocation4 + $0x70] sm:$0xf]
  %v2403 = vld [vmem:[#allocation4 + $0x78] sm:$0xf]
  %v2404 = vunpack.c.l.bf16 %v2400
  %v2405 = vunpack.c.l.bf16 %v2401
  %v2406 = vunpack.c.l.bf16 %v2402
  %v2407 = vunpack.c.l.bf16 %v2403
  %v2408 = vld [vmem:[#allocation2] sm:$0xf]
  %v2409 = vld [vmem:[%s3] sm:$0xff]
  %v2410 = vld [vmem:[%s3 + $0x8] sm:$0xff]
  %v2411 = vld [vmem:[%s3 + $0x10] sm:$0xff]
  %v2412 = vld [vmem:[%s3 + $0x18] sm:$0xff]
  %v2413 = vld [vmem:[%s3 + $0x20] sm:$0xff]
  %v2414 = vld [vmem:[%s3 + $0x28] sm:$0xff]
  %v2415 = vld [vmem:[%s3 + $0x30] sm:$0xff]
  %v2416 = vld [vmem:[%s3 + $0x38] sm:$0xff]
  %v2417 = vld [vmem:[%s3 + $0x40] sm:$0xff]
  %v2418 = vld [vmem:[%s3 + $0x48] sm:$0xff]
  %v2419 = vld [vmem:[%s3 + $0x50] sm:$0xff]
  %v2420 = vld [vmem:[%s3 + $0x58] sm:$0xff]
  %v2421 = vld [vmem:[%s3 + $0x60] sm:$0xff]
  %v2422 = vld [vmem:[%s3 + $0x68] sm:$0xff]
  %v2423 = vld [vmem:[%s3 + $0x70] sm:$0xff]
  %v2424 = vld [vmem:[%s3 + $0x78] sm:$0xff]
  %v2425 = vld [vmem:[%s3 + $0x80] sm:$0xff]
  %v2426 = vld [vmem:[%s3 + $0x88] sm:$0xff]
  %v2427 = vld [vmem:[%s3 + $0x90] sm:$0xff]
  %v2428 = vld [vmem:[%s3 + $0x98] sm:$0xff]
  %v2429 = vld [vmem:[%s3 + $0xa0] sm:$0xff]
  %v2430 = vld [vmem:[%s3 + $0xa8] sm:$0xff]
  %v2431 = vld [vmem:[%s3 + $0xb0] sm:$0xff]
  %v2432 = vld [vmem:[%s3 + $0xb8] sm:$0xff]
  %v2433 = vld [vmem:[%s3 + $0xc0] sm:$0xff]
  %v2434 = vld [vmem:[%s3 + $0xc8] sm:$0xff]
  %v2435 = vld [vmem:[%s3 + $0xd0] sm:$0xff]
  %v2436 = vld [vmem:[%s3 + $0xd8] sm:$0xff]
  %v2437 = vld [vmem:[%s3 + $0xe0] sm:$0xff]
  %v2438 = vld [vmem:[%s3 + $0xe8] sm:$0xff]
  %v2439 = vld [vmem:[%s3 + $0xf0] sm:$0xff]
  %v2440 = vld [vmem:[%s3 + $0xf8] sm:$0xff]
  %v2473 = vunpack.c.l.b16 %v2409
  %v2474 = vunpack.c.h.b16 %v2409
  %v2475 = vunpack.c.l.b16 %v2410
  %v2476 = vunpack.c.h.b16 %v2410
  %v2477 = vunpack.c.l.b16 %v2411
  %v2478 = vunpack.c.h.b16 %v2411
  %v2479 = vunpack.c.l.b16 %v2412
  %v2480 = vunpack.c.h.b16 %v2412
  %v2481 = vunpack.c.l.b16 %v2413
  %v2482 = vunpack.c.h.b16 %v2413
  %v2483 = vunpack.c.l.b16 %v2414
  %v2484 = vunpack.c.h.b16 %v2414
  %v2485 = vunpack.c.l.b16 %v2415
  %v2486 = vunpack.c.h.b16 %v2415
  %v2487 = vunpack.c.l.b16 %v2416
  %v2488 = vunpack.c.h.b16 %v2416
  %v2489 = vunpack.c.l.b16 %v2417
  %v2490 = vunpack.c.h.b16 %v2417
  %v2491 = vunpack.c.l.b16 %v2418
  %v2492 = vunpack.c.h.b16 %v2418
  %v2493 = vunpack.c.l.b16 %v2419
  %v2494 = vunpack.c.h.b16 %v2419
  %v2495 = vunpack.c.l.b16 %v2420
  %v2496 = vunpack.c.h.b16 %v2420
  %v2497 = vunpack.c.l.b16 %v2421
  %v2498 = vunpack.c.h.b16 %v2421
  %v2499 = vunpack.c.l.b16 %v2422
  %v2500 = vunpack.c.h.b16 %v2422
  %v2501 = vunpack.c.l.b16 %v2423
  %v2502 = vunpack.c.h.b16 %v2423
  %v2503 = vunpack.c.l.b16 %v2424
  %v2504 = vunpack.c.h.b16 %v2424
  %v2505 = vunpack.c.l.b16 %v2425
  %v2506 = vunpack.c.h.b16 %v2425
  %v2507 = vunpack.c.l.b16 %v2426
  %v2508 = vunpack.c.h.b16 %v2426
  %v2509 = vunpack.c.l.b16 %v2427
  %v2510 = vunpack.c.h.b16 %v2427
  %v2511 = vunpack.c.l.b16 %v2428
  %v2512 = vunpack.c.h.b16 %v2428
  %v2513 = vunpack.c.l.b16 %v2429
  %v2514 = vunpack.c.h.b16 %v2429
  %v2515 = vunpack.c.l.b16 %v2430
  %v2516 = vunpack.c.h.b16 %v2430
  %v2517 = vunpack.c.l.b16 %v2431
  %v2518 = vunpack.c.h.b16 %v2431
  %v2519 = vunpack.c.l.b16 %v2432
  %v2520 = vunpack.c.h.b16 %v2432
  %v2521 = vunpack.c.l.b16 %v2433
  %v2522 = vunpack.c.h.b16 %v2433
  %v2523 = vunpack.c.l.b16 %v2434
  %v2524 = vunpack.c.h.b16 %v2434
  %v2525 = vunpack.c.l.b16 %v2435
  %v2526 = vunpack.c.h.b16 %v2435
  %v2527 = vunpack.c.l.b16 %v2436
  %v2528 = vunpack.c.h.b16 %v2436
  %v2529 = vunpack.c.l.b16 %v2437
  %v2530 = vunpack.c.h.b16 %v2437
  %v2531 = vunpack.c.l.b16 %v2438
  %v2532 = vunpack.c.h.b16 %v2438
  %v2533 = vunpack.c.l.b16 %v2439
  %v2534 = vunpack.c.h.b16 %v2439
  %v2535 = vunpack.c.l.b16 %v2440
  %v2536 = vunpack.c.h.b16 %v2440
  %v2537 = vpack.c.b16 %v2477, %v2473
  %v2538 = vpack.c.b16 %v2478, %v2474
  %v2539 = vpack.c.b16 %v2479, %v2475
  %v2540 = vpack.c.b16 %v2480, %v2476
  %v2541 = vpack.c.b16 %v2485, %v2481
  %v2542 = vpack.c.b16 %v2486, %v2482
  %v2543 = vpack.c.b16 %v2487, %v2483
  %v2544 = vpack.c.b16 %v2488, %v2484
  %v2545 = vpack.c.b16 %v2493, %v2489
  %v2546 = vpack.c.b16 %v2494, %v2490
  %v2547 = vpack.c.b16 %v2495, %v2491
  %v2548 = vpack.c.b16 %v2496, %v2492
  %v2549 = vpack.c.b16 %v2501, %v2497
  %v2550 = vpack.c.b16 %v2502, %v2498
  %v2551 = vpack.c.b16 %v2503, %v2499
  %v2552 = vpack.c.b16 %v2504, %v2500
  %v2553 = vpack.c.b16 %v2509, %v2505
  %v2554 = vpack.c.b16 %v2510, %v2506
  %v2555 = vpack.c.b16 %v2511, %v2507
  %v2556 = vpack.c.b16 %v2512, %v2508
  %v2557 = vpack.c.b16 %v2517, %v2513
  %v2558 = vpack.c.b16 %v2518, %v2514
  %v2559 = vpack.c.b16 %v2519, %v2515
  %v2560 = vpack.c.b16 %v2520, %v2516
  %v2561 = vpack.c.b16 %v2525, %v2521
  %v2562 = vpack.c.b16 %v2526, %v2522
  %v2563 = vpack.c.b16 %v2527, %v2523
  %v2564 = vpack.c.b16 %v2528, %v2524
  %v2565 = vpack.c.b16 %v2533, %v2529
  %v2566 = vpack.c.b16 %v2534, %v2530
  %v2567 = vpack.c.b16 %v2535, %v2531
  %v2568 = vpack.c.b16 %v2536, %v2532
  %2601 = vmatprep.subr.bf16.mxu0 %v2538
  %2602 = vmatpush1.bf16.msra.mxu0 %v2537
  %2603 = vmatprep.subr.bf16.mxu0 %v2542
  %2604 = vmatpush1.bf16.msra.mxu0 %v2541
  %2605 = vmatprep.subr.bf16.mxu0 %v2546
  %2606 = vmatpush1.bf16.msra.mxu0 %v2545
  %2607 = vmatprep.subr.bf16.mxu0 %v2550
  %2608 = vmatpush1.bf16.msra.mxu0 %v2549
  %2609 = vmatprep.subr.bf16.mxu0 %v2554
  %2610 = vmatpush1.bf16.msra.mxu0 %v2553
  %2611 = vmatprep.subr.bf16.mxu0 %v2558
  %2612 = vmatpush1.bf16.msra.mxu0 %v2557
  %2613 = vmatprep.subr.bf16.mxu0 %v2562
  %2614 = vmatpush1.bf16.msra.mxu0 %v2561
  %2615 = vmatprep.subr.bf16.mxu0 %v2566
  %2616 = vmatpush1.bf16.msra.mxu0 %v2565
  %2617 = vmatprep.subr.bf16.mxu0 0
  %2618 = vmatpush1.bf16.msra.mxu0 0
  %2619 = vmatprep.subr.bf16.mxu0 0
  %2620 = vmatpush1.bf16.msra.mxu0 0
  %2621 = vmatprep.subr.bf16.mxu0 0
  %2622 = vmatpush1.bf16.msra.mxu0 0
  %2623 = vmatprep.subr.bf16.mxu0 0
  %2624 = vmatpush1.bf16.msra.mxu0 0
  %2625 = vmatprep.subr.bf16.mxu0 0
  %2626 = vmatpush1.bf16.msra.mxu0 0
  %2627 = vmatprep.subr.bf16.mxu0 0
  %2628 = vmatpush1.bf16.msra.mxu0 0
  %2629 = vmatprep.subr.bf16.mxu0 0
  %2630 = vmatpush1.bf16.msra.mxu0 0
  %2631 = vmatprep.subr.bf16.mxu0 0
  %2632 = vmatpush1.bf16.msra.mxu0 0
  %2633 = vmatprep.mubr.bf16.mxu0 0
  %2634 = vmatmul.mubr.bf16.gmra.mrb[0].mxu0 %v2408
  %v2635 = vpop.f32.mrb[0].mxu0
  %v2636 = vadd.f32 0.0, %v2635
  %v2637 = vpop.f32.mrb[0].mxu0
  %v2638 = vadd.f32 0.0, %v2637
  %v2639 = vpop.f32.mrb[0].mxu0
  %v2640 = vpop.f32.mrb[0].mxu0
  %2641 = vdwg.mxu0
  %2642 = vmatprep.subr.bf16.mxu0 %v2540
  %2643 = vmatpush1.bf16.msra.mxu0 %v2539
  %2644 = vmatprep.subr.bf16.mxu0 %v2544
  %2645 = vmatpush1.bf16.msra.mxu0 %v2543
  %2646 = vmatprep.subr.bf16.mxu0 %v2548
  %2647 = vmatpush1.bf16.msra.mxu0 %v2547
  %2648 = vmatprep.subr.bf16.mxu0 %v2552
  %2649 = vmatpush1.bf16.msra.mxu0 %v2551
  %2650 = vmatprep.subr.bf16.mxu0 %v2556
  %2651 = vmatpush1.bf16.msra.mxu0 %v2555
  %2652 = vmatprep.subr.bf16.mxu0 %v2560
  %2653 = vmatpush1.bf16.msra.mxu0 %v2559
  %2654 = vmatprep.subr.bf16.mxu0 %v2564
  %2655 = vmatpush1.bf16.msra.mxu0 %v2563
  %2656 = vmatprep.subr.bf16.mxu0 %v2568
  %2657 = vmatpush1.bf16.msra.mxu0 %v2567
  %2658 = vmatprep.subr.bf16.mxu0 0
  %2659 = vmatpush1.bf16.msra.mxu0 0
  %2660 = vmatprep.subr.bf16.mxu0 0
  %2661 = vmatpush1.bf16.msra.mxu0 0
  %2662 = vmatprep.subr.bf16.mxu0 0
  %2663 = vmatpush1.bf16.msra.mxu0 0
  %2664 = vmatprep.subr.bf16.mxu0 0
  %2665 = vmatpush1.bf16.msra.mxu0 0
  %2666 = vmatprep.subr.bf16.mxu0 0
  %2667 = vmatpush1.bf16.msra.mxu0 0
  %2668 = vmatprep.subr.bf16.mxu0 0
  %2669 = vmatpush1.bf16.msra.mxu0 0
  %2670 = vmatprep.subr.bf16.mxu0 0
  %2671 = vmatpush1.bf16.msra.mxu0 0
  %2672 = vmatprep.subr.bf16.mxu0 0
  %2673 = vmatpush1.bf16.msra.mxu0 0
  %2674 = vmatprep.mubr.bf16.mxu0 0
  %2675 = vmatmul.mubr.bf16.gmra.mrb[0].mxu0 %v2408
  %v2676 = vpop.f32.mrb[0].mxu0
  %v2677 = vadd.f32 0.0, %v2676
  %v2678 = vpop.f32.mrb[0].mxu0
  %v2679 = vadd.f32 0.0, %v2678
  %v2680 = vpop.f32.mrb[0].mxu0
  %v2681 = vpop.f32.mrb[0].mxu0
  %2682 = vdwg.mxu0
  %v2683 = vadd.f32 %v2404, %v2636
  %v2684 = vadd.f32 %v2405, %v2638
  %v2685 = vadd.f32 %v2406, %v2677
  %v2686 = vadd.f32 %v2407, %v2679
  %v2687 = vxor.u32 %v2683, 2147483648
  %v2688 = vmul.f32 %v2687, 1.442695
  %v2689 = vpow.pop %v2688
  %v2690 = vadd.f32 %v2689, 1.0
  %v2691 = vrcp.pop %v2690
  %v2692 = vmul.f32 1.0, %v2691
  %v2693 = vxor.u32 %v2684, 2147483648
  %v2694 = vmul.f32 %v2693, 1.442695
  %v2695 = vpow.pop %v2694
  %v2696 = vadd.f32 %v2695, 1.0
  %v2697 = vrcp.pop %v2696
  %v2698 = vmul.f32 1.0, %v2697
  %v2699 = vtanh.pop %v2685
  %v2700 = vxor.u32 %v2686, 2147483648
  %v2701 = vmul.f32 %v2700, 1.442695
  %v2702 = vpow.pop %v2701
  %v2703 = vadd.f32 %v2702, 1.0
  %v2704 = vrcp.pop %v2703
  %v2705 = vmul.f32 1.0, %v2704
  %v2706 = vld [vmem:[#allocation3] sm:$0xff]
  %v2707 = vmul.f32 %v2698, %v2706
  %v2708 = vmul.f32 %v2692, %v2699
  %v2709 = vadd.f32 %v2707, %v2708
  %v2710 = vtanh.pop %v2709
  %v2711 = vmul.f32 %v2705, %v2710
  %2712 = vst [vmem:[#allocation3] sm:$0xff] %v2709
  %v2713 = vpack.c.bf16 %v2711, %v2711
  %2714 = vst [vmem:[#allocation2] sm:$0xf] %v2713
  %2715 = vst [vmem:[#allocation5 + $0x18] sm:$0xf] %v2713
  %v2716 = vld [vmem:[#allocation4 + $0x60] sm:$0xf0]
  %v2717 = vld [vmem:[#allocation4 + $0x68] sm:$0xf0]
  %v2718 = vld [vmem:[#allocation4 + $0x70] sm:$0xf0]
  %v2719 = vld [vmem:[#allocation4 + $0x78] sm:$0xf0]
  %v2724 = vrot.slane %v2716, 4
  %v2725 = vrot.slane %v2717, 4
  %v2726 = vrot.slane %v2718, 4
  %v2727 = vrot.slane %v2719, 4
  %v2732 = vunpack.c.l.bf16 %v2724
  %v2733 = vunpack.c.l.bf16 %v2725
  %v2734 = vunpack.c.l.bf16 %v2726
  %v2735 = vunpack.c.l.bf16 %v2727
  %v2736 = vld [vmem:[#allocation2] sm:$0xf]
  %v2737 = vld [vmem:[%s3] sm:$0xff]
  %v2738 = vld [vmem:[%s3 + $0x8] sm:$0xff]
  %v2739 = vld [vmem:[%s3 + $0x10] sm:$0xff]
  %v2740 = vld [vmem:[%s3 + $0x18] sm:$0xff]
  %v2741 = vld [vmem:[%s3 + $0x20] sm:$0xff]
  %v2742 = vld [vmem:[%s3 + $0x28] sm:$0xff]
  %v2743 = vld [vmem:[%s3 + $0x30] sm:$0xff]
  %v2744 = vld [vmem:[%s3 + $0x38] sm:$0xff]
  %v2745 = vld [vmem:[%s3 + $0x40] sm:$0xff]
  %v2746 = vld [vmem:[%s3 + $0x48] sm:$0xff]
  %v2747 = vld [vmem:[%s3 + $0x50] sm:$0xff]
  %v2748 = vld [vmem:[%s3 + $0x58] sm:$0xff]
  %v2749 = vld [vmem:[%s3 + $0x60] sm:$0xff]
  %v2750 = vld [vmem:[%s3 + $0x68] sm:$0xff]
  %v2751 = vld [vmem:[%s3 + $0x70] sm:$0xff]
  %v2752 = vld [vmem:[%s3 + $0x78] sm:$0xff]
  %v2753 = vld [vmem:[%s3 + $0x80] sm:$0xff]
  %v2754 = vld [vmem:[%s3 + $0x88] sm:$0xff]
  %v2755 = vld [vmem:[%s3 + $0x90] sm:$0xff]
  %v2756 = vld [vmem:[%s3 + $0x98] sm:$0xff]
  %v2757 = vld [vmem:[%s3 + $0xa0] sm:$0xff]
  %v2758 = vld [vmem:[%s3 + $0xa8] sm:$0xff]
  %v2759 = vld [vmem:[%s3 + $0xb0] sm:$0xff]
  %v2760 = vld [vmem:[%s3 + $0xb8] sm:$0xff]
  %v2761 = vld [vmem:[%s3 + $0xc0] sm:$0xff]
  %v2762 = vld [vmem:[%s3 + $0xc8] sm:$0xff]
  %v2763 = vld [vmem:[%s3 + $0xd0] sm:$0xff]
  %v2764 = vld [vmem:[%s3 + $0xd8] sm:$0xff]
  %v2765 = vld [vmem:[%s3 + $0xe0] sm:$0xff]
  %v2766 = vld [vmem:[%s3 + $0xe8] sm:$0xff]
  %v2767 = vld [vmem:[%s3 + $0xf0] sm:$0xff]
  %v2768 = vld [vmem:[%s3 + $0xf8] sm:$0xff]
  %v2801 = vunpack.c.l.b16 %v2737
  %v2802 = vunpack.c.h.b16 %v2737
  %v2803 = vunpack.c.l.b16 %v2738
  %v2804 = vunpack.c.h.b16 %v2738
  %v2805 = vunpack.c.l.b16 %v2739
  %v2806 = vunpack.c.h.b16 %v2739
  %v2807 = vunpack.c.l.b16 %v2740
  %v2808 = vunpack.c.h.b16 %v2740
  %v2809 = vunpack.c.l.b16 %v2741
  %v2810 = vunpack.c.h.b16 %v2741
  %v2811 = vunpack.c.l.b16 %v2742
  %v2812 = vunpack.c.h.b16 %v2742
  %v2813 = vunpack.c.l.b16 %v2743
  %v2814 = vunpack.c.h.b16 %v2743
  %v2815 = vunpack.c.l.b16 %v2744
  %v2816 = vunpack.c.h.b16 %v2744
  %v2817 = vunpack.c.l.b16 %v2745
  %v2818 = vunpack.c.h.b16 %v2745
  %v2819 = vunpack.c.l.b16 %v2746
  %v2820 = vunpack.c.h.b16 %v2746
  %v2821 = vunpack.c.l.b16 %v2747
  %v2822 = vunpack.c.h.b16 %v2747
  %v2823 = vunpack.c.l.b16 %v2748
  %v2824 = vunpack.c.h.b16 %v2748
  %v2825 = vunpack.c.l.b16 %v2749
  %v2826 = vunpack.c.h.b16 %v2749
  %v2827 = vunpack.c.l.b16 %v2750
  %v2828 = vunpack.c.h.b16 %v2750
  %v2829 = vunpack.c.l.b16 %v2751
  %v2830 = vunpack.c.h.b16 %v2751
  %v2831 = vunpack.c.l.b16 %v2752
  %v2832 = vunpack.c.h.b16 %v2752
  %v2833 = vunpack.c.l.b16 %v2753
  %v2834 = vunpack.c.h.b16 %v2753
  %v2835 = vunpack.c.l.b16 %v2754
  %v2836 = vunpack.c.h.b16 %v2754
  %v2837 = vunpack.c.l.b16 %v2755
  %v2838 = vunpack.c.h.b16 %v2755
  %v2839 = vunpack.c.l.b16 %v2756
  %v2840 = vunpack.c.h.b16 %v2756
  %v2841 = vunpack.c.l.b16 %v2757
  %v2842 = vunpack.c.h.b16 %v2757
  %v2843 = vunpack.c.l.b16 %v2758
  %v2844 = vunpack.c.h.b16 %v2758
  %v2845 = vunpack.c.l.b16 %v2759
  %v2846 = vunpack.c.h.b16 %v2759
  %v2847 = vunpack.c.l.b16 %v2760
  %v2848 = vunpack.c.h.b16 %v2760
  %v2849 = vunpack.c.l.b16 %v2761
  %v2850 = vunpack.c.h.b16 %v2761
  %v2851 = vunpack.c.l.b16 %v2762
  %v2852 = vunpack.c.h.b16 %v2762
  %v2853 = vunpack.c.l.b16 %v2763
  %v2854 = vunpack.c.h.b16 %v2763
  %v2855 = vunpack.c.l.b16 %v2764
  %v2856 = vunpack.c.h.b16 %v2764
  %v2857 = vunpack.c.l.b16 %v2765
  %v2858 = vunpack.c.h.b16 %v2765
  %v2859 = vunpack.c.l.b16 %v2766
  %v2860 = vunpack.c.h.b16 %v2766
  %v2861 = vunpack.c.l.b16 %v2767
  %v2862 = vunpack.c.h.b16 %v2767
  %v2863 = vunpack.c.l.b16 %v2768
  %v2864 = vunpack.c.h.b16 %v2768
  %v2865 = vpack.c.b16 %v2805, %v2801
  %v2866 = vpack.c.b16 %v2806, %v2802
  %v2867 = vpack.c.b16 %v2807, %v2803
  %v2868 = vpack.c.b16 %v2808, %v2804
  %v2869 = vpack.c.b16 %v2813, %v2809
  %v2870 = vpack.c.b16 %v2814, %v2810
  %v2871 = vpack.c.b16 %v2815, %v2811
  %v2872 = vpack.c.b16 %v2816, %v2812
  %v2873 = vpack.c.b16 %v2821, %v2817
  %v2874 = vpack.c.b16 %v2822, %v2818
  %v2875 = vpack.c.b16 %v2823, %v2819
  %v2876 = vpack.c.b16 %v2824, %v2820
  %v2877 = vpack.c.b16 %v2829, %v2825
  %v2878 = vpack.c.b16 %v2830, %v2826
  %v2879 = vpack.c.b16 %v2831, %v2827
  %v2880 = vpack.c.b16 %v2832, %v2828
  %v2881 = vpack.c.b16 %v2837, %v2833
  %v2882 = vpack.c.b16 %v2838, %v2834
  %v2883 = vpack.c.b16 %v2839, %v2835
  %v2884 = vpack.c.b16 %v2840, %v2836
  %v2885 = vpack.c.b16 %v2845, %v2841
  %v2886 = vpack.c.b16 %v2846, %v2842
  %v2887 = vpack.c.b16 %v2847, %v2843
  %v2888 = vpack.c.b16 %v2848, %v2844
  %v2889 = vpack.c.b16 %v2853, %v2849
  %v2890 = vpack.c.b16 %v2854, %v2850
  %v2891 = vpack.c.b16 %v2855, %v2851
  %v2892 = vpack.c.b16 %v2856, %v2852
  %v2893 = vpack.c.b16 %v2861, %v2857
  %v2894 = vpack.c.b16 %v2862, %v2858
  %v2895 = vpack.c.b16 %v2863, %v2859
  %v2896 = vpack.c.b16 %v2864, %v2860
  %2929 = vmatprep.subr.bf16.mxu0 %v2866
  %2930 = vmatpush1.bf16.msra.mxu0 %v2865
  %2931 = vmatprep.subr.bf16.mxu0 %v2870
  %2932 = vmatpush1.bf16.msra.mxu0 %v2869
  %2933 = vmatprep.subr.bf16.mxu0 %v2874
  %2934 = vmatpush1.bf16.msra.mxu0 %v2873
  %2935 = vmatprep.subr.bf16.mxu0 %v2878
  %2936 = vmatpush1.bf16.msra.mxu0 %v2877
  %2937 = vmatprep.subr.bf16.mxu0 %v2882
  %2938 = vmatpush1.bf16.msra.mxu0 %v2881
  %2939 = vmatprep.subr.bf16.mxu0 %v2886
  %2940 = vmatpush1.bf16.msra.mxu0 %v2885
  %2941 = vmatprep.subr.bf16.mxu0 %v2890
  %2942 = vmatpush1.bf16.msra.mxu0 %v2889
  %2943 = vmatprep.subr.bf16.mxu0 %v2894
  %2944 = vmatpush1.bf16.msra.mxu0 %v2893
  %2945 = vmatprep.subr.bf16.mxu0 0
  %2946 = vmatpush1.bf16.msra.mxu0 0
  %2947 = vmatprep.subr.bf16.mxu0 0
  %2948 = vmatpush1.bf16.msra.mxu0 0
  %2949 = vmatprep.subr.bf16.mxu0 0
  %2950 = vmatpush1.bf16.msra.mxu0 0
  %2951 = vmatprep.subr.bf16.mxu0 0
  %2952 = vmatpush1.bf16.msra.mxu0 0
  %2953 = vmatprep.subr.bf16.mxu0 0
  %2954 = vmatpush1.bf16.msra.mxu0 0
  %2955 = vmatprep.subr.bf16.mxu0 0
  %2956 = vmatpush1.bf16.msra.mxu0 0
  %2957 = vmatprep.subr.bf16.mxu0 0
  %2958 = vmatpush1.bf16.msra.mxu0 0
  %2959 = vmatprep.subr.bf16.mxu0 0
  %2960 = vmatpush1.bf16.msra.mxu0 0
  %2961 = vmatprep.mubr.bf16.mxu0 0
  %2962 = vmatmul.mubr.bf16.gmra.mrb[0].mxu0 %v2736
  %v2963 = vpop.f32.mrb[0].mxu0
  %v2964 = vadd.f32 0.0, %v2963
  %v2965 = vpop.f32.mrb[0].mxu0
  %v2966 = vadd.f32 0.0, %v2965
  %v2967 = vpop.f32.mrb[0].mxu0
  %v2968 = vpop.f32.mrb[0].mxu0
  %2969 = vdwg.mxu0
  %2970 = vmatprep.subr.bf16.mxu0 %v2868
  %2971 = vmatpush1.bf16.msra.mxu0 %v2867
  %2972 = vmatprep.subr.bf16.mxu0 %v2872
  %2973 = vmatpush1.bf16.msra.mxu0 %v2871
  %2974 = vmatprep.subr.bf16.mxu0 %v2876
  %2975 = vmatpush1.bf16.msra.mxu0 %v2875
  %2976 = vmatprep.subr.bf16.mxu0 %v2880
  %2977 = vmatpush1.bf16.msra.mxu0 %v2879
  %2978 = vmatprep.subr.bf16.mxu0 %v2884
  %2979 = vmatpush1.bf16.msra.mxu0 %v2883
  %2980 = vmatprep.subr.bf16.mxu0 %v2888
  %2981 = vmatpush1.bf16.msra.mxu0 %v2887
  %2982 = vmatprep.subr.bf16.mxu0 %v2892
  %2983 = vmatpush1.bf16.msra.mxu0 %v2891
  %2984 = vmatprep.subr.bf16.mxu0 %v2896
  %2985 = vmatpush1.bf16.msra.mxu0 %v2895
  %2986 = vmatprep.subr.bf16.mxu0 0
  %2987 = vmatpush1.bf16.msra.mxu0 0
  %2988 = vmatprep.subr.bf16.mxu0 0
  %2989 = vmatpush1.bf16.msra.mxu0 0
  %2990 = vmatprep.subr.bf16.mxu0 0
  %2991 = vmatpush1.bf16.msra.mxu0 0
  %2992 = vmatprep.subr.bf16.mxu0 0
  %2993 = vmatpush1.bf16.msra.mxu0 0
  %2994 = vmatprep.subr.bf16.mxu0 0
  %2995 = vmatpush1.bf16.msra.mxu0 0
  %2996 = vmatprep.subr.bf16.mxu0 0
  %2997 = vmatpush1.bf16.msra.mxu0 0
  %2998 = vmatprep.subr.bf16.mxu0 0
  %2999 = vmatpush1.bf16.msra.mxu0 0
  %3000 = vmatprep.subr.bf16.mxu0 0
  %3001 = vmatpush1.bf16.msra.mxu0 0
  %3002 = vmatprep.mubr.bf16.mxu0 0
  %3003 = vmatmul.mubr.bf16.gmra.mrb[0].mxu0 %v2736
  %v3004 = vpop.f32.mrb[0].mxu0
  %v3005 = vadd.f32 0.0, %v3004
  %v3006 = vpop.f32.mrb[0].mxu0
  %v3007 = vadd.f32 0.0, %v3006
  %v3008 = vpop.f32.mrb[0].mxu0
  %v3009 = vpop.f32.mrb[0].mxu0
  %3010 = vdwg.mxu0
  %v3011 = vadd.f32 %v2732, %v2964
  %v3012 = vadd.f32 %v2733, %v2966
  %v3013 = vadd.f32 %v2734, %v3005
  %v3014 = vadd.f32 %v2735, %v3007
  %v3015 = vxor.u32 %v3011, 2147483648
  %v3016 = vmul.f32 %v3015, 1.442695
  %v3017 = vpow.pop %v3016
  %v3018 = vadd.f32 %v3017, 1.0
  %v3019 = vrcp.pop %v3018
  %v3020 = vmul.f32 1.0, %v3019
  %v3021 = vxor.u32 %v3012, 2147483648
  %v3022 = vmul.f32 %v3021, 1.442695
  %v3023 = vpow.pop %v3022
  %v3024 = vadd.f32 %v3023, 1.0
  %v3025 = vrcp.pop %v3024
  %v3026 = vmul.f32 1.0, %v3025
  %v3027 = vtanh.pop %v3013
  %v3028 = vxor.u32 %v3014, 2147483648
  %v3029 = vmul.f32 %v3028, 1.442695
  %v3030 = vpow.pop %v3029
  %v3031 = vadd.f32 %v3030, 1.0
  %v3032 = vrcp.pop %v3031
  %v3033 = vmul.f32 1.0, %v3032
  %v3034 = vld [vmem:[#allocation3] sm:$0xff]
  %v3035 = vmul.f32 %v3026, %v3034
  %v3036 = vmul.f32 %v3020, %v3027
  %v3037 = vadd.f32 %v3035, %v3036
  %v3038 = vtanh.pop %v3037
  %v3039 = vmul.f32 %v3033, %v3038
  %3040 = vst [vmem:[#allocation3] sm:$0xff] %v3037
  %v3041 = vpack.c.bf16 %v3039, %v3039
  %3042 = vst [vmem:[#allocation2] sm:$0xf] %v3041
  %v3044 = vrot.slane %v3041, 4
  %3046 = vst [vmem:[#allocation5 + $0x18] sm:$0xf0] %v3044
  %v3047 = vld [vmem:[#allocation5] sm:$0xff]
  %v3048 = vld [vmem:[#allocation5 + $0x8] sm:$0xff]
  %v3049 = vld [vmem:[#allocation5 + $0x10] sm:$0xff]
  %v3050 = vld [vmem:[#allocation5 + $0x18] sm:$0xff]
  %v3051 = vld [vmem:[%s2] sm:$0xff]
  %v3052 = vld [vmem:[%s2 + $0x8] sm:$0xff]
  %v3053 = vld [vmem:[%s2 + $0x10] sm:$0xff]
  %v3054 = vld [vmem:[%s2 + $0x18] sm:$0xff]
  %v3055 = vld [vmem:[%s2 + $0x20] sm:$0xff]
  %v3056 = vld [vmem:[%s2 + $0x28] sm:$0xff]
  %v3057 = vld [vmem:[%s2 + $0x30] sm:$0xff]
  %v3058 = vld [vmem:[%s2 + $0x38] sm:$0xff]
  %v3059 = vld [vmem:[%s2 + $0x40] sm:$0xff]
  %v3060 = vld [vmem:[%s2 + $0x48] sm:$0xff]
  %v3061 = vld [vmem:[%s2 + $0x50] sm:$0xff]
  %v3062 = vld [vmem:[%s2 + $0x58] sm:$0xff]
  %v3063 = vld [vmem:[%s2 + $0x60] sm:$0xff]
  %v3064 = vld [vmem:[%s2 + $0x68] sm:$0xff]
  %v3065 = vld [vmem:[%s2 + $0x70] sm:$0xff]
  %v3066 = vld [vmem:[%s2 + $0x78] sm:$0xff]
  %v3067 = vld [vmem:[%s2 + $0x80] sm:$0xff]
  %v3068 = vld [vmem:[%s2 + $0x88] sm:$0xff]
  %v3069 = vld [vmem:[%s2 + $0x90] sm:$0xff]
  %v3070 = vld [vmem:[%s2 + $0x98] sm:$0xff]
  %v3071 = vld [vmem:[%s2 + $0xa0] sm:$0xff]
  %v3072 = vld [vmem:[%s2 + $0xa8] sm:$0xff]
  %v3073 = vld [vmem:[%s2 + $0xb0] sm:$0xff]
  %v3074 = vld [vmem:[%s2 + $0xb8] sm:$0xff]
  %v3075 = vld [vmem:[%s2 + $0xc0] sm:$0xff]
  %v3076 = vld [vmem:[%s2 + $0xc8] sm:$0xff]
  %v3077 = vld [vmem:[%s2 + $0xd0] sm:$0xff]
  %v3078 = vld [vmem:[%s2 + $0xd8] sm:$0xff]
  %v3079 = vld [vmem:[%s2 + $0xe0] sm:$0xff]
  %v3080 = vld [vmem:[%s2 + $0xe8] sm:$0xff]
  %v3081 = vld [vmem:[%s2 + $0xf0] sm:$0xff]
  %v3082 = vld [vmem:[%s2 + $0xf8] sm:$0xff]
  %s3083 = scalar_lea.vmem %s4, 4
  %v3084 = vld [vmem:[%s3083] sm:$0xf]
  %v3086 = vlaneseq
  %v3087 = vshrl.u32 %v3086, 7
  %v3088 = vsub.s32 0, %v3087
  %v3089 = vrot.slane %v3084, %v3088
  %v3090 = vlaneseq
  %v3091 = vshrl.u32 %v3090, 7
  %v3092 = vsub.s32 1, %v3091
  %v3093 = vrot.slane %v3084, %v3092
  %v3094 = vlaneseq
  %v3095 = vshrl.u32 %v3094, 7
  %v3096 = vsub.s32 2, %v3095
  %v3097 = vrot.slane %v3084, %v3096
  %v3098 = vlaneseq
  %v3099 = vshrl.u32 %v3098, 7
  %v3100 = vsub.s32 3, %v3099
  %v3101 = vrot.slane %v3084, %v3100
  %v3138 = vunpack.c.l.b16 %v3051
  %v3139 = vunpack.c.h.b16 %v3051
  %v3140 = vunpack.c.l.b16 %v3052
  %v3141 = vunpack.c.h.b16 %v3052
  %v3142 = vunpack.c.l.b16 %v3053
  %v3143 = vunpack.c.h.b16 %v3053
  %v3144 = vunpack.c.l.b16 %v3054
  %v3145 = vunpack.c.h.b16 %v3054
  %v3146 = vunpack.c.l.b16 %v3055
  %v3147 = vunpack.c.h.b16 %v3055
  %v3148 = vunpack.c.l.b16 %v3056
  %v3149 = vunpack.c.h.b16 %v3056
  %v3150 = vunpack.c.l.b16 %v3057
  %v3151 = vunpack.c.h.b16 %v3057
  %v3152 = vunpack.c.l.b16 %v3058
  %v3153 = vunpack.c.h.b16 %v3058
  %v3154 = vunpack.c.l.b16 %v3059
  %v3155 = vunpack.c.h.b16 %v3059
  %v3156 = vunpack.c.l.b16 %v3060
  %v3157 = vunpack.c.h.b16 %v3060
  %v3158 = vunpack.c.l.b16 %v3061
  %v3159 = vunpack.c.h.b16 %v3061
  %v3160 = vunpack.c.l.b16 %v3062
  %v3161 = vunpack.c.h.b16 %v3062
  %v3162 = vunpack.c.l.b16 %v3063
  %v3163 = vunpack.c.h.b16 %v3063
  %v3164 = vunpack.c.l.b16 %v3064
  %v3165 = vunpack.c.h.b16 %v3064
  %v3166 = vunpack.c.l.b16 %v3065
  %v3167 = vunpack.c.h.b16 %v3065
  %v3168 = vunpack.c.l.b16 %v3066
  %v3169 = vunpack.c.h.b16 %v3066
  %v3170 = vunpack.c.l.b16 %v3067
  %v3171 = vunpack.c.h.b16 %v3067
  %v3172 = vunpack.c.l.b16 %v3068
  %v3173 = vunpack.c.h.b16 %v3068
  %v3174 = vunpack.c.l.b16 %v3069
  %v3175 = vunpack.c.h.b16 %v3069
  %v3176 = vunpack.c.l.b16 %v3070
  %v3177 = vunpack.c.h.b16 %v3070
  %v3178 = vunpack.c.l.b16 %v3071
  %v3179 = vunpack.c.h.b16 %v3071
  %v3180 = vunpack.c.l.b16 %v3072
  %v3181 = vunpack.c.h.b16 %v3072
  %v3182 = vunpack.c.l.b16 %v3073
  %v3183 = vunpack.c.h.b16 %v3073
  %v3184 = vunpack.c.l.b16 %v3074
  %v3185 = vunpack.c.h.b16 %v3074
  %v3186 = vunpack.c.l.b16 %v3075
  %v3187 = vunpack.c.h.b16 %v3075
  %v3188 = vunpack.c.l.b16 %v3076
  %v3189 = vunpack.c.h.b16 %v3076
  %v3190 = vunpack.c.l.b16 %v3077
  %v3191 = vunpack.c.h.b16 %v3077
  %v3192 = vunpack.c.l.b16 %v3078
  %v3193 = vunpack.c.h.b16 %v3078
  %v3194 = vunpack.c.l.b16 %v3079
  %v3195 = vunpack.c.h.b16 %v3079
  %v3196 = vunpack.c.l.b16 %v3080
  %v3197 = vunpack.c.h.b16 %v3080
  %v3198 = vunpack.c.l.b16 %v3081
  %v3199 = vunpack.c.h.b16 %v3081
  %v3200 = vunpack.c.l.b16 %v3082
  %v3201 = vunpack.c.h.b16 %v3082
  %v3202 = vpack.c.b16 %v3142, %v3138
  %v3203 = vpack.c.b16 %v3143, %v3139
  %v3204 = vpack.c.b16 %v3144, %v3140
  %v3205 = vpack.c.b16 %v3145, %v3141
  %v3206 = vpack.c.b16 %v3150, %v3146
  %v3207 = vpack.c.b16 %v3151, %v3147
  %v3208 = vpack.c.b16 %v3152, %v3148
  %v3209 = vpack.c.b16 %v3153, %v3149
  %v3210 = vpack.c.b16 %v3158, %v3154
  %v3211 = vpack.c.b16 %v3159, %v3155
  %v3212 = vpack.c.b16 %v3160, %v3156
  %v3213 = vpack.c.b16 %v3161, %v3157
  %v3214 = vpack.c.b16 %v3166, %v3162
  %v3215 = vpack.c.b16 %v3167, %v3163
  %v3216 = vpack.c.b16 %v3168, %v3164
  %v3217 = vpack.c.b16 %v3169, %v3165
  %v3218 = vpack.c.b16 %v3174, %v3170
  %v3219 = vpack.c.b16 %v3175, %v3171
  %v3220 = vpack.c.b16 %v3176, %v3172
  %v3221 = vpack.c.b16 %v3177, %v3173
  %v3222 = vpack.c.b16 %v3182, %v3178
  %v3223 = vpack.c.b16 %v3183, %v3179
  %v3224 = vpack.c.b16 %v3184, %v3180
  %v3225 = vpack.c.b16 %v3185, %v3181
  %v3226 = vpack.c.b16 %v3190, %v3186
  %v3227 = vpack.c.b16 %v3191, %v3187
  %v3228 = vpack.c.b16 %v3192, %v3188
  %v3229 = vpack.c.b16 %v3193, %v3189
  %v3230 = vpack.c.b16 %v3198, %v3194
  %v3231 = vpack.c.b16 %v3199, %v3195
  %v3232 = vpack.c.b16 %v3200, %v3196
  %v3233 = vpack.c.b16 %v3201, %v3197
  %3266 = vmatprep.subr.bf16.mxu0 %v3203
  %3267 = vmatpush1.bf16.msra.mxu0 %v3202
  %3268 = vmatprep.subr.bf16.mxu0 %v3207
  %3269 = vmatpush1.bf16.msra.mxu0 %v3206
  %3270 = vmatprep.subr.bf16.mxu0 %v3211
  %3271 = vmatpush1.bf16.msra.mxu0 %v3210
  %3272 = vmatprep.subr.bf16.mxu0 %v3215
  %3273 = vmatpush1.bf16.msra.mxu0 %v3214
  %3274 = vmatprep.subr.bf16.mxu0 %v3219
  %3275 = vmatpush1.bf16.msra.mxu0 %v3218
  %3276 = vmatprep.subr.bf16.mxu0 %v3223
  %3277 = vmatpush1.bf16.msra.mxu0 %v3222
  %3278 = vmatprep.subr.bf16.mxu0 %v3227
  %3279 = vmatpush1.bf16.msra.mxu0 %v3226
  %3280 = vmatprep.subr.bf16.mxu0 %v3231
  %3281 = vmatpush1.bf16.msra.mxu0 %v3230
  %3282 = vmatprep.subr.bf16.mxu0 0
  %3283 = vmatpush1.bf16.msra.mxu0 0
  %3284 = vmatprep.subr.bf16.mxu0 0
  %3285 = vmatpush1.bf16.msra.mxu0 0
  %3286 = vmatprep.subr.bf16.mxu0 0
  %3287 = vmatpush1.bf16.msra.mxu0 0
  %3288 = vmatprep.subr.bf16.mxu0 0
  %3289 = vmatpush1.bf16.msra.mxu0 0
  %3290 = vmatprep.subr.bf16.mxu0 0
  %3291 = vmatpush1.bf16.msra.mxu0 0
  %3292 = vmatprep.subr.bf16.mxu0 0
  %3293 = vmatpush1.bf16.msra.mxu0 0
  %3294 = vmatprep.subr.bf16.mxu0 0
  %3295 = vmatpush1.bf16.msra.mxu0 0
  %3296 = vmatprep.subr.bf16.mxu0 0
  %3297 = vmatpush1.bf16.msra.mxu0 0
  %3298 = vmatprep.mubr.bf16.mxu0 0
  %3299 = vmatmul.mubr.bf16.gmra.mrb[0].mxu0 %v3047
  %v3300 = vpop.f32.mrb[0].mxu0
  %v3301 = vadd.f32 %v3089, %v3300
  %v3302 = vpop.f32.mrb[0].mxu0
  %v3303 = vadd.f32 %v3093, %v3302
  %v3304 = vpop.f32.mrb[0].mxu0
  %v3305 = vadd.f32 %v3089, %v3304
  %v3306 = vpop.f32.mrb[0].mxu0
  %v3307 = vadd.f32 %v3093, %v3306
  %3308 = vmatprep.mubr.bf16.mxu0 0
  %3309 = vmatmul.mubr.bf16.gmra.mrb[0].mxu0 %v3048
  %v3310 = vpop.f32.mrb[0].mxu0
  %v3311 = vadd.f32 %v3089, %v3310
  %v3312 = vpop.f32.mrb[0].mxu0
  %v3313 = vadd.f32 %v3093, %v3312
  %v3314 = vpop.f32.mrb[0].mxu0
  %v3315 = vadd.f32 %v3089, %v3314
  %v3316 = vpop.f32.mrb[0].mxu0
  %v3317 = vadd.f32 %v3093, %v3316
  %3318 = vmatprep.mubr.bf16.mxu0 0
  %3319 = vmatmul.mubr.bf16.gmra.mrb[0].mxu0 %v3049
  %v3320 = vpop.f32.mrb[0].mxu0
  %v3321 = vadd.f32 %v3089, %v3320
  %v3322 = vpop.f32.mrb[0].mxu0
  %v3323 = vadd.f32 %v3093, %v3322
  %v3324 = vpop.f32.mrb[0].mxu0
  %v3325 = vadd.f32 %v3089, %v3324
  %v3326 = vpop.f32.mrb[0].mxu0
  %v3327 = vadd.f32 %v3093, %v3326
  %3328 = vmatprep.mubr.bf16.mxu0 0
  %3329 = vmatmul.mubr.bf16.gmra.mrb[0].mxu0 %v3050
  %v3330 = vpop.f32.mrb[0].mxu0
  %v3331 = vadd.f32 %v3089, %v3330
  %v3332 = vpop.f32.mrb[0].mxu0
  %v3333 = vadd.f32 %v3093, %v3332
  %v3334 = vpop.f32.mrb[0].mxu0
  %v3335 = vadd.f32 %v3089, %v3334
  %v3336 = vpop.f32.mrb[0].mxu0
  %v3337 = vadd.f32 %v3093, %v3336
  %3338 = vdwg.mxu0
  %3339 = vmatprep.subr.bf16.mxu0 %v3205
  %3340 = vmatpush1.bf16.msra.mxu0 %v3204
  %3341 = vmatprep.subr.bf16.mxu0 %v3209
  %3342 = vmatpush1.bf16.msra.mxu0 %v3208
  %3343 = vmatprep.subr.bf16.mxu0 %v3213
  %3344 = vmatpush1.bf16.msra.mxu0 %v3212
  %3345 = vmatprep.subr.bf16.mxu0 %v3217
  %3346 = vmatpush1.bf16.msra.mxu0 %v3216
  %3347 = vmatprep.subr.bf16.mxu0 %v3221
  %3348 = vmatpush1.bf16.msra.mxu0 %v3220
  %3349 = vmatprep.subr.bf16.mxu0 %v3225
  %3350 = vmatpush1.bf16.msra.mxu0 %v3224
  %3351 = vmatprep.subr.bf16.mxu0 %v3229
  %3352 = vmatpush1.bf16.msra.mxu0 %v3228
  %3353 = vmatprep.subr.bf16.mxu0 %v3233
  %3354 = vmatpush1.bf16.msra.mxu0 %v3232
  %3355 = vmatprep.subr.bf16.mxu0 0
  %3356 = vmatpush1.bf16.msra.mxu0 0
  %3357 = vmatprep.subr.bf16.mxu0 0
  %3358 = vmatpush1.bf16.msra.mxu0 0
  %3359 = vmatprep.subr.bf16.mxu0 0
  %3360 = vmatpush1.bf16.msra.mxu0 0
  %3361 = vmatprep.subr.bf16.mxu0 0
  %3362 = vmatpush1.bf16.msra.mxu0 0
  %3363 = vmatprep.subr.bf16.mxu0 0
  %3364 = vmatpush1.bf16.msra.mxu0 0
  %3365 = vmatprep.subr.bf16.mxu0 0
  %3366 = vmatpush1.bf16.msra.mxu0 0
  %3367 = vmatprep.subr.bf16.mxu0 0
  %3368 = vmatpush1.bf16.msra.mxu0 0
  %3369 = vmatprep.subr.bf16.mxu0 0
  %3370 = vmatpush1.bf16.msra.mxu0 0
  %3371 = vmatprep.mubr.bf16.mxu0 0
  %3372 = vmatmul.mubr.bf16.gmra.mrb[0].mxu0 %v3047
  %v3373 = vpop.f32.mrb[0].mxu0
  %v3374 = vadd.f32 %v3097, %v3373
  %v3375 = vpop.f32.mrb[0].mxu0
  %v3376 = vadd.f32 %v3101, %v3375
  %v3377 = vpop.f32.mrb[0].mxu0
  %v3378 = vadd.f32 %v3097, %v3377
  %v3379 = vpop.f32.mrb[0].mxu0
  %v3380 = vadd.f32 %v3101, %v3379
  %3381 = vmatprep.mubr.bf16.mxu0 0
  %3382 = vmatmul.mubr.bf16.gmra.mrb[0].mxu0 %v3048
  %v3383 = vpop.f32.mrb[0].mxu0
  %v3384 = vadd.f32 %v3097, %v3383
  %v3385 = vpop.f32.mrb[0].mxu0
  %v3386 = vadd.f32 %v3101, %v3385
  %v3387 = vpop.f32.mrb[0].mxu0
  %v3388 = vadd.f32 %v3097, %v3387
  %v3389 = vpop.f32.mrb[0].mxu0
  %v3390 = vadd.f32 %v3101, %v3389
  %3391 = vmatprep.mubr.bf16.mxu0 0
  %3392 = vmatmul.mubr.bf16.gmra.mrb[0].mxu0 %v3049
  %v3393 = vpop.f32.mrb[0].mxu0
  %v3394 = vadd.f32 %v3097, %v3393
  %v3395 = vpop.f32.mrb[0].mxu0
  %v3396 = vadd.f32 %v3101, %v3395
  %v3397 = vpop.f32.mrb[0].mxu0
  %v3398 = vadd.f32 %v3097, %v3397
  %v3399 = vpop.f32.mrb[0].mxu0
  %v3400 = vadd.f32 %v3101, %v3399
  %3401 = vmatprep.mubr.bf16.mxu0 0
  %3402 = vmatmul.mubr.bf16.gmra.mrb[0].mxu0 %v3050
  %v3403 = vpop.f32.mrb[0].mxu0
  %v3404 = vadd.f32 %v3097, %v3403
  %v3405 = vpop.f32.mrb[0].mxu0
  %v3406 = vadd.f32 %v3101, %v3405
  %v3407 = vpop.f32.mrb[0].mxu0
  %v3408 = vadd.f32 %v3097, %v3407
  %v3409 = vpop.f32.mrb[0].mxu0
  %v3410 = vadd.f32 %v3101, %v3409
  %3411 = vdwg.mxu0
  %v3412 = vpack.c.bf16 %v3305, %v3301
  %v3413 = vpack.c.bf16 %v3307, %v3303
  %v3414 = vpack.c.bf16 %v3378, %v3374
  %v3415 = vpack.c.bf16 %v3380, %v3376
  %v3416 = vpack.c.bf16 %v3315, %v3311
  %v3417 = vpack.c.bf16 %v3317, %v3313
  %v3418 = vpack.c.bf16 %v3388, %v3384
  %v3419 = vpack.c.bf16 %v3390, %v3386
  %v3420 = vpack.c.bf16 %v3325, %v3321
  %v3421 = vpack.c.bf16 %v3327, %v3323
  %v3422 = vpack.c.bf16 %v3398, %v3394
  %v3423 = vpack.c.bf16 %v3400, %v3396
  %v3424 = vpack.c.bf16 %v3335, %v3331
  %v3425 = vpack.c.bf16 %v3337, %v3333
  %v3426 = vpack.c.bf16 %v3408, %v3404
  %v3427 = vpack.c.bf16 %v3410, %v3406
  %3428 = vst [vmem:[#allocation4] sm:$0xff] %v3412
  %3429 = vst [vmem:[#allocation4 + $0x8] sm:$0xff] %v3413
  %3430 = vst [vmem:[#allocation4 + $0x10] sm:$0xff] %v3414
  %3431 = vst [vmem:[#allocation4 + $0x18] sm:$0xff] %v3415
  %3432 = vst [vmem:[#allocation4 + $0x20] sm:$0xff] %v3416
  %3433 = vst [vmem:[#allocation4 + $0x28] sm:$0xff] %v3417
  %3434 = vst [vmem:[#allocation4 + $0x30] sm:$0xff] %v3418
  %3435 = vst [vmem:[#allocation4 + $0x38] sm:$0xff] %v3419
  %3436 = vst [vmem:[#allocation4 + $0x40] sm:$0xff] %v3420
  %3437 = vst [vmem:[#allocation4 + $0x48] sm:$0xff] %v3421
  %3438 = vst [vmem:[#allocation4 + $0x50] sm:$0xff] %v3422
  %3439 = vst [vmem:[#allocation4 + $0x58] sm:$0xff] %v3423
  %3440 = vst [vmem:[#allocation4 + $0x60] sm:$0xff] %v3424
  %3441 = vst [vmem:[#allocation4 + $0x68] sm:$0xff] %v3425
  %3442 = vst [vmem:[#allocation4 + $0x70] sm:$0xff] %v3426
  %3443 = vst [vmem:[#allocation4 + $0x78] sm:$0xff] %v3427
  %v3444 = vld [vmem:[#allocation4] sm:$0xf]
  %v3445 = vld [vmem:[#allocation4 + $0x8] sm:$0xf]
  %v3446 = vld [vmem:[#allocation4 + $0x10] sm:$0xf]
  %v3447 = vld [vmem:[#allocation4 + $0x18] sm:$0xf]
  %v3448 = vunpack.c.l.bf16 %v3444
  %v3449 = vunpack.c.l.bf16 %v3445
  %v3450 = vunpack.c.l.bf16 %v3446
  %v3451 = vunpack.c.l.bf16 %v3447
  %s3452 = scalar_lea.vmem [#allocation2], 4
  %v3453 = vld [vmem:[%s3452] sm:$0xf]
  %s3454 = scalar_lea.vmem %s3, 256
  %v3455 = vld [vmem:[%s3454] sm:$0xff]
  %v3456 = vld [vmem:[%s3454 + $0x8] sm:$0xff]
  %v3457 = vld [vmem:[%s3454 + $0x10] sm:$0xff]
  %v3458 = vld [vmem:[%s3454 + $0x18] sm:$0xff]
  %v3459 = vld [vmem:[%s3454 + $0x20] sm:$0xff]
  %v3460 = vld [vmem:[%s3454 + $0x28] sm:$0xff]
  %v3461 = vld [vmem:[%s3454 + $0x30] sm:$0xff]
  %v3462 = vld [vmem:[%s3454 + $0x38] sm:$0xff]
  %v3463 = vld [vmem:[%s3454 + $0x40] sm:$0xff]
  %v3464 = vld [vmem:[%s3454 + $0x48] sm:$0xff]
  %v3465 = vld [vmem:[%s3454 + $0x50] sm:$0xff]
  %v3466 = vld [vmem:[%s3454 + $0x58] sm:$0xff]
  %v3467 = vld [vmem:[%s3454 + $0x60] sm:$0xff]
  %v3468 = vld [vmem:[%s3454 + $0x68] sm:$0xff]
  %v3469 = vld [vmem:[%s3454 + $0x70] sm:$0xff]
  %v3470 = vld [vmem:[%s3454 + $0x78] sm:$0xff]
  %v3471 = vld [vmem:[%s3454 + $0x80] sm:$0xff]
  %v3472 = vld [vmem:[%s3454 + $0x88] sm:$0xff]
  %v3473 = vld [vmem:[%s3454 + $0x90] sm:$0xff]
  %v3474 = vld [vmem:[%s3454 + $0x98] sm:$0xff]
  %v3475 = vld [vmem:[%s3454 + $0xa0] sm:$0xff]
  %v3476 = vld [vmem:[%s3454 + $0xa8] sm:$0xff]
  %v3477 = vld [vmem:[%s3454 + $0xb0] sm:$0xff]
  %v3478 = vld [vmem:[%s3454 + $0xb8] sm:$0xff]
  %v3479 = vld [vmem:[%s3454 + $0xc0] sm:$0xff]
  %v3480 = vld [vmem:[%s3454 + $0xc8] sm:$0xff]
  %v3481 = vld [vmem:[%s3454 + $0xd0] sm:$0xff]
  %v3482 = vld [vmem:[%s3454 + $0xd8] sm:$0xff]
  %v3483 = vld [vmem:[%s3454 + $0xe0] sm:$0xff]
  %v3484 = vld [vmem:[%s3454 + $0xe8] sm:$0xff]
  %v3485 = vld [vmem:[%s3454 + $0xf0] sm:$0xff]
  %v3486 = vld [vmem:[%s3454 + $0xf8] sm:$0xff]
  %v3519 = vunpack.c.l.b16 %v3455
  %v3520 = vunpack.c.h.b16 %v3455
  %v3521 = vunpack.c.l.b16 %v3456
  %v3522 = vunpack.c.h.b16 %v3456
  %v3523 = vunpack.c.l.b16 %v3457
  %v3524 = vunpack.c.h.b16 %v3457
  %v3525 = vunpack.c.l.b16 %v3458
  %v3526 = vunpack.c.h.b16 %v3458
  %v3527 = vunpack.c.l.b16 %v3459
  %v3528 = vunpack.c.h.b16 %v3459
  %v3529 = vunpack.c.l.b16 %v3460
  %v3530 = vunpack.c.h.b16 %v3460
  %v3531 = vunpack.c.l.b16 %v3461
  %v3532 = vunpack.c.h.b16 %v3461
  %v3533 = vunpack.c.l.b16 %v3462
  %v3534 = vunpack.c.h.b16 %v3462
  %v3535 = vunpack.c.l.b16 %v3463
  %v3536 = vunpack.c.h.b16 %v3463
  %v3537 = vunpack.c.l.b16 %v3464
  %v3538 = vunpack.c.h.b16 %v3464
  %v3539 = vunpack.c.l.b16 %v3465
  %v3540 = vunpack.c.h.b16 %v3465
  %v3541 = vunpack.c.l.b16 %v3466
  %v3542 = vunpack.c.h.b16 %v3466
  %v3543 = vunpack.c.l.b16 %v3467
  %v3544 = vunpack.c.h.b16 %v3467
  %v3545 = vunpack.c.l.b16 %v3468
  %v3546 = vunpack.c.h.b16 %v3468
  %v3547 = vunpack.c.l.b16 %v3469
  %v3548 = vunpack.c.h.b16 %v3469
  %v3549 = vunpack.c.l.b16 %v3470
  %v3550 = vunpack.c.h.b16 %v3470
  %v3551 = vunpack.c.l.b16 %v3471
  %v3552 = vunpack.c.h.b16 %v3471
  %v3553 = vunpack.c.l.b16 %v3472
  %v3554 = vunpack.c.h.b16 %v3472
  %v3555 = vunpack.c.l.b16 %v3473
  %v3556 = vunpack.c.h.b16 %v3473
  %v3557 = vunpack.c.l.b16 %v3474
  %v3558 = vunpack.c.h.b16 %v3474
  %v3559 = vunpack.c.l.b16 %v3475
  %v3560 = vunpack.c.h.b16 %v3475
  %v3561 = vunpack.c.l.b16 %v3476
  %v3562 = vunpack.c.h.b16 %v3476
  %v3563 = vunpack.c.l.b16 %v3477
  %v3564 = vunpack.c.h.b16 %v3477
  %v3565 = vunpack.c.l.b16 %v3478
  %v3566 = vunpack.c.h.b16 %v3478
  %v3567 = vunpack.c.l.b16 %v3479
  %v3568 = vunpack.c.h.b16 %v3479
  %v3569 = vunpack.c.l.b16 %v3480
  %v3570 = vunpack.c.h.b16 %v3480
  %v3571 = vunpack.c.l.b16 %v3481
  %v3572 = vunpack.c.h.b16 %v3481
  %v3573 = vunpack.c.l.b16 %v3482
  %v3574 = vunpack.c.h.b16 %v3482
  %v3575 = vunpack.c.l.b16 %v3483
  %v3576 = vunpack.c.h.b16 %v3483
  %v3577 = vunpack.c.l.b16 %v3484
  %v3578 = vunpack.c.h.b16 %v3484
  %v3579 = vunpack.c.l.b16 %v3485
  %v3580 = vunpack.c.h.b16 %v3485
  %v3581 = vunpack.c.l.b16 %v3486
  %v3582 = vunpack.c.h.b16 %v3486
  %v3583 = vpack.c.b16 %v3523, %v3519
  %v3584 = vpack.c.b16 %v3524, %v3520
  %v3585 = vpack.c.b16 %v3525, %v3521
  %v3586 = vpack.c.b16 %v3526, %v3522
  %v3587 = vpack.c.b16 %v3531, %v3527
  %v3588 = vpack.c.b16 %v3532, %v3528
  %v3589 = vpack.c.b16 %v3533, %v3529
  %v3590 = vpack.c.b16 %v3534, %v3530
  %v3591 = vpack.c.b16 %v3539, %v3535
  %v3592 = vpack.c.b16 %v3540, %v3536
  %v3593 = vpack.c.b16 %v3541, %v3537
  %v3594 = vpack.c.b16 %v3542, %v3538
  %v3595 = vpack.c.b16 %v3547, %v3543
  %v3596 = vpack.c.b16 %v3548, %v3544
  %v3597 = vpack.c.b16 %v3549, %v3545
  %v3598 = vpack.c.b16 %v3550, %v3546
  %v3599 = vpack.c.b16 %v3555, %v3551
  %v3600 = vpack.c.b16 %v3556, %v3552
  %v3601 = vpack.c.b16 %v3557, %v3553
  %v3602 = vpack.c.b16 %v3558, %v3554
  %v3603 = vpack.c.b16 %v3563, %v3559
  %v3604 = vpack.c.b16 %v3564, %v3560
  %v3605 = vpack.c.b16 %v3565, %v3561
  %v3606 = vpack.c.b16 %v3566, %v3562
  %v3607 = vpack.c.b16 %v3571, %v3567
  %v3608 = vpack.c.b16 %v3572, %v3568
  %v3609 = vpack.c.b16 %v3573, %v3569
  %v3610 = vpack.c.b16 %v3574, %v3570
  %v3611 = vpack.c.b16 %v3579, %v3575
  %v3612 = vpack.c.b16 %v3580, %v3576
  %v3613 = vpack.c.b16 %v3581, %v3577
  %v3614 = vpack.c.b16 %v3582, %v3578
  %3647 = vmatprep.subr.bf16.mxu0 %v3584
  %3648 = vmatpush1.bf16.msra.mxu0 %v3583
  %3649 = vmatprep.subr.bf16.mxu0 %v3588
  %3650 = vmatpush1.bf16.msra.mxu0 %v3587
  %3651 = vmatprep.subr.bf16.mxu0 %v3592
  %3652 = vmatpush1.bf16.msra.mxu0 %v3591
  %3653 = vmatprep.subr.bf16.mxu0 %v3596
  %3654 = vmatpush1.bf16.msra.mxu0 %v3595
  %3655 = vmatprep.subr.bf16.mxu0 %v3600
  %3656 = vmatpush1.bf16.msra.mxu0 %v3599
  %3657 = vmatprep.subr.bf16.mxu0 %v3604
  %3658 = vmatpush1.bf16.msra.mxu0 %v3603
  %3659 = vmatprep.subr.bf16.mxu0 %v3608
  %3660 = vmatpush1.bf16.msra.mxu0 %v3607
  %3661 = vmatprep.subr.bf16.mxu0 %v3612
  %3662 = vmatpush1.bf16.msra.mxu0 %v3611
  %3663 = vmatprep.subr.bf16.mxu0 0
  %3664 = vmatpush1.bf16.msra.mxu0 0
  %3665 = vmatprep.subr.bf16.mxu0 0
  %3666 = vmatpush1.bf16.msra.mxu0 0
  %3667 = vmatprep.subr.bf16.mxu0 0
  %3668 = vmatpush1.bf16.msra.mxu0 0
  %3669 = vmatprep.subr.bf16.mxu0 0
  %3670 = vmatpush1.bf16.msra.mxu0 0
  %3671 = vmatprep.subr.bf16.mxu0 0
  %3672 = vmatpush1.bf16.msra.mxu0 0
  %3673 = vmatprep.subr.bf16.mxu0 0
  %3674 = vmatpush1.bf16.msra.mxu0 0
  %3675 = vmatprep.subr.bf16.mxu0 0
  %3676 = vmatpush1.bf16.msra.mxu0 0
  %3677 = vmatprep.subr.bf16.mxu0 0
  %3678 = vmatpush1.bf16.msra.mxu0 0
  %3679 = vmatprep.mubr.bf16.mxu0 0
  %3680 = vmatmul.mubr.bf16.gmra.mrb[0].mxu0 %v3453
  %v3681 = vpop.f32.mrb[0].mxu0
  %v3682 = vadd.f32 0.0, %v3681
  %v3683 = vpop.f32.mrb[0].mxu0
  %v3684 = vadd.f32 0.0, %v3683
  %v3685 = vpop.f32.mrb[0].mxu0
  %v3686 = vpop.f32.mrb[0].mxu0
  %3687 = vdwg.mxu0
  %3688 = vmatprep.subr.bf16.mxu0 %v3586
  %3689 = vmatpush1.bf16.msra.mxu0 %v3585
  %3690 = vmatprep.subr.bf16.mxu0 %v3590
  %3691 = vmatpush1.bf16.msra.mxu0 %v3589
  %3692 = vmatprep.subr.bf16.mxu0 %v3594
  %3693 = vmatpush1.bf16.msra.mxu0 %v3593
  %3694 = vmatprep.subr.bf16.mxu0 %v3598
  %3695 = vmatpush1.bf16.msra.mxu0 %v3597
  %3696 = vmatprep.subr.bf16.mxu0 %v3602
  %3697 = vmatpush1.bf16.msra.mxu0 %v3601
  %3698 = vmatprep.subr.bf16.mxu0 %v3606
  %3699 = vmatpush1.bf16.msra.mxu0 %v3605
  %3700 = vmatprep.subr.bf16.mxu0 %v3610
  %3701 = vmatpush1.bf16.msra.mxu0 %v3609
  %3702 = vmatprep.subr.bf16.mxu0 %v3614
  %3703 = vmatpush1.bf16.msra.mxu0 %v3613
  %3704 = vmatprep.subr.bf16.mxu0 0
  %3705 = vmatpush1.bf16.msra.mxu0 0
  %3706 = vmatprep.subr.bf16.mxu0 0
  %3707 = vmatpush1.bf16.msra.mxu0 0
  %3708 = vmatprep.subr.bf16.mxu0 0
  %3709 = vmatpush1.bf16.msra.mxu0 0
  %3710 = vmatprep.subr.bf16.mxu0 0
  %3711 = vmatpush1.bf16.msra.mxu0 0
  %3712 = vmatprep.subr.bf16.mxu0 0
  %3713 = vmatpush1.bf16.msra.mxu0 0
  %3714 = vmatprep.subr.bf16.mxu0 0
  %3715 = vmatpush1.bf16.msra.mxu0 0
  %3716 = vmatprep.subr.bf16.mxu0 0
  %3717 = vmatpush1.bf16.msra.mxu0 0
  %3718 = vmatprep.subr.bf16.mxu0 0
  %3719 = vmatpush1.bf16.msra.mxu0 0
  %3720 = vmatprep.mubr.bf16.mxu0 0
  %3721 = vmatmul.mubr.bf16.gmra.mrb[0].mxu0 %v3453
  %v3722 = vpop.f32.mrb[0].mxu0
  %v3723 = vadd.f32 0.0, %v3722
  %v3724 = vpop.f32.mrb[0].mxu0
  %v3725 = vadd.f32 0.0, %v3724
  %v3726 = vpop.f32.mrb[0].mxu0
  %v3727 = vpop.f32.mrb[0].mxu0
  %3728 = vdwg.mxu0
  %v3729 = vadd.f32 %v3448, %v3682
  %v3730 = vadd.f32 %v3449, %v3684
  %v3731 = vadd.f32 %v3450, %v3723
  %v3732 = vadd.f32 %v3451, %v3725
  %v3733 = vxor.u32 %v3729, 2147483648
  %v3734 = vmul.f32 %v3733, 1.442695
  %v3735 = vpow.pop %v3734
  %v3736 = vadd.f32 %v3735, 1.0
  %v3737 = vrcp.pop %v3736
  %v3738 = vmul.f32 1.0, %v3737
  %v3739 = vxor.u32 %v3730, 2147483648
  %v3740 = vmul.f32 %v3739, 1.442695
  %v3741 = vpow.pop %v3740
  %v3742 = vadd.f32 %v3741, 1.0
  %v3743 = vrcp.pop %v3742
  %v3744 = vmul.f32 1.0, %v3743
  %v3745 = vtanh.pop %v3731
  %v3746 = vxor.u32 %v3732, 2147483648
  %v3747 = vmul.f32 %v3746, 1.442695
  %v3748 = vpow.pop %v3747
  %v3749 = vadd.f32 %v3748, 1.0
  %v3750 = vrcp.pop %v3749
  %v3751 = vmul.f32 1.0, %v3750
  %s3752 = scalar_lea.vmem [#allocation3], 8
  %v3753 = vld [vmem:[%s3752] sm:$0xff]
  %v3754 = vmul.f32 %v3744, %v3753
  %v3755 = vmul.f32 %v3738, %v3745
  %v3756 = vadd.f32 %v3754, %v3755
  %v3757 = vtanh.pop %v3756
  %v3758 = vmul.f32 %v3751, %v3757
  %3759 = vst [vmem:[%s3752] sm:$0xff] %v3756
  %v3760 = vpack.c.bf16 %v3758, %v3758
  %3761 = vst [vmem:[%s3452] sm:$0xf] %v3760
  %3762 = vst [vmem:[#allocation5] sm:$0xf] %v3760
  %v3763 = vld [vmem:[#allocation4] sm:$0xf0]
  %v3764 = vld [vmem:[#allocation4 + $0x8] sm:$0xf0]
  %v3765 = vld [vmem:[#allocation4 + $0x10] sm:$0xf0]
  %v3766 = vld [vmem:[#allocation4 + $0x18] sm:$0xf0]
  %v3771 = vrot.slane %v3763, 4
  %v3772 = vrot.slane %v3764, 4
  %v3773 = vrot.slane %v3765, 4
  %v3774 = vrot.slane %v3766, 4
  %v3779 = vunpack.c.l.bf16 %v3771
  %v3780 = vunpack.c.l.bf16 %v3772
  %v3781 = vunpack.c.l.bf16 %v3773
  %v3782 = vunpack.c.l.bf16 %v3774
  %v3783 = vld [vmem:[%s3452] sm:$0xf]
  %v3784 = vld [vmem:[%s3454] sm:$0xff]
  %v3785 = vld [vmem:[%s3454 + $0x8] sm:$0xff]
  %v3786 = vld [vmem:[%s3454 + $0x10] sm:$0xff]
  %v3787 = vld [vmem:[%s3454 + $0x18] sm:$0xff]
  %v3788 = vld [vmem:[%s3454 + $0x20] sm:$0xff]
  %v3789 = vld [vmem:[%s3454 + $0x28] sm:$0xff]
  %v3790 = vld [vmem:[%s3454 + $0x30] sm:$0xff]
  %v3791 = vld [vmem:[%s3454 + $0x38] sm:$0xff]
  %v3792 = vld [vmem:[%s3454 + $0x40] sm:$0xff]
  %v3793 = vld [vmem:[%s3454 + $0x48] sm:$0xff]
  %v3794 = vld [vmem:[%s3454 + $0x50] sm:$0xff]
  %v3795 = vld [vmem:[%s3454 + $0x58] sm:$0xff]
  %v3796 = vld [vmem:[%s3454 + $0x60] sm:$0xff]
  %v3797 = vld [vmem:[%s3454 + $0x68] sm:$0xff]
  %v3798 = vld [vmem:[%s3454 + $0x70] sm:$0xff]
  %v3799 = vld [vmem:[%s3454 + $0x78] sm:$0xff]
  %v3800 = vld [vmem:[%s3454 + $0x80] sm:$0xff]
  %v3801 = vld [vmem:[%s3454 + $0x88] sm:$0xff]
  %v3802 = vld [vmem:[%s3454 + $0x90] sm:$0xff]
  %v3803 = vld [vmem:[%s3454 + $0x98] sm:$0xff]
  %v3804 = vld [vmem:[%s3454 + $0xa0] sm:$0xff]
  %v3805 = vld [vmem:[%s3454 + $0xa8] sm:$0xff]
  %v3806 = vld [vmem:[%s3454 + $0xb0] sm:$0xff]
  %v3807 = vld [vmem:[%s3454 + $0xb8] sm:$0xff]
  %v3808 = vld [vmem:[%s3454 + $0xc0] sm:$0xff]
  %v3809 = vld [vmem:[%s3454 + $0xc8] sm:$0xff]
  %v3810 = vld [vmem:[%s3454 + $0xd0] sm:$0xff]
  %v3811 = vld [vmem:[%s3454 + $0xd8] sm:$0xff]
  %v3812 = vld [vmem:[%s3454 + $0xe0] sm:$0xff]
  %v3813 = vld [vmem:[%s3454 + $0xe8] sm:$0xff]
  %v3814 = vld [vmem:[%s3454 + $0xf0] sm:$0xff]
  %v3815 = vld [vmem:[%s3454 + $0xf8] sm:$0xff]
  %v3848 = vunpack.c.l.b16 %v3784
  %v3849 = vunpack.c.h.b16 %v3784
  %v3850 = vunpack.c.l.b16 %v3785
  %v3851 = vunpack.c.h.b16 %v3785
  %v3852 = vunpack.c.l.b16 %v3786
  %v3853 = vunpack.c.h.b16 %v3786
  %v3854 = vunpack.c.l.b16 %v3787
  %v3855 = vunpack.c.h.b16 %v3787
  %v3856 = vunpack.c.l.b16 %v3788
  %v3857 = vunpack.c.h.b16 %v3788
  %v3858 = vunpack.c.l.b16 %v3789
  %v3859 = vunpack.c.h.b16 %v3789
  %v3860 = vunpack.c.l.b16 %v3790
  %v3861 = vunpack.c.h.b16 %v3790
  %v3862 = vunpack.c.l.b16 %v3791
  %v3863 = vunpack.c.h.b16 %v3791
  %v3864 = vunpack.c.l.b16 %v3792
  %v3865 = vunpack.c.h.b16 %v3792
  %v3866 = vunpack.c.l.b16 %v3793
  %v3867 = vunpack.c.h.b16 %v3793
  %v3868 = vunpack.c.l.b16 %v3794
  %v3869 = vunpack.c.h.b16 %v3794
  %v3870 = vunpack.c.l.b16 %v3795
  %v3871 = vunpack.c.h.b16 %v3795
  %v3872 = vunpack.c.l.b16 %v3796
  %v3873 = vunpack.c.h.b16 %v3796
  %v3874 = vunpack.c.l.b16 %v3797
  %v3875 = vunpack.c.h.b16 %v3797
  %v3876 = vunpack.c.l.b16 %v3798
  %v3877 = vunpack.c.h.b16 %v3798
  %v3878 = vunpack.c.l.b16 %v3799
  %v3879 = vunpack.c.h.b16 %v3799
  %v3880 = vunpack.c.l.b16 %v3800
  %v3881 = vunpack.c.h.b16 %v3800
  %v3882 = vunpack.c.l.b16 %v3801
  %v3883 = vunpack.c.h.b16 %v3801
  %v3884 = vunpack.c.l.b16 %v3802
  %v3885 = vunpack.c.h.b16 %v3802
  %v3886 = vunpack.c.l.b16 %v3803
  %v3887 = vunpack.c.h.b16 %v3803
  %v3888 = vunpack.c.l.b16 %v3804
  %v3889 = vunpack.c.h.b16 %v3804
  %v3890 = vunpack.c.l.b16 %v3805
  %v3891 = vunpack.c.h.b16 %v3805
  %v3892 = vunpack.c.l.b16 %v3806
  %v3893 = vunpack.c.h.b16 %v3806
  %v3894 = vunpack.c.l.b16 %v3807
  %v3895 = vunpack.c.h.b16 %v3807
  %v3896 = vunpack.c.l.b16 %v3808
  %v3897 = vunpack.c.h.b16 %v3808
  %v3898 = vunpack.c.l.b16 %v3809
  %v3899 = vunpack.c.h.b16 %v3809
  %v3900 = vunpack.c.l.b16 %v3810
  %v3901 = vunpack.c.h.b16 %v3810
  %v3902 = vunpack.c.l.b16 %v3811
  %v3903 = vunpack.c.h.b16 %v3811
  %v3904 = vunpack.c.l.b16 %v3812
  %v3905 = vunpack.c.h.b16 %v3812
  %v3906 = vunpack.c.l.b16 %v3813
  %v3907 = vunpack.c.h.b16 %v3813
  %v3908 = vunpack.c.l.b16 %v3814
  %v3909 = vunpack.c.h.b16 %v3814
  %v3910 = vunpack.c.l.b16 %v3815
  %v3911 = vunpack.c.h.b16 %v3815
  %v3912 = vpack.c.b16 %v3852, %v3848
  %v3913 = vpack.c.b16 %v3853, %v3849
  %v3914 = vpack.c.b16 %v3854, %v3850
  %v3915 = vpack.c.b16 %v3855, %v3851
  %v3916 = vpack.c.b16 %v3860, %v3856
  %v3917 = vpack.c.b16 %v3861, %v3857
  %v3918 = vpack.c.b16 %v3862, %v3858
  %v3919 = vpack.c.b16 %v3863, %v3859
  %v3920 = vpack.c.b16 %v3868, %v3864
  %v3921 = vpack.c.b16 %v3869, %v3865
  %v3922 = vpack.c.b16 %v3870, %v3866
  %v3923 = vpack.c.b16 %v3871, %v3867
  %v3924 = vpack.c.b16 %v3876, %v3872
  %v3925 = vpack.c.b16 %v3877, %v3873
  %v3926 = vpack.c.b16 %v3878, %v3874
  %v3927 = vpack.c.b16 %v3879, %v3875
  %v3928 = vpack.c.b16 %v3884, %v3880
  %v3929 = vpack.c.b16 %v3885, %v3881
  %v3930 = vpack.c.b16 %v3886, %v3882
  %v3931 = vpack.c.b16 %v3887, %v3883
  %v3932 = vpack.c.b16 %v3892, %v3888
  %v3933 = vpack.c.b16 %v3893, %v3889
  %v3934 = vpack.c.b16 %v3894, %v3890
  %v3935 = vpack.c.b16 %v3895, %v3891
  %v3936 = vpack.c.b16 %v3900, %v3896
  %v3937 = vpack.c.b16 %v3901, %v3897
  %v3938 = vpack.c.b16 %v3902, %v3898
  %v3939 = vpack.c.b16 %v3903, %v3899
  %v3940 = vpack.c.b16 %v3908, %v3904
  %v3941 = vpack.c.b16 %v3909, %v3905
  %v3942 = vpack.c.b16 %v3910, %v3906
  %v3943 = vpack.c.b16 %v3911, %v3907
  %3976 = vmatprep.subr.bf16.mxu0 %v3913
  %3977 = vmatpush1.bf16.msra.mxu0 %v3912
  %3978 = vmatprep.subr.bf16.mxu0 %v3917
  %3979 = vmatpush1.bf16.msra.mxu0 %v3916
  %3980 = vmatprep.subr.bf16.mxu0 %v3921
  %3981 = vmatpush1.bf16.msra.mxu0 %v3920
  %3982 = vmatprep.subr.bf16.mxu0 %v3925
  %3983 = vmatpush1.bf16.msra.mxu0 %v3924
  %3984 = vmatprep.subr.bf16.mxu0 %v3929
  %3985 = vmatpush1.bf16.msra.mxu0 %v3928
  %3986 = vmatprep.subr.bf16.mxu0 %v3933
  %3987 = vmatpush1.bf16.msra.mxu0 %v3932
  %3988 = vmatprep.subr.bf16.mxu0 %v3937
  %3989 = vmatpush1.bf16.msra.mxu0 %v3936
  %3990 = vmatprep.subr.bf16.mxu0 %v3941
  %3991 = vmatpush1.bf16.msra.mxu0 %v3940
  %3992 = vmatprep.subr.bf16.mxu0 0
  %3993 = vmatpush1.bf16.msra.mxu0 0
  %3994 = vmatprep.subr.bf16.mxu0 0
  %3995 = vmatpush1.bf16.msra.mxu0 0
  %3996 = vmatprep.subr.bf16.mxu0 0
  %3997 = vmatpush1.bf16.msra.mxu0 0
  %3998 = vmatprep.subr.bf16.mxu0 0
  %3999 = vmatpush1.bf16.msra.mxu0 0
  %4000 = vmatprep.subr.bf16.mxu0 0
  %4001 = vmatpush1.bf16.msra.mxu0 0
  %4002 = vmatprep.subr.bf16.mxu0 0
  %4003 = vmatpush1.bf16.msra.mxu0 0
  %4004 = vmatprep.subr.bf16.mxu0 0
  %4005 = vmatpush1.bf16.msra.mxu0 0
  %4006 = vmatprep.subr.bf16.mxu0 0
  %4007 = vmatpush1.bf16.msra.mxu0 0
  %4008 = vmatprep.mubr.bf16.mxu0 0
  %4009 = vmatmul.mubr.bf16.gmra.mrb[0].mxu0 %v3783
  %v4010 = vpop.f32.mrb[0].mxu0
  %v4011 = vadd.f32 0.0, %v4010
  %v4012 = vpop.f32.mrb[0].mxu0
  %v4013 = vadd.f32 0.0, %v4012
  %v4014 = vpop.f32.mrb[0].mxu0
  %v4015 = vpop.f32.mrb[0].mxu0
  %4016 = vdwg.mxu0
  %4017 = vmatprep.subr.bf16.mxu0 %v3915
  %4018 = vmatpush1.bf16.msra.mxu0 %v3914
  %4019 = vmatprep.subr.bf16.mxu0 %v3919
  %4020 = vmatpush1.bf16.msra.mxu0 %v3918
  %4021 = vmatprep.subr.bf16.mxu0 %v3923
  %4022 = vmatpush1.bf16.msra.mxu0 %v3922
  %4023 = vmatprep.subr.bf16.mxu0 %v3927
  %4024 = vmatpush1.bf16.msra.mxu0 %v3926
  %4025 = vmatprep.subr.bf16.mxu0 %v3931
  %4026 = vmatpush1.bf16.msra.mxu0 %v3930
  %4027 = vmatprep.subr.bf16.mxu0 %v3935
  %4028 = vmatpush1.bf16.msra.mxu0 %v3934
  %4029 = vmatprep.subr.bf16.mxu0 %v3939
  %4030 = vmatpush1.bf16.msra.mxu0 %v3938
  %4031 = vmatprep.subr.bf16.mxu0 %v3943
  %4032 = vmatpush1.bf16.msra.mxu0 %v3942
  %4033 = vmatprep.subr.bf16.mxu0 0
  %4034 = vmatpush1.bf16.msra.mxu0 0
  %4035 = vmatprep.subr.bf16.mxu0 0
  %4036 = vmatpush1.bf16.msra.mxu0 0
  %4037 = vmatprep.subr.bf16.mxu0 0
  %4038 = vmatpush1.bf16.msra.mxu0 0
  %4039 = vmatprep.subr.bf16.mxu0 0
  %4040 = vmatpush1.bf16.msra.mxu0 0
  %4041 = vmatprep.subr.bf16.mxu0 0
  %4042 = vmatpush1.bf16.msra.mxu0 0
  %4043 = vmatprep.subr.bf16.mxu0 0
  %4044 = vmatpush1.bf16.msra.mxu0 0
  %4045 = vmatprep.subr.bf16.mxu0 0
  %4046 = vmatpush1.bf16.msra.mxu0 0
  %4047 = vmatprep.subr.bf16.mxu0 0
  %4048 = vmatpush1.bf16.msra.mxu0 0
  %4049 = vmatprep.mubr.bf16.mxu0 0
  %4050 = vmatmul.mubr.bf16.gmra.mrb[0].mxu0 %v3783
  %v4051 = vpop.f32.mrb[0].mxu0
  %v4052 = vadd.f32 0.0, %v4051
  %v4053 = vpop.f32.mrb[0].mxu0
  %v4054 = vadd.f32 0.0, %v4053
  %v4055 = vpop.f32.mrb[0].mxu0
  %v4056 = vpop.f32.mrb[0].mxu0
  %4057 = vdwg.mxu0
  %v4058 = vadd.f32 %v3779, %v4011
  %v4059 = vadd.f32 %v3780, %v4013
  %v4060 = vadd.f32 %v3781, %v4052
  %v4061 = vadd.f32 %v3782, %v4054
  %v4062 = vxor.u32 %v4058, 2147483648
  %v4063 = vmul.f32 %v4062, 1.442695
  %v4064 = vpow.pop %v4063
  %v4065 = vadd.f32 %v4064, 1.0
  %v4066 = vrcp.pop %v4065
  %v4067 = vmul.f32 1.0, %v4066
  %v4068 = vxor.u32 %v4059, 2147483648
  %v4069 = vmul.f32 %v4068, 1.442695
  %v4070 = vpow.pop %v4069
  %v4071 = vadd.f32 %v4070, 1.0
  %v4072 = vrcp.pop %v4071
  %v4073 = vmul.f32 1.0, %v4072
  %v4074 = vtanh.pop %v4060
  %v4075 = vxor.u32 %v4061, 2147483648
  %v4076 = vmul.f32 %v4075, 1.442695
  %v4077 = vpow.pop %v4076
  %v4078 = vadd.f32 %v4077, 1.0
  %v4079 = vrcp.pop %v4078
  %v4080 = vmul.f32 1.0, %v4079
  %v4081 = vld [vmem:[%s3752] sm:$0xff]
  %v4082 = vmul.f32 %v4073, %v4081
  %v4083 = vmul.f32 %v4067, %v4074
  %v4084 = vadd.f32 %v4082, %v4083
  %v4085 = vtanh.pop %v4084
  %v4086 = vmul.f32 %v4080, %v4085
  %4087 = vst [vmem:[%s3752] sm:$0xff] %v4084
  %v4088 = vpack.c.bf16 %v4086, %v4086
  %4089 = vst [vmem:[%s3452] sm:$0xf] %v4088
  %v4091 = vrot.slane %v4088, 4
  %4093 = vst [vmem:[#allocation5] sm:$0xf0] %v4091
  %v4094 = vld [vmem:[#allocation4 + $0x20] sm:$0xf]
  %v4095 = vld [vmem:[#allocation4 + $0x28] sm:$0xf]
  %v4096 = vld [vmem:[#allocation4 + $0x30] sm:$0xf]
  %v4097 = vld [vmem:[#allocation4 + $0x38] sm:$0xf]
  %v4098 = vunpack.c.l.bf16 %v4094
  %v4099 = vunpack.c.l.bf16 %v4095
  %v4100 = vunpack.c.l.bf16 %v4096
  %v4101 = vunpack.c.l.bf16 %v4097
  %v4102 = vld [vmem:[%s3452] sm:$0xf]
  %v4103 = vld [vmem:[%s3454] sm:$0xff]
  %v4104 = vld [vmem:[%s3454 + $0x8] sm:$0xff]
  %v4105 = vld [vmem:[%s3454 + $0x10] sm:$0xff]
  %v4106 = vld [vmem:[%s3454 + $0x18] sm:$0xff]
  %v4107 = vld [vmem:[%s3454 + $0x20] sm:$0xff]
  %v4108 = vld [vmem:[%s3454 + $0x28] sm:$0xff]
  %v4109 = vld [vmem:[%s3454 + $0x30] sm:$0xff]
  %v4110 = vld [vmem:[%s3454 + $0x38] sm:$0xff]
  %v4111 = vld [vmem:[%s3454 + $0x40] sm:$0xff]
  %v4112 = vld [vmem:[%s3454 + $0x48] sm:$0xff]
  %v4113 = vld [vmem:[%s3454 + $0x50] sm:$0xff]
  %v4114 = vld [vmem:[%s3454 + $0x58] sm:$0xff]
  %v4115 = vld [vmem:[%s3454 + $0x60] sm:$0xff]
  %v4116 = vld [vmem:[%s3454 + $0x68] sm:$0xff]
  %v4117 = vld [vmem:[%s3454 + $0x70] sm:$0xff]
  %v4118 = vld [vmem:[%s3454 + $0x78] sm:$0xff]
  %v4119 = vld [vmem:[%s3454 + $0x80] sm:$0xff]
  %v4120 = vld [vmem:[%s3454 + $0x88] sm:$0xff]
  %v4121 = vld [vmem:[%s3454 + $0x90] sm:$0xff]
  %v4122 = vld [vmem:[%s3454 + $0x98] sm:$0xff]
  %v4123 = vld [vmem:[%s3454 + $0xa0] sm:$0xff]
  %v4124 = vld [vmem:[%s3454 + $0xa8] sm:$0xff]
  %v4125 = vld [vmem:[%s3454 + $0xb0] sm:$0xff]
  %v4126 = vld [vmem:[%s3454 + $0xb8] sm:$0xff]
  %v4127 = vld [vmem:[%s3454 + $0xc0] sm:$0xff]
  %v4128 = vld [vmem:[%s3454 + $0xc8] sm:$0xff]
  %v4129 = vld [vmem:[%s3454 + $0xd0] sm:$0xff]
  %v4130 = vld [vmem:[%s3454 + $0xd8] sm:$0xff]
  %v4131 = vld [vmem:[%s3454 + $0xe0] sm:$0xff]
  %v4132 = vld [vmem:[%s3454 + $0xe8] sm:$0xff]
  %v4133 = vld [vmem:[%s3454 + $0xf0] sm:$0xff]
  %v4134 = vld [vmem:[%s3454 + $0xf8] sm:$0xff]
  %v4167 = vunpack.c.l.b16 %v4103
  %v4168 = vunpack.c.h.b16 %v4103
  %v4169 = vunpack.c.l.b16 %v4104
  %v4170 = vunpack.c.h.b16 %v4104
  %v4171 = vunpack.c.l.b16 %v4105
  %v4172 = vunpack.c.h.b16 %v4105
  %v4173 = vunpack.c.l.b16 %v4106
  %v4174 = vunpack.c.h.b16 %v4106
  %v4175 = vunpack.c.l.b16 %v4107
  %v4176 = vunpack.c.h.b16 %v4107
  %v4177 = vunpack.c.l.b16 %v4108
  %v4178 = vunpack.c.h.b16 %v4108
  %v4179 = vunpack.c.l.b16 %v4109
  %v4180 = vunpack.c.h.b16 %v4109
  %v4181 = vunpack.c.l.b16 %v4110
  %v4182 = vunpack.c.h.b16 %v4110
  %v4183 = vunpack.c.l.b16 %v4111
  %v4184 = vunpack.c.h.b16 %v4111
  %v4185 = vunpack.c.l.b16 %v4112
  %v4186 = vunpack.c.h.b16 %v4112
  %v4187 = vunpack.c.l.b16 %v4113
  %v4188 = vunpack.c.h.b16 %v4113
  %v4189 = vunpack.c.l.b16 %v4114
  %v4190 = vunpack.c.h.b16 %v4114
  %v4191 = vunpack.c.l.b16 %v4115
  %v4192 = vunpack.c.h.b16 %v4115
  %v4193 = vunpack.c.l.b16 %v4116
  %v4194 = vunpack.c.h.b16 %v4116
  %v4195 = vunpack.c.l.b16 %v4117
  %v4196 = vunpack.c.h.b16 %v4117
  %v4197 = vunpack.c.l.b16 %v4118
  %v4198 = vunpack.c.h.b16 %v4118
  %v4199 = vunpack.c.l.b16 %v4119
  %v4200 = vunpack.c.h.b16 %v4119
  %v4201 = vunpack.c.l.b16 %v4120
  %v4202 = vunpack.c.h.b16 %v4120
  %v4203 = vunpack.c.l.b16 %v4121
  %v4204 = vunpack.c.h.b16 %v4121
  %v4205 = vunpack.c.l.b16 %v4122
  %v4206 = vunpack.c.h.b16 %v4122
  %v4207 = vunpack.c.l.b16 %v4123
  %v4208 = vunpack.c.h.b16 %v4123
  %v4209 = vunpack.c.l.b16 %v4124
  %v4210 = vunpack.c.h.b16 %v4124
  %v4211 = vunpack.c.l.b16 %v4125
  %v4212 = vunpack.c.h.b16 %v4125
  %v4213 = vunpack.c.l.b16 %v4126
  %v4214 = vunpack.c.h.b16 %v4126
  %v4215 = vunpack.c.l.b16 %v4127
  %v4216 = vunpack.c.h.b16 %v4127
  %v4217 = vunpack.c.l.b16 %v4128
  %v4218 = vunpack.c.h.b16 %v4128
  %v4219 = vunpack.c.l.b16 %v4129
  %v4220 = vunpack.c.h.b16 %v4129
  %v4221 = vunpack.c.l.b16 %v4130
  %v4222 = vunpack.c.h.b16 %v4130
  %v4223 = vunpack.c.l.b16 %v4131
  %v4224 = vunpack.c.h.b16 %v4131
  %v4225 = vunpack.c.l.b16 %v4132
  %v4226 = vunpack.c.h.b16 %v4132
  %v4227 = vunpack.c.l.b16 %v4133
  %v4228 = vunpack.c.h.b16 %v4133
  %v4229 = vunpack.c.l.b16 %v4134
  %v4230 = vunpack.c.h.b16 %v4134
  %v4231 = vpack.c.b16 %v4171, %v4167
  %v4232 = vpack.c.b16 %v4172, %v4168
  %v4233 = vpack.c.b16 %v4173, %v4169
  %v4234 = vpack.c.b16 %v4174, %v4170
  %v4235 = vpack.c.b16 %v4179, %v4175
  %v4236 = vpack.c.b16 %v4180, %v4176
  %v4237 = vpack.c.b16 %v4181, %v4177
  %v4238 = vpack.c.b16 %v4182, %v4178
  %v4239 = vpack.c.b16 %v4187, %v4183
  %v4240 = vpack.c.b16 %v4188, %v4184
  %v4241 = vpack.c.b16 %v4189, %v4185
  %v4242 = vpack.c.b16 %v4190, %v4186
  %v4243 = vpack.c.b16 %v4195, %v4191
  %v4244 = vpack.c.b16 %v4196, %v4192
  %v4245 = vpack.c.b16 %v4197, %v4193
  %v4246 = vpack.c.b16 %v4198, %v4194
  %v4247 = vpack.c.b16 %v4203, %v4199
  %v4248 = vpack.c.b16 %v4204, %v4200
  %v4249 = vpack.c.b16 %v4205, %v4201
  %v4250 = vpack.c.b16 %v4206, %v4202
  %v4251 = vpack.c.b16 %v4211, %v4207
  %v4252 = vpack.c.b16 %v4212, %v4208
  %v4253 = vpack.c.b16 %v4213, %v4209
  %v4254 = vpack.c.b16 %v4214, %v4210
  %v4255 = vpack.c.b16 %v4219, %v4215
  %v4256 = vpack.c.b16 %v4220, %v4216
  %v4257 = vpack.c.b16 %v4221, %v4217
  %v4258 = vpack.c.b16 %v4222, %v4218
  %v4259 = vpack.c.b16 %v4227, %v4223
  %v4260 = vpack.c.b16 %v4228, %v4224
  %v4261 = vpack.c.b16 %v4229, %v4225
  %v4262 = vpack.c.b16 %v4230, %v4226
  %4295 = vmatprep.subr.bf16.mxu0 %v4232
  %4296 = vmatpush1.bf16.msra.mxu0 %v4231
  %4297 = vmatprep.subr.bf16.mxu0 %v4236
  %4298 = vmatpush1.bf16.msra.mxu0 %v4235
  %4299 = vmatprep.subr.bf16.mxu0 %v4240
  %4300 = vmatpush1.bf16.msra.mxu0 %v4239
  %4301 = vmatprep.subr.bf16.mxu0 %v4244
  %4302 = vmatpush1.bf16.msra.mxu0 %v4243
  %4303 = vmatprep.subr.bf16.mxu0 %v4248
  %4304 = vmatpush1.bf16.msra.mxu0 %v4247
  %4305 = vmatprep.subr.bf16.mxu0 %v4252
  %4306 = vmatpush1.bf16.msra.mxu0 %v4251
  %4307 = vmatprep.subr.bf16.mxu0 %v4256
  %4308 = vmatpush1.bf16.msra.mxu0 %v4255
  %4309 = vmatprep.subr.bf16.mxu0 %v4260
  %4310 = vmatpush1.bf16.msra.mxu0 %v4259
  %4311 = vmatprep.subr.bf16.mxu0 0
  %4312 = vmatpush1.bf16.msra.mxu0 0
  %4313 = vmatprep.subr.bf16.mxu0 0
  %4314 = vmatpush1.bf16.msra.mxu0 0
  %4315 = vmatprep.subr.bf16.mxu0 0
  %4316 = vmatpush1.bf16.msra.mxu0 0
  %4317 = vmatprep.subr.bf16.mxu0 0
  %4318 = vmatpush1.bf16.msra.mxu0 0
  %4319 = vmatprep.subr.bf16.mxu0 0
  %4320 = vmatpush1.bf16.msra.mxu0 0
  %4321 = vmatprep.subr.bf16.mxu0 0
  %4322 = vmatpush1.bf16.msra.mxu0 0
  %4323 = vmatprep.subr.bf16.mxu0 0
  %4324 = vmatpush1.bf16.msra.mxu0 0
  %4325 = vmatprep.subr.bf16.mxu0 0
  %4326 = vmatpush1.bf16.msra.mxu0 0
  %4327 = vmatprep.mubr.bf16.mxu0 0
  %4328 = vmatmul.mubr.bf16.gmra.mrb[0].mxu0 %v4102
  %v4329 = vpop.f32.mrb[0].mxu0
  %v4330 = vadd.f32 0.0, %v4329
  %v4331 = vpop.f32.mrb[0].mxu0
  %v4332 = vadd.f32 0.0, %v4331
  %v4333 = vpop.f32.mrb[0].mxu0
  %v4334 = vpop.f32.mrb[0].mxu0
  %4335 = vdwg.mxu0
  %4336 = vmatprep.subr.bf16.mxu0 %v4234
  %4337 = vmatpush1.bf16.msra.mxu0 %v4233
  %4338 = vmatprep.subr.bf16.mxu0 %v4238
  %4339 = vmatpush1.bf16.msra.mxu0 %v4237
  %4340 = vmatprep.subr.bf16.mxu0 %v4242
  %4341 = vmatpush1.bf16.msra.mxu0 %v4241
  %4342 = vmatprep.subr.bf16.mxu0 %v4246
  %4343 = vmatpush1.bf16.msra.mxu0 %v4245
  %4344 = vmatprep.subr.bf16.mxu0 %v4250
  %4345 = vmatpush1.bf16.msra.mxu0 %v4249
  %4346 = vmatprep.subr.bf16.mxu0 %v4254
  %4347 = vmatpush1.bf16.msra.mxu0 %v4253
  %4348 = vmatprep.subr.bf16.mxu0 %v4258
  %4349 = vmatpush1.bf16.msra.mxu0 %v4257
  %4350 = vmatprep.subr.bf16.mxu0 %v4262
  %4351 = vmatpush1.bf16.msra.mxu0 %v4261
  %4352 = vmatprep.subr.bf16.mxu0 0
  %4353 = vmatpush1.bf16.msra.mxu0 0
  %4354 = vmatprep.subr.bf16.mxu0 0
  %4355 = vmatpush1.bf16.msra.mxu0 0
  %4356 = vmatprep.subr.bf16.mxu0 0
  %4357 = vmatpush1.bf16.msra.mxu0 0
  %4358 = vmatprep.subr.bf16.mxu0 0
  %4359 = vmatpush1.bf16.msra.mxu0 0
  %4360 = vmatprep.subr.bf16.mxu0 0
  %4361 = vmatpush1.bf16.msra.mxu0 0
  %4362 = vmatprep.subr.bf16.mxu0 0
  %4363 = vmatpush1.bf16.msra.mxu0 0
  %4364 = vmatprep.subr.bf16.mxu0 0
  %4365 = vmatpush1.bf16.msra.mxu0 0
  %4366 = vmatprep.subr.bf16.mxu0 0
  %4367 = vmatpush1.bf16.msra.mxu0 0
  %4368 = vmatprep.mubr.bf16.mxu0 0
  %4369 = vmatmul.mubr.bf16.gmra.mrb[0].mxu0 %v4102
  %v4370 = vpop.f32.mrb[0].mxu0
  %v4371 = vadd.f32 0.0, %v4370
  %v4372 = vpop.f32.mrb[0].mxu0
  %v4373 = vadd.f32 0.0, %v4372
  %v4374 = vpop.f32.mrb[0].mxu0
  %v4375 = vpop.f32.mrb[0].mxu0
  %4376 = vdwg.mxu0
  %v4377 = vadd.f32 %v4098, %v4330
  %v4378 = vadd.f32 %v4099, %v4332
  %v4379 = vadd.f32 %v4100, %v4371
  %v4380 = vadd.f32 %v4101, %v4373
  %v4381 = vxor.u32 %v4377, 2147483648
  %v4382 = vmul.f32 %v4381, 1.442695
  %v4383 = vpow.pop %v4382
  %v4384 = vadd.f32 %v4383, 1.0
  %v4385 = vrcp.pop %v4384
  %v4386 = vmul.f32 1.0, %v4385
  %v4387 = vxor.u32 %v4378, 2147483648
  %v4388 = vmul.f32 %v4387, 1.442695
  %v4389 = vpow.pop %v4388
  %v4390 = vadd.f32 %v4389, 1.0
  %v4391 = vrcp.pop %v4390
  %v4392 = vmul.f32 1.0, %v4391
  %v4393 = vtanh.pop %v4379
  %v4394 = vxor.u32 %v4380, 2147483648
  %v4395 = vmul.f32 %v4394, 1.442695
  %v4396 = vpow.pop %v4395
  %v4397 = vadd.f32 %v4396, 1.0
  %v4398 = vrcp.pop %v4397
  %v4399 = vmul.f32 1.0, %v4398
  %v4400 = vld [vmem:[%s3752] sm:$0xff]
  %v4401 = vmul.f32 %v4392, %v4400
  %v4402 = vmul.f32 %v4386, %v4393
  %v4403 = vadd.f32 %v4401, %v4402
  %v4404 = vtanh.pop %v4403
  %v4405 = vmul.f32 %v4399, %v4404
  %4406 = vst [vmem:[%s3752] sm:$0xff] %v4403
  %v4407 = vpack.c.bf16 %v4405, %v4405
  %4408 = vst [vmem:[%s3452] sm:$0xf] %v4407
  %4409 = vst [vmem:[#allocation5 + $0x8] sm:$0xf] %v4407
  %v4410 = vld [vmem:[#allocation4 + $0x20] sm:$0xf0]
  %v4411 = vld [vmem:[#allocation4 + $0x28] sm:$0xf0]
  %v4412 = vld [vmem:[#allocation4 + $0x30] sm:$0xf0]
  %v4413 = vld [vmem:[#allocation4 + $0x38] sm:$0xf0]
  %v4418 = vrot.slane %v4410, 4
  %v4419 = vrot.slane %v4411, 4
  %v4420 = vrot.slane %v4412, 4
  %v4421 = vrot.slane %v4413, 4
  %v4426 = vunpack.c.l.bf16 %v4418
  %v4427 = vunpack.c.l.bf16 %v4419
  %v4428 = vunpack.c.l.bf16 %v4420
  %v4429 = vunpack.c.l.bf16 %v4421
  %v4430 = vld [vmem:[%s3452] sm:$0xf]
  %v4431 = vld [vmem:[%s3454] sm:$0xff]
  %v4432 = vld [vmem:[%s3454 + $0x8] sm:$0xff]
  %v4433 = vld [vmem:[%s3454 + $0x10] sm:$0xff]
  %v4434 = vld [vmem:[%s3454 + $0x18] sm:$0xff]
  %v4435 = vld [vmem:[%s3454 + $0x20] sm:$0xff]
  %v4436 = vld [vmem:[%s3454 + $0x28] sm:$0xff]
  %v4437 = vld [vmem:[%s3454 + $0x30] sm:$0xff]
  %v4438 = vld [vmem:[%s3454 + $0x38] sm:$0xff]
  %v4439 = vld [vmem:[%s3454 + $0x40] sm:$0xff]
  %v4440 = vld [vmem:[%s3454 + $0x48] sm:$0xff]
  %v4441 = vld [vmem:[%s3454 + $0x50] sm:$0xff]
  %v4442 = vld [vmem:[%s3454 + $0x58] sm:$0xff]
  %v4443 = vld [vmem:[%s3454 + $0x60] sm:$0xff]
  %v4444 = vld [vmem:[%s3454 + $0x68] sm:$0xff]
  %v4445 = vld [vmem:[%s3454 + $0x70] sm:$0xff]
  %v4446 = vld [vmem:[%s3454 + $0x78] sm:$0xff]
  %v4447 = vld [vmem:[%s3454 + $0x80] sm:$0xff]
  %v4448 = vld [vmem:[%s3454 + $0x88] sm:$0xff]
  %v4449 = vld [vmem:[%s3454 + $0x90] sm:$0xff]
  %v4450 = vld [vmem:[%s3454 + $0x98] sm:$0xff]
  %v4451 = vld [vmem:[%s3454 + $0xa0] sm:$0xff]
  %v4452 = vld [vmem:[%s3454 + $0xa8] sm:$0xff]
  %v4453 = vld [vmem:[%s3454 + $0xb0] sm:$0xff]
  %v4454 = vld [vmem:[%s3454 + $0xb8] sm:$0xff]
  %v4455 = vld [vmem:[%s3454 + $0xc0] sm:$0xff]
  %v4456 = vld [vmem:[%s3454 + $0xc8] sm:$0xff]
  %v4457 = vld [vmem:[%s3454 + $0xd0] sm:$0xff]
  %v4458 = vld [vmem:[%s3454 + $0xd8] sm:$0xff]
  %v4459 = vld [vmem:[%s3454 + $0xe0] sm:$0xff]
  %v4460 = vld [vmem:[%s3454 + $0xe8] sm:$0xff]
  %v4461 = vld [vmem:[%s3454 + $0xf0] sm:$0xff]
  %v4462 = vld [vmem:[%s3454 + $0xf8] sm:$0xff]
  %v4495 = vunpack.c.l.b16 %v4431
  %v4496 = vunpack.c.h.b16 %v4431
  %v4497 = vunpack.c.l.b16 %v4432
  %v4498 = vunpack.c.h.b16 %v4432
  %v4499 = vunpack.c.l.b16 %v4433
  %v4500 = vunpack.c.h.b16 %v4433
  %v4501 = vunpack.c.l.b16 %v4434
  %v4502 = vunpack.c.h.b16 %v4434
  %v4503 = vunpack.c.l.b16 %v4435
  %v4504 = vunpack.c.h.b16 %v4435
  %v4505 = vunpack.c.l.b16 %v4436
  %v4506 = vunpack.c.h.b16 %v4436
  %v4507 = vunpack.c.l.b16 %v4437
  %v4508 = vunpack.c.h.b16 %v4437
  %v4509 = vunpack.c.l.b16 %v4438
  %v4510 = vunpack.c.h.b16 %v4438
  %v4511 = vunpack.c.l.b16 %v4439
  %v4512 = vunpack.c.h.b16 %v4439
  %v4513 = vunpack.c.l.b16 %v4440
  %v4514 = vunpack.c.h.b16 %v4440
  %v4515 = vunpack.c.l.b16 %v4441
  %v4516 = vunpack.c.h.b16 %v4441
  %v4517 = vunpack.c.l.b16 %v4442
  %v4518 = vunpack.c.h.b16 %v4442
  %v4519 = vunpack.c.l.b16 %v4443
  %v4520 = vunpack.c.h.b16 %v4443
  %v4521 = vunpack.c.l.b16 %v4444
  %v4522 = vunpack.c.h.b16 %v4444
  %v4523 = vunpack.c.l.b16 %v4445
  %v4524 = vunpack.c.h.b16 %v4445
  %v4525 = vunpack.c.l.b16 %v4446
  %v4526 = vunpack.c.h.b16 %v4446
  %v4527 = vunpack.c.l.b16 %v4447
  %v4528 = vunpack.c.h.b16 %v4447
  %v4529 = vunpack.c.l.b16 %v4448
  %v4530 = vunpack.c.h.b16 %v4448
  %v4531 = vunpack.c.l.b16 %v4449
  %v4532 = vunpack.c.h.b16 %v4449
  %v4533 = vunpack.c.l.b16 %v4450
  %v4534 = vunpack.c.h.b16 %v4450
  %v4535 = vunpack.c.l.b16 %v4451
  %v4536 = vunpack.c.h.b16 %v4451
  %v4537 = vunpack.c.l.b16 %v4452
  %v4538 = vunpack.c.h.b16 %v4452
  %v4539 = vunpack.c.l.b16 %v4453
  %v4540 = vunpack.c.h.b16 %v4453
  %v4541 = vunpack.c.l.b16 %v4454
  %v4542 = vunpack.c.h.b16 %v4454
  %v4543 = vunpack.c.l.b16 %v4455
  %v4544 = vunpack.c.h.b16 %v4455
  %v4545 = vunpack.c.l.b16 %v4456
  %v4546 = vunpack.c.h.b16 %v4456
  %v4547 = vunpack.c.l.b16 %v4457
  %v4548 = vunpack.c.h.b16 %v4457
  %v4549 = vunpack.c.l.b16 %v4458
  %v4550 = vunpack.c.h.b16 %v4458
  %v4551 = vunpack.c.l.b16 %v4459
  %v4552 = vunpack.c.h.b16 %v4459
  %v4553 = vunpack.c.l.b16 %v4460
  %v4554 = vunpack.c.h.b16 %v4460
  %v4555 = vunpack.c.l.b16 %v4461
  %v4556 = vunpack.c.h.b16 %v4461
  %v4557 = vunpack.c.l.b16 %v4462
  %v4558 = vunpack.c.h.b16 %v4462
  %v4559 = vpack.c.b16 %v4499, %v4495
  %v4560 = vpack.c.b16 %v4500, %v4496
  %v4561 = vpack.c.b16 %v4501, %v4497
  %v4562 = vpack.c.b16 %v4502, %v4498
  %v4563 = vpack.c.b16 %v4507, %v4503
  %v4564 = vpack.c.b16 %v4508, %v4504
  %v4565 = vpack.c.b16 %v4509, %v4505
  %v4566 = vpack.c.b16 %v4510, %v4506
  %v4567 = vpack.c.b16 %v4515, %v4511
  %v4568 = vpack.c.b16 %v4516, %v4512
  %v4569 = vpack.c.b16 %v4517, %v4513
  %v4570 = vpack.c.b16 %v4518, %v4514
  %v4571 = vpack.c.b16 %v4523, %v4519
  %v4572 = vpack.c.b16 %v4524, %v4520
  %v4573 = vpack.c.b16 %v4525, %v4521
  %v4574 = vpack.c.b16 %v4526, %v4522
  %v4575 = vpack.c.b16 %v4531, %v4527
  %v4576 = vpack.c.b16 %v4532, %v4528
  %v4577 = vpack.c.b16 %v4533, %v4529
  %v4578 = vpack.c.b16 %v4534, %v4530
  %v4579 = vpack.c.b16 %v4539, %v4535
  %v4580 = vpack.c.b16 %v4540, %v4536
  %v4581 = vpack.c.b16 %v4541, %v4537
  %v4582 = vpack.c.b16 %v4542, %v4538
  %v4583 = vpack.c.b16 %v4547, %v4543
  %v4584 = vpack.c.b16 %v4548, %v4544
  %v4585 = vpack.c.b16 %v4549, %v4545
  %v4586 = vpack.c.b16 %v4550, %v4546
  %v4587 = vpack.c.b16 %v4555, %v4551
  %v4588 = vpack.c.b16 %v4556, %v4552
  %v4589 = vpack.c.b16 %v4557, %v4553
  %v4590 = vpack.c.b16 %v4558, %v4554
  %4623 = vmatprep.subr.bf16.mxu0 %v4560
  %4624 = vmatpush1.bf16.msra.mxu0 %v4559
  %4625 = vmatprep.subr.bf16.mxu0 %v4564
  %4626 = vmatpush1.bf16.msra.mxu0 %v4563
  %4627 = vmatprep.subr.bf16.mxu0 %v4568
  %4628 = vmatpush1.bf16.msra.mxu0 %v4567
  %4629 = vmatprep.subr.bf16.mxu0 %v4572
  %4630 = vmatpush1.bf16.msra.mxu0 %v4571
  %4631 = vmatprep.subr.bf16.mxu0 %v4576
  %4632 = vmatpush1.bf16.msra.mxu0 %v4575
  %4633 = vmatprep.subr.bf16.mxu0 %v4580
  %4634 = vmatpush1.bf16.msra.mxu0 %v4579
  %4635 = vmatprep.subr.bf16.mxu0 %v4584
  %4636 = vmatpush1.bf16.msra.mxu0 %v4583
  %4637 = vmatprep.subr.bf16.mxu0 %v4588
  %4638 = vmatpush1.bf16.msra.mxu0 %v4587
  %4639 = vmatprep.subr.bf16.mxu0 0
  %4640 = vmatpush1.bf16.msra.mxu0 0
  %4641 = vmatprep.subr.bf16.mxu0 0
  %4642 = vmatpush1.bf16.msra.mxu0 0
  %4643 = vmatprep.subr.bf16.mxu0 0
  %4644 = vmatpush1.bf16.msra.mxu0 0
  %4645 = vmatprep.subr.bf16.mxu0 0
  %4646 = vmatpush1.bf16.msra.mxu0 0
  %4647 = vmatprep.subr.bf16.mxu0 0
  %4648 = vmatpush1.bf16.msra.mxu0 0
  %4649 = vmatprep.subr.bf16.mxu0 0
  %4650 = vmatpush1.bf16.msra.mxu0 0
  %4651 = vmatprep.subr.bf16.mxu0 0
  %4652 = vmatpush1.bf16.msra.mxu0 0
  %4653 = vmatprep.subr.bf16.mxu0 0
  %4654 = vmatpush1.bf16.msra.mxu0 0
  %4655 = vmatprep.mubr.bf16.mxu0 0
  %4656 = vmatmul.mubr.bf16.gmra.mrb[0].mxu0 %v4430
  %v4657 = vpop.f32.mrb[0].mxu0
  %v4658 = vadd.f32 0.0, %v4657
  %v4659 = vpop.f32.mrb[0].mxu0
  %v4660 = vadd.f32 0.0, %v4659
  %v4661 = vpop.f32.mrb[0].mxu0
  %v4662 = vpop.f32.mrb[0].mxu0
  %4663 = vdwg.mxu0
  %4664 = vmatprep.subr.bf16.mxu0 %v4562
  %4665 = vmatpush1.bf16.msra.mxu0 %v4561
  %4666 = vmatprep.subr.bf16.mxu0 %v4566
  %4667 = vmatpush1.bf16.msra.mxu0 %v4565
  %4668 = vmatprep.subr.bf16.mxu0 %v4570
  %4669 = vmatpush1.bf16.msra.mxu0 %v4569
  %4670 = vmatprep.subr.bf16.mxu0 %v4574
  %4671 = vmatpush1.bf16.msra.mxu0 %v4573
  %4672 = vmatprep.subr.bf16.mxu0 %v4578
  %4673 = vmatpush1.bf16.msra.mxu0 %v4577
  %4674 = vmatprep.subr.bf16.mxu0 %v4582
  %4675 = vmatpush1.bf16.msra.mxu0 %v4581
  %4676 = vmatprep.subr.bf16.mxu0 %v4586
  %4677 = vmatpush1.bf16.msra.mxu0 %v4585
  %4678 = vmatprep.subr.bf16.mxu0 %v4590
  %4679 = vmatpush1.bf16.msra.mxu0 %v4589
  %4680 = vmatprep.subr.bf16.mxu0 0
  %4681 = vmatpush1.bf16.msra.mxu0 0
  %4682 = vmatprep.subr.bf16.mxu0 0
  %4683 = vmatpush1.bf16.msra.mxu0 0
  %4684 = vmatprep.subr.bf16.mxu0 0
  %4685 = vmatpush1.bf16.msra.mxu0 0
  %4686 = vmatprep.subr.bf16.mxu0 0
  %4687 = vmatpush1.bf16.msra.mxu0 0
  %4688 = vmatprep.subr.bf16.mxu0 0
  %4689 = vmatpush1.bf16.msra.mxu0 0
  %4690 = vmatprep.subr.bf16.mxu0 0
  %4691 = vmatpush1.bf16.msra.mxu0 0
  %4692 = vmatprep.subr.bf16.mxu0 0
  %4693 = vmatpush1.bf16.msra.mxu0 0
  %4694 = vmatprep.subr.bf16.mxu0 0
  %4695 = vmatpush1.bf16.msra.mxu0 0
  %4696 = vmatprep.mubr.bf16.mxu0 0
  %4697 = vmatmul.mubr.bf16.gmra.mrb[0].mxu0 %v4430
  %v4698 = vpop.f32.mrb[0].mxu0
  %v4699 = vadd.f32 0.0, %v4698
  %v4700 = vpop.f32.mrb[0].mxu0
  %v4701 = vadd.f32 0.0, %v4700
  %v4702 = vpop.f32.mrb[0].mxu0
  %v4703 = vpop.f32.mrb[0].mxu0
  %4704 = vdwg.mxu0
  %v4705 = vadd.f32 %v4426, %v4658
  %v4706 = vadd.f32 %v4427, %v4660
  %v4707 = vadd.f32 %v4428, %v4699
  %v4708 = vadd.f32 %v4429, %v4701
  %v4709 = vxor.u32 %v4705, 2147483648
  %v4710 = vmul.f32 %v4709, 1.442695
  %v4711 = vpow.pop %v4710
  %v4712 = vadd.f32 %v4711, 1.0
  %v4713 = vrcp.pop %v4712
  %v4714 = vmul.f32 1.0, %v4713
  %v4715 = vxor.u32 %v4706, 2147483648
  %v4716 = vmul.f32 %v4715, 1.442695
  %v4717 = vpow.pop %v4716
  %v4718 = vadd.f32 %v4717, 1.0
  %v4719 = vrcp.pop %v4718
  %v4720 = vmul.f32 1.0, %v4719
  %v4721 = vtanh.pop %v4707
  %v4722 = vxor.u32 %v4708, 2147483648
  %v4723 = vmul.f32 %v4722, 1.442695
  %v4724 = vpow.pop %v4723
  %v4725 = vadd.f32 %v4724, 1.0
  %v4726 = vrcp.pop %v4725
  %v4727 = vmul.f32 1.0, %v4726
  %v4728 = vld [vmem:[%s3752] sm:$0xff]
  %v4729 = vmul.f32 %v4720, %v4728
  %v4730 = vmul.f32 %v4714, %v4721
  %v4731 = vadd.f32 %v4729, %v4730
  %v4732 = vtanh.pop %v4731
  %v4733 = vmul.f32 %v4727, %v4732
  %4734 = vst [vmem:[%s3752] sm:$0xff] %v4731
  %v4735 = vpack.c.bf16 %v4733, %v4733
  %4736 = vst [vmem:[%s3452] sm:$0xf] %v4735
  %v4738 = vrot.slane %v4735, 4
  %4740 = vst [vmem:[#allocation5 + $0x8] sm:$0xf0] %v4738
  %v4741 = vld [vmem:[#allocation4 + $0x40] sm:$0xf]
  %v4742 = vld [vmem:[#allocation4 + $0x48] sm:$0xf]
  %v4743 = vld [vmem:[#allocation4 + $0x50] sm:$0xf]
  %v4744 = vld [vmem:[#allocation4 + $0x58] sm:$0xf]
  %v4745 = vunpack.c.l.bf16 %v4741
  %v4746 = vunpack.c.l.bf16 %v4742
  %v4747 = vunpack.c.l.bf16 %v4743
  %v4748 = vunpack.c.l.bf16 %v4744
  %v4749 = vld [vmem:[%s3452] sm:$0xf]
  %v4750 = vld [vmem:[%s3454] sm:$0xff]
  %v4751 = vld [vmem:[%s3454 + $0x8] sm:$0xff]
  %v4752 = vld [vmem:[%s3454 + $0x10] sm:$0xff]
  %v4753 = vld [vmem:[%s3454 + $0x18] sm:$0xff]
  %v4754 = vld [vmem:[%s3454 + $0x20] sm:$0xff]
  %v4755 = vld [vmem:[%s3454 + $0x28] sm:$0xff]
  %v4756 = vld [vmem:[%s3454 + $0x30] sm:$0xff]
  %v4757 = vld [vmem:[%s3454 + $0x38] sm:$0xff]
  %v4758 = vld [vmem:[%s3454 + $0x40] sm:$0xff]
  %v4759 = vld [vmem:[%s3454 + $0x48] sm:$0xff]
  %v4760 = vld [vmem:[%s3454 + $0x50] sm:$0xff]
  %v4761 = vld [vmem:[%s3454 + $0x58] sm:$0xff]
  %v4762 = vld [vmem:[%s3454 + $0x60] sm:$0xff]
  %v4763 = vld [vmem:[%s3454 + $0x68] sm:$0xff]
  %v4764 = vld [vmem:[%s3454 + $0x70] sm:$0xff]
  %v4765 = vld [vmem:[%s3454 + $0x78] sm:$0xff]
  %v4766 = vld [vmem:[%s3454 + $0x80] sm:$0xff]
  %v4767 = vld [vmem:[%s3454 + $0x88] sm:$0xff]
  %v4768 = vld [vmem:[%s3454 + $0x90] sm:$0xff]
  %v4769 = vld [vmem:[%s3454 + $0x98] sm:$0xff]
  %v4770 = vld [vmem:[%s3454 + $0xa0] sm:$0xff]
  %v4771 = vld [vmem:[%s3454 + $0xa8] sm:$0xff]
  %v4772 = vld [vmem:[%s3454 + $0xb0] sm:$0xff]
  %v4773 = vld [vmem:[%s3454 + $0xb8] sm:$0xff]
  %v4774 = vld [vmem:[%s3454 + $0xc0] sm:$0xff]
  %v4775 = vld [vmem:[%s3454 + $0xc8] sm:$0xff]
  %v4776 = vld [vmem:[%s3454 + $0xd0] sm:$0xff]
  %v4777 = vld [vmem:[%s3454 + $0xd8] sm:$0xff]
  %v4778 = vld [vmem:[%s3454 + $0xe0] sm:$0xff]
  %v4779 = vld [vmem:[%s3454 + $0xe8] sm:$0xff]
  %v4780 = vld [vmem:[%s3454 + $0xf0] sm:$0xff]
  %v4781 = vld [vmem:[%s3454 + $0xf8] sm:$0xff]
  %v4814 = vunpack.c.l.b16 %v4750
  %v4815 = vunpack.c.h.b16 %v4750
  %v4816 = vunpack.c.l.b16 %v4751
  %v4817 = vunpack.c.h.b16 %v4751
  %v4818 = vunpack.c.l.b16 %v4752
  %v4819 = vunpack.c.h.b16 %v4752
  %v4820 = vunpack.c.l.b16 %v4753
  %v4821 = vunpack.c.h.b16 %v4753
  %v4822 = vunpack.c.l.b16 %v4754
  %v4823 = vunpack.c.h.b16 %v4754
  %v4824 = vunpack.c.l.b16 %v4755
  %v4825 = vunpack.c.h.b16 %v4755
  %v4826 = vunpack.c.l.b16 %v4756
  %v4827 = vunpack.c.h.b16 %v4756
  %v4828 = vunpack.c.l.b16 %v4757
  %v4829 = vunpack.c.h.b16 %v4757
  %v4830 = vunpack.c.l.b16 %v4758
  %v4831 = vunpack.c.h.b16 %v4758
  %v4832 = vunpack.c.l.b16 %v4759
  %v4833 = vunpack.c.h.b16 %v4759
  %v4834 = vunpack.c.l.b16 %v4760
  %v4835 = vunpack.c.h.b16 %v4760
  %v4836 = vunpack.c.l.b16 %v4761
  %v4837 = vunpack.c.h.b16 %v4761
  %v4838 = vunpack.c.l.b16 %v4762
  %v4839 = vunpack.c.h.b16 %v4762
  %v4840 = vunpack.c.l.b16 %v4763
  %v4841 = vunpack.c.h.b16 %v4763
  %v4842 = vunpack.c.l.b16 %v4764
  %v4843 = vunpack.c.h.b16 %v4764
  %v4844 = vunpack.c.l.b16 %v4765
  %v4845 = vunpack.c.h.b16 %v4765
  %v4846 = vunpack.c.l.b16 %v4766
  %v4847 = vunpack.c.h.b16 %v4766
  %v4848 = vunpack.c.l.b16 %v4767
  %v4849 = vunpack.c.h.b16 %v4767
  %v4850 = vunpack.c.l.b16 %v4768
  %v4851 = vunpack.c.h.b16 %v4768
  %v4852 = vunpack.c.l.b16 %v4769
  %v4853 = vunpack.c.h.b16 %v4769
  %v4854 = vunpack.c.l.b16 %v4770
  %v4855 = vunpack.c.h.b16 %v4770
  %v4856 = vunpack.c.l.b16 %v4771
  %v4857 = vunpack.c.h.b16 %v4771
  %v4858 = vunpack.c.l.b16 %v4772
  %v4859 = vunpack.c.h.b16 %v4772
  %v4860 = vunpack.c.l.b16 %v4773
  %v4861 = vunpack.c.h.b16 %v4773
  %v4862 = vunpack.c.l.b16 %v4774
  %v4863 = vunpack.c.h.b16 %v4774
  %v4864 = vunpack.c.l.b16 %v4775
  %v4865 = vunpack.c.h.b16 %v4775
  %v4866 = vunpack.c.l.b16 %v4776
  %v4867 = vunpack.c.h.b16 %v4776
  %v4868 = vunpack.c.l.b16 %v4777
  %v4869 = vunpack.c.h.b16 %v4777
  %v4870 = vunpack.c.l.b16 %v4778
  %v4871 = vunpack.c.h.b16 %v4778
  %v4872 = vunpack.c.l.b16 %v4779
  %v4873 = vunpack.c.h.b16 %v4779
  %v4874 = vunpack.c.l.b16 %v4780
  %v4875 = vunpack.c.h.b16 %v4780
  %v4876 = vunpack.c.l.b16 %v4781
  %v4877 = vunpack.c.h.b16 %v4781
  %v4878 = vpack.c.b16 %v4818, %v4814
  %v4879 = vpack.c.b16 %v4819, %v4815
  %v4880 = vpack.c.b16 %v4820, %v4816
  %v4881 = vpack.c.b16 %v4821, %v4817
  %v4882 = vpack.c.b16 %v4826, %v4822
  %v4883 = vpack.c.b16 %v4827, %v4823
  %v4884 = vpack.c.b16 %v4828, %v4824
  %v4885 = vpack.c.b16 %v4829, %v4825
  %v4886 = vpack.c.b16 %v4834, %v4830
  %v4887 = vpack.c.b16 %v4835, %v4831
  %v4888 = vpack.c.b16 %v4836, %v4832
  %v4889 = vpack.c.b16 %v4837, %v4833
  %v4890 = vpack.c.b16 %v4842, %v4838
  %v4891 = vpack.c.b16 %v4843, %v4839
  %v4892 = vpack.c.b16 %v4844, %v4840
  %v4893 = vpack.c.b16 %v4845, %v4841
  %v4894 = vpack.c.b16 %v4850, %v4846
  %v4895 = vpack.c.b16 %v4851, %v4847
  %v4896 = vpack.c.b16 %v4852, %v4848
  %v4897 = vpack.c.b16 %v4853, %v4849
  %v4898 = vpack.c.b16 %v4858, %v4854
  %v4899 = vpack.c.b16 %v4859, %v4855
  %v4900 = vpack.c.b16 %v4860, %v4856
  %v4901 = vpack.c.b16 %v4861, %v4857
  %v4902 = vpack.c.b16 %v4866, %v4862
  %v4903 = vpack.c.b16 %v4867, %v4863
  %v4904 = vpack.c.b16 %v4868, %v4864
  %v4905 = vpack.c.b16 %v4869, %v4865
  %v4906 = vpack.c.b16 %v4874, %v4870
  %v4907 = vpack.c.b16 %v4875, %v4871
  %v4908 = vpack.c.b16 %v4876, %v4872
  %v4909 = vpack.c.b16 %v4877, %v4873
  %4942 = vmatprep.subr.bf16.mxu0 %v4879
  %4943 = vmatpush1.bf16.msra.mxu0 %v4878
  %4944 = vmatprep.subr.bf16.mxu0 %v4883
  %4945 = vmatpush1.bf16.msra.mxu0 %v4882
  %4946 = vmatprep.subr.bf16.mxu0 %v4887
  %4947 = vmatpush1.bf16.msra.mxu0 %v4886
  %4948 = vmatprep.subr.bf16.mxu0 %v4891
  %4949 = vmatpush1.bf16.msra.mxu0 %v4890
  %4950 = vmatprep.subr.bf16.mxu0 %v4895
  %4951 = vmatpush1.bf16.msra.mxu0 %v4894
  %4952 = vmatprep.subr.bf16.mxu0 %v4899
  %4953 = vmatpush1.bf16.msra.mxu0 %v4898
  %4954 = vmatprep.subr.bf16.mxu0 %v4903
  %4955 = vmatpush1.bf16.msra.mxu0 %v4902
  %4956 = vmatprep.subr.bf16.mxu0 %v4907
  %4957 = vmatpush1.bf16.msra.mxu0 %v4906
  %4958 = vmatprep.subr.bf16.mxu0 0
  %4959 = vmatpush1.bf16.msra.mxu0 0
  %4960 = vmatprep.subr.bf16.mxu0 0
  %4961 = vmatpush1.bf16.msra.mxu0 0
  %4962 = vmatprep.subr.bf16.mxu0 0
  %4963 = vmatpush1.bf16.msra.mxu0 0
  %4964 = vmatprep.subr.bf16.mxu0 0
  %4965 = vmatpush1.bf16.msra.mxu0 0
  %4966 = vmatprep.subr.bf16.mxu0 0
  %4967 = vmatpush1.bf16.msra.mxu0 0
  %4968 = vmatprep.subr.bf16.mxu0 0
  %4969 = vmatpush1.bf16.msra.mxu0 0
  %4970 = vmatprep.subr.bf16.mxu0 0
  %4971 = vmatpush1.bf16.msra.mxu0 0
  %4972 = vmatprep.subr.bf16.mxu0 0
  %4973 = vmatpush1.bf16.msra.mxu0 0
  %4974 = vmatprep.mubr.bf16.mxu0 0
  %4975 = vmatmul.mubr.bf16.gmra.mrb[0].mxu0 %v4749
  %v4976 = vpop.f32.mrb[0].mxu0
  %v4977 = vadd.f32 0.0, %v4976
  %v4978 = vpop.f32.mrb[0].mxu0
  %v4979 = vadd.f32 0.0, %v4978
  %v4980 = vpop.f32.mrb[0].mxu0
  %v4981 = vpop.f32.mrb[0].mxu0
  %4982 = vdwg.mxu0
  %4983 = vmatprep.subr.bf16.mxu0 %v4881
  %4984 = vmatpush1.bf16.msra.mxu0 %v4880
  %4985 = vmatprep.subr.bf16.mxu0 %v4885
  %4986 = vmatpush1.bf16.msra.mxu0 %v4884
  %4987 = vmatprep.subr.bf16.mxu0 %v4889
  %4988 = vmatpush1.bf16.msra.mxu0 %v4888
  %4989 = vmatprep.subr.bf16.mxu0 %v4893
  %4990 = vmatpush1.bf16.msra.mxu0 %v4892
  %4991 = vmatprep.subr.bf16.mxu0 %v4897
  %4992 = vmatpush1.bf16.msra.mxu0 %v4896
  %4993 = vmatprep.subr.bf16.mxu0 %v4901
  %4994 = vmatpush1.bf16.msra.mxu0 %v4900
  %4995 = vmatprep.subr.bf16.mxu0 %v4905
  %4996 = vmatpush1.bf16.msra.mxu0 %v4904
  %4997 = vmatprep.subr.bf16.mxu0 %v4909
  %4998 = vmatpush1.bf16.msra.mxu0 %v4908
  %4999 = vmatprep.subr.bf16.mxu0 0
  %5000 = vmatpush1.bf16.msra.mxu0 0
  %5001 = vmatprep.subr.bf16.mxu0 0
  %5002 = vmatpush1.bf16.msra.mxu0 0
  %5003 = vmatprep.subr.bf16.mxu0 0
  %5004 = vmatpush1.bf16.msra.mxu0 0
  %5005 = vmatprep.subr.bf16.mxu0 0
  %5006 = vmatpush1.bf16.msra.mxu0 0
  %5007 = vmatprep.subr.bf16.mxu0 0
  %5008 = vmatpush1.bf16.msra.mxu0 0
  %5009 = vmatprep.subr.bf16.mxu0 0
  %5010 = vmatpush1.bf16.msra.mxu0 0
  %5011 = vmatprep.subr.bf16.mxu0 0
  %5012 = vmatpush1.bf16.msra.mxu0 0
  %5013 = vmatprep.subr.bf16.mxu0 0
  %5014 = vmatpush1.bf16.msra.mxu0 0
  %5015 = vmatprep.mubr.bf16.mxu0 0
  %5016 = vmatmul.mubr.bf16.gmra.mrb[0].mxu0 %v4749
  %v5017 = vpop.f32.mrb[0].mxu0
  %v5018 = vadd.f32 0.0, %v5017
  %v5019 = vpop.f32.mrb[0].mxu0
  %v5020 = vadd.f32 0.0, %v5019
  %v5021 = vpop.f32.mrb[0].mxu0
  %v5022 = vpop.f32.mrb[0].mxu0
  %5023 = vdwg.mxu0
  %v5024 = vadd.f32 %v4745, %v4977
  %v5025 = vadd.f32 %v4746, %v4979
  %v5026 = vadd.f32 %v4747, %v5018
  %v5027 = vadd.f32 %v4748, %v5020
  %v5028 = vxor.u32 %v5024, 2147483648
  %v5029 = vmul.f32 %v5028, 1.442695
  %v5030 = vpow.pop %v5029
  %v5031 = vadd.f32 %v5030, 1.0
  %v5032 = vrcp.pop %v5031
  %v5033 = vmul.f32 1.0, %v5032
  %v5034 = vxor.u32 %v5025, 2147483648
  %v5035 = vmul.f32 %v5034, 1.442695
  %v5036 = vpow.pop %v5035
  %v5037 = vadd.f32 %v5036, 1.0
  %v5038 = vrcp.pop %v5037
  %v5039 = vmul.f32 1.0, %v5038
  %v5040 = vtanh.pop %v5026
  %v5041 = vxor.u32 %v5027, 2147483648
  %v5042 = vmul.f32 %v5041, 1.442695
  %v5043 = vpow.pop %v5042
  %v5044 = vadd.f32 %v5043, 1.0
  %v5045 = vrcp.pop %v5044
  %v5046 = vmul.f32 1.0, %v5045
  %v5047 = vld [vmem:[%s3752] sm:$0xff]
  %v5048 = vmul.f32 %v5039, %v5047
  %v5049 = vmul.f32 %v5033, %v5040
  %v5050 = vadd.f32 %v5048, %v5049
  %v5051 = vtanh.pop %v5050
  %v5052 = vmul.f32 %v5046, %v5051
  %5053 = vst [vmem:[%s3752] sm:$0xff] %v5050
  %v5054 = vpack.c.bf16 %v5052, %v5052
  %5055 = vst [vmem:[%s3452] sm:$0xf] %v5054
  %5056 = vst [vmem:[#allocation5 + $0x10] sm:$0xf] %v5054
  %v5057 = vld [vmem:[#allocation4 + $0x40] sm:$0xf0]
  %v5058 = vld [vmem:[#allocation4 + $0x48] sm:$0xf0]
  %v5059 = vld [vmem:[#allocation4 + $0x50] sm:$0xf0]
  %v5060 = vld [vmem:[#allocation4 + $0x58] sm:$0xf0]
  %v5065 = vrot.slane %v5057, 4
  %v5066 = vrot.slane %v5058, 4
  %v5067 = vrot.slane %v5059, 4
  %v5068 = vrot.slane %v5060, 4
  %v5073 = vunpack.c.l.bf16 %v5065
  %v5074 = vunpack.c.l.bf16 %v5066
  %v5075 = vunpack.c.l.bf16 %v5067
  %v5076 = vunpack.c.l.bf16 %v5068
  %v5077 = vld [vmem:[%s3452] sm:$0xf]
  %v5078 = vld [vmem:[%s3454] sm:$0xff]
  %v5079 = vld [vmem:[%s3454 + $0x8] sm:$0xff]
  %v5080 = vld [vmem:[%s3454 + $0x10] sm:$0xff]
  %v5081 = vld [vmem:[%s3454 + $0x18] sm:$0xff]
  %v5082 = vld [vmem:[%s3454 + $0x20] sm:$0xff]
  %v5083 = vld [vmem:[%s3454 + $0x28] sm:$0xff]
  %v5084 = vld [vmem:[%s3454 + $0x30] sm:$0xff]
  %v5085 = vld [vmem:[%s3454 + $0x38] sm:$0xff]
  %v5086 = vld [vmem:[%s3454 + $0x40] sm:$0xff]
  %v5087 = vld [vmem:[%s3454 + $0x48] sm:$0xff]
  %v5088 = vld [vmem:[%s3454 + $0x50] sm:$0xff]
  %v5089 = vld [vmem:[%s3454 + $0x58] sm:$0xff]
  %v5090 = vld [vmem:[%s3454 + $0x60] sm:$0xff]
  %v5091 = vld [vmem:[%s3454 + $0x68] sm:$0xff]
  %v5092 = vld [vmem:[%s3454 + $0x70] sm:$0xff]
  %v5093 = vld [vmem:[%s3454 + $0x78] sm:$0xff]
  %v5094 = vld [vmem:[%s3454 + $0x80] sm:$0xff]
  %v5095 = vld [vmem:[%s3454 + $0x88] sm:$0xff]
  %v5096 = vld [vmem:[%s3454 + $0x90] sm:$0xff]
  %v5097 = vld [vmem:[%s3454 + $0x98] sm:$0xff]
  %v5098 = vld [vmem:[%s3454 + $0xa0] sm:$0xff]
  %v5099 = vld [vmem:[%s3454 + $0xa8] sm:$0xff]
  %v5100 = vld [vmem:[%s3454 + $0xb0] sm:$0xff]
  %v5101 = vld [vmem:[%s3454 + $0xb8] sm:$0xff]
  %v5102 = vld [vmem:[%s3454 + $0xc0] sm:$0xff]
  %v5103 = vld [vmem:[%s3454 + $0xc8] sm:$0xff]
  %v5104 = vld [vmem:[%s3454 + $0xd0] sm:$0xff]
  %v5105 = vld [vmem:[%s3454 + $0xd8] sm:$0xff]
  %v5106 = vld [vmem:[%s3454 + $0xe0] sm:$0xff]
  %v5107 = vld [vmem:[%s3454 + $0xe8] sm:$0xff]
  %v5108 = vld [vmem:[%s3454 + $0xf0] sm:$0xff]
  %v5109 = vld [vmem:[%s3454 + $0xf8] sm:$0xff]
  %v5142 = vunpack.c.l.b16 %v5078
  %v5143 = vunpack.c.h.b16 %v5078
  %v5144 = vunpack.c.l.b16 %v5079
  %v5145 = vunpack.c.h.b16 %v5079
  %v5146 = vunpack.c.l.b16 %v5080
  %v5147 = vunpack.c.h.b16 %v5080
  %v5148 = vunpack.c.l.b16 %v5081
  %v5149 = vunpack.c.h.b16 %v5081
  %v5150 = vunpack.c.l.b16 %v5082
  %v5151 = vunpack.c.h.b16 %v5082
  %v5152 = vunpack.c.l.b16 %v5083
  %v5153 = vunpack.c.h.b16 %v5083
  %v5154 = vunpack.c.l.b16 %v5084
  %v5155 = vunpack.c.h.b16 %v5084
  %v5156 = vunpack.c.l.b16 %v5085
  %v5157 = vunpack.c.h.b16 %v5085
  %v5158 = vunpack.c.l.b16 %v5086
  %v5159 = vunpack.c.h.b16 %v5086
  %v5160 = vunpack.c.l.b16 %v5087
  %v5161 = vunpack.c.h.b16 %v5087
  %v5162 = vunpack.c.l.b16 %v5088
  %v5163 = vunpack.c.h.b16 %v5088
  %v5164 = vunpack.c.l.b16 %v5089
  %v5165 = vunpack.c.h.b16 %v5089
  %v5166 = vunpack.c.l.b16 %v5090
  %v5167 = vunpack.c.h.b16 %v5090
  %v5168 = vunpack.c.l.b16 %v5091
  %v5169 = vunpack.c.h.b16 %v5091
  %v5170 = vunpack.c.l.b16 %v5092
  %v5171 = vunpack.c.h.b16 %v5092
  %v5172 = vunpack.c.l.b16 %v5093
  %v5173 = vunpack.c.h.b16 %v5093
  %v5174 = vunpack.c.l.b16 %v5094
  %v5175 = vunpack.c.h.b16 %v5094
  %v5176 = vunpack.c.l.b16 %v5095
  %v5177 = vunpack.c.h.b16 %v5095
  %v5178 = vunpack.c.l.b16 %v5096
  %v5179 = vunpack.c.h.b16 %v5096
  %v5180 = vunpack.c.l.b16 %v5097
  %v5181 = vunpack.c.h.b16 %v5097
  %v5182 = vunpack.c.l.b16 %v5098
  %v5183 = vunpack.c.h.b16 %v5098
  %v5184 = vunpack.c.l.b16 %v5099
  %v5185 = vunpack.c.h.b16 %v5099
  %v5186 = vunpack.c.l.b16 %v5100
  %v5187 = vunpack.c.h.b16 %v5100
  %v5188 = vunpack.c.l.b16 %v5101
  %v5189 = vunpack.c.h.b16 %v5101
  %v5190 = vunpack.c.l.b16 %v5102
  %v5191 = vunpack.c.h.b16 %v5102
  %v5192 = vunpack.c.l.b16 %v5103
  %v5193 = vunpack.c.h.b16 %v5103
  %v5194 = vunpack.c.l.b16 %v5104
  %v5195 = vunpack.c.h.b16 %v5104
  %v5196 = vunpack.c.l.b16 %v5105
  %v5197 = vunpack.c.h.b16 %v5105
  %v5198 = vunpack.c.l.b16 %v5106
  %v5199 = vunpack.c.h.b16 %v5106
  %v5200 = vunpack.c.l.b16 %v5107
  %v5201 = vunpack.c.h.b16 %v5107
  %v5202 = vunpack.c.l.b16 %v5108
  %v5203 = vunpack.c.h.b16 %v5108
  %v5204 = vunpack.c.l.b16 %v5109
  %v5205 = vunpack.c.h.b16 %v5109
  %v5206 = vpack.c.b16 %v5146, %v5142
  %v5207 = vpack.c.b16 %v5147, %v5143
  %v5208 = vpack.c.b16 %v5148, %v5144
  %v5209 = vpack.c.b16 %v5149, %v5145
  %v5210 = vpack.c.b16 %v5154, %v5150
  %v5211 = vpack.c.b16 %v5155, %v5151
  %v5212 = vpack.c.b16 %v5156, %v5152
  %v5213 = vpack.c.b16 %v5157, %v5153
  %v5214 = vpack.c.b16 %v5162, %v5158
  %v5215 = vpack.c.b16 %v5163, %v5159
  %v5216 = vpack.c.b16 %v5164, %v5160
  %v5217 = vpack.c.b16 %v5165, %v5161
  %v5218 = vpack.c.b16 %v5170, %v5166
  %v5219 = vpack.c.b16 %v5171, %v5167
  %v5220 = vpack.c.b16 %v5172, %v5168
  %v5221 = vpack.c.b16 %v5173, %v5169
  %v5222 = vpack.c.b16 %v5178, %v5174
  %v5223 = vpack.c.b16 %v5179, %v5175
  %v5224 = vpack.c.b16 %v5180, %v5176
  %v5225 = vpack.c.b16 %v5181, %v5177
  %v5226 = vpack.c.b16 %v5186, %v5182
  %v5227 = vpack.c.b16 %v5187, %v5183
  %v5228 = vpack.c.b16 %v5188, %v5184
  %v5229 = vpack.c.b16 %v5189, %v5185
  %v5230 = vpack.c.b16 %v5194, %v5190
  %v5231 = vpack.c.b16 %v5195, %v5191
  %v5232 = vpack.c.b16 %v5196, %v5192
  %v5233 = vpack.c.b16 %v5197, %v5193
  %v5234 = vpack.c.b16 %v5202, %v5198
  %v5235 = vpack.c.b16 %v5203, %v5199
  %v5236 = vpack.c.b16 %v5204, %v5200
  %v5237 = vpack.c.b16 %v5205, %v5201
  %5270 = vmatprep.subr.bf16.mxu0 %v5207
  %5271 = vmatpush1.bf16.msra.mxu0 %v5206
  %5272 = vmatprep.subr.bf16.mxu0 %v5211
  %5273 = vmatpush1.bf16.msra.mxu0 %v5210
  %5274 = vmatprep.subr.bf16.mxu0 %v5215
  %5275 = vmatpush1.bf16.msra.mxu0 %v5214
  %5276 = vmatprep.subr.bf16.mxu0 %v5219
  %5277 = vmatpush1.bf16.msra.mxu0 %v5218
  %5278 = vmatprep.subr.bf16.mxu0 %v5223
  %5279 = vmatpush1.bf16.msra.mxu0 %v5222
  %5280 = vmatprep.subr.bf16.mxu0 %v5227
  %5281 = vmatpush1.bf16.msra.mxu0 %v5226
  %5282 = vmatprep.subr.bf16.mxu0 %v5231
  %5283 = vmatpush1.bf16.msra.mxu0 %v5230
  %5284 = vmatprep.subr.bf16.mxu0 %v5235
  %5285 = vmatpush1.bf16.msra.mxu0 %v5234
  %5286 = vmatprep.subr.bf16.mxu0 0
  %5287 = vmatpush1.bf16.msra.mxu0 0
  %5288 = vmatprep.subr.bf16.mxu0 0
  %5289 = vmatpush1.bf16.msra.mxu0 0
  %5290 = vmatprep.subr.bf16.mxu0 0
  %5291 = vmatpush1.bf16.msra.mxu0 0
  %5292 = vmatprep.subr.bf16.mxu0 0
  %5293 = vmatpush1.bf16.msra.mxu0 0
  %5294 = vmatprep.subr.bf16.mxu0 0
  %5295 = vmatpush1.bf16.msra.mxu0 0
  %5296 = vmatprep.subr.bf16.mxu0 0
  %5297 = vmatpush1.bf16.msra.mxu0 0
  %5298 = vmatprep.subr.bf16.mxu0 0
  %5299 = vmatpush1.bf16.msra.mxu0 0
  %5300 = vmatprep.subr.bf16.mxu0 0
  %5301 = vmatpush1.bf16.msra.mxu0 0
  %5302 = vmatprep.mubr.bf16.mxu0 0
  %5303 = vmatmul.mubr.bf16.gmra.mrb[0].mxu0 %v5077
  %v5304 = vpop.f32.mrb[0].mxu0
  %v5305 = vadd.f32 0.0, %v5304
  %v5306 = vpop.f32.mrb[0].mxu0
  %v5307 = vadd.f32 0.0, %v5306
  %v5308 = vpop.f32.mrb[0].mxu0
  %v5309 = vpop.f32.mrb[0].mxu0
  %5310 = vdwg.mxu0
  %5311 = vmatprep.subr.bf16.mxu0 %v5209
  %5312 = vmatpush1.bf16.msra.mxu0 %v5208
  %5313 = vmatprep.subr.bf16.mxu0 %v5213
  %5314 = vmatpush1.bf16.msra.mxu0 %v5212
  %5315 = vmatprep.subr.bf16.mxu0 %v5217
  %5316 = vmatpush1.bf16.msra.mxu0 %v5216
  %5317 = vmatprep.subr.bf16.mxu0 %v5221
  %5318 = vmatpush1.bf16.msra.mxu0 %v5220
  %5319 = vmatprep.subr.bf16.mxu0 %v5225
  %5320 = vmatpush1.bf16.msra.mxu0 %v5224
  %5321 = vmatprep.subr.bf16.mxu0 %v5229
  %5322 = vmatpush1.bf16.msra.mxu0 %v5228
  %5323 = vmatprep.subr.bf16.mxu0 %v5233
  %5324 = vmatpush1.bf16.msra.mxu0 %v5232
  %5325 = vmatprep.subr.bf16.mxu0 %v5237
  %5326 = vmatpush1.bf16.msra.mxu0 %v5236
  %5327 = vmatprep.subr.bf16.mxu0 0
  %5328 = vmatpush1.bf16.msra.mxu0 0
  %5329 = vmatprep.subr.bf16.mxu0 0
  %5330 = vmatpush1.bf16.msra.mxu0 0
  %5331 = vmatprep.subr.bf16.mxu0 0
  %5332 = vmatpush1.bf16.msra.mxu0 0
  %5333 = vmatprep.subr.bf16.mxu0 0
  %5334 = vmatpush1.bf16.msra.mxu0 0
  %5335 = vmatprep.subr.bf16.mxu0 0
  %5336 = vmatpush1.bf16.msra.mxu0 0
  %5337 = vmatprep.subr.bf16.mxu0 0
  %5338 = vmatpush1.bf16.msra.mxu0 0
  %5339 = vmatprep.subr.bf16.mxu0 0
  %5340 = vmatpush1.bf16.msra.mxu0 0
  %5341 = vmatprep.subr.bf16.mxu0 0
  %5342 = vmatpush1.bf16.msra.mxu0 0
  %5343 = vmatprep.mubr.bf16.mxu0 0
  %5344 = vmatmul.mubr.bf16.gmra.mrb[0].mxu0 %v5077
  %v5345 = vpop.f32.mrb[0].mxu0
  %v5346 = vadd.f32 0.0, %v5345
  %v5347 = vpop.f32.mrb[0].mxu0
  %v5348 = vadd.f32 0.0, %v5347
  %v5349 = vpop.f32.mrb[0].mxu0
  %v5350 = vpop.f32.mrb[0].mxu0
  %5351 = vdwg.mxu0
  %v5352 = vadd.f32 %v5073, %v5305
  %v5353 = vadd.f32 %v5074, %v5307
  %v5354 = vadd.f32 %v5075, %v5346
  %v5355 = vadd.f32 %v5076, %v5348
  %v5356 = vxor.u32 %v5352, 2147483648
  %v5357 = vmul.f32 %v5356, 1.442695
  %v5358 = vpow.pop %v5357
  %v5359 = vadd.f32 %v5358, 1.0
  %v5360 = vrcp.pop %v5359
  %v5361 = vmul.f32 1.0, %v5360
  %v5362 = vxor.u32 %v5353, 2147483648
  %v5363 = vmul.f32 %v5362, 1.442695
  %v5364 = vpow.pop %v5363
  %v5365 = vadd.f32 %v5364, 1.0
  %v5366 = vrcp.pop %v5365
  %v5367 = vmul.f32 1.0, %v5366
  %v5368 = vtanh.pop %v5354
  %v5369 = vxor.u32 %v5355, 2147483648
  %v5370 = vmul.f32 %v5369, 1.442695
  %v5371 = vpow.pop %v5370
  %v5372 = vadd.f32 %v5371, 1.0
  %v5373 = vrcp.pop %v5372
  %v5374 = vmul.f32 1.0, %v5373
  %v5375 = vld [vmem:[%s3752] sm:$0xff]
  %v5376 = vmul.f32 %v5367, %v5375
  %v5377 = vmul.f32 %v5361, %v5368
  %v5378 = vadd.f32 %v5376, %v5377
  %v5379 = vtanh.pop %v5378
  %v5380 = vmul.f32 %v5374, %v5379
  %5381 = vst [vmem:[%s3752] sm:$0xff] %v5378
  %v5382 = vpack.c.bf16 %v5380, %v5380
  %5383 = vst [vmem:[%s3452] sm:$0xf] %v5382
  %v5385 = vrot.slane %v5382, 4
  %5387 = vst [vmem:[#allocation5 + $0x10] sm:$0xf0] %v5385
  %v5388 = vld [vmem:[#allocation4 + $0x60] sm:$0xf]
  %v5389 = vld [vmem:[#allocation4 + $0x68] sm:$0xf]
  %v5390 = vld [vmem:[#allocation4 + $0x70] sm:$0xf]
  %v5391 = vld [vmem:[#allocation4 + $0x78] sm:$0xf]
  %v5392 = vunpack.c.l.bf16 %v5388
  %v5393 = vunpack.c.l.bf16 %v5389
  %v5394 = vunpack.c.l.bf16 %v5390
  %v5395 = vunpack.c.l.bf16 %v5391
  %v5396 = vld [vmem:[%s3452] sm:$0xf]
  %v5397 = vld [vmem:[%s3454] sm:$0xff]
  %v5398 = vld [vmem:[%s3454 + $0x8] sm:$0xff]
  %v5399 = vld [vmem:[%s3454 + $0x10] sm:$0xff]
  %v5400 = vld [vmem:[%s3454 + $0x18] sm:$0xff]
  %v5401 = vld [vmem:[%s3454 + $0x20] sm:$0xff]
  %v5402 = vld [vmem:[%s3454 + $0x28] sm:$0xff]
  %v5403 = vld [vmem:[%s3454 + $0x30] sm:$0xff]
  %v5404 = vld [vmem:[%s3454 + $0x38] sm:$0xff]
  %v5405 = vld [vmem:[%s3454 + $0x40] sm:$0xff]
  %v5406 = vld [vmem:[%s3454 + $0x48] sm:$0xff]
  %v5407 = vld [vmem:[%s3454 + $0x50] sm:$0xff]
  %v5408 = vld [vmem:[%s3454 + $0x58] sm:$0xff]
  %v5409 = vld [vmem:[%s3454 + $0x60] sm:$0xff]
  %v5410 = vld [vmem:[%s3454 + $0x68] sm:$0xff]
  %v5411 = vld [vmem:[%s3454 + $0x70] sm:$0xff]
  %v5412 = vld [vmem:[%s3454 + $0x78] sm:$0xff]
  %v5413 = vld [vmem:[%s3454 + $0x80] sm:$0xff]
  %v5414 = vld [vmem:[%s3454 + $0x88] sm:$0xff]
  %v5415 = vld [vmem:[%s3454 + $0x90] sm:$0xff]
  %v5416 = vld [vmem:[%s3454 + $0x98] sm:$0xff]
  %v5417 = vld [vmem:[%s3454 + $0xa0] sm:$0xff]
  %v5418 = vld [vmem:[%s3454 + $0xa8] sm:$0xff]
  %v5419 = vld [vmem:[%s3454 + $0xb0] sm:$0xff]
  %v5420 = vld [vmem:[%s3454 + $0xb8] sm:$0xff]
  %v5421 = vld [vmem:[%s3454 + $0xc0] sm:$0xff]
  %v5422 = vld [vmem:[%s3454 + $0xc8] sm:$0xff]
  %v5423 = vld [vmem:[%s3454 + $0xd0] sm:$0xff]
  %v5424 = vld [vmem:[%s3454 + $0xd8] sm:$0xff]
  %v5425 = vld [vmem:[%s3454 + $0xe0] sm:$0xff]
  %v5426 = vld [vmem:[%s3454 + $0xe8] sm:$0xff]
  %v5427 = vld [vmem:[%s3454 + $0xf0] sm:$0xff]
  %v5428 = vld [vmem:[%s3454 + $0xf8] sm:$0xff]
  %v5461 = vunpack.c.l.b16 %v5397
  %v5462 = vunpack.c.h.b16 %v5397
  %v5463 = vunpack.c.l.b16 %v5398
  %v5464 = vunpack.c.h.b16 %v5398
  %v5465 = vunpack.c.l.b16 %v5399
  %v5466 = vunpack.c.h.b16 %v5399
  %v5467 = vunpack.c.l.b16 %v5400
  %v5468 = vunpack.c.h.b16 %v5400
  %v5469 = vunpack.c.l.b16 %v5401
  %v5470 = vunpack.c.h.b16 %v5401
  %v5471 = vunpack.c.l.b16 %v5402
  %v5472 = vunpack.c.h.b16 %v5402
  %v5473 = vunpack.c.l.b16 %v5403
  %v5474 = vunpack.c.h.b16 %v5403
  %v5475 = vunpack.c.l.b16 %v5404
  %v5476 = vunpack.c.h.b16 %v5404
  %v5477 = vunpack.c.l.b16 %v5405
  %v5478 = vunpack.c.h.b16 %v5405
  %v5479 = vunpack.c.l.b16 %v5406
  %v5480 = vunpack.c.h.b16 %v5406
  %v5481 = vunpack.c.l.b16 %v5407
  %v5482 = vunpack.c.h.b16 %v5407
  %v5483 = vunpack.c.l.b16 %v5408
  %v5484 = vunpack.c.h.b16 %v5408
  %v5485 = vunpack.c.l.b16 %v5409
  %v5486 = vunpack.c.h.b16 %v5409
  %v5487 = vunpack.c.l.b16 %v5410
  %v5488 = vunpack.c.h.b16 %v5410
  %v5489 = vunpack.c.l.b16 %v5411
  %v5490 = vunpack.c.h.b16 %v5411
  %v5491 = vunpack.c.l.b16 %v5412
  %v5492 = vunpack.c.h.b16 %v5412
  %v5493 = vunpack.c.l.b16 %v5413
  %v5494 = vunpack.c.h.b16 %v5413
  %v5495 = vunpack.c.l.b16 %v5414
  %v5496 = vunpack.c.h.b16 %v5414
  %v5497 = vunpack.c.l.b16 %v5415
  %v5498 = vunpack.c.h.b16 %v5415
  %v5499 = vunpack.c.l.b16 %v5416
  %v5500 = vunpack.c.h.b16 %v5416
  %v5501 = vunpack.c.l.b16 %v5417
  %v5502 = vunpack.c.h.b16 %v5417
  %v5503 = vunpack.c.l.b16 %v5418
  %v5504 = vunpack.c.h.b16 %v5418
  %v5505 = vunpack.c.l.b16 %v5419
  %v5506 = vunpack.c.h.b16 %v5419
  %v5507 = vunpack.c.l.b16 %v5420
  %v5508 = vunpack.c.h.b16 %v5420
  %v5509 = vunpack.c.l.b16 %v5421
  %v5510 = vunpack.c.h.b16 %v5421
  %v5511 = vunpack.c.l.b16 %v5422
  %v5512 = vunpack.c.h.b16 %v5422
  %v5513 = vunpack.c.l.b16 %v5423
  %v5514 = vunpack.c.h.b16 %v5423
  %v5515 = vunpack.c.l.b16 %v5424
  %v5516 = vunpack.c.h.b16 %v5424
  %v5517 = vunpack.c.l.b16 %v5425
  %v5518 = vunpack.c.h.b16 %v5425
  %v5519 = vunpack.c.l.b16 %v5426
  %v5520 = vunpack.c.h.b16 %v5426
  %v5521 = vunpack.c.l.b16 %v5427
  %v5522 = vunpack.c.h.b16 %v5427
  %v5523 = vunpack.c.l.b16 %v5428
  %v5524 = vunpack.c.h.b16 %v5428
  %v5525 = vpack.c.b16 %v5465, %v5461
  %v5526 = vpack.c.b16 %v5466, %v5462
  %v5527 = vpack.c.b16 %v5467, %v5463
  %v5528 = vpack.c.b16 %v5468, %v5464
  %v5529 = vpack.c.b16 %v5473, %v5469
  %v5530 = vpack.c.b16 %v5474, %v5470
  %v5531 = vpack.c.b16 %v5475, %v5471
  %v5532 = vpack.c.b16 %v5476, %v5472
  %v5533 = vpack.c.b16 %v5481, %v5477
  %v5534 = vpack.c.b16 %v5482, %v5478
  %v5535 = vpack.c.b16 %v5483, %v5479
  %v5536 = vpack.c.b16 %v5484, %v5480
  %v5537 = vpack.c.b16 %v5489, %v5485
  %v5538 = vpack.c.b16 %v5490, %v5486
  %v5539 = vpack.c.b16 %v5491, %v5487
  %v5540 = vpack.c.b16 %v5492, %v5488
  %v5541 = vpack.c.b16 %v5497, %v5493
  %v5542 = vpack.c.b16 %v5498, %v5494
  %v5543 = vpack.c.b16 %v5499, %v5495
  %v5544 = vpack.c.b16 %v5500, %v5496
  %v5545 = vpack.c.b16 %v5505, %v5501
  %v5546 = vpack.c.b16 %v5506, %v5502
  %v5547 = vpack.c.b16 %v5507, %v5503
  %v5548 = vpack.c.b16 %v5508, %v5504
  %v5549 = vpack.c.b16 %v5513, %v5509
  %v5550 = vpack.c.b16 %v5514, %v5510
  %v5551 = vpack.c.b16 %v5515, %v5511
  %v5552 = vpack.c.b16 %v5516, %v5512
  %v5553 = vpack.c.b16 %v5521, %v5517
  %v5554 = vpack.c.b16 %v5522, %v5518
  %v5555 = vpack.c.b16 %v5523, %v5519
  %v5556 = vpack.c.b16 %v5524, %v5520
  %5589 = vmatprep.subr.bf16.mxu0 %v5526
  %5590 = vmatpush1.bf16.msra.mxu0 %v5525
  %5591 = vmatprep.subr.bf16.mxu0 %v5530
  %5592 = vmatpush1.bf16.msra.mxu0 %v5529
  %5593 = vmatprep.subr.bf16.mxu0 %v5534
  %5594 = vmatpush1.bf16.msra.mxu0 %v5533
  %5595 = vmatprep.subr.bf16.mxu0 %v5538
  %5596 = vmatpush1.bf16.msra.mxu0 %v5537
  %5597 = vmatprep.subr.bf16.mxu0 %v5542
  %5598 = vmatpush1.bf16.msra.mxu0 %v5541
  %5599 = vmatprep.subr.bf16.mxu0 %v5546
  %5600 = vmatpush1.bf16.msra.mxu0 %v5545
  %5601 = vmatprep.subr.bf16.mxu0 %v5550
  %5602 = vmatpush1.bf16.msra.mxu0 %v5549
  %5603 = vmatprep.subr.bf16.mxu0 %v5554
  %5604 = vmatpush1.bf16.msra.mxu0 %v5553
  %5605 = vmatprep.subr.bf16.mxu0 0
  %5606 = vmatpush1.bf16.msra.mxu0 0
  %5607 = vmatprep.subr.bf16.mxu0 0
  %5608 = vmatpush1.bf16.msra.mxu0 0
  %5609 = vmatprep.subr.bf16.mxu0 0
  %5610 = vmatpush1.bf16.msra.mxu0 0
  %5611 = vmatprep.subr.bf16.mxu0 0
  %5612 = vmatpush1.bf16.msra.mxu0 0
  %5613 = vmatprep.subr.bf16.mxu0 0
  %5614 = vmatpush1.bf16.msra.mxu0 0
  %5615 = vmatprep.subr.bf16.mxu0 0
  %5616 = vmatpush1.bf16.msra.mxu0 0
  %5617 = vmatprep.subr.bf16.mxu0 0
  %5618 = vmatpush1.bf16.msra.mxu0 0
  %5619 = vmatprep.subr.bf16.mxu0 0
  %5620 = vmatpush1.bf16.msra.mxu0 0
  %5621 = vmatprep.mubr.bf16.mxu0 0
  %5622 = vmatmul.mubr.bf16.gmra.mrb[0].mxu0 %v5396
  %v5623 = vpop.f32.mrb[0].mxu0
  %v5624 = vadd.f32 0.0, %v5623
  %v5625 = vpop.f32.mrb[0].mxu0
  %v5626 = vadd.f32 0.0, %v5625
  %v5627 = vpop.f32.mrb[0].mxu0
  %v5628 = vpop.f32.mrb[0].mxu0
  %5629 = vdwg.mxu0
  %5630 = vmatprep.subr.bf16.mxu0 %v5528
  %5631 = vmatpush1.bf16.msra.mxu0 %v5527
  %5632 = vmatprep.subr.bf16.mxu0 %v5532
  %5633 = vmatpush1.bf16.msra.mxu0 %v5531
  %5634 = vmatprep.subr.bf16.mxu0 %v5536
  %5635 = vmatpush1.bf16.msra.mxu0 %v5535
  %5636 = vmatprep.subr.bf16.mxu0 %v5540
  %5637 = vmatpush1.bf16.msra.mxu0 %v5539
  %5638 = vmatprep.subr.bf16.mxu0 %v5544
  %5639 = vmatpush1.bf16.msra.mxu0 %v5543
  %5640 = vmatprep.subr.bf16.mxu0 %v5548
  %5641 = vmatpush1.bf16.msra.mxu0 %v5547
  %5642 = vmatprep.subr.bf16.mxu0 %v5552
  %5643 = vmatpush1.bf16.msra.mxu0 %v5551
  %5644 = vmatprep.subr.bf16.mxu0 %v5556
  %5645 = vmatpush1.bf16.msra.mxu0 %v5555
  %5646 = vmatprep.subr.bf16.mxu0 0
  %5647 = vmatpush1.bf16.msra.mxu0 0
  %5648 = vmatprep.subr.bf16.mxu0 0
  %5649 = vmatpush1.bf16.msra.mxu0 0
  %5650 = vmatprep.subr.bf16.mxu0 0
  %5651 = vmatpush1.bf16.msra.mxu0 0
  %5652 = vmatprep.subr.bf16.mxu0 0
  %5653 = vmatpush1.bf16.msra.mxu0 0
  %5654 = vmatprep.subr.bf16.mxu0 0
  %5655 = vmatpush1.bf16.msra.mxu0 0
  %5656 = vmatprep.subr.bf16.mxu0 0
  %5657 = vmatpush1.bf16.msra.mxu0 0
  %5658 = vmatprep.subr.bf16.mxu0 0
  %5659 = vmatpush1.bf16.msra.mxu0 0
  %5660 = vmatprep.subr.bf16.mxu0 0
  %5661 = vmatpush1.bf16.msra.mxu0 0
  %5662 = vmatprep.mubr.bf16.mxu0 0
  %5663 = vmatmul.mubr.bf16.gmra.mrb[0].mxu0 %v5396
  %v5664 = vpop.f32.mrb[0].mxu0
  %v5665 = vadd.f32 0.0, %v5664
  %v5666 = vpop.f32.mrb[0].mxu0
  %v5667 = vadd.f32 0.0, %v5666
  %v5668 = vpop.f32.mrb[0].mxu0
  %v5669 = vpop.f32.mrb[0].mxu0
  %5670 = vdwg.mxu0
  %v5671 = vadd.f32 %v5392, %v5624
  %v5672 = vadd.f32 %v5393, %v5626
  %v5673 = vadd.f32 %v5394, %v5665
  %v5674 = vadd.f32 %v5395, %v5667
  %v5675 = vxor.u32 %v5671, 2147483648
  %v5676 = vmul.f32 %v5675, 1.442695
  %v5677 = vpow.pop %v5676
  %v5678 = vadd.f32 %v5677, 1.0
  %v5679 = vrcp.pop %v5678
  %v5680 = vmul.f32 1.0, %v5679
  %v5681 = vxor.u32 %v5672, 2147483648
  %v5682 = vmul.f32 %v5681, 1.442695
  %v5683 = vpow.pop %v5682
  %v5684 = vadd.f32 %v5683, 1.0
  %v5685 = vrcp.pop %v5684
  %v5686 = vmul.f32 1.0, %v5685
  %v5687 = vtanh.pop %v5673
  %v5688 = vxor.u32 %v5674, 2147483648
  %v5689 = vmul.f32 %v5688, 1.442695
  %v5690 = vpow.pop %v5689
  %v5691 = vadd.f32 %v5690, 1.0
  %v5692 = vrcp.pop %v5691
  %v5693 = vmul.f32 1.0, %v5692
  %v5694 = vld [vmem:[%s3752] sm:$0xff]
  %v5695 = vmul.f32 %v5686, %v5694
  %v5696 = vmul.f32 %v5680, %v5687
  %v5697 = vadd.f32 %v5695, %v5696
  %v5698 = vtanh.pop %v5697
  %v5699 = vmul.f32 %v5693, %v5698
  %5700 = vst [vmem:[%s3752] sm:$0xff] %v5697
  %v5701 = vpack.c.bf16 %v5699, %v5699
  %5702 = vst [vmem:[%s3452] sm:$0xf] %v5701
  %5703 = vst [vmem:[#allocation5 + $0x18] sm:$0xf] %v5701
  %v5704 = vld [vmem:[#allocation4 + $0x60] sm:$0xf0]
  %v5705 = vld [vmem:[#allocation4 + $0x68] sm:$0xf0]
  %v5706 = vld [vmem:[#allocation4 + $0x70] sm:$0xf0]
  %v5707 = vld [vmem:[#allocation4 + $0x78] sm:$0xf0]
  %v5712 = vrot.slane %v5704, 4
  %v5713 = vrot.slane %v5705, 4
  %v5714 = vrot.slane %v5706, 4
  %v5715 = vrot.slane %v5707, 4
  %v5720 = vunpack.c.l.bf16 %v5712
  %v5721 = vunpack.c.l.bf16 %v5713
  %v5722 = vunpack.c.l.bf16 %v5714
  %v5723 = vunpack.c.l.bf16 %v5715
  %v5724 = vld [vmem:[%s3452] sm:$0xf]
  %v5725 = vld [vmem:[%s3454] sm:$0xff]
  %v5726 = vld [vmem:[%s3454 + $0x8] sm:$0xff]
  %v5727 = vld [vmem:[%s3454 + $0x10] sm:$0xff]
  %v5728 = vld [vmem:[%s3454 + $0x18] sm:$0xff]
  %v5729 = vld [vmem:[%s3454 + $0x20] sm:$0xff]
  %v5730 = vld [vmem:[%s3454 + $0x28] sm:$0xff]
  %v5731 = vld [vmem:[%s3454 + $0x30] sm:$0xff]
  %v5732 = vld [vmem:[%s3454 + $0x38] sm:$0xff]
  %v5733 = vld [vmem:[%s3454 + $0x40] sm:$0xff]
  %v5734 = vld [vmem:[%s3454 + $0x48] sm:$0xff]
  %v5735 = vld [vmem:[%s3454 + $0x50] sm:$0xff]
  %v5736 = vld [vmem:[%s3454 + $0x58] sm:$0xff]
  %v5737 = vld [vmem:[%s3454 + $0x60] sm:$0xff]
  %v5738 = vld [vmem:[%s3454 + $0x68] sm:$0xff]
  %v5739 = vld [vmem:[%s3454 + $0x70] sm:$0xff]
  %v5740 = vld [vmem:[%s3454 + $0x78] sm:$0xff]
  %v5741 = vld [vmem:[%s3454 + $0x80] sm:$0xff]
  %v5742 = vld [vmem:[%s3454 + $0x88] sm:$0xff]
  %v5743 = vld [vmem:[%s3454 + $0x90] sm:$0xff]
  %v5744 = vld [vmem:[%s3454 + $0x98] sm:$0xff]
  %v5745 = vld [vmem:[%s3454 + $0xa0] sm:$0xff]
  %v5746 = vld [vmem:[%s3454 + $0xa8] sm:$0xff]
  %v5747 = vld [vmem:[%s3454 + $0xb0] sm:$0xff]
  %v5748 = vld [vmem:[%s3454 + $0xb8] sm:$0xff]
  %v5749 = vld [vmem:[%s3454 + $0xc0] sm:$0xff]
  %v5750 = vld [vmem:[%s3454 + $0xc8] sm:$0xff]
  %v5751 = vld [vmem:[%s3454 + $0xd0] sm:$0xff]
  %v5752 = vld [vmem:[%s3454 + $0xd8] sm:$0xff]
  %v5753 = vld [vmem:[%s3454 + $0xe0] sm:$0xff]
  %v5754 = vld [vmem:[%s3454 + $0xe8] sm:$0xff]
  %v5755 = vld [vmem:[%s3454 + $0xf0] sm:$0xff]
  %v5756 = vld [vmem:[%s3454 + $0xf8] sm:$0xff]
  %v5789 = vunpack.c.l.b16 %v5725
  %v5790 = vunpack.c.h.b16 %v5725
  %v5791 = vunpack.c.l.b16 %v5726
  %v5792 = vunpack.c.h.b16 %v5726
  %v5793 = vunpack.c.l.b16 %v5727
  %v5794 = vunpack.c.h.b16 %v5727
  %v5795 = vunpack.c.l.b16 %v5728
  %v5796 = vunpack.c.h.b16 %v5728
  %v5797 = vunpack.c.l.b16 %v5729
  %v5798 = vunpack.c.h.b16 %v5729
  %v5799 = vunpack.c.l.b16 %v5730
  %v5800 = vunpack.c.h.b16 %v5730
  %v5801 = vunpack.c.l.b16 %v5731
  %v5802 = vunpack.c.h.b16 %v5731
  %v5803 = vunpack.c.l.b16 %v5732
  %v5804 = vunpack.c.h.b16 %v5732
  %v5805 = vunpack.c.l.b16 %v5733
  %v5806 = vunpack.c.h.b16 %v5733
  %v5807 = vunpack.c.l.b16 %v5734
  %v5808 = vunpack.c.h.b16 %v5734
  %v5809 = vunpack.c.l.b16 %v5735
  %v5810 = vunpack.c.h.b16 %v5735
  %v5811 = vunpack.c.l.b16 %v5736
  %v5812 = vunpack.c.h.b16 %v5736
  %v5813 = vunpack.c.l.b16 %v5737
  %v5814 = vunpack.c.h.b16 %v5737
  %v5815 = vunpack.c.l.b16 %v5738
  %v5816 = vunpack.c.h.b16 %v5738
  %v5817 = vunpack.c.l.b16 %v5739
  %v5818 = vunpack.c.h.b16 %v5739
  %v5819 = vunpack.c.l.b16 %v5740
  %v5820 = vunpack.c.h.b16 %v5740
  %v5821 = vunpack.c.l.b16 %v5741
  %v5822 = vunpack.c.h.b16 %v5741
  %v5823 = vunpack.c.l.b16 %v5742
  %v5824 = vunpack.c.h.b16 %v5742
  %v5825 = vunpack.c.l.b16 %v5743
  %v5826 = vunpack.c.h.b16 %v5743
  %v5827 = vunpack.c.l.b16 %v5744
  %v5828 = vunpack.c.h.b16 %v5744
  %v5829 = vunpack.c.l.b16 %v5745
  %v5830 = vunpack.c.h.b16 %v5745
  %v5831 = vunpack.c.l.b16 %v5746
  %v5832 = vunpack.c.h.b16 %v5746
  %v5833 = vunpack.c.l.b16 %v5747
  %v5834 = vunpack.c.h.b16 %v5747
  %v5835 = vunpack.c.l.b16 %v5748
  %v5836 = vunpack.c.h.b16 %v5748
  %v5837 = vunpack.c.l.b16 %v5749
  %v5838 = vunpack.c.h.b16 %v5749
  %v5839 = vunpack.c.l.b16 %v5750
  %v5840 = vunpack.c.h.b16 %v5750
  %v5841 = vunpack.c.l.b16 %v5751
  %v5842 = vunpack.c.h.b16 %v5751
  %v5843 = vunpack.c.l.b16 %v5752
  %v5844 = vunpack.c.h.b16 %v5752
  %v5845 = vunpack.c.l.b16 %v5753
  %v5846 = vunpack.c.h.b16 %v5753
  %v5847 = vunpack.c.l.b16 %v5754
  %v5848 = vunpack.c.h.b16 %v5754
  %v5849 = vunpack.c.l.b16 %v5755
  %v5850 = vunpack.c.h.b16 %v5755
  %v5851 = vunpack.c.l.b16 %v5756
  %v5852 = vunpack.c.h.b16 %v5756
  %v5853 = vpack.c.b16 %v5793, %v5789
  %v5854 = vpack.c.b16 %v5794, %v5790
  %v5855 = vpack.c.b16 %v5795, %v5791
  %v5856 = vpack.c.b16 %v5796, %v5792
  %v5857 = vpack.c.b16 %v5801, %v5797
  %v5858 = vpack.c.b16 %v5802, %v5798
  %v5859 = vpack.c.b16 %v5803, %v5799
  %v5860 = vpack.c.b16 %v5804, %v5800
  %v5861 = vpack.c.b16 %v5809, %v5805
  %v5862 = vpack.c.b16 %v5810, %v5806
  %v5863 = vpack.c.b16 %v5811, %v5807
  %v5864 = vpack.c.b16 %v5812, %v5808
  %v5865 = vpack.c.b16 %v5817, %v5813
  %v5866 = vpack.c.b16 %v5818, %v5814
  %v5867 = vpack.c.b16 %v5819, %v5815
  %v5868 = vpack.c.b16 %v5820, %v5816
  %v5869 = vpack.c.b16 %v5825, %v5821
  %v5870 = vpack.c.b16 %v5826, %v5822
  %v5871 = vpack.c.b16 %v5827, %v5823
  %v5872 = vpack.c.b16 %v5828, %v5824
  %v5873 = vpack.c.b16 %v5833, %v5829
  %v5874 = vpack.c.b16 %v5834, %v5830
  %v5875 = vpack.c.b16 %v5835, %v5831
  %v5876 = vpack.c.b16 %v5836, %v5832
  %v5877 = vpack.c.b16 %v5841, %v5837
  %v5878 = vpack.c.b16 %v5842, %v5838
  %v5879 = vpack.c.b16 %v5843, %v5839
  %v5880 = vpack.c.b16 %v5844, %v5840
  %v5881 = vpack.c.b16 %v5849, %v5845
  %v5882 = vpack.c.b16 %v5850, %v5846
  %v5883 = vpack.c.b16 %v5851, %v5847
  %v5884 = vpack.c.b16 %v5852, %v5848
  %5917 = vmatprep.subr.bf16.mxu0 %v5854
  %5918 = vmatpush1.bf16.msra.mxu0 %v5853
  %5919 = vmatprep.subr.bf16.mxu0 %v5858
  %5920 = vmatpush1.bf16.msra.mxu0 %v5857
  %5921 = vmatprep.subr.bf16.mxu0 %v5862
  %5922 = vmatpush1.bf16.msra.mxu0 %v5861
  %5923 = vmatprep.subr.bf16.mxu0 %v5866
  %5924 = vmatpush1.bf16.msra.mxu0 %v5865
  %5925 = vmatprep.subr.bf16.mxu0 %v5870
  %5926 = vmatpush1.bf16.msra.mxu0 %v5869
  %5927 = vmatprep.subr.bf16.mxu0 %v5874
  %5928 = vmatpush1.bf16.msra.mxu0 %v5873
  %5929 = vmatprep.subr.bf16.mxu0 %v5878
  %5930 = vmatpush1.bf16.msra.mxu0 %v5877
  %5931 = vmatprep.subr.bf16.mxu0 %v5882
  %5932 = vmatpush1.bf16.msra.mxu0 %v5881
  %5933 = vmatprep.subr.bf16.mxu0 0
  %5934 = vmatpush1.bf16.msra.mxu0 0
  %5935 = vmatprep.subr.bf16.mxu0 0
  %5936 = vmatpush1.bf16.msra.mxu0 0
  %5937 = vmatprep.subr.bf16.mxu0 0
  %5938 = vmatpush1.bf16.msra.mxu0 0
  %5939 = vmatprep.subr.bf16.mxu0 0
  %5940 = vmatpush1.bf16.msra.mxu0 0
  %5941 = vmatprep.subr.bf16.mxu0 0
  %5942 = vmatpush1.bf16.msra.mxu0 0
  %5943 = vmatprep.subr.bf16.mxu0 0
  %5944 = vmatpush1.bf16.msra.mxu0 0
  %5945 = vmatprep.subr.bf16.mxu0 0
  %5946 = vmatpush1.bf16.msra.mxu0 0
  %5947 = vmatprep.subr.bf16.mxu0 0
  %5948 = vmatpush1.bf16.msra.mxu0 0
  %5949 = vmatprep.mubr.bf16.mxu0 0
  %5950 = vmatmul.mubr.bf16.gmra.mrb[0].mxu0 %v5724
  %v5951 = vpop.f32.mrb[0].mxu0
  %v5952 = vadd.f32 0.0, %v5951
  %v5953 = vpop.f32.mrb[0].mxu0
  %v5954 = vadd.f32 0.0, %v5953
  %v5955 = vpop.f32.mrb[0].mxu0
  %v5956 = vpop.f32.mrb[0].mxu0
  %5957 = vdwg.mxu0
  %5958 = vmatprep.subr.bf16.mxu0 %v5856
  %5959 = vmatpush1.bf16.msra.mxu0 %v5855
  %5960 = vmatprep.subr.bf16.mxu0 %v5860
  %5961 = vmatpush1.bf16.msra.mxu0 %v5859
  %5962 = vmatprep.subr.bf16.mxu0 %v5864
  %5963 = vmatpush1.bf16.msra.mxu0 %v5863
  %5964 = vmatprep.subr.bf16.mxu0 %v5868
  %5965 = vmatpush1.bf16.msra.mxu0 %v5867
  %5966 = vmatprep.subr.bf16.mxu0 %v5872
  %5967 = vmatpush1.bf16.msra.mxu0 %v5871
  %5968 = vmatprep.subr.bf16.mxu0 %v5876
  %5969 = vmatpush1.bf16.msra.mxu0 %v5875
  %5970 = vmatprep.subr.bf16.mxu0 %v5880
  %5971 = vmatpush1.bf16.msra.mxu0 %v5879
  %5972 = vmatprep.subr.bf16.mxu0 %v5884
  %5973 = vmatpush1.bf16.msra.mxu0 %v5883
  %5974 = vmatprep.subr.bf16.mxu0 0
  %5975 = vmatpush1.bf16.msra.mxu0 0
  %5976 = vmatprep.subr.bf16.mxu0 0
  %5977 = vmatpush1.bf16.msra.mxu0 0
  %5978 = vmatprep.subr.bf16.mxu0 0
  %5979 = vmatpush1.bf16.msra.mxu0 0
  %5980 = vmatprep.subr.bf16.mxu0 0
  %5981 = vmatpush1.bf16.msra.mxu0 0
  %5982 = vmatprep.subr.bf16.mxu0 0
  %5983 = vmatpush1.bf16.msra.mxu0 0
  %5984 = vmatprep.subr.bf16.mxu0 0
  %5985 = vmatpush1.bf16.msra.mxu0 0
  %5986 = vmatprep.subr.bf16.mxu0 0
  %5987 = vmatpush1.bf16.msra.mxu0 0
  %5988 = vmatprep.subr.bf16.mxu0 0
  %5989 = vmatpush1.bf16.msra.mxu0 0
  %5990 = vmatprep.mubr.bf16.mxu0 0
  %5991 = vmatmul.mubr.bf16.gmra.mrb[0].mxu0 %v5724
  %v5992 = vpop.f32.mrb[0].mxu0
  %v5993 = vadd.f32 0.0, %v5992
  %v5994 = vpop.f32.mrb[0].mxu0
  %v5995 = vadd.f32 0.0, %v5994
  %v5996 = vpop.f32.mrb[0].mxu0
  %v5997 = vpop.f32.mrb[0].mxu0
  %5998 = vdwg.mxu0
  %v5999 = vadd.f32 %v5720, %v5952
  %v6000 = vadd.f32 %v5721, %v5954
  %v6001 = vadd.f32 %v5722, %v5993
  %v6002 = vadd.f32 %v5723, %v5995
  %v6003 = vxor.u32 %v5999, 2147483648
  %v6004 = vmul.f32 %v6003, 1.442695
  %v6005 = vpow.pop %v6004
  %v6006 = vadd.f32 %v6005, 1.0
  %v6007 = vrcp.pop %v6006
  %v6008 = vmul.f32 1.0, %v6007
  %v6009 = vxor.u32 %v6000, 2147483648
  %v6010 = vmul.f32 %v6009, 1.442695
  %v6011 = vpow.pop %v6010
  %v6012 = vadd.f32 %v6011, 1.0
  %v6013 = vrcp.pop %v6012
  %v6014 = vmul.f32 1.0, %v6013
  %v6015 = vtanh.pop %v6001
  %v6016 = vxor.u32 %v6002, 2147483648
  %v6017 = vmul.f32 %v6016, 1.442695
  %v6018 = vpow.pop %v6017
  %v6019 = vadd.f32 %v6018, 1.0
  %v6020 = vrcp.pop %v6019
  %v6021 = vmul.f32 1.0, %v6020
  %v6022 = vld [vmem:[%s3752] sm:$0xff]
  %v6023 = vmul.f32 %v6014, %v6022
  %v6024 = vmul.f32 %v6008, %v6015
  %v6025 = vadd.f32 %v6023, %v6024
  %v6026 = vtanh.pop %v6025
  %v6027 = vmul.f32 %v6021, %v6026
  %6028 = vst [vmem:[%s3752] sm:$0xff] %v6025
  %v6029 = vpack.c.bf16 %v6027, %v6027
  %6030 = vst [vmem:[%s3452] sm:$0xf] %v6029
  %v6032 = vrot.slane %v6029, 4
  %6034 = vst [vmem:[#allocation5 + $0x18] sm:$0xf0] %v6032
  %v6035 = vld [vmem:[#allocation5] sm:$0xff]
  %v6036 = vld [vmem:[#allocation5 + $0x8] sm:$0xff]
  %v6037 = vld [vmem:[#allocation5 + $0x10] sm:$0xff]
  %v6038 = vld [vmem:[#allocation5 + $0x18] sm:$0xff]
  %v6039 = vld [vmem:[%s5] sm:$0xf]
  %v6040 = vld [vmem:[%s5 + $0x4] sm:$0xf]
  %v6041 = vld [vmem:[%s5 + $0x8] sm:$0xf]
  %v6042 = vld [vmem:[%s5 + $0xc] sm:$0xf]
  %v6043 = vld [vmem:[%s5 + $0x10] sm:$0xf]
  %v6044 = vld [vmem:[%s5 + $0x14] sm:$0xf]
  %v6045 = vld [vmem:[%s5 + $0x18] sm:$0xf]
  %v6046 = vld [vmem:[%s5 + $0x1c] sm:$0xf]
  %v6047 = vld [vmem:[%s5 + $0x20] sm:$0xf]
  %v6048 = vld [vmem:[%s5 + $0x24] sm:$0xf]
  %v6049 = vld [vmem:[%s5 + $0x28] sm:$0xf]
  %v6050 = vld [vmem:[%s5 + $0x2c] sm:$0xf]
  %v6051 = vld [vmem:[%s5 + $0x30] sm:$0xf]
  %v6052 = vld [vmem:[%s5 + $0x34] sm:$0xf]
  %v6053 = vld [vmem:[%s5 + $0x38] sm:$0xf]
  %v6054 = vld [vmem:[%s5 + $0x3c] sm:$0xf]
  %v6055 = vld [vmem:[%s6] sm:$0x1]
  %v6057 = vlaneseq
  %v6058 = vshrl.u32 %v6057, 7
  %v6059 = vsub.s32 0, %v6058
  %v6060 = vrot.slane %v6055, %v6059
  %v6078 = vunpack.c.l.b16 %v6039
  %v6079 = vunpack.c.l.b16 %v6040
  %v6080 = vunpack.c.l.b16 %v6041
  %v6081 = vunpack.c.l.b16 %v6042
  %v6082 = vunpack.c.l.b16 %v6043
  %v6083 = vunpack.c.l.b16 %v6044
  %v6084 = vunpack.c.l.b16 %v6045
  %v6085 = vunpack.c.l.b16 %v6046
  %v6086 = vunpack.c.l.b16 %v6047
  %v6087 = vunpack.c.l.b16 %v6048
  %v6088 = vunpack.c.l.b16 %v6049
  %v6089 = vunpack.c.l.b16 %v6050
  %v6090 = vunpack.c.l.b16 %v6051
  %v6091 = vunpack.c.l.b16 %v6052
  %v6092 = vunpack.c.l.b16 %v6053
  %v6093 = vunpack.c.l.b16 %v6054
  %v6094 = vpack.c.b16 %v6079, %v6078
  %v6095 = vpack.c.b16 %v6081, %v6080
  %v6096 = vpack.c.b16 %v6083, %v6082
  %v6097 = vpack.c.b16 %v6085, %v6084
  %v6098 = vpack.c.b16 %v6087, %v6086
  %v6099 = vpack.c.b16 %v6089, %v6088
  %v6100 = vpack.c.b16 %v6091, %v6090
  %v6101 = vpack.c.b16 %v6093, %v6092
  %6110 = vmatprep.subr.bf16.mxu0 0
  %6111 = vmatpush1.bf16.msra.mxu0 %v6094
  %6112 = vmatprep.subr.bf16.mxu0 0
  %6113 = vmatpush1.bf16.msra.mxu0 %v6095
  %6114 = vmatprep.subr.bf16.mxu0 0
  %6115 = vmatpush1.bf16.msra.mxu0 %v6096
  %6116 = vmatprep.subr.bf16.mxu0 0
  %6117 = vmatpush1.bf16.msra.mxu0 %v6097
  %6118 = vmatprep.subr.bf16.mxu0 0
  %6119 = vmatpush1.bf16.msra.mxu0 %v6098
  %6120 = vmatprep.subr.bf16.mxu0 0
  %6121 = vmatpush1.bf16.msra.mxu0 %v6099
  %6122 = vmatprep.subr.bf16.mxu0 0
  %6123 = vmatpush1.bf16.msra.mxu0 %v6100
  %6124 = vmatprep.subr.bf16.mxu0 0
  %6125 = vmatpush1.bf16.msra.mxu0 %v6101
  %6126 = vmatprep.subr.bf16.mxu0 0
  %6127 = vmatpush1.bf16.msra.mxu0 0
  %6128 = vmatprep.subr.bf16.mxu0 0
  %6129 = vmatpush1.bf16.msra.mxu0 0
  %6130 = vmatprep.subr.bf16.mxu0 0
  %6131 = vmatpush1.bf16.msra.mxu0 0
  %6132 = vmatprep.subr.bf16.mxu0 0
  %6133 = vmatpush1.bf16.msra.mxu0 0
  %6134 = vmatprep.subr.bf16.mxu0 0
  %6135 = vmatpush1.bf16.msra.mxu0 0
  %6136 = vmatprep.subr.bf16.mxu0 0
  %6137 = vmatpush1.bf16.msra.mxu0 0
  %6138 = vmatprep.subr.bf16.mxu0 0
  %6139 = vmatpush1.bf16.msra.mxu0 0
  %6140 = vmatprep.subr.bf16.mxu0 0
  %6141 = vmatpush1.bf16.msra.mxu0 0
  %6142 = vmatprep.mubr.bf16.mxu0 0
  %6143 = vmatmul.mubr.bf16.gmra.mrb[0].mxu0 %v6035
  %v6144 = vpop.f32.mrb[0].mxu0
  %v6145 = vadd.f32 %v6060, %v6144
  %v6146 = vpop.f32.mrb[0].mxu0
  %v6147 = vpop.f32.mrb[0].mxu0
  %v6148 = vadd.f32 %v6060, %v6147
  %v6149 = vpop.f32.mrb[0].mxu0
  %6150 = vmatprep.mubr.bf16.mxu0 0
  %6151 = vmatmul.mubr.bf16.gmra.mrb[0].mxu0 %v6036
  %v6152 = vpop.f32.mrb[0].mxu0
  %v6153 = vadd.f32 %v6060, %v6152
  %v6154 = vpop.f32.mrb[0].mxu0
  %v6155 = vpop.f32.mrb[0].mxu0
  %v6156 = vadd.f32 %v6060, %v6155
  %v6157 = vpop.f32.mrb[0].mxu0
  %6158 = vmatprep.mubr.bf16.mxu0 0
  %6159 = vmatmul.mubr.bf16.gmra.mrb[0].mxu0 %v6037
  %v6160 = vpop.f32.mrb[0].mxu0
  %v6161 = vadd.f32 %v6060, %v6160
  %v6162 = vpop.f32.mrb[0].mxu0
  %v6163 = vpop.f32.mrb[0].mxu0
  %v6164 = vadd.f32 %v6060, %v6163
  %v6165 = vpop.f32.mrb[0].mxu0
  %6166 = vmatprep.mubr.bf16.mxu0 0
  %6167 = vmatmul.mubr.bf16.gmra.mrb[0].mxu0 %v6038
  %v6168 = vpop.f32.mrb[0].mxu0
  %v6169 = vadd.f32 %v6060, %v6168
  %v6170 = vpop.f32.mrb[0].mxu0
  %v6171 = vpop.f32.mrb[0].mxu0
  %v6172 = vadd.f32 %v6060, %v6171
  %v6173 = vpop.f32.mrb[0].mxu0
  %6174 = vdwg.mxu0
  %6175 = vst [vmem:[%s7] sm:$0xff] %v6145
  %6176 = vst [vmem:[%s7 + $0x8] sm:$0xff] %v6148
  %6177 = vst [vmem:[%s7 + $0x10] sm:$0xff] %v6153
  %6178 = vst [vmem:[%s7 + $0x18] sm:$0xff] %v6156
  %6179 = vst [vmem:[%s7 + $0x20] sm:$0xff] %v6161
  %6180 = vst [vmem:[%s7 + $0x28] sm:$0xff] %v6164
  %6181 = vst [vmem:[%s7 + $0x30] sm:$0xff] %v6169
  %6182 = vst [vmem:[%s7 + $0x38] sm:$0xff] %v6172
  // Predicated region
  $region34: #{lstm_preference_model.1} parent=0 // pred_check
    _
  $region35: #{lstm_preference_model.1} parent=0 // pred_check_branch
    %6184 = sbr.rel (0) target = $region37
  $region36: #{lstm_preference_model.1} parent=0 // pred_region
    _
  $region37: #{lstm_preference_model.1} parent=0 // pred_fallthru
    _
  // Predicated region
  $region38: #{lstm_preference_model.1} parent=0 // pred_check
    _
  $region39: #{lstm_preference_model.1} parent=0 // pred_check_branch
    %6186 = sbr.rel (0) target = $region41
  $region40: #{lstm_preference_model.1} parent=0 // pred_region
    _
  $region41: #{lstm_preference_model.1} parent=0 // pred_fallthru
    _

</llo_original>
